<compile_context>
chip_gen: v5e
topology: v5e:2x2
jax: 0.10.0
libtpu: 0.0.40
codegen_flags: <defaults>
</compile_context>

<pallas_src>
import jax
import jax.numpy as jnp
from jax import lax
from jax.experimental import pallas as pl
from jax.experimental.pallas import tpu as pltpu

BN_EPS = 1e-5
_VMEM_LIMIT = 48 * 1024 * 1024  # headroom under v7x's 64 MiB physical VMEM


def _cparams(n_axes):
    return pltpu.CompilerParams(
        dimension_semantics=("parallel",) * n_axes,
        vmem_limit_bytes=_VMEM_LIMIT,
    )


def _pick_tile_h(hy, wy):
    """Even divisor of the upsampled height; ~4096 output rows per tile."""
    cap = min(max(2, hy // 2), max(2, 4096 // max(wy, 1)), hy)
    for cand in range(cap, 1, -1):
        if hy % cand == 0 and cand % 2 == 0:
            return cand
    return 2  # hy = 2*H is always even


# ---------------------------------------------------------------------------
# Kernels
# ---------------------------------------------------------------------------
def _upsample_kernel(x_ref, w_ref, b_ref, o_ref):
    """ConvTranspose2d(k=2, s=2) for one (batch, row-tile) grid point.

    x_ref : (1, TH, W, Cin)         bf16 input rows
    w_ref : (2, Cin, 2*Cout)        bf16 weights, w[di, c, dj*Cout + o]
    b_ref : (1, 2*Cout)             f32  bias tiled over dj
    o_ref : (1, 2*TH, W, 2*Cout)    bf16; the full output (N, 2H, W, 2*Cout)
            reinterprets for free (row-major) as (N, 2H, 2W, Cout).
    """
    th, w, cin = x_ref.shape[1], x_ref.shape[2], x_ref.shape[3]
    c2 = w_ref.shape[2]
    x2 = x_ref[...].reshape(th * w, cin)
    b = b_ref[...]
    y0 = jnp.dot(x2, w_ref[0], preferred_element_type=jnp.float32) + b
    y1 = jnp.dot(x2, w_ref[1], preferred_element_type=jnp.float32) + b
    # Interleave di along rows: (th, 2, w, c2) -> (2*th, w, c2) is row-major.
    y = jnp.concatenate(
        [y0.reshape(th, 1, w, c2), y1.reshape(th, 1, w, c2)], axis=1)
    o_ref[...] = y.reshape(1, 2 * th, w, c2).astype(o_ref.dtype)


def _conv_dual_kernel(y_ref, s_ref, wy_ref, ws_ref, b_ref, z_ref, ps_ref, pq_ref):
    """3x3 'SAME' conv over concat([y, skip]) expressed as a K-split, plus
    bias and per-tile BatchNorm partial sums (train-mode stats).

    y_ref, s_ref : (1, Hy+2, Wy+2, C)  bf16 zero-padded activations (resident per image)
    wy_ref,ws_ref: (9, C, Co)          bf16 per-tap weights (tap = ki*3 + kj)
    b_ref        : (1, Co)             f32  conv bias
    z_ref        : (1, TH, Wy, Co)     f32  raw conv output tile
    ps_ref,pq_ref: (1, 1, 1, Co)       f32  per-tile sum / sum-of-squares
    """
    th, wy, co = z_ref.shape[1], z_ref.shape[2], z_ref.shape[3]
    cy, cs = y_ref.shape[3], s_ref.shape[3]
    r0 = pl.program_id(1) * th

    acc = jnp.zeros((th * wy, co), jnp.float32)
    for ki in range(3):
        for kj in range(3):
            t = ki * 3 + kj
            ywin = y_ref[0, pl.ds(r0 + ki, th), pl.ds(kj, wy), :].reshape(th * wy, cy)
            swin = s_ref[0, pl.ds(r0 + ki, th), pl.ds(kj, wy), :].reshape(th * wy, cs)
            acc = acc + jnp.dot(ywin, wy_ref[t], preferred_element_type=jnp.float32)
            acc = acc + jnp.dot(swin, ws_ref[t], preferred_element_type=jnp.float32)
    acc = acc + b_ref[...]

    z_ref[...] = acc.reshape(1, th, wy, co)
    ps_ref[...] = jnp.sum(acc, axis=0, keepdims=True).reshape(1, 1, 1, co)
    pq_ref[...] = jnp.sum(acc * acc, axis=0, keepdims=True).reshape(1, 1, 1, co)


def _bnrelu_conv_kernel(z1_ref, w_ref, b_ref, sc_ref, sh_ref, z2_ref, ps_ref, pq_ref):
    """Fused: BatchNorm1+ReLU of the *raw* first-conv output (read on-chip),
    then 3x3 conv + bias, plus per-tile BatchNorm2 partial sums.

    z1_ref : (1, Hy+2, Wy+2, C1) f32 raw conv1 output, zero-padded, resident
    w_ref  : (9, C1, C2) bf16 ; b_ref: (1, C2) f32
    sc_ref, sh_ref : (1, C1) f32 folded BN1 scale/shift
    """
    th, wy, c2 = z2_ref.shape[1], z2_ref.shape[2], z2_ref.shape[3]
    c1 = z1_ref.shape[3]
    hp, wp = z1_ref.shape[1], z1_ref.shape[2]
    r0 = pl.program_id(1) * th

    raw = z1_ref[0, pl.ds(r0, th + 2), :, :]                 # (TH+2, Wp, C1) f32
    act = jnp.maximum(raw * sc_ref[...] + sh_ref[...], 0.0)  # BN1 + ReLU in f32
    # Mask the padded border: raw zeros there would not map to zero activation.
    rows = lax.broadcasted_iota(jnp.int32, (th + 2, wp, 1), 0) + r0
    cols = lax.broadcasted_iota(jnp.int32, (th + 2, wp, 1), 1)
    interior = (rows > 0) & (rows < hp - 1) & (cols > 0) & (cols < wp - 1)
    act = jnp.where(interior, act, 0.0).astype(jnp.bfloat16)

    acc = jnp.zeros((th * wy, c2), jnp.float32)
    for ki in range(3):
        for kj in range(3):
            t = ki * 3 + kj
            win = act[ki:ki + th, kj:kj + wy, :].reshape(th * wy, c1)
            acc = acc + jnp.dot(win, w_ref[t], preferred_element_type=jnp.float32)
    acc = acc + b_ref[...]

    z2_ref[...] = acc.reshape(1, th, wy, c2)
    ps_ref[...] = jnp.sum(acc, axis=0, keepdims=True).reshape(1, 1, 1, c2)
    pq_ref[...] = jnp.sum(acc * acc, axis=0, keepdims=True).reshape(1, 1, 1, c2)


def _bn_relu_kernel(z_ref, sc_ref, sh_ref, o_ref):
    """Final BatchNorm2 (folded scale/shift) + ReLU, elementwise per tile."""
    o_ref[...] = jnp.maximum(z_ref[...] * sc_ref[...] + sh_ref[...], 0.0)


# ---------------------------------------------------------------------------
# pallas_call wrappers
# ---------------------------------------------------------------------------
def _upsample(x_bf16, up_w, up_b, tile_hx):
    """ConvTranspose2d(k=2, s=2); returns (N, 2H, 2W, Cout) bf16 (free reshape)."""
    n, h, w, cin = x_bf16.shape
    cout = up_w.shape[1]
    # (Cin, Cout, di, dj) -> (di, Cin, dj*Cout + o)
    wmat = jnp.transpose(up_w, (2, 0, 3, 1)).reshape(2, cin, 2 * cout)
    wmat = wmat.astype(jnp.bfloat16)
    brow = jnp.tile(up_b.astype(jnp.float32), 2)[None, :]          # (1, 2*Cout)
    n_i = h // tile_hx
    y4 = pl.pallas_call(
        _upsample_kernel,
        grid=(n, n_i),
        in_specs=[
            pl.BlockSpec((1, tile_hx, w, cin), lambda b, i: (b, i, 0, 0)),
            pl.BlockSpec((2, cin, 2 * cout), lambda b, i: (0, 0, 0)),
            pl.BlockSpec((1, 2 * cout), lambda b, i: (0, 0)),
        ],
        out_specs=pl.BlockSpec((1, 2 * tile_hx, w, 2 * cout),
                               lambda b, i: (b, i, 0, 0)),
        out_shape=jax.ShapeDtypeStruct((n, 2 * h, w, 2 * cout), jnp.bfloat16),
        compiler_params=_cparams(2),
        cost_estimate=pl.CostEstimate(
            flops=2 * n * h * w * cin * 4 * cout,
            transcendentals=0,
            bytes_accessed=x_bf16.size * 2 + n * h * w * 4 * cout * 2),
    )(x_bf16, wmat, brow)
    # (N, 2H, W, 2*Cout) -> (N, 2H, 2W, Cout): pure row-major reinterpretation.
    return y4.reshape(n, 2 * h, 2 * w, cout)


def _conv1(y_pad, s_pad, w_y, w_s, bias, tile_h):
    n, hp, wp, cy = y_pad.shape
    cs = s_pad.shape[3]
    co = w_y.shape[2]
    hy, wy = hp - 2, wp - 2
    n_i = hy // tile_h
    return pl.pallas_call(
        _conv_dual_kernel,
        grid=(n, n_i),
        in_specs=[
            pl.BlockSpec((1, hp, wp, cy), lambda b, i: (b, 0, 0, 0)),
            pl.BlockSpec((1, hp, wp, cs), lambda b, i: (b, 0, 0, 0)),
            pl.BlockSpec((9, cy, co), lambda b, i: (0, 0, 0)),
            pl.BlockSpec((9, cs, co), lambda b, i: (0, 0, 0)),
            pl.BlockSpec((1, co), lambda b, i: (0, 0)),
        ],
        out_specs=(
            pl.BlockSpec((1, tile_h, wy, co), lambda b, i: (b, i, 0, 0)),
            pl.BlockSpec((1, 1, 1, co), lambda b, i: (b, i, 0, 0)),
            pl.BlockSpec((1, 1, 1, co), lambda b, i: (b, i, 0, 0)),
        ),
        out_shape=(
            jax.ShapeDtypeStruct((n, hy, wy, co), jnp.float32),
            jax.ShapeDtypeStruct((n, n_i, 1, co), jnp.float32),
            jax.ShapeDtypeStruct((n, n_i, 1, co), jnp.float32),
        ),
        compiler_params=_cparams(2),
        cost_estimate=pl.CostEstimate(
            flops=2 * n * hy * wy * 9 * (cy + cs) * co,
            transcendentals=0,
            bytes_accessed=(y_pad.size + s_pad.size) * 2 + n * hy * wy * co * 4),
    )(y_pad, s_pad, w_y, w_s, bias)


def _conv2(z1_pad, w2, bias, scale1, shift1, tile_h):
    n, hp, wp, c1 = z1_pad.shape
    c2 = w2.shape[2]
    hy, wy = hp - 2, wp - 2
    n_i = hy // tile_h
    return pl.pallas_call(
        _bnrelu_conv_kernel,
        grid=(n, n_i),
        in_specs=[
            pl.BlockSpec((1, hp, wp, c1), lambda b, i: (b, 0, 0, 0)),
            pl.BlockSpec((9, c1, c2), lambda b, i: (0, 0, 0)),
            pl.BlockSpec((1, c2), lambda b, i: (0, 0)),
            pl.BlockSpec((1, c1), lambda b, i: (0, 0)),
            pl.BlockSpec((1, c1), lambda b, i: (0, 0)),
        ],
        out_specs=(
            pl.BlockSpec((1, tile_h, wy, c2), lambda b, i: (b, i, 0, 0)),
            pl.BlockSpec((1, 1, 1, c2), lambda b, i: (b, i, 0, 0)),
            pl.BlockSpec((1, 1, 1, c2), lambda b, i: (b, i, 0, 0)),
        ),
        out_shape=(
            jax.ShapeDtypeStruct((n, hy, wy, c2), jnp.float32),
            jax.ShapeDtypeStruct((n, n_i, 1, c2), jnp.float32),
            jax.ShapeDtypeStruct((n, n_i, 1, c2), jnp.float32),
        ),
        compiler_params=_cparams(2),
        cost_estimate=pl.CostEstimate(
            flops=2 * n * hy * wy * 9 * c1 * c2,
            transcendentals=0,
            bytes_accessed=z1_pad.size * 4 + n * hy * wy * c2 * 4),
    )(z1_pad, w2, bias, scale1, shift1)


def _bn_relu(z, scale, shift, tile_h):
    n, hy, wy, c = z.shape
    n_i = hy // tile_h
    return pl.pallas_call(
        _bn_relu_kernel,
        grid=(n, n_i),
        in_specs=[
            pl.BlockSpec((1, tile_h, wy, c), lambda b, i: (b, i, 0, 0)),
            pl.BlockSpec((1, c), lambda b, i: (0, 0)),
            pl.BlockSpec((1, c), lambda b, i: (0, 0)),
        ],
        out_specs=pl.BlockSpec((1, tile_h, wy, c), lambda b, i: (b, i, 0, 0)),
        out_shape=jax.ShapeDtypeStruct((n, hy, wy, c), jnp.float32),
        compiler_params=_cparams(2),
    )(z, scale, shift)


def _bn_finalize(psum, psq, count, gamma, beta):
    """Fold global batch stats (biased variance) into per-channel scale/shift."""
    s = jnp.sum(psum, axis=(0, 1, 2))
    sq = jnp.sum(psq, axis=(0, 1, 2))
    mean = s / count
    var = jnp.maximum(sq / count - mean * mean, 0.0)
    rstd = lax.rsqrt(var + BN_EPS)
    scale = (gamma * rstd).astype(jnp.float32)
    shift = (beta - mean * scale).astype(jnp.float32)
    return scale[None, :], shift[None, :]


# ---------------------------------------------------------------------------
# UpSample forward (NCHW in / NCHW out, like the PyTorch module)
# ---------------------------------------------------------------------------
@jax.jit
def upsample_forward(x_nchw, skip_nchw, params):
    f32, bf16 = jnp.float32, jnp.bfloat16
    x = jnp.transpose(x_nchw, (0, 2, 3, 1)).astype(bf16)          # (N, H, W, Cin)
    skip = jnp.transpose(skip_nchw, (0, 2, 3, 1)).astype(bf16)    # (N, 2H, 2W, Cout)
    n, h, w, _ = x.shape
    cout = params["up_w"].shape[1]
    hy, wy = 2 * h, 2 * w
    tile_h = _pick_tile_h(hy, wy)

    # 1) ConvTranspose2d(k=2, s=2); pixel shuffle folded into the layout.
    y = _upsample(x, params["up_w"], params["up_b"], tile_h // 2)  # (N, 2H, 2W, Cout) bf16

    # 2) First Conv3x3: concat is expressed as a K-split (y-part / skip-part).
    y_pad = jnp.pad(y, ((0, 0), (1, 1), (1, 1), (0, 0)))
    s_pad = jnp.pad(skip, ((0, 0), (1, 1), (1, 1), (0, 0)))
    w1 = jnp.transpose(params["c1_w"], (2, 3, 1, 0)).reshape(9, 2 * cout, cout)
    w1 = w1.astype(bf16)
    b1 = params["c1_b"].astype(f32)[None, :]
    z1, ps1, pq1 = _conv1(y_pad, s_pad, w1[:, :cout, :], w1[:, cout:, :], b1, tile_h)
    sc1, sh1 = _bn_finalize(ps1, pq1, n * hy * wy, params["bn1_g"], params["bn1_b"])

    # 3) Second Conv3x3 with BN1 + ReLU fused into its on-chip input read.
    z1_pad = jnp.pad(z1, ((0, 0), (1, 1), (1, 1), (0, 0)))
    w2 = jnp.transpose(params["c2_w"], (2, 3, 1, 0)).reshape(9, cout, cout).astype(bf16)
    b2 = params["c2_b"].astype(f32)[None, :]
    z2, ps2, pq2 = _conv2(z1_pad, w2, b2, sc1, sh1, tile_h)
    sc2, sh2 = _bn_finalize(ps2, pq2, n * hy * wy, params["bn2_g"], params["bn2_b"])

    # 4) Final BatchNorm + ReLU.
    out = _bn_relu(z2, sc2, sh2, tile_h)
    return jnp.transpose(out, (0, 3, 1, 2))                        # back to NCHW


# ---------------------------------------------------------------------------
# Pure-JAX reference (same bf16 operand rounding, f32 accumulation)
# ---------------------------------------------------------------------------
def reference_forward(x_nchw, skip_nchw, p):
    hi = lax.Precision.HIGHEST
    f32 = jnp.float32
    b16 = lambda t: t.astype(jnp.bfloat16).astype(f32)   # MXU operand rounding

    x = b16(jnp.transpose(x_nchw, (0, 2, 3, 1)))
    skip = b16(jnp.transpose(skip_nchw, (0, 2, 3, 1)))
    n, h, w, _ = x.shape
    cout = p["up_w"].shape[1]

    y = jnp.einsum("nhwc,cofg->nhfwgo", x, b16(p["up_w"]), precision=hi)
    y = y.reshape(n, 2 * h, 2 * w, cout) + p["up_b"].astype(f32)
    y = b16(y)                                            # kernel stores y in bf16
    z = jnp.concatenate([y, skip], axis=-1)

    def conv3(inp, wt, b):
        wh = jnp.transpose(b16(wt), (2, 3, 1, 0))          # HWIO
        o = lax.conv_general_dilated(
            inp, wh, (1, 1), "SAME",
            dimension_numbers=("NHWC", "HWIO", "NHWC"), precision=hi)
        return o + b.astype(f32)

    def bn_relu(o, g, bt):
        m = jnp.mean(o, axis=(0, 1, 2))
        v = jnp.var(o, axis=(0, 1, 2))
        return jnp.maximum((o - m) * lax.rsqrt(v + BN_EPS) * g + bt, 0.0)

    z1 = conv3(z, p["c1_w"], p["c1_b"])
    a1 = b16(bn_relu(z1, p["bn1_g"], p["bn1_b"]))          # kernel feeds conv2 in bf16
    z2 = conv3(a1, p["c2_w"], p["c2_b"])
    a2 = bn_relu(z2, p["bn2_g"], p["bn2_b"])
    return jnp.transpose(a2, (0, 3, 1, 2))


# ---------------------------------------------------------------------------
def init_params(key, in_channels, out_channels):
    ks = jax.random.split(key, 10)
    cat = out_channels + out_channels
    norm = lambda k, s, sc=0.1: (sc * jax.random.normal(k, s)).astype(jnp.float32)
    return {
        # ConvTranspose2d(in, out, k=2, s=2): weight (Cin, Cout, 2, 2)
        "up_w": norm(ks[0], (in_channels, out_channels, 2, 2)),
        "up_b": norm(ks[1], (out_channels,)),
        # Conv2d(cat, out, 3) + BN
        "c1_w": norm(ks[2], (out_channels, cat, 3, 3)),
        "c1_b": norm(ks[3], (out_channels,)),
        "bn1_g": 1.0 + norm(ks[4], (out_channels,)),
        "bn1_b": norm(ks[5], (out_channels,)),
        # Conv2d(out, out, 3) + BN
        "c2_w": norm(ks[6], (out_channels, out_channels, 3, 3)),
        "c2_b": norm(ks[7], (out_channels,)),
        "bn2_g": 1.0 + norm(ks[8], (out_channels,)),
        "bn2_b": norm(ks[9], (out_channels,)),
    }


if __name__ == "__main__":
    key = jax.random.PRNGKey(0)
    k_x, k_s, k_p = jax.random.split(key, 3)

    in_channels, out_channels = 4, 8
    N, H, W = 2, 8, 8
    x = jax.random.normal(k_x, (N, in_channels, H, W), jnp.float32)          # NCHW
    skip = jax.random.normal(k_s, (N, out_channels, 2 * H, 2 * W), jnp.float32)
    params = init_params(k_p, in_channels, out_channels)

    out = jax.block_until_ready(upsample_forward(x, skip, params))
    assert out.shape == (N, out_channels, 2 * H, 2 * W), out.shape

    ref = jax.block_until_ready(reference_forward(x, skip, params))
    err = float(jnp.max(jnp.abs(out - ref)))
    assert err < 1e-2, f"max abs error {err}"

    print("KERNEL_OK")
</pallas_src>

<mosaic_0001>
module attributes {stable_mosaic.version = 11 : i64} {
  func.func @_upsample_kernel(%arg0: i32, %arg1: i32, %arg2: memref<1x4x8x4xbf16, #tpu.memory_space<vmem>>, %arg3: memref<2x4x16xbf16, #tpu.memory_space<vmem>>, %arg4: memref<1x16xf32, #tpu.memory_space<vmem>>, %arg5: memref<1x8x8x16xbf16, #tpu.memory_space<vmem>>) attributes {dimension_semantics = [#tpu.dimension_semantics<parallel>, #tpu.dimension_semantics<parallel>], iteration_bounds = array<i64: 2, 2>, scalar_prefetch = 0 : i64, scratch_operands = 0 : i64, tpu.core_type = #tpu.core_type<tc>, window_params = [{transform_indices = @transform_0, window_bounds = array<i64: 1, 4, 8, 4>}, {pipeline_mode = #tpu.pipeline_mode<synchronous>, transform_indices = @transform_1, window_bounds = array<i64: 2, 4, 16>}, {pipeline_mode = #tpu.pipeline_mode<synchronous>, transform_indices = @transform_2, window_bounds = array<i64: 1, 16>}, {transform_indices = @transform_3, window_bounds = array<i64: 1, 8, 8, 16>}]} {
    %c0 = arith.constant 0 : index
    %c0_0 = arith.constant 0 : index
    %c0_1 = arith.constant 0 : index
    %c0_2 = arith.constant 0 : index
    %0 = vector.load %arg2[%c0, %c0_0, %c0_1, %c0_2] : memref<1x4x8x4xbf16, #tpu.memory_space<vmem>>, vector<1x4x8x4xbf16>
    %1 = vector.shape_cast %0 : vector<1x4x8x4xbf16> to vector<32x4xbf16>
    %c0_3 = arith.constant 0 : index
    %c0_4 = arith.constant 0 : index
    %2 = vector.load %arg4[%c0_3, %c0_4] : memref<1x16xf32, #tpu.memory_space<vmem>>, vector<1x16xf32>
    %c0_5 = arith.constant 0 : index
    %c0_6 = arith.constant 0 : index
    %c0_7 = arith.constant 0 : index
    %3 = vector.load %arg3[%c0_5, %c0_6, %c0_7] : memref<2x4x16xbf16, #tpu.memory_space<vmem>>, vector<1x4x16xbf16>
    %4 = vector.shape_cast %3 : vector<1x4x16xbf16> to vector<4x16xbf16>
    %cst = arith.constant dense<0.000000e+00> : vector<32x16xf32>
    %5 = tpu.matmul %1, %4, %cst {dimension_numbers = #tpu.dot_dimension_numbers<[1], [0], [0], [1], [0, 0, 1, 1], [], []>} : vector<32x4xbf16>, vector<4x16xbf16>, vector<32x16xf32> -> vector<32x16xf32>
    %6 = vector.broadcast %2 : vector<1x16xf32> to vector<32x16xf32>
    %7 = arith.addf %5, %6 : vector<32x16xf32>
    %c1 = arith.constant 1 : index
    %c0_8 = arith.constant 0 : index
    %c0_9 = arith.constant 0 : index
    %8 = vector.load %arg3[%c1, %c0_8, %c0_9] : memref<2x4x16xbf16, #tpu.memory_space<vmem>>, vector<1x4x16xbf16>
    %9 = vector.shape_cast %8 : vector<1x4x16xbf16> to vector<4x16xbf16>
    %cst_10 = arith.constant dense<0.000000e+00> : vector<32x16xf32>
    %10 = tpu.matmul %1, %9, %cst_10 {dimension_numbers = #tpu.dot_dimension_numbers<[1], [0], [0], [1], [0, 0, 1, 1], [], []>} : vector<32x4xbf16>, vector<4x16xbf16>, vector<32x16xf32> -> vector<32x16xf32>
    %11 = vector.broadcast %2 : vector<1x16xf32> to vector<32x16xf32>
    %12 = arith.addf %10, %11 : vector<32x16xf32>
    %13 = vector.shape_cast %7 : vector<32x16xf32> to vector<4x1x8x16xf32>
    %14 = vector.shape_cast %12 : vector<32x16xf32> to vector<4x1x8x16xf32>
    %15 = tpu.concatenate %13, %14 in 1 : vector<4x1x8x16xf32>, vector<4x1x8x16xf32> -> vector<4x2x8x16xf32>
    %16 = vector.shape_cast %15 : vector<4x2x8x16xf32> to vector<1x8x8x16xf32>
    %17 = arith.truncf %16 : vector<1x8x8x16xf32> to vector<1x8x8x16xbf16>
    %c0_11 = arith.constant 0 : index
    %c0_12 = arith.constant 0 : index
    %c0_13 = arith.constant 0 : index
    %c0_14 = arith.constant 0 : index
    %18 = vector.load %arg5[%c0_11, %c0_12, %c0_13, %c0_14] : memref<1x8x8x16xbf16, #tpu.memory_space<vmem>>, vector<1x8x8x16xbf16>
    tpu.vector_store %arg5[%c0_11, %c0_12, %c0_13, %c0_14], %17 {strides = array<i32>} : memref<1x8x8x16xbf16, #tpu.memory_space<vmem>>, vector<1x8x8x16xbf16>,
    return
  }
  func.func @transform_0(%arg0: i32, %arg1: i32) -> (i32, i32, i32, i32) {
    %c0_i32 = arith.constant 0 : i32
    %c0_i32_0 = arith.constant 0 : i32
    %c0_i32_1 = arith.constant 0 : i32
    return %arg0, %arg1, %c0_i32, %c0_i32_0 : i32, i32, i32, i32
  }
  func.func @transform_1(%arg0: i32, %arg1: i32) -> (i32, i32, i32) {
    %c0_i32 = arith.constant 0 : i32
    %c0_i32_0 = arith.constant 0 : i32
    %c0_i32_1 = arith.constant 0 : i32
    %c0_i32_2 = arith.constant 0 : i32
    return %c0_i32, %c0_i32_0, %c0_i32_1 : i32, i32, i32
  }
  func.func @transform_2(%arg0: i32, %arg1: i32) -> (i32, i32) {
    %c0_i32 = arith.constant 0 : i32
    %c0_i32_0 = arith.constant 0 : i32
    %c0_i32_1 = arith.constant 0 : i32
    return %c0_i32, %c0_i32_0 : i32, i32
  }
  func.func @transform_3(%arg0: i32, %arg1: i32) -> (i32, i32, i32, i32) {
    %c0_i32 = arith.constant 0 : i32
    %c0_i32_0 = arith.constant 0 : i32
    %c0_i32_1 = arith.constant 0 : i32
    return %arg0, %arg1, %c0_i32, %c0_i32_0 : i32, i32, i32, i32
  }
}

module attributes {stable_mosaic.version = 11 : i64} {
  func.func @_conv_dual_kernel(%arg0: i32, %arg1: i32, %arg2: memref<1x18x18x8xbf16, #tpu.memory_space<vmem>>, %arg3: memref<1x18x18x8xbf16, #tpu.memory_space<vmem>>, %arg4: memref<9x8x8xbf16, #tpu.memory_space<vmem>>, %arg5: memref<9x8x8xbf16, #tpu.memory_space<vmem>>, %arg6: memref<1x8xf32, #tpu.memory_space<vmem>>, %arg7: memref<1x8x16x8xf32, #tpu.memory_space<vmem>>, %arg8: memref<1x1x1x8xf32, #tpu.memory_space<vmem>>, %arg9: memref<1x1x1x8xf32, #tpu.memory_space<vmem>>) attributes {dimension_semantics = [#tpu.dimension_semantics<parallel>, #tpu.dimension_semantics<parallel>], iteration_bounds = array<i64: 2, 2>, scalar_prefetch = 0 : i64, scratch_operands = 0 : i64, tpu.core_type = #tpu.core_type<tc>, window_params = [{transform_indices = @transform_0, window_bounds = array<i64: 1, 18, 18, 8>}, {transform_indices = @transform_1, window_bounds = array<i64: 1, 18, 18, 8>}, {pipeline_mode = #tpu.pipeline_mode<synchronous>, transform_indices = @transform_2, window_bounds = array<i64: 9, 8, 8>}, {pipeline_mode = #tpu.pipeline_mode<synchronous>, transform_indices = @transform_3, window_bounds = array<i64: 9, 8, 8>}, {pipeline_mode = #tpu.pipeline_mode<synchronous>, transform_indices = @transform_4, window_bounds = array<i64: 1, 8>}, {transform_indices = @transform_5, window_bounds = array<i64: 1, 8, 16, 8>}, {transform_indices = @transform_6, window_bounds = array<i64: 1, 1, 1, 8>}, {transform_indices = @transform_7, window_bounds = array<i64: 1, 1, 1, 8>}]} {
    %c8_i32 = arith.constant 8 : i32
    %0 = arith.muli %arg1, %c8_i32 : i32
    %cst = arith.constant 0.000000e+00 : f32
    %1 = vector.broadcast %cst : f32 to vector<128x8xf32>
    %c0_i32 = arith.constant 0 : i32
    %2 = arith.addi %0, %c0_i32 : i32
    %c0 = arith.constant 0 : index
    %3 = arith.index_cast %2 : i32 to index
    %c0_0 = arith.constant 0 : index
    %c0_1 = arith.constant 0 : index
    %4 = vector.load %arg2[%c0, %3, %c0_0, %c0_1] : memref<1x18x18x8xbf16, #tpu.memory_space<vmem>>, vector<1x8x16x8xbf16>
    %5 = vector.shape_cast %4 : vector<1x8x16x8xbf16> to vector<8x16x8xbf16>
    %6 = vector.shape_cast %5 : vector<8x16x8xbf16> to vector<128x8xbf16>
    %c0_i32_2 = arith.constant 0 : i32
    %7 = arith.addi %0, %c0_i32_2 : i32
    %c0_3 = arith.constant 0 : index
    %8 = arith.index_cast %7 : i32 to index
    %c0_4 = arith.constant 0 : index
    %c0_5 = arith.constant 0 : index
    %9 = vector.load %arg3[%c0_3, %8, %c0_4, %c0_5] : memref<1x18x18x8xbf16, #tpu.memory_space<vmem>>, vector<1x8x16x8xbf16>
    %10 = vector.shape_cast %9 : vector<1x8x16x8xbf16> to vector<8x16x8xbf16>
    %11 = vector.shape_cast %10 : vector<8x16x8xbf16> to vector<128x8xbf16>
    %c0_6 = arith.constant 0 : index
    %c0_7 = arith.constant 0 : index
    %c0_8 = arith.constant 0 : index
    %12 = vector.load %arg4[%c0_6, %c0_7, %c0_8] : memref<9x8x8xbf16, #tpu.memory_space<vmem>>, vector<1x8x8xbf16>
    %13 = vector.shape_cast %12 : vector<1x8x8xbf16> to vector<8x8xbf16>
    %cst_9 = arith.constant dense<0.000000e+00> : vector<128x8xf32>
    %14 = tpu.matmul %6, %13, %cst_9 {dimension_numbers = #tpu.dot_dimension_numbers<[1], [0], [0], [1], [0, 0, 1, 1], [], []>} : vector<128x8xbf16>, vector<8x8xbf16>, vector<128x8xf32> -> vector<128x8xf32>
    %15 = arith.addf %1, %14 : vector<128x8xf32>
    %c0_10 = arith.constant 0 : index
    %c0_11 = arith.constant 0 : index
    %c0_12 = arith.constant 0 : index
    %16 = vector.load %arg5[%c0_10, %c0_11, %c0_12] : memref<9x8x8xbf16, #tpu.memory_space<vmem>>, vector<1x8x8xbf16>
    %17 = vector.shape_cast %16 : vector<1x8x8xbf16> to vector<8x8xbf16>
    %cst_13 = arith.constant dense<0.000000e+00> : vector<128x8xf32>
    %18 = tpu.matmul %11, %17, %cst_13 {dimension_numbers = #tpu.dot_dimension_numbers<[1], [0], [0], [1], [0, 0, 1, 1], [], []>} : vector<128x8xbf16>, vector<8x8xbf16>, vector<128x8xf32> -> vector<128x8xf32>
    %19 = arith.addf %15, %18 : vector<128x8xf32>
    %c0_i32_14 = arith.constant 0 : i32
    %20 = arith.addi %0, %c0_i32_14 : i32
    %c0_15 = arith.constant 0 : index
    %21 = arith.index_cast %20 : i32 to index
    %c1 = arith.constant 1 : index
    %c0_16 = arith.constant 0 : index
    %22 = vector.load %arg2[%c0_15, %21, %c1, %c0_16] : memref<1x18x18x8xbf16, #tpu.memory_space<vmem>>, vector<1x8x16x8xbf16>
    %23 = vector.shape_cast %22 : vector<1x8x16x8xbf16> to vector<8x16x8xbf16>
    %24 = vector.shape_cast %23 : vector<8x16x8xbf16> to vector<128x8xbf16>
    %c0_i32_17 = arith.constant 0 : i32
    %25 = arith.addi %0, %c0_i32_17 : i32
    %c0_18 = arith.constant 0 : index
    %26 = arith.index_cast %25 : i32 to index
    %c1_19 = arith.constant 1 : index
    %c0_20 = arith.constant 0 : index
    %27 = vector.load %arg3[%c0_18, %26, %c1_19, %c0_20] : memref<1x18x18x8xbf16, #tpu.memory_space<vmem>>, vector<1x8x16x8xbf16>
    %28 = vector.shape_cast %27 : vector<1x8x16x8xbf16> to vector<8x16x8xbf16>
    %29 = vector.shape_cast %28 : vector<8x16x8xbf16> to vector<128x8xbf16>
    %c1_21 = arith.constant 1 : index
    %c0_22 = arith.constant 0 : index
    %c0_23 = arith.constant 0 : index
    %30 = vector.load %arg4[%c1_21, %c0_22, %c0_23] : memref<9x8x8xbf16, #tpu.memory_space<vmem>>, vector<1x8x8xbf16>
    %31 = vector.shape_cast %30 : vector<1x8x8xbf16> to vector<8x8xbf16>
    %cst_24 = arith.constant dense<0.000000e+00> : vector<128x8xf32>
    %32 = tpu.matmul %24, %31, %cst_24 {dimension_numbers = #tpu.dot_dimension_numbers<[1], [0], [0], [1], [0, 0, 1, 1], [], []>} : vector<128x8xbf16>, vector<8x8xbf16>, vector<128x8xf32> -> vector<128x8xf32>
    %33 = arith.addf %19, %32 : vector<128x8xf32>
    %c1_25 = arith.constant 1 : index
    %c0_26 = arith.constant 0 : index
    %c0_27 = arith.constant 0 : index
    %34 = vector.load %arg5[%c1_25, %c0_26, %c0_27] : memref<9x8x8xbf16, #tpu.memory_space<vmem>>, vector<1x8x8xbf16>
    %35 = vector.shape_cast %34 : vector<1x8x8xbf16> to vector<8x8xbf16>
    %cst_28 = arith.constant dense<0.000000e+00> : vector<128x8xf32>
    %36 = tpu.matmul %29, %35, %cst_28 {dimension_numbers = #tpu.dot_dimension_numbers<[1], [0], [0], [1], [0, 0, 1, 1], [], []>} : vector<128x8xbf16>, vector<8x8xbf16>, vector<128x8xf32> -> vector<128x8xf32>
    %37 = arith.addf %33, %36 : vector<128x8xf32>
    %c0_i32_29 = arith.constant 0 : i32
    %38 = arith.addi %0, %c0_i32_29 : i32
    %c0_30 = arith.constant 0 : index
    %39 = arith.index_cast %38 : i32 to index
    %c2 = arith.constant 2 : index
    %c0_31 = arith.constant 0 : index
    %40 = vector.load %arg2[%c0_30, %39, %c2, %c0_31] : memref<1x18x18x8xbf16, #tpu.memory_space<vmem>>, vector<1x8x16x8xbf16>
    %41 = vector.shape_cast %40 : vector<1x8x16x8xbf16> to vector<8x16x8xbf16>
    %42 = vector.shape_cast %41 : vector<8x16x8xbf16> to vector<128x8xbf16>
    %c0_i32_32 = arith.constant 0 : i32
    %43 = arith.addi %0, %c0_i32_32 : i32
    %c0_33 = arith.constant 0 : index
    %44 = arith.index_cast %43 : i32 to index
    %c2_34 = arith.constant 2 : index
    %c0_35 = arith.constant 0 : index
    %45 = vector.load %arg3[%c0_33, %44, %c2_34, %c0_35] : memref<1x18x18x8xbf16, #tpu.memory_space<vmem>>, vector<1x8x16x8xbf16>
    %46 = vector.shape_cast %45 : vector<1x8x16x8xbf16> to vector<8x16x8xbf16>
    %47 = vector.shape_cast %46 : vector<8x16x8xbf16> to vector<128x8xbf16>
    %c2_36 = arith.constant 2 : index
    %c0_37 = arith.constant 0 : index
    %c0_38 = arith.constant 0 : index
    %48 = vector.load %arg4[%c2_36, %c0_37, %c0_38] : memref<9x8x8xbf16, #tpu.memory_space<vmem>>, vector<1x8x8xbf16>
    %49 = vector.shape_cast %48 : vector<1x8x8xbf16> to vector<8x8xbf16>
    %cst_39 = arith.constant dense<0.000000e+00> : vector<128x8xf32>
    %50 = tpu.matmul %42, %49, %cst_39 {dimension_numbers = #tpu.dot_dimension_numbers<[1], [0], [0], [1], [0, 0, 1, 1], [], []>} : vector<128x8xbf16>, vector<8x8xbf16>, vector<128x8xf32> -> vector<128x8xf32>
    %51 = arith.addf %37, %50 : vector<128x8xf32>
    %c2_40 = arith.constant 2 : index
    %c0_41 = arith.constant 0 : index
    %c0_42 = arith.constant 0 : index
    %52 = vector.load %arg5[%c2_40, %c0_41, %c0_42] : memref<9x8x8xbf16, #tpu.memory_space<vmem>>, vector<1x8x8xbf16>
    %53 = vector.shape_cast %52 : vector<1x8x8xbf16> to vector<8x8xbf16>
    %cst_43 = arith.constant dense<0.000000e+00> : vector<128x8xf32>
    %54 = tpu.matmul %47, %53, %cst_43 {dimension_numbers = #tpu.dot_dimension_numbers<[1], [0], [0], [1], [0, 0, 1, 1], [], []>} : vector<128x8xbf16>, vector<8x8xbf16>, vector<128x8xf32> -> vector<128x8xf32>
    %55 = arith.addf %51, %54 : vector<128x8xf32>
    %c1_i32 = arith.constant 1 : i32
    %56 = arith.addi %0, %c1_i32 : i32
    %c0_44 = arith.constant 0 : index
    %57 = arith.index_cast %56 : i32 to index
    %c0_45 = arith.constant 0 : index
    %c0_46 = arith.constant 0 : index
    %58 = vector.load %arg2[%c0_44, %57, %c0_45, %c0_46] : memref<1x18x18x8xbf16, #tpu.memory_space<vmem>>, vector<1x8x16x8xbf16>
    %59 = vector.shape_cast %58 : vector<1x8x16x8xbf16> to vector<8x16x8xbf16>
    %60 = vector.shape_cast %59 : vector<8x16x8xbf16> to vector<128x8xbf16>
    %c1_i32_47 = arith.constant 1 : i32
    %61 = arith.addi %0, %c1_i32_47 : i32
    %c0_48 = arith.constant 0 : index
    %62 = arith.index_cast %61 : i32 to index
    %c0_49 = arith.constant 0 : index
    %c0_50 = arith.constant 0 : index
    %63 = vector.load %arg3[%c0_48, %62, %c0_49, %c0_50] : memref<1x18x18x8xbf16, #tpu.memory_space<vmem>>, vector<1x8x16x8xbf16>
    %64 = vector.shape_cast %63 : vector<1x8x16x8xbf16> to vector<8x16x8xbf16>
    %65 = vector.shape_cast %64 : vector<8x16x8xbf16> to vector<128x8xbf16>
    %c3 = arith.constant 3 : index
    %c0_51 = arith.constant 0 : index
    %c0_52 = arith.constant 0 : index
    %66 = vector.load %arg4[%c3, %c0_51, %c0_52] : memref<9x8x8xbf16, #tpu.memory_space<vmem>>, vector<1x8x8xbf16>
    %67 = vector.shape_cast %66 : vector<1x8x8xbf16> to vector<8x8xbf16>
    %cst_53 = arith.constant dense<0.000000e+00> : vector<128x8xf32>
    %68 = tpu.matmul %60, %67, %cst_53 {dimension_numbers = #tpu.dot_dimension_numbers<[1], [0], [0], [1], [0, 0, 1, 1], [], []>} : vector<128x8xbf16>, vector<8x8xbf16>, vector<128x8xf32> -> vector<128x8xf32>
    %69 = arith.addf %55, %68 : vector<128x8xf32>
    %c3_54 = arith.constant 3 : index
    %c0_55 = arith.constant 0 : index
    %c0_56 = arith.constant 0 : index
    %70 = vector.load %arg5[%c3_54, %c0_55, %c0_56] : memref<9x8x8xbf16, #tpu.memory_space<vmem>>, vector<1x8x8xbf16>
    %71 = vector.shape_cast %70 : vector<1x8x8xbf16> to vector<8x8xbf16>
    %cst_57 = arith.constant dense<0.000000e+00> : vector<128x8xf32>
    %72 = tpu.matmul %65, %71, %cst_57 {dimension_numbers = #tpu.dot_dimension_numbers<[1], [0], [0], [1], [0, 0, 1, 1], [], []>} : vector<128x8xbf16>, vector<8x8xbf16>, vector<128x8xf32> -> vector<128x8xf32>
    %73 = arith.addf %69, %72 : vector<128x8xf32>
    %c1_i32_58 = arith.constant 1 : i32
    %74 = arith.addi %0, %c1_i32_58 : i32
    %c0_59 = arith.constant 0 : index
    %75 = arith.index_cast %74 : i32 to index
    %c1_60 = arith.constant 1 : index
    %c0_61 = arith.constant 0 : index
    %76 = vector.load %arg2[%c0_59, %75, %c1_60, %c0_61] : memref<1x18x18x8xbf16, #tpu.memory_space<vmem>>, vector<1x8x16x8xbf16>
    %77 = vector.shape_cast %76 : vector<1x8x16x8xbf16> to vector<8x16x8xbf16>
    %78 = vector.shape_cast %77 : vector<8x16x8xbf16> to vector<128x8xbf16>
    %c1_i32_62 = arith.constant 1 : i32
    %79 = arith.addi %0, %c1_i32_62 : i32
    %c0_63 = arith.constant 0 : index
    %80 = arith.index_cast %79 : i32 to index
    %c1_64 = arith.constant 1 : index
    %c0_65 = arith.constant 0 : index
    %81 = vector.load %arg3[%c0_63, %80, %c1_64, %c0_65] : memref<1x18x18x8xbf16, #tpu.memory_space<vmem>>, vector<1x8x16x8xbf16>
    %82 = vector.shape_cast %81 : vector<1x8x16x8xbf16> to vector<8x16x8xbf16>
    %83 = vector.shape_cast %82 : vector<8x16x8xbf16> to vector<128x8xbf16>
    %c4 = arith.constant 4 : index
    %c0_66 = arith.constant 0 : index
    %c0_67 = arith.constant 0 : index
    %84 = vector.load %arg4[%c4, %c0_66, %c0_67] : memref<9x8x8xbf16, #tpu.memory_space<vmem>>, vector<1x8x8xbf16>
    %85 = vector.shape_cast %84 : vector<1x8x8xbf16> to vector<8x8xbf16>
    %cst_68 = arith.constant dense<0.000000e+00> : vector<128x8xf32>
    %86 = tpu.matmul %78, %85, %cst_68 {dimension_numbers = #tpu.dot_dimension_numbers<[1], [0], [0], [1], [0, 0, 1, 1], [], []>} : vector<128x8xbf16>, vector<8x8xbf16>, vector<128x8xf32> -> vector<128x8xf32>
    %87 = arith.addf %73, %86 : vector<128x8xf32>
    %c4_69 = arith.constant 4 : index
    %c0_70 = arith.constant 0 : index
    %c0_71 = arith.constant 0 : index
    %88 = vector.load %arg5[%c4_69, %c0_70, %c0_71] : memref<9x8x8xbf16, #tpu.memory_space<vmem>>, vector<1x8x8xbf16>
    %89 = vector.shape_cast %88 : vector<1x8x8xbf16> to vector<8x8xbf16>
    %cst_72 = arith.constant dense<0.000000e+00> : vector<128x8xf32>
    %90 = tpu.matmul %83, %89, %cst_72 {dimension_numbers = #tpu.dot_dimension_numbers<[1], [0], [0], [1], [0, 0, 1, 1], [], []>} : vector<128x8xbf16>, vector<8x8xbf16>, vector<128x8xf32> -> vector<128x8xf32>
    %91 = arith.addf %87, %90 : vector<128x8xf32>
    %c1_i32_73 = arith.constant 1 : i32
    %92 = arith.addi %0, %c1_i32_73 : i32
    %c0_74 = arith.constant 0 : index
    %93 = arith.index_cast %92 : i32 to index
    %c2_75 = arith.constant 2 : index
    %c0_76 = arith.constant 0 : index
    %94 = vector.load %arg2[%c0_74, %93, %c2_75, %c0_76] : memref<1x18x18x8xbf16, #tpu.memory_space<vmem>>, vector<1x8x16x8xbf16>
    %95 = vector.shape_cast %94 : vector<1x8x16x8xbf16> to vector<8x16x8xbf16>
    %96 = vector.shape_cast %95 : vector<8x16x8xbf16> to vector<128x8xbf16>
    %c1_i32_77 = arith.constant 1 : i32
    %97 = arith.addi %0, %c1_i32_77 : i32
    %c0_78 = arith.constant 0 : index
    %98 = arith.index_cast %97 : i32 to index
    %c2_79 = arith.constant 2 : index
    %c0_80 = arith.constant 0 : index
    %99 = vector.load %arg3[%c0_78, %98, %c2_79, %c0_80] : memref<1x18x18x8xbf16, #tpu.memory_space<vmem>>, vector<1x8x16x8xbf16>
    %100 = vector.shape_cast %99 : vector<1x8x16x8xbf16> to vector<8x16x8xbf16>
    %101 = vector.shape_cast %100 : vector<8x16x8xbf16> to vector<128x8xbf16>
    %c5 = arith.constant 5 : index
    %c0_81 = arith.constant 0 : index
    %c0_82 = arith.constant 0 : index
    %102 = vector.load %arg4[%c5, %c0_81, %c0_82] : memref<9x8x8xbf16, #tpu.memory_space<vmem>>, vector<1x8x8xbf16>
    %103 = vector.shape_cast %102 : vector<1x8x8xbf16> to vector<8x8xbf16>
    %cst_83 = arith.constant dense<0.000000e+00> : vector<128x8xf32>
    %104 = tpu.matmul %96, %103, %cst_83 {dimension_numbers = #tpu.dot_dimension_numbers<[1], [0], [0], [1], [0, 0, 1, 1], [], []>} : vector<128x8xbf16>, vector<8x8xbf16>, vector<128x8xf32> -> vector<128x8xf32>
    %105 = arith.addf %91, %104 : vector<128x8xf32>
    %c5_84 = arith.constant 5 : index
    %c0_85 = arith.constant 0 : index
    %c0_86 = arith.constant 0 : index
    %106 = vector.load %arg5[%c5_84, %c0_85, %c0_86] : memref<9x8x8xbf16, #tpu.memory_space<vmem>>, vector<1x8x8xbf16>
    %107 = vector.shape_cast %106 : vector<1x8x8xbf16> to vector<8x8xbf16>
    %cst_87 = arith.constant dense<0.000000e+00> : vector<128x8xf32>
    %108 = tpu.matmul %101, %107, %cst_87 {dimension_numbers = #tpu.dot_dimension_numbers<[1], [0], [0], [1], [0, 0, 1, 1], [], []>} : vector<128x8xbf16>, vector<8x8xbf16>, vector<128x8xf32> -> vector<128x8xf32>
    %109 = arith.addf %105, %108 : vector<128x8xf32>
    %c2_i32 = arith.constant 2 : i32
    %110 = arith.addi %0, %c2_i32 : i32
    %c0_88 = arith.constant 0 : index
    %111 = arith.index_cast %110 : i32 to index
    %c0_89 = arith.constant 0 : index
    %c0_90 = arith.constant 0 : index
    %112 = vector.load %arg2[%c0_88, %111, %c0_89, %c0_90] : memref<1x18x18x8xbf16, #tpu.memory_space<vmem>>, vector<1x8x16x8xbf16>
    %113 = vector.shape_cast %112 : vector<1x8x16x8xbf16> to vector<8x16x8xbf16>
    %114 = vector.shape_cast %113 : vector<8x16x8xbf16> to vector<128x8xbf16>
    %c2_i32_91 = arith.constant 2 : i32
    %115 = arith.addi %0, %c2_i32_91 : i32
    %c0_92 = arith.constant 0 : index
    %116 = arith.index_cast %115 : i32 to index
    %c0_93 = arith.constant 0 : index
    %c0_94 = arith.constant 0 : index
    %117 = vector.load %arg3[%c0_92, %116, %c0_93, %c0_94] : memref<1x18x18x8xbf16, #tpu.memory_space<vmem>>, vector<1x8x16x8xbf16>
    %118 = vector.shape_cast %117 : vector<1x8x16x8xbf16> to vector<8x16x8xbf16>
    %119 = vector.shape_cast %118 : vector<8x16x8xbf16> to vector<128x8xbf16>
    %c6 = arith.constant 6 : index
    %c0_95 = arith.constant 0 : index
    %c0_96 = arith.constant 0 : index
    %120 = vector.load %arg4[%c6, %c0_95, %c0_96] : memref<9x8x8xbf16, #tpu.memory_space<vmem>>, vector<1x8x8xbf16>
    %121 = vector.shape_cast %120 : vector<1x8x8xbf16> to vector<8x8xbf16>
    %cst_97 = arith.constant dense<0.000000e+00> : vector<128x8xf32>
    %122 = tpu.matmul %114, %121, %cst_97 {dimension_numbers = #tpu.dot_dimension_numbers<[1], [0], [0], [1], [0, 0, 1, 1], [], []>} : vector<128x8xbf16>, vector<8x8xbf16>, vector<128x8xf32> -> vector<128x8xf32>
    %123 = arith.addf %109, %122 : vector<128x8xf32>
    %c6_98 = arith.constant 6 : index
    %c0_99 = arith.constant 0 : index
    %c0_100 = arith.constant 0 : index
    %124 = vector.load %arg5[%c6_98, %c0_99, %c0_100] : memref<9x8x8xbf16, #tpu.memory_space<vmem>>, vector<1x8x8xbf16>
    %125 = vector.shape_cast %124 : vector<1x8x8xbf16> to vector<8x8xbf16>
    %cst_101 = arith.constant dense<0.000000e+00> : vector<128x8xf32>
    %126 = tpu.matmul %119, %125, %cst_101 {dimension_numbers = #tpu.dot_dimension_numbers<[1], [0], [0], [1], [0, 0, 1, 1], [], []>} : vector<128x8xbf16>, vector<8x8xbf16>, vector<128x8xf32> -> vector<128x8xf32>
    %127 = arith.addf %123, %126 : vector<128x8xf32>
    %c2_i32_102 = arith.constant 2 : i32
    %128 = arith.addi %0, %c2_i32_102 : i32
    %c0_103 = arith.constant 0 : index
    %129 = arith.index_cast %128 : i32 to index
    %c1_104 = arith.constant 1 : index
    %c0_105 = arith.constant 0 : index
    %130 = vector.load %arg2[%c0_103, %129, %c1_104, %c0_105] : memref<1x18x18x8xbf16, #tpu.memory_space<vmem>>, vector<1x8x16x8xbf16>
    %131 = vector.shape_cast %130 : vector<1x8x16x8xbf16> to vector<8x16x8xbf16>
    %132 = vector.shape_cast %131 : vector<8x16x8xbf16> to vector<128x8xbf16>
    %c2_i32_106 = arith.constant 2 : i32
    %133 = arith.addi %0, %c2_i32_106 : i32
    %c0_107 = arith.constant 0 : index
    %134 = arith.index_cast %133 : i32 to index
    %c1_108 = arith.constant 1 : index
    %c0_109 = arith.constant 0 : index
    %135 = vector.load %arg3[%c0_107, %134, %c1_108, %c0_109] : memref<1x18x18x8xbf16, #tpu.memory_space<vmem>>, vector<1x8x16x8xbf16>
    %136 = vector.shape_cast %135 : vector<1x8x16x8xbf16> to vector<8x16x8xbf16>
    %137 = vector.shape_cast %136 : vector<8x16x8xbf16> to vector<128x8xbf16>
    %c7 = arith.constant 7 : index
    %c0_110 = arith.constant 0 : index
    %c0_111 = arith.constant 0 : index
    %138 = vector.load %arg4[%c7, %c0_110, %c0_111] : memref<9x8x8xbf16, #tpu.memory_space<vmem>>, vector<1x8x8xbf16>
    %139 = vector.shape_cast %138 : vector<1x8x8xbf16> to vector<8x8xbf16>
    %cst_112 = arith.constant dense<0.000000e+00> : vector<128x8xf32>
    %140 = tpu.matmul %132, %139, %cst_112 {dimension_numbers = #tpu.dot_dimension_numbers<[1], [0], [0], [1], [0, 0, 1, 1], [], []>} : vector<128x8xbf16>, vector<8x8xbf16>, vector<128x8xf32> -> vector<128x8xf32>
    %141 = arith.addf %127, %140 : vector<128x8xf32>
    %c7_113 = arith.constant 7 : index
    %c0_114 = arith.constant 0 : index
    %c0_115 = arith.constant 0 : index
    %142 = vector.load %arg5[%c7_113, %c0_114, %c0_115] : memref<9x8x8xbf16, #tpu.memory_space<vmem>>, vector<1x8x8xbf16>
    %143 = vector.shape_cast %142 : vector<1x8x8xbf16> to vector<8x8xbf16>
    %cst_116 = arith.constant dense<0.000000e+00> : vector<128x8xf32>
    %144 = tpu.matmul %137, %143, %cst_116 {dimension_numbers = #tpu.dot_dimension_numbers<[1], [0], [0], [1], [0, 0, 1, 1], [], []>} : vector<128x8xbf16>, vector<8x8xbf16>, vector<128x8xf32> -> vector<128x8xf32>
    %145 = arith.addf %141, %144 : vector<128x8xf32>
    %c2_i32_117 = arith.constant 2 : i32
    %146 = arith.addi %0, %c2_i32_117 : i32
    %c0_118 = arith.constant 0 : index
    %147 = arith.index_cast %146 : i32 to index
    %c2_119 = arith.constant 2 : index
    %c0_120 = arith.constant 0 : index
    %148 = vector.load %arg2[%c0_118, %147, %c2_119, %c0_120] : memref<1x18x18x8xbf16, #tpu.memory_space<vmem>>, vector<1x8x16x8xbf16>
    %149 = vector.shape_cast %148 : vector<1x8x16x8xbf16> to vector<8x16x8xbf16>
    %150 = vector.shape_cast %149 : vector<8x16x8xbf16> to vector<128x8xbf16>
    %c2_i32_121 = arith.constant 2 : i32
    %151 = arith.addi %0, %c2_i32_121 : i32
    %c0_122 = arith.constant 0 : index
    %152 = arith.index_cast %151 : i32 to index
    %c2_123 = arith.constant 2 : index
    %c0_124 = arith.constant 0 : index
    %153 = vector.load %arg3[%c0_122, %152, %c2_123, %c0_124] : memref<1x18x18x8xbf16, #tpu.memory_space<vmem>>, vector<1x8x16x8xbf16>
    %154 = vector.shape_cast %153 : vector<1x8x16x8xbf16> to vector<8x16x8xbf16>
    %155 = vector.shape_cast %154 : vector<8x16x8xbf16> to vector<128x8xbf16>
    %c8 = arith.constant 8 : index
    %c0_125 = arith.constant 0 : index
    %c0_126 = arith.constant 0 : index
    %156 = vector.load %arg4[%c8, %c0_125, %c0_126] : memref<9x8x8xbf16, #tpu.memory_space<vmem>>, vector<1x8x8xbf16>
    %157 = vector.shape_cast %156 : vector<1x8x8xbf16> to vector<8x8xbf16>
    %cst_127 = arith.constant dense<0.000000e+00> : vector<128x8xf32>
    %158 = tpu.matmul %150, %157, %cst_127 {dimension_numbers = #tpu.dot_dimension_numbers<[1], [0], [0], [1], [0, 0, 1, 1], [], []>} : vector<128x8xbf16>, vector<8x8xbf16>, vector<128x8xf32> -> vector<128x8xf32>
    %159 = arith.addf %145, %158 : vector<128x8xf32>
    %c8_128 = arith.constant 8 : index
    %c0_129 = arith.constant 0 : index
    %c0_130 = arith.constant 0 : index
    %160 = vector.load %arg5[%c8_128, %c0_129, %c0_130] : memref<9x8x8xbf16, #tpu.memory_space<vmem>>, vector<1x8x8xbf16>
    %161 = vector.shape_cast %160 : vector<1x8x8xbf16> to vector<8x8xbf16>
    %cst_131 = arith.constant dense<0.000000e+00> : vector<128x8xf32>
    %162 = tpu.matmul %155, %161, %cst_131 {dimension_numbers = #tpu.dot_dimension_numbers<[1], [0], [0], [1], [0, 0, 1, 1], [], []>} : vector<128x8xbf16>, vector<8x8xbf16>, vector<128x8xf32> -> vector<128x8xf32>
    %163 = arith.addf %159, %162 : vector<128x8xf32>
    %c0_132 = arith.constant 0 : index
    %c0_133 = arith.constant 0 : index
    %164 = vector.load %arg6[%c0_132, %c0_133] : memref<1x8xf32, #tpu.memory_space<vmem>>, vector<1x8xf32>
    %165 = vector.broadcast %164 : vector<1x8xf32> to vector<128x8xf32>
    %166 = arith.addf %163, %165 : vector<128x8xf32>
    %167 = vector.shape_cast %166 : vector<128x8xf32> to vector<1x8x16x8xf32>
    %c0_134 = arith.constant 0 : index
    %c0_135 = arith.constant 0 : index
    %c0_136 = arith.constant 0 : index
    %c0_137 = arith.constant 0 : index
    %168 = vector.load %arg7[%c0_134, %c0_135, %c0_136, %c0_137] : memref<1x8x16x8xf32, #tpu.memory_space<vmem>>, vector<1x8x16x8xf32>
    tpu.vector_store %arg7[%c0_134, %c0_135, %c0_136, %c0_137], %167 {strides = array<i32>} : memref<1x8x16x8xf32, #tpu.memory_space<vmem>>, vector<1x8x16x8xf32>,
    %cst_138 = arith.constant dense<0.000000e+00> : vector<8xf32>
    %169 = vector.multi_reduction <add>, %166, %cst_138 [0] : vector<128x8xf32> to vector<8xf32>
    %170 = vector.shape_cast %169 : vector<8xf32> to vector<1x8xf32>
    %171 = vector.shape_cast %170 : vector<1x8xf32> to vector<1x1x1x8xf32>
    %c0_139 = arith.constant 0 : index
    %c0_140 = arith.constant 0 : index
    %c0_141 = arith.constant 0 : index
    %c0_142 = arith.constant 0 : index
    %172 = vector.load %arg8[%c0_139, %c0_140, %c0_141, %c0_142] : memref<1x1x1x8xf32, #tpu.memory_space<vmem>>, vector<1x1x1x8xf32>
    tpu.vector_store %arg8[%c0_139, %c0_140, %c0_141, %c0_142], %171 {strides = array<i32>} : memref<1x1x1x8xf32, #tpu.memory_space<vmem>>, vector<1x1x1x8xf32>,
    %173 = arith.mulf %166, %166 : vector<128x8xf32>
    %cst_143 = arith.constant dense<0.000000e+00> : vector<8xf32>
    %174 = vector.multi_reduction <add>, %173, %cst_143 [0] : vector<128x8xf32> to vector<8xf32>
    %175 = vector.shape_cast %174 : vector<8xf32> to vector<1x8xf32>
    %176 = vector.shape_cast %175 : vector<1x8xf32> to vector<1x1x1x8xf32>
    %c0_144 = arith.constant 0 : index
    %c0_145 = arith.constant 0 : index
    %c0_146 = arith.constant 0 : index
    %c0_147 = arith.constant 0 : index
    %177 = vector.load %arg9[%c0_144, %c0_145, %c0_146, %c0_147] : memref<1x1x1x8xf32, #tpu.memory_space<vmem>>, vector<1x1x1x8xf32>
    tpu.vector_store %arg9[%c0_144, %c0_145, %c0_146, %c0_147], %176 {strides = array<i32>} : memref<1x1x1x8xf32, #tpu.memory_space<vmem>>, vector<1x1x1x8xf32>,
    return
  }
  func.func @transform_0(%arg0: i32, %arg1: i32) -> (i32, i32, i32, i32) {
    %c0_i32 = arith.constant 0 : i32
    %c0_i32_0 = arith.constant 0 : i32
    %c0_i32_1 = arith.constant 0 : i32
    %c0_i32_2 = arith.constant 0 : i32
    return %arg0, %c0_i32, %c0_i32_0, %c0_i32_1 : i32, i32, i32, i32
  }
  func.func @transform_1(%arg0: i32, %arg1: i32) -> (i32, i32, i32, i32) {
    %c0_i32 = arith.constant 0 : i32
    %c0_i32_0 = arith.constant 0 : i32
    %c0_i32_1 = arith.constant 0 : i32
    %c0_i32_2 = arith.constant 0 : i32
    return %arg0, %c0_i32, %c0_i32_0, %c0_i32_1 : i32, i32, i32, i32
  }
  func.func @transform_2(%arg0: i32, %arg1: i32) -> (i32, i32, i32) {
    %c0_i32 = arith.constant 0 : i32
    %c0_i32_0 = arith.constant 0 : i32
    %c0_i32_1 = arith.constant 0 : i32
    %c0_i32_2 = arith.constant 0 : i32
    return %c0_i32, %c0_i32_0, %c0_i32_1 : i32, i32, i32
  }
  func.func @transform_3(%arg0: i32, %arg1: i32) -> (i32, i32, i32) {
    %c0_i32 = arith.constant 0 : i32
    %c0_i32_0 = arith.constant 0 : i32
    %c0_i32_1 = arith.constant 0 : i32
    %c0_i32_2 = arith.constant 0 : i32
    return %c0_i32, %c0_i32_0, %c0_i32_1 : i32, i32, i32
  }
  func.func @transform_4(%arg0: i32, %arg1: i32) -> (i32, i32) {
    %c0_i32 = arith.constant 0 : i32
    %c0_i32_0 = arith.constant 0 : i32
    %c0_i32_1 = arith.constant 0 : i32
    return %c0_i32, %c0_i32_0 : i32, i32
  }
  func.func @transform_5(%arg0: i32, %arg1: i32) -> (i32, i32, i32, i32) {
    %c0_i32 = arith.constant 0 : i32
    %c0_i32_0 = arith.constant 0 : i32
    %c0_i32_1 = arith.constant 0 : i32
    return %arg0, %arg1, %c0_i32, %c0_i32_0 : i32, i32, i32, i32
  }
  func.func @transform_6(%arg0: i32, %arg1: i32) -> (i32, i32, i32, i32) {
    %c0_i32 = arith.constant 0 : i32
    %c0_i32_0 = arith.constant 0 : i32
    %c0_i32_1 = arith.constant 0 : i32
    return %arg0, %arg1, %c0_i32, %c0_i32_0 : i32, i32, i32, i32
  }
  func.func @transform_7(%arg0: i32, %arg1: i32) -> (i32, i32, i32, i32) {
    %c0_i32 = arith.constant 0 : i32
    %c0_i32_0 = arith.constant 0 : i32
    %c0_i32_1 = arith.constant 0 : i32
    return %arg0, %arg1, %c0_i32, %c0_i32_0 : i32, i32, i32, i32
  }
}

module attributes {stable_mosaic.version = 11 : i64} {
  func.func @_bn_relu_kernel(%arg0: i32, %arg1: i32, %arg2: memref<1x8x16x8xf32, #tpu.memory_space<vmem>>, %arg3: memref<1x8xf32, #tpu.memory_space<vmem>>, %arg4: memref<1x8xf32, #tpu.memory_space<vmem>>, %arg5: memref<1x8x16x8xf32, #tpu.memory_space<vmem>>) attributes {dimension_semantics = [#tpu.dimension_semantics<parallel>, #tpu.dimension_semantics<parallel>], iteration_bounds = array<i64: 2, 2>, scalar_prefetch = 0 : i64, scratch_operands = 0 : i64, tpu.core_type = #tpu.core_type<tc>, window_params = [{transform_indices = @transform_0, window_bounds = array<i64: 1, 8, 16, 8>}, {pipeline_mode = #tpu.pipeline_mode<synchronous>, transform_indices = @transform_1, window_bounds = array<i64: 1, 8>}, {pipeline_mode = #tpu.pipeline_mode<synchronous>, transform_indices = @transform_2, window_bounds = array<i64: 1, 8>}, {transform_indices = @transform_3, window_bounds = array<i64: 1, 8, 16, 8>}]} {
    %c0 = arith.constant 0 : index
    %c0_0 = arith.constant 0 : index
    %c0_1 = arith.constant 0 : index
    %c0_2 = arith.constant 0 : index
    %0 = vector.load %arg2[%c0, %c0_0, %c0_1, %c0_2] : memref<1x8x16x8xf32, #tpu.memory_space<vmem>>, vector<1x8x16x8xf32>
    %c0_3 = arith.constant 0 : index
    %c0_4 = arith.constant 0 : index
    %1 = vector.load %arg3[%c0_3, %c0_4] : memref<1x8xf32, #tpu.memory_space<vmem>>, vector<1x8xf32>
    %2 = vector.shape_cast %1 : vector<1x8xf32> to vector<1x1x1x8xf32>
    %3 = vector.broadcast %2 : vector<1x1x1x8xf32> to vector<1x8x16x8xf32>
    %4 = arith.mulf %0, %3 : vector<1x8x16x8xf32>
    %c0_5 = arith.constant 0 : index
    %c0_6 = arith.constant 0 : index
    %5 = vector.load %arg4[%c0_5, %c0_6] : memref<1x8xf32, #tpu.memory_space<vmem>>, vector<1x8xf32>
    %6 = vector.shape_cast %5 : vector<1x8xf32> to vector<1x1x1x8xf32>
    %7 = vector.broadcast %6 : vector<1x1x1x8xf32> to vector<1x8x16x8xf32>
    %8 = arith.addf %4, %7 : vector<1x8x16x8xf32>
    %cst = arith.constant 0.000000e+00 : f32
    %9 = vector.broadcast %cst : f32 to vector<1x8x16x8xf32>
    %10 = arith.maximumf %8, %9 : vector<1x8x16x8xf32>
    %c0_7 = arith.constant 0 : index
    %c0_8 = arith.constant 0 : index
    %c0_9 = arith.constant 0 : index
    %c0_10 = arith.constant 0 : index
    %11 = vector.load %arg5[%c0_7, %c0_8, %c0_9, %c0_10] : memref<1x8x16x8xf32, #tpu.memory_space<vmem>>, vector<1x8x16x8xf32>
    tpu.vector_store %arg5[%c0_7, %c0_8, %c0_9, %c0_10], %10 {strides = array<i32>} : memref<1x8x16x8xf32, #tpu.memory_space<vmem>>, vector<1x8x16x8xf32>,
    return
  }
  func.func @transform_0(%arg0: i32, %arg1: i32) -> (i32, i32, i32, i32) {
    %c0_i32 = arith.constant 0 : i32
    %c0_i32_0 = arith.constant 0 : i32
    %c0_i32_1 = arith.constant 0 : i32
    return %arg0, %arg1, %c0_i32, %c0_i32_0 : i32, i32, i32, i32
  }
  func.func @transform_1(%arg0: i32, %arg1: i32) -> (i32, i32) {
    %c0_i32 = arith.constant 0 : i32
    %c0_i32_0 = arith.constant 0 : i32
    %c0_i32_1 = arith.constant 0 : i32
    return %c0_i32, %c0_i32_0 : i32, i32
  }
  func.func @transform_2(%arg0: i32, %arg1: i32) -> (i32, i32) {
    %c0_i32 = arith.constant 0 : i32
    %c0_i32_0 = arith.constant 0 : i32
    %c0_i32_1 = arith.constant 0 : i32
    return %c0_i32, %c0_i32_0 : i32, i32
  }
  func.func @transform_3(%arg0: i32, %arg1: i32) -> (i32, i32, i32, i32) {
    %c0_i32 = arith.constant 0 : i32
    %c0_i32_0 = arith.constant 0 : i32
    %c0_i32_1 = arith.constant 0 : i32
    return %arg0, %arg1, %c0_i32, %c0_i32_0 : i32, i32, i32, i32
  }
}

module attributes {stable_mosaic.version = 11 : i64} {
  func.func @_bnrelu_conv_kernel(%arg0: i32, %arg1: i32, %arg2: memref<1x18x18x8xf32, #tpu.memory_space<vmem>>, %arg3: memref<9x8x8xbf16, #tpu.memory_space<vmem>>, %arg4: memref<1x8xf32, #tpu.memory_space<vmem>>, %arg5: memref<1x8xf32, #tpu.memory_space<vmem>>, %arg6: memref<1x8xf32, #tpu.memory_space<vmem>>, %arg7: memref<1x8x16x8xf32, #tpu.memory_space<vmem>>, %arg8: memref<1x1x1x8xf32, #tpu.memory_space<vmem>>, %arg9: memref<1x1x1x8xf32, #tpu.memory_space<vmem>>) attributes {dimension_semantics = [#tpu.dimension_semantics<parallel>, #tpu.dimension_semantics<parallel>], iteration_bounds = array<i64: 2, 2>, scalar_prefetch = 0 : i64, scratch_operands = 0 : i64, tpu.core_type = #tpu.core_type<tc>, window_params = [{transform_indices = @transform_0, window_bounds = array<i64: 1, 18, 18, 8>}, {pipeline_mode = #tpu.pipeline_mode<synchronous>, transform_indices = @transform_1, window_bounds = array<i64: 9, 8, 8>}, {pipeline_mode = #tpu.pipeline_mode<synchronous>, transform_indices = @transform_2, window_bounds = array<i64: 1, 8>}, {pipeline_mode = #tpu.pipeline_mode<synchronous>, transform_indices = @transform_3, window_bounds = array<i64: 1, 8>}, {pipeline_mode = #tpu.pipeline_mode<synchronous>, transform_indices = @transform_4, window_bounds = array<i64: 1, 8>}, {transform_indices = @transform_5, window_bounds = array<i64: 1, 8, 16, 8>}, {transform_indices = @transform_6, window_bounds = array<i64: 1, 1, 1, 8>}, {transform_indices = @transform_7, window_bounds = array<i64: 1, 1, 1, 8>}]} {
    %c8_i32 = arith.constant 8 : i32
    %0 = arith.muli %arg1, %c8_i32 : i32
    %c0 = arith.constant 0 : index
    %1 = arith.index_cast %0 : i32 to index
    %c0_0 = arith.constant 0 : index
    %c0_1 = arith.constant 0 : index
    %2 = vector.load %arg2[%c0, %1, %c0_0, %c0_1] : memref<1x18x18x8xf32, #tpu.memory_space<vmem>>, vector<1x10x18x8xf32>
    %3 = vector.shape_cast %2 : vector<1x10x18x8xf32> to vector<10x18x8xf32>
    %c0_2 = arith.constant 0 : index
    %c0_3 = arith.constant 0 : index
    %4 = vector.load %arg5[%c0_2, %c0_3] : memref<1x8xf32, #tpu.memory_space<vmem>>, vector<1x8xf32>
    %5 = vector.shape_cast %4 : vector<1x8xf32> to vector<1x1x8xf32>
    %6 = vector.broadcast %5 : vector<1x1x8xf32> to vector<10x18x8xf32>
    %7 = arith.mulf %3, %6 : vector<10x18x8xf32>
    %c0_4 = arith.constant 0 : index
    %c0_5 = arith.constant 0 : index
    %8 = vector.load %arg6[%c0_4, %c0_5] : memref<1x8xf32, #tpu.memory_space<vmem>>, vector<1x8xf32>
    %9 = vector.shape_cast %8 : vector<1x8xf32> to vector<1x1x8xf32>
    %10 = vector.broadcast %9 : vector<1x1x8xf32> to vector<10x18x8xf32>
    %11 = arith.addf %7, %10 : vector<10x18x8xf32>
    %cst = arith.constant 0.000000e+00 : f32
    %12 = vector.broadcast %cst : f32 to vector<10x18x8xf32>
    %13 = arith.maximumf %11, %12 : vector<10x18x8xf32>
    %14 = tpu.iota {dimensions = array<i32: 0>} : vector<10x18x1xi32>
    %15 = vector.broadcast %0 : i32 to vector<10x18x1xi32>
    %16 = arith.addi %14, %15 : vector<10x18x1xi32>
    %17 = tpu.iota {dimensions = array<i32: 1>} : vector<10x18x1xi32>
    %c0_i32 = arith.constant 0 : i32
    %18 = vector.broadcast %c0_i32 : i32 to vector<10x18x1xi32>
    %19 = arith.cmpi sgt, %16, %18 : vector<10x18x1xi32>
    %c17_i32 = arith.constant 17 : i32
    %20 = vector.broadcast %c17_i32 : i32 to vector<10x18x1xi32>
    %21 = arith.cmpi slt, %16, %20 : vector<10x18x1xi32>
    %22 = arith.andi %19, %21 : vector<10x18x1xi1>
    %c0_i32_6 = arith.constant 0 : i32
    %23 = vector.broadcast %c0_i32_6 : i32 to vector<10x18x1xi32>
    %24 = arith.cmpi sgt, %17, %23 : vector<10x18x1xi32>
    %25 = arith.andi %22, %24 : vector<10x18x1xi1>
    %c17_i32_7 = arith.constant 17 : i32
    %26 = vector.broadcast %c17_i32_7 : i32 to vector<10x18x1xi32>
    %27 = arith.cmpi slt, %17, %26 : vector<10x18x1xi32>
    %28 = arith.andi %25, %27 : vector<10x18x1xi1>
    %cst_8 = arith.constant 0.000000e+00 : f32
    %29 = vector.shape_cast %28 : vector<10x18x1xi1> to vector<10x18x1xi1>
    %30 = vector.broadcast %29 : vector<10x18x1xi1> to vector<10x18x8xi1>
    %31 = vector.broadcast %cst_8 : f32 to vector<10x18x8xf32>
    %32 = arith.select %30, %13, %31 : vector<10x18x8xi1>, vector<10x18x8xf32>
    %33 = arith.truncf %32 : vector<10x18x8xf32> to vector<10x18x8xbf16>
    %cst_9 = arith.constant 0.000000e+00 : f32
    %34 = vector.broadcast %cst_9 : f32 to vector<128x8xf32>
    %35 = vector.extract_strided_slice %33 {offsets = [0, 0, 0], sizes = [8, 16, 8], strides = [1, 1, 1]} : vector<10x18x8xbf16> to vector<8x16x8xbf16>
    %36 = vector.shape_cast %35 : vector<8x16x8xbf16> to vector<128x8xbf16>
    %c0_10 = arith.constant 0 : index
    %c0_11 = arith.constant 0 : index
    %c0_12 = arith.constant 0 : index
    %37 = vector.load %arg3[%c0_10, %c0_11, %c0_12] : memref<9x8x8xbf16, #tpu.memory_space<vmem>>, vector<1x8x8xbf16>
    %38 = vector.shape_cast %37 : vector<1x8x8xbf16> to vector<8x8xbf16>
    %cst_13 = arith.constant dense<0.000000e+00> : vector<128x8xf32>
    %39 = tpu.matmul %36, %38, %cst_13 {dimension_numbers = #tpu.dot_dimension_numbers<[1], [0], [0], [1], [0, 0, 1, 1], [], []>} : vector<128x8xbf16>, vector<8x8xbf16>, vector<128x8xf32> -> vector<128x8xf32>
    %40 = arith.addf %34, %39 : vector<128x8xf32>
    %41 = vector.extract_strided_slice %33 {offsets = [0, 1, 0], sizes = [8, 16, 8], strides = [1, 1, 1]} : vector<10x18x8xbf16> to vector<8x16x8xbf16>
    %42 = vector.shape_cast %41 : vector<8x16x8xbf16> to vector<128x8xbf16>
    %c1 = arith.constant 1 : index
    %c0_14 = arith.constant 0 : index
    %c0_15 = arith.constant 0 : index
    %43 = vector.load %arg3[%c1, %c0_14, %c0_15] : memref<9x8x8xbf16, #tpu.memory_space<vmem>>, vector<1x8x8xbf16>
    %44 = vector.shape_cast %43 : vector<1x8x8xbf16> to vector<8x8xbf16>
    %cst_16 = arith.constant dense<0.000000e+00> : vector<128x8xf32>
    %45 = tpu.matmul %42, %44, %cst_16 {dimension_numbers = #tpu.dot_dimension_numbers<[1], [0], [0], [1], [0, 0, 1, 1], [], []>} : vector<128x8xbf16>, vector<8x8xbf16>, vector<128x8xf32> -> vector<128x8xf32>
    %46 = arith.addf %40, %45 : vector<128x8xf32>
    %47 = vector.extract_strided_slice %33 {offsets = [0, 2, 0], sizes = [8, 16, 8], strides = [1, 1, 1]} : vector<10x18x8xbf16> to vector<8x16x8xbf16>
    %48 = vector.shape_cast %47 : vector<8x16x8xbf16> to vector<128x8xbf16>
    %c2 = arith.constant 2 : index
    %c0_17 = arith.constant 0 : index
    %c0_18 = arith.constant 0 : index
    %49 = vector.load %arg3[%c2, %c0_17, %c0_18] : memref<9x8x8xbf16, #tpu.memory_space<vmem>>, vector<1x8x8xbf16>
    %50 = vector.shape_cast %49 : vector<1x8x8xbf16> to vector<8x8xbf16>
    %cst_19 = arith.constant dense<0.000000e+00> : vector<128x8xf32>
    %51 = tpu.matmul %48, %50, %cst_19 {dimension_numbers = #tpu.dot_dimension_numbers<[1], [0], [0], [1], [0, 0, 1, 1], [], []>} : vector<128x8xbf16>, vector<8x8xbf16>, vector<128x8xf32> -> vector<128x8xf32>
    %52 = arith.addf %46, %51 : vector<128x8xf32>
    %53 = vector.extract_strided_slice %33 {offsets = [1, 0, 0], sizes = [8, 16, 8], strides = [1, 1, 1]} : vector<10x18x8xbf16> to vector<8x16x8xbf16>
    %54 = vector.shape_cast %53 : vector<8x16x8xbf16> to vector<128x8xbf16>
    %c3 = arith.constant 3 : index
    %c0_20 = arith.constant 0 : index
    %c0_21 = arith.constant 0 : index
    %55 = vector.load %arg3[%c3, %c0_20, %c0_21] : memref<9x8x8xbf16, #tpu.memory_space<vmem>>, vector<1x8x8xbf16>
    %56 = vector.shape_cast %55 : vector<1x8x8xbf16> to vector<8x8xbf16>
    %cst_22 = arith.constant dense<0.000000e+00> : vector<128x8xf32>
    %57 = tpu.matmul %54, %56, %cst_22 {dimension_numbers = #tpu.dot_dimension_numbers<[1], [0], [0], [1], [0, 0, 1, 1], [], []>} : vector<128x8xbf16>, vector<8x8xbf16>, vector<128x8xf32> -> vector<128x8xf32>
    %58 = arith.addf %52, %57 : vector<128x8xf32>
    %59 = vector.extract_strided_slice %33 {offsets = [1, 1, 0], sizes = [8, 16, 8], strides = [1, 1, 1]} : vector<10x18x8xbf16> to vector<8x16x8xbf16>
    %60 = vector.shape_cast %59 : vector<8x16x8xbf16> to vector<128x8xbf16>
    %c4 = arith.constant 4 : index
    %c0_23 = arith.constant 0 : index
    %c0_24 = arith.constant 0 : index
    %61 = vector.load %arg3[%c4, %c0_23, %c0_24] : memref<9x8x8xbf16, #tpu.memory_space<vmem>>, vector<1x8x8xbf16>
    %62 = vector.shape_cast %61 : vector<1x8x8xbf16> to vector<8x8xbf16>
    %cst_25 = arith.constant dense<0.000000e+00> : vector<128x8xf32>
    %63 = tpu.matmul %60, %62, %cst_25 {dimension_numbers = #tpu.dot_dimension_numbers<[1], [0], [0], [1], [0, 0, 1, 1], [], []>} : vector<128x8xbf16>, vector<8x8xbf16>, vector<128x8xf32> -> vector<128x8xf32>
    %64 = arith.addf %58, %63 : vector<128x8xf32>
    %65 = vector.extract_strided_slice %33 {offsets = [1, 2, 0], sizes = [8, 16, 8], strides = [1, 1, 1]} : vector<10x18x8xbf16> to vector<8x16x8xbf16>
    %66 = vector.shape_cast %65 : vector<8x16x8xbf16> to vector<128x8xbf16>
    %c5 = arith.constant 5 : index
    %c0_26 = arith.constant 0 : index
    %c0_27 = arith.constant 0 : index
    %67 = vector.load %arg3[%c5, %c0_26, %c0_27] : memref<9x8x8xbf16, #tpu.memory_space<vmem>>, vector<1x8x8xbf16>
    %68 = vector.shape_cast %67 : vector<1x8x8xbf16> to vector<8x8xbf16>
    %cst_28 = arith.constant dense<0.000000e+00> : vector<128x8xf32>
    %69 = tpu.matmul %66, %68, %cst_28 {dimension_numbers = #tpu.dot_dimension_numbers<[1], [0], [0], [1], [0, 0, 1, 1], [], []>} : vector<128x8xbf16>, vector<8x8xbf16>, vector<128x8xf32> -> vector<128x8xf32>
    %70 = arith.addf %64, %69 : vector<128x8xf32>
    %71 = vector.extract_strided_slice %33 {offsets = [2, 0, 0], sizes = [8, 16, 8], strides = [1, 1, 1]} : vector<10x18x8xbf16> to vector<8x16x8xbf16>
    %72 = vector.shape_cast %71 : vector<8x16x8xbf16> to vector<128x8xbf16>
    %c6 = arith.constant 6 : index
    %c0_29 = arith.constant 0 : index
    %c0_30 = arith.constant 0 : index
    %73 = vector.load %arg3[%c6, %c0_29, %c0_30] : memref<9x8x8xbf16, #tpu.memory_space<vmem>>, vector<1x8x8xbf16>
    %74 = vector.shape_cast %73 : vector<1x8x8xbf16> to vector<8x8xbf16>
    %cst_31 = arith.constant dense<0.000000e+00> : vector<128x8xf32>
    %75 = tpu.matmul %72, %74, %cst_31 {dimension_numbers = #tpu.dot_dimension_numbers<[1], [0], [0], [1], [0, 0, 1, 1], [], []>} : vector<128x8xbf16>, vector<8x8xbf16>, vector<128x8xf32> -> vector<128x8xf32>
    %76 = arith.addf %70, %75 : vector<128x8xf32>
    %77 = vector.extract_strided_slice %33 {offsets = [2, 1, 0], sizes = [8, 16, 8], strides = [1, 1, 1]} : vector<10x18x8xbf16> to vector<8x16x8xbf16>
    %78 = vector.shape_cast %77 : vector<8x16x8xbf16> to vector<128x8xbf16>
    %c7 = arith.constant 7 : index
    %c0_32 = arith.constant 0 : index
    %c0_33 = arith.constant 0 : index
    %79 = vector.load %arg3[%c7, %c0_32, %c0_33] : memref<9x8x8xbf16, #tpu.memory_space<vmem>>, vector<1x8x8xbf16>
    %80 = vector.shape_cast %79 : vector<1x8x8xbf16> to vector<8x8xbf16>
    %cst_34 = arith.constant dense<0.000000e+00> : vector<128x8xf32>
    %81 = tpu.matmul %78, %80, %cst_34 {dimension_numbers = #tpu.dot_dimension_numbers<[1], [0], [0], [1], [0, 0, 1, 1], [], []>} : vector<128x8xbf16>, vector<8x8xbf16>, vector<128x8xf32> -> vector<128x8xf32>
    %82 = arith.addf %76, %81 : vector<128x8xf32>
    %83 = vector.extract_strided_slice %33 {offsets = [2, 2, 0], sizes = [8, 16, 8], strides = [1, 1, 1]} : vector<10x18x8xbf16> to vector<8x16x8xbf16>
    %84 = vector.shape_cast %83 : vector<8x16x8xbf16> to vector<128x8xbf16>
    %c8 = arith.constant 8 : index
    %c0_35 = arith.constant 0 : index
    %c0_36 = arith.constant 0 : index
    %85 = vector.load %arg3[%c8, %c0_35, %c0_36] : memref<9x8x8xbf16, #tpu.memory_space<vmem>>, vector<1x8x8xbf16>
    %86 = vector.shape_cast %85 : vector<1x8x8xbf16> to vector<8x8xbf16>
    %cst_37 = arith.constant dense<0.000000e+00> : vector<128x8xf32>
    %87 = tpu.matmul %84, %86, %cst_37 {dimension_numbers = #tpu.dot_dimension_numbers<[1], [0], [0], [1], [0, 0, 1, 1], [], []>} : vector<128x8xbf16>, vector<8x8xbf16>, vector<128x8xf32> -> vector<128x8xf32>
    %88 = arith.addf %82, %87 : vector<128x8xf32>
    %c0_38 = arith.constant 0 : index
    %c0_39 = arith.constant 0 : index
    %89 = vector.load %arg4[%c0_38, %c0_39] : memref<1x8xf32, #tpu.memory_space<vmem>>, vector<1x8xf32>
    %90 = vector.broadcast %89 : vector<1x8xf32> to vector<128x8xf32>
    %91 = arith.addf %88, %90 : vector<128x8xf32>
    %92 = vector.shape_cast %91 : vector<128x8xf32> to vector<1x8x16x8xf32>
    %c0_40 = arith.constant 0 : index
    %c0_41 = arith.constant 0 : index
    %c0_42 = arith.constant 0 : index
    %c0_43 = arith.constant 0 : index
    %93 = vector.load %arg7[%c0_40, %c0_41, %c0_42, %c0_43] : memref<1x8x16x8xf32, #tpu.memory_space<vmem>>, vector<1x8x16x8xf32>
    tpu.vector_store %arg7[%c0_40, %c0_41, %c0_42, %c0_43], %92 {strides = array<i32>} : memref<1x8x16x8xf32, #tpu.memory_space<vmem>>, vector<1x8x16x8xf32>,
    %cst_44 = arith.constant dense<0.000000e+00> : vector<8xf32>
    %94 = vector.multi_reduction <add>, %91, %cst_44 [0] : vector<128x8xf32> to vector<8xf32>
    %95 = vector.shape_cast %94 : vector<8xf32> to vector<1x8xf32>
    %96 = vector.shape_cast %95 : vector<1x8xf32> to vector<1x1x1x8xf32>
    %c0_45 = arith.constant 0 : index
    %c0_46 = arith.constant 0 : index
    %c0_47 = arith.constant 0 : index
    %c0_48 = arith.constant 0 : index
    %97 = vector.load %arg8[%c0_45, %c0_46, %c0_47, %c0_48] : memref<1x1x1x8xf32, #tpu.memory_space<vmem>>, vector<1x1x1x8xf32>
    tpu.vector_store %arg8[%c0_45, %c0_46, %c0_47, %c0_48], %96 {strides = array<i32>} : memref<1x1x1x8xf32, #tpu.memory_space<vmem>>, vector<1x1x1x8xf32>,
    %98 = arith.mulf %91, %91 : vector<128x8xf32>
    %cst_49 = arith.constant dense<0.000000e+00> : vector<8xf32>
    %99 = vector.multi_reduction <add>, %98, %cst_49 [0] : vector<128x8xf32> to vector<8xf32>
    %100 = vector.shape_cast %99 : vector<8xf32> to vector<1x8xf32>
    %101 = vector.shape_cast %100 : vector<1x8xf32> to vector<1x1x1x8xf32>
    %c0_50 = arith.constant 0 : index
    %c0_51 = arith.constant 0 : index
    %c0_52 = arith.constant 0 : index
    %c0_53 = arith.constant 0 : index
    %102 = vector.load %arg9[%c0_50, %c0_51, %c0_52, %c0_53] : memref<1x1x1x8xf32, #tpu.memory_space<vmem>>, vector<1x1x1x8xf32>
    tpu.vector_store %arg9[%c0_50, %c0_51, %c0_52, %c0_53], %101 {strides = array<i32>} : memref<1x1x1x8xf32, #tpu.memory_space<vmem>>, vector<1x1x1x8xf32>,
    return
  }
  func.func @transform_0(%arg0: i32, %arg1: i32) -> (i32, i32, i32, i32) {
    %c0_i32 = arith.constant 0 : i32
    %c0_i32_0 = arith.constant 0 : i32
    %c0_i32_1 = arith.constant 0 : i32
    %c0_i32_2 = arith.constant 0 : i32
    return %arg0, %c0_i32, %c0_i32_0, %c0_i32_1 : i32, i32, i32, i32
  }
  func.func @transform_1(%arg0: i32, %arg1: i32) -> (i32, i32, i32) {
    %c0_i32 = arith.constant 0 : i32
    %c0_i32_0 = arith.constant 0 : i32
    %c0_i32_1 = arith.constant 0 : i32
    %c0_i32_2 = arith.constant 0 : i32
    return %c0_i32, %c0_i32_0, %c0_i32_1 : i32, i32, i32
  }
  func.func @transform_2(%arg0: i32, %arg1: i32) -> (i32, i32) {
    %c0_i32 = arith.constant 0 : i32
    %c0_i32_0 = arith.constant 0 : i32
    %c0_i32_1 = arith.constant 0 : i32
    return %c0_i32, %c0_i32_0 : i32, i32
  }
  func.func @transform_3(%arg0: i32, %arg1: i32) -> (i32, i32) {
    %c0_i32 = arith.constant 0 : i32
    %c0_i32_0 = arith.constant 0 : i32
    %c0_i32_1 = arith.constant 0 : i32
    return %c0_i32, %c0_i32_0 : i32, i32
  }
  func.func @transform_4(%arg0: i32, %arg1: i32) -> (i32, i32) {
    %c0_i32 = arith.constant 0 : i32
    %c0_i32_0 = arith.constant 0 : i32
    %c0_i32_1 = arith.constant 0 : i32
    return %c0_i32, %c0_i32_0 : i32, i32
  }
  func.func @transform_5(%arg0: i32, %arg1: i32) -> (i32, i32, i32, i32) {
    %c0_i32 = arith.constant 0 : i32
    %c0_i32_0 = arith.constant 0 : i32
    %c0_i32_1 = arith.constant 0 : i32
    return %arg0, %arg1, %c0_i32, %c0_i32_0 : i32, i32, i32, i32
  }
  func.func @transform_6(%arg0: i32, %arg1: i32) -> (i32, i32, i32, i32) {
    %c0_i32 = arith.constant 0 : i32
    %c0_i32_0 = arith.constant 0 : i32
    %c0_i32_1 = arith.constant 0 : i32
    return %arg0, %arg1, %c0_i32, %c0_i32_0 : i32, i32, i32, i32
  }
  func.func @transform_7(%arg0: i32, %arg1: i32) -> (i32, i32, i32, i32) {
    %c0_i32 = arith.constant 0 : i32
    %c0_i32_0 = arith.constant 0 : i32
    %c0_i32_1 = arith.constant 0 : i32
    return %arg0, %arg1, %c0_i32, %c0_i32_0 : i32, i32, i32, i32
  }
}

</mosaic_0001>

<llo_original>
// kernel: tile.9
$region0: #{tile.9}
  %s0 = inlined_call_operand.vmem [shape: f32[2,8], index: 0, kind: input, shape index: {}]
  %s1 = inlined_call_operand.vmem [shape: f32[1,16], index: 1, kind: output, shape index: {}]
  $region1: #{tile.9} parent=0
    #allocation0 [shape = 'u8[4096]{0}', space=vmem, size = 0x1000, scoped, tag = 'scoped mem for output reshape']
    #allocation1 [shape = 'u8[4096]{0}', space=vmem, size = 0x1000, scoped, tag = 'scoped mem for input reshape']
    %s3 = ssub.s32 4, 1
    %v4 = vld [vmem:[%s0] sm:%s3]
    %5 = vst [vmem:[#allocation1] sm:%s3] %v4
    %v6 = vld [vmem:[#allocation1] sm:$0x1]
    %vm7 = vcmask 64512
    %8 = vst.msk [vmem:[#allocation0] sm:$0x1] %vm7, %v6
    %s9 = scalar_lea.vmem [#allocation1], 1
    %v10 = vld [vmem:[%s9] sm:$0x1]
    %11 = vrot.lane.b32.xlu0 %v10, 8
    %v12 = vpop.permute.xlu0 %11
    %vm13 = vcmask 130112
    %14 = vst.msk [vmem:[#allocation0] sm:$0x1] %vm13, %v12
    %s16 = ssub.s32 2, 1
    %v17 = vld [vmem:[#allocation0] sm:%s16]
    %s19 = ssub.s32 2, 1
    %20 = vst [vmem:[%s1] sm:%s19] %v17

// kernel: tile.8
$region0: #{tile.8}
  #allocation0 [shape = 's32[1]{0}', space=sflag, size = 0x4, scoped, tag = 'scoped memory for tile.8']
  %s0 = inlined_call_operand.vmem [shape: f32[8], index: 0, kind: input, shape index: {}]
  %s1 = inlined_call_operand.vmem [shape: f32[2,8], index: 1, kind: output, shape index: {}]
  // Predicated region
  $region2: #{tile.8} parent=0 // pred_check
    _
  $region3: #{tile.8} parent=0 // pred_check_branch
    %3 = sbr.rel (0) target = $region5
  $region4: #{tile.8} parent=0 // pred_region
    _
  $region5: #{tile.8} parent=0 // pred_fallthru
    _
  %v4 = vld [vmem:[%s0] ss:$0 sm:$0xff]
  %5 = vst [vmem:[%s1] sm:$0x3] %v4

// kernel: upsample_forward.4
$region0: #{upsample_forward.4}
  #allocation0 [shape = 'u32[]', space=smem, size = 0x4, offset = 0x4, fixed_abs, tag = 'smem constant byte address 0x4 - core index']
  #allocation1 [shape = 'u32[72,128]{1,0:T(1,128)}', space=vmem, size = 0x9000, scoped, tag = 'internal scratch']
  %s0 = inlined_call_operand.vmem [shape: bf16[2,8,8,4], index: 0, kind: input, shape index: {}]
  %s1 = inlined_call_operand.vmem [shape: bf16[2,4,16], index: 1, kind: input, shape index: {}]
  %s2 = inlined_call_operand.vmem [shape: f32[1,16], index: 2, kind: input, shape index: {}]
  %s3 = inlined_call_operand.vmem [shape: bf16[2,16,8,16], index: 3, kind: output, shape index: {}]
  %s4 = sld [smem:[#allocation0]]
  $region45: #{upsample_forward.4} parent=0
    _
  %s6 = ssub.s32 1, %s4
  %s7 = scalar_select 0, %s6, %s4
  loop: start=0, step=1, limit=6
  $region2: #{upsample_forward.4} parent=0 // loop_pre_header
    _
  $region3: #{upsample_forward.4} parent=0 // loop_header
    %s9 = sphi 0, %s13
    %p10 = scmp.ge.s32.totalorder %s9, 6
    %s16 = sphi 0, %s28
    %s17 = sphi 0, %s24
    %s18 = sphi 0, %s16
    %s19 = sphi 0, %s17
    %s20 = sphi 0, %s18
    %s21 = sphi 0, %s19
    %s33 = sphi 0, %s35
    %s36 = sphi 0, %s33
    %s37 = sphi 0, %s36
    %s53 = sphi 0, %s37
    %s57 = sphi 0, %s57
    %s59 = sphi 0, %s57
    %s60 = sphi 0, %s59
    %s74 = sphi 0, %s60
    %s78 = sphi 0, %s78
    %s80 = sphi 0, %s78
    %s81 = sphi 0, %s80
    %s95 = sphi 0, %s81
    %s103 = sphi 0, %s105
    %s106 = sphi 0, %s103
    %s107 = sphi 0, %s106
    %s123 = sphi 0, %s107
  $region4: #{upsample_forward.4} parent=0 // loop_header_branch
    %12 = sbr.rel (%p10) target = $region8
  $region5: #{upsample_forward.4} parent=0 // loop_body
    %s14 = ssub.s32 %s9, 1
    %s15 = ssub.s32 %s9, 2
    %s22 = sadd.s32 1, %s17
    %p23 = scmp.ge.s32.totalorder %s22, 2
    %s24 = scalar_select %p23, 0, %s22
    %s25 = sadd.s32 1, %s16
    %s26 = scalar_select %p23, %s25, %s16
    %p27 = scmp.ge.s32.totalorder %s26, 2
    %s28 = scalar_select %p27, 0, %s26
    %s29 = ssub.s32 %s16, %s28
    %s30 = ssub.s32 %s17, %s24
    %s31 = sor.u32 %s29, %s30
    %p32 = scmp.eq.s32.totalorder %s31, 0
    %s34 = sadd.s32 %s33, 1
    %s35 = scalar_select %p32, %s33, %s34
    %p38 = pneg %p32
    %p39 = scmp.eq.s32.totalorder %s9, 3
    %p40 = por %p38, %p39
    %p41 = scmp.ne.s32.totalorder %s33, %s36
    %p42 = scmp.eq.s32.totalorder %s9, 0
    %p43 = por %p41, %p42
    %p44 = scmp.ne.s32.totalorder %s33, %s36
    %p45 = scmp.eq.s32.totalorder %s14, 3
    %p46 = por %p44, %p45
    %p47 = scmp.ne.s32.totalorder %s36, %s37
    %p48 = scmp.eq.s32.totalorder %s14, 0
    %p49 = por %p47, %p48
    %p50 = scmp.ne.s32.totalorder %s36, %s37
    %p51 = scmp.eq.s32.totalorder %s15, 3
    %p52 = por %p50, %p51
    %p54 = scmp.ne.s32.totalorder %s37, %s53
    %p55 = scmp.eq.s32.totalorder %s15, 0
    %p56 = por %p54, %p55
    %s58 = sadd.s32 %s57, 1
    %p61 = scmp.eq.s32.totalorder %s9, 3
    %p62 = scmp.ne.s32.totalorder %s57, %s59
    %p63 = scmp.eq.s32.totalorder %s9, 0
    %p64 = por %p62, %p63
    %p65 = scmp.ne.s32.totalorder %s57, %s59
    %p66 = scmp.eq.s32.totalorder %s14, 3
    %p67 = por %p65, %p66
    %p68 = scmp.ne.s32.totalorder %s59, %s60
    %p69 = scmp.eq.s32.totalorder %s14, 0
    %p70 = por %p68, %p69
    %p71 = scmp.ne.s32.totalorder %s59, %s60
    %p72 = scmp.eq.s32.totalorder %s15, 3
    %p73 = por %p71, %p72
    %p75 = scmp.ne.s32.totalorder %s60, %s74
    %p76 = scmp.eq.s32.totalorder %s15, 0
    %p77 = por %p75, %p76
    %s79 = sadd.s32 %s78, 1
    %p82 = scmp.eq.s32.totalorder %s9, 3
    %p83 = scmp.ne.s32.totalorder %s78, %s80
    %p84 = scmp.eq.s32.totalorder %s9, 0
    %p85 = por %p83, %p84
    %p86 = scmp.ne.s32.totalorder %s78, %s80
    %p87 = scmp.eq.s32.totalorder %s14, 3
    %p88 = por %p86, %p87
    %p89 = scmp.ne.s32.totalorder %s80, %s81
    %p90 = scmp.eq.s32.totalorder %s14, 0
    %p91 = por %p89, %p90
    %p92 = scmp.ne.s32.totalorder %s80, %s81
    %p93 = scmp.eq.s32.totalorder %s15, 3
    %p94 = por %p92, %p93
    %p96 = scmp.ne.s32.totalorder %s81, %s95
    %p97 = scmp.eq.s32.totalorder %s15, 0
    %p98 = por %p96, %p97
    %s99 = ssub.s32 %s16, %s28
    %s100 = ssub.s32 %s17, %s24
    %s101 = sor.u32 %s99, %s100
    %p102 = scmp.eq.s32.totalorder %s101, 0
    %s104 = sadd.s32 %s103, 1
    %s105 = scalar_select %p102, %s103, %s104
    %p108 = pneg %p102
    %p109 = scmp.eq.s32.totalorder %s9, 3
    %p110 = por %p108, %p109
    %p111 = scmp.ne.s32.totalorder %s103, %s106
    %p112 = scmp.eq.s32.totalorder %s9, 0
    %p113 = por %p111, %p112
    %p114 = scmp.ne.s32.totalorder %s103, %s106
    %p115 = scmp.eq.s32.totalorder %s14, 3
    %p116 = por %p114, %p115
    %p117 = scmp.ne.s32.totalorder %s106, %s107
    %p118 = scmp.eq.s32.totalorder %s14, 0
    %p119 = por %p117, %p118
    %p120 = scmp.ne.s32.totalorder %s106, %s107
    %p121 = scmp.eq.s32.totalorder %s15, 3
    %p122 = por %p120, %p121
    %p124 = scmp.ne.s32.totalorder %s107, %s123
    %p125 = scmp.eq.s32.totalorder %s15, 0
    %p126 = por %p124, %p125
    %p127 = scmp.le.s32.totalorder 1, %s9
    %p128 = scmp.lt.s32.totalorder %s9, 5
    %p129 = pnand %p127, %p128
    %p130 = pneg %p129
    // Predicated region
    $region9: #{upsample_forward.4} parent=5 // pred_check
      _
    $region10: #{upsample_forward.4} parent=5 // pred_check_branch
      %132 = sbr.rel (%p129) target = $region12
    $region11: #{upsample_forward.4} parent=5 // pred_region
      %s133 = ssub.s32 %s9, 1
      // Predicated region
      $region13: #{upsample_forward.4} parent=11 // pred_check
        %p134 = pneg %p70
      $region14: #{upsample_forward.4} parent=11 // pred_check_branch
        %136 = sbr.rel (%p134) target = $region16
      $region15: #{upsample_forward.4} parent=11 // pred_region
        _
      $region16: #{upsample_forward.4} parent=11 // pred_fallthru
        _
      // Predicated region
      $region17: #{upsample_forward.4} parent=11 // pred_check
        %p137 = pneg %p91
      $region18: #{upsample_forward.4} parent=11 // pred_check_branch
        %139 = sbr.rel (%p137) target = $region20
      $region19: #{upsample_forward.4} parent=11 // pred_region
        _
      $region20: #{upsample_forward.4} parent=11 // pred_fallthru
        _
    $region12: #{upsample_forward.4} parent=5 // pred_fallthru
      _
    %p140 = scmp.lt.s32.totalorder %s9, 4
    // Predicated region
    $region21: #{upsample_forward.4} parent=5 // pred_check
      %p141 = pneg %p140
    $region22: #{upsample_forward.4} parent=5 // pred_check_branch
      %143 = sbr.rel (%p141) target = $region24
    $region23: #{upsample_forward.4} parent=5 // pred_region
      // Predicated region
      $region25: #{upsample_forward.4} parent=23 // pred_check
        %p144 = pneg %p43
      $region26: #{upsample_forward.4} parent=23 // pred_check_branch
        %146 = sbr.rel (%p144) target = $region28
      $region27: #{upsample_forward.4} parent=23 // pred_region
        %s147 = smul.u32 4, %s17
        %p148 = scmp.lt.s32.totalorder %s16, 1
        %s149 = scalar_select %p148, %s16, 1
        %p150 = scmp.lt.s32.totalorder %s147, 7
        %s151 = scalar_select %p150, %s147, 7
        %s152 = smul.addr %s149, 8
        %s153 = sadd.s32 %s151, %s152
        %s154 = smul.addr %s153, 4
        %s155 = scalar_lea.vmem %s0, %s154
        %s156 = smul.u32 4, %s17
      $region28: #{upsample_forward.4} parent=23 // pred_fallthru
        _
    $region24: #{upsample_forward.4} parent=5 // pred_fallthru
      _
    %p157 = scmp.le.s32.totalorder 1, %s9
    %p158 = scmp.lt.s32.totalorder %s9, 5
    %p159 = pnand %p157, %p158
    %p160 = pneg %p159
    // Predicated region
    $region29: #{upsample_forward.4} parent=5 // pred_check
      _
    $region30: #{upsample_forward.4} parent=5 // pred_check_branch
      %162 = sbr.rel (%p159) target = $region32
    $region31: #{upsample_forward.4} parent=5 // pred_region
      %s163 = ssub.s32 %s9, 1
      %s164 = smul.u32 4, %s19
      %p165 = scmp.lt.s32.totalorder %s18, 1
      %s166 = scalar_select %p165, %s18, 1
      %p167 = scmp.lt.s32.totalorder %s164, 7
      %s168 = scalar_select %p167, %s164, 7
      %s169 = smul.addr %s166, 8
      %s170 = sadd.s32 %s168, %s169
      %s171 = smul.addr %s170, 4
      %s172 = scalar_lea.vmem %s0, %s171
      %p173 = pneg %p49
      %p174 = pneg %p46
      %p175 = pneg %p70
      %p176 = pneg %p67
      %p177 = pneg %p91
      %p178 = pneg %p88
      %p179 = pneg %p119
      %p180 = pneg %p116
      %s181 = smul.u32 8, %s19
      %p182 = scmp.lt.s32.totalorder %s18, 1
      %s183 = scalar_select %p182, %s18, 1
      %p184 = scmp.lt.s32.totalorder %s181, 15
      %s185 = scalar_select %p184, %s181, 15
      %s186 = smul.addr %s183, 16
      %s187 = sadd.s32 %s185, %s186
      %s188 = smul.addr %s187, 4
      %s189 = scalar_lea.vmem %s3, %s188
      %s190 = smul.u32 4, %s19
      %p191 = scmp.lt.s32.totalorder %s18, 1
      %s192 = scalar_select %p191, %s18, 1
      %p193 = scmp.lt.s32.totalorder %s190, 7
      %s194 = scalar_select %p193, %s190, 7
      %s195 = smul.addr %s192, 8
      %s196 = sadd.s32 %s194, %s195
      %s197 = smul.addr %s196, 4
      %s198 = scalar_lea.vmem %s0, %s197
      %s199 = smul.u32 4, %s19
      %s200 = smul.u32 8, %s19
      %p201 = scmp.lt.s32.totalorder %s18, 1
      %s202 = scalar_select %p201, %s18, 1
      %p203 = scmp.lt.s32.totalorder %s200, 15
      %s204 = scalar_select %p203, %s200, 15
      %s205 = smul.addr %s202, 16
      %s206 = sadd.s32 %s204, %s205
      %s207 = smul.addr %s206, 4
      %s208 = scalar_lea.vmem %s3, %s207
      %s209 = smul.u32 8, %s19
      %v211 = vld [vmem:[%s198] sm:$0xf]
      %v212 = vld [vmem:[%s198 + $0x4] sm:$0xf]
      %v213 = vld [vmem:[%s198 + $0x8] sm:$0xf]
      %v214 = vld [vmem:[%s198 + $0xc] sm:$0xf]
      %v215 = vld [vmem:[%s2] sm:$0x1]
      %v216 = vld [vmem:[%s1] sm:$0x3]
      %v218 = vperm.slane %v215, 0
      %v224 = vunpack.c.l.b16 %v211
      %v225 = vunpack.c.l.b16 %v212
      %v226 = vunpack.c.l.b16 %v213
      %v227 = vunpack.c.l.b16 %v214
      %v228 = vpack.c.b16 %v225, %v224
      %v229 = vpack.c.b16 %v227, %v226
      %vm230 = vcmask 31744
      %v232 = vsel %vm230, %v228, 0
      %v235 = vsel %vm230, %v229, 0
      %vm237 = vcmask 1041408
      %v239 = vsel %vm237, %v216, 0
      %241 = vmatpush.bf16.msra.mxu0 0
      %242 = vmatpush.bf16.msra.mxu0 0
      %243 = vmatpush.bf16.msra.mxu0 0
      %244 = vmatpush.bf16.msra.mxu0 0
      %245 = vmatpush.bf16.msra.mxu0 0
      %246 = vmatpush.bf16.msra.mxu0 0
      %247 = vmatpush.bf16.msra.mxu0 0
      %248 = vmatpush.bf16.msra.mxu0 %v239
      %249 = vmatmul.bf16.gmra.mxu0 %v232
      %v250 = vpop.f32.mrf.mxu0
      %v251 = vadd.f32 %v218, %v250
      %v252 = vpop.f32.mrf.mxu0
      %v253 = vadd.f32 %v218, %v252
      %254 = vmatmul.bf16.gmra.mxu0 %v235
      %v255 = vpop.f32.mrf.mxu0
      %v256 = vadd.f32 %v218, %v255
      %v257 = vpop.f32.mrf.mxu0
      %v258 = vadd.f32 %v218, %v257
      %259 = vdwg.mxu0
      %s260 = scalar_lea.vmem %s1, 2
      %v261 = vld [vmem:[%s260] sm:$0x3]
      %v263 = vsel %vm237, %v261, 0
      %265 = vmatpush.bf16.msra.mxu0 0
      %266 = vmatpush.bf16.msra.mxu0 0
      %267 = vmatpush.bf16.msra.mxu0 0
      %268 = vmatpush.bf16.msra.mxu0 0
      %269 = vmatpush.bf16.msra.mxu0 0
      %270 = vmatpush.bf16.msra.mxu0 0
      %271 = vmatpush.bf16.msra.mxu0 0
      %272 = vmatpush.bf16.msra.mxu0 %v263
      %273 = vmatmul.bf16.gmra.mxu0 %v232
      %v274 = vpop.f32.mrf.mxu0
      %v275 = vadd.f32 %v218, %v274
      %v276 = vpop.f32.mrf.mxu0
      %v277 = vadd.f32 %v218, %v276
      %278 = vmatmul.bf16.gmra.mxu0 %v235
      %v279 = vpop.f32.mrf.mxu0
      %v280 = vadd.f32 %v218, %v279
      %v281 = vpop.f32.mrf.mxu0
      %v282 = vadd.f32 %v218, %v281
      %283 = vdwg.mxu0
      %v284 = vpack.c.bf16 %v251, %v251
      %v285 = vpack.c.bf16 %v275, %v275
      %v286 = vpack.c.bf16 %v253, %v253
      %v287 = vpack.c.bf16 %v277, %v277
      %v288 = vpack.c.bf16 %v256, %v256
      %v289 = vpack.c.bf16 %v280, %v280
      %v290 = vpack.c.bf16 %v258, %v258
      %v291 = vpack.c.bf16 %v282, %v282
      %vm292 = vcmask 125952
      %293 = vst.msk [vmem:[%s208] sm:$0xf] %vm292, %v284
      %294 = vst.msk [vmem:[%s208 + $0x4] sm:$0xf] %vm292, %v285
      %295 = vst.msk [vmem:[%s208 + $0x8] sm:$0xf] %vm292, %v286
      %296 = vst.msk [vmem:[%s208 + $0xc] sm:$0xf] %vm292, %v287
      %297 = vst.msk [vmem:[%s208 + $0x10] sm:$0xf] %vm292, %v288
      %298 = vst.msk [vmem:[%s208 + $0x14] sm:$0xf] %vm292, %v289
      %299 = vst.msk [vmem:[%s208 + $0x18] sm:$0xf] %vm292, %v290
      %300 = vst.msk [vmem:[%s208 + $0x1c] sm:$0xf] %vm292, %v291
      %s301 = smul.u32 8, %s19
      %p302 = scmp.lt.s32.totalorder %s18, 1
      %s303 = scalar_select %p302, %s18, 1
      %p304 = scmp.lt.s32.totalorder %s301, 15
      %s305 = scalar_select %p304, %s301, 15
      %s306 = smul.addr %s303, 16
      %s307 = sadd.s32 %s305, %s306
      %s308 = smul.addr %s307, 4
      %s309 = scalar_lea.vmem %s3, %s308
      // Predicated region
      $region33: #{upsample_forward.4} parent=31 // pred_check
        %p310 = pneg %p116
      $region34: #{upsample_forward.4} parent=31 // pred_check_branch
        %312 = sbr.rel (%p310) target = $region36
      $region35: #{upsample_forward.4} parent=31 // pred_region
        %s313 = smul.u32 8, %s19
      $region36: #{upsample_forward.4} parent=31 // pred_fallthru
        _
    $region32: #{upsample_forward.4} parent=5 // pred_fallthru
      _
    %p314 = scmp.le.s32.totalorder 2, %s9
    // Predicated region
    $region37: #{upsample_forward.4} parent=5 // pred_check
      %p315 = pneg %p314
    $region38: #{upsample_forward.4} parent=5 // pred_check_branch
      %317 = sbr.rel (%p315) target = $region40
    $region39: #{upsample_forward.4} parent=5 // pred_region
      %s318 = ssub.s32 %s9, 2
      // Predicated region
      $region41: #{upsample_forward.4} parent=39 // pred_check
        %p319 = pneg %p122
      $region42: #{upsample_forward.4} parent=39 // pred_check_branch
        %321 = sbr.rel (%p319) target = $region44
      $region43: #{upsample_forward.4} parent=39 // pred_region
        %s322 = smul.u32 8, %s21
        %p323 = scmp.lt.s32.totalorder %s20, 1
        %s324 = scalar_select %p323, %s20, 1
        %p325 = scmp.lt.s32.totalorder %s322, 15
        %s326 = scalar_select %p325, %s322, 15
        %s327 = smul.addr %s324, 16
        %s328 = sadd.s32 %s326, %s327
        %s329 = smul.addr %s328, 4
        %s330 = scalar_lea.vmem %s3, %s329
      $region44: #{upsample_forward.4} parent=39 // pred_fallthru
        _
    $region40: #{upsample_forward.4} parent=5 // pred_fallthru
      _
  $region6: #{upsample_forward.4} parent=0 // loop_footer
    %s13 = sadd.s32 1, %s9
  $region7: #{upsample_forward.4} parent=0 // loop_footer_branch
    %8 = sbr.rel target = $region3
  $region8: #{upsample_forward.4} parent=0 // loop_exit
    _

// kernel: upsample_forward.7
$region0: #{upsample_forward.7}
  #allocation0 [shape = 'u32[]', space=smem, size = 0x4, offset = 0x4, fixed_abs, tag = 'smem constant byte address 0x4 - core index']
  #allocation1 [shape = 'u32[72,128]{1,0:T(1,128)}', space=vmem, size = 0x9000, scoped, tag = 'internal scratch']
  %s0 = inlined_call_operand.vmem [shape: f32[2,16,16,8], index: 0, kind: input, shape index: {}]
  %s1 = inlined_call_operand.vmem [shape: f32[1,8], index: 1, kind: input, shape index: {}]
  %s2 = inlined_call_operand.vmem [shape: f32[1,8], index: 2, kind: input, shape index: {}]
  %s3 = inlined_call_operand.vmem [shape: f32[2,16,16,8], index: 3, kind: output, shape index: {}]
  %s4 = sld [smem:[#allocation0]]
  $region45: #{upsample_forward.7} parent=0
    _
  %s6 = ssub.s32 1, %s4
  %s7 = scalar_select 0, %s6, %s4
  loop: start=0, step=1, limit=6
  $region2: #{upsample_forward.7} parent=0 // loop_pre_header
    _
  $region3: #{upsample_forward.7} parent=0 // loop_header
    %s9 = sphi 0, %s13
    %p10 = scmp.ge.s32.totalorder %s9, 6
    %s16 = sphi 0, %s28
    %s17 = sphi 0, %s24
    %s18 = sphi 0, %s16
    %s19 = sphi 0, %s17
    %s20 = sphi 0, %s18
    %s21 = sphi 0, %s19
    %s33 = sphi 0, %s35
    %s36 = sphi 0, %s33
    %s37 = sphi 0, %s36
    %s53 = sphi 0, %s37
    %s57 = sphi 0, %s57
    %s59 = sphi 0, %s57
    %s60 = sphi 0, %s59
    %s74 = sphi 0, %s60
    %s78 = sphi 0, %s78
    %s80 = sphi 0, %s78
    %s81 = sphi 0, %s80
    %s95 = sphi 0, %s81
    %s103 = sphi 0, %s105
    %s106 = sphi 0, %s103
    %s107 = sphi 0, %s106
    %s123 = sphi 0, %s107
  $region4: #{upsample_forward.7} parent=0 // loop_header_branch
    %12 = sbr.rel (%p10) target = $region8
  $region5: #{upsample_forward.7} parent=0 // loop_body
    %s14 = ssub.s32 %s9, 1
    %s15 = ssub.s32 %s9, 2
    %s22 = sadd.s32 1, %s17
    %p23 = scmp.ge.s32.totalorder %s22, 2
    %s24 = scalar_select %p23, 0, %s22
    %s25 = sadd.s32 1, %s16
    %s26 = scalar_select %p23, %s25, %s16
    %p27 = scmp.ge.s32.totalorder %s26, 2
    %s28 = scalar_select %p27, 0, %s26
    %s29 = ssub.s32 %s16, %s28
    %s30 = ssub.s32 %s17, %s24
    %s31 = sor.u32 %s29, %s30
    %p32 = scmp.eq.s32.totalorder %s31, 0
    %s34 = sadd.s32 %s33, 1
    %s35 = scalar_select %p32, %s33, %s34
    %p38 = pneg %p32
    %p39 = scmp.eq.s32.totalorder %s9, 3
    %p40 = por %p38, %p39
    %p41 = scmp.ne.s32.totalorder %s33, %s36
    %p42 = scmp.eq.s32.totalorder %s9, 0
    %p43 = por %p41, %p42
    %p44 = scmp.ne.s32.totalorder %s33, %s36
    %p45 = scmp.eq.s32.totalorder %s14, 3
    %p46 = por %p44, %p45
    %p47 = scmp.ne.s32.totalorder %s36, %s37
    %p48 = scmp.eq.s32.totalorder %s14, 0
    %p49 = por %p47, %p48
    %p50 = scmp.ne.s32.totalorder %s36, %s37
    %p51 = scmp.eq.s32.totalorder %s15, 3
    %p52 = por %p50, %p51
    %p54 = scmp.ne.s32.totalorder %s37, %s53
    %p55 = scmp.eq.s32.totalorder %s15, 0
    %p56 = por %p54, %p55
    %s58 = sadd.s32 %s57, 1
    %p61 = scmp.eq.s32.totalorder %s9, 3
    %p62 = scmp.ne.s32.totalorder %s57, %s59
    %p63 = scmp.eq.s32.totalorder %s9, 0
    %p64 = por %p62, %p63
    %p65 = scmp.ne.s32.totalorder %s57, %s59
    %p66 = scmp.eq.s32.totalorder %s14, 3
    %p67 = por %p65, %p66
    %p68 = scmp.ne.s32.totalorder %s59, %s60
    %p69 = scmp.eq.s32.totalorder %s14, 0
    %p70 = por %p68, %p69
    %p71 = scmp.ne.s32.totalorder %s59, %s60
    %p72 = scmp.eq.s32.totalorder %s15, 3
    %p73 = por %p71, %p72
    %p75 = scmp.ne.s32.totalorder %s60, %s74
    %p76 = scmp.eq.s32.totalorder %s15, 0
    %p77 = por %p75, %p76
    %s79 = sadd.s32 %s78, 1
    %p82 = scmp.eq.s32.totalorder %s9, 3
    %p83 = scmp.ne.s32.totalorder %s78, %s80
    %p84 = scmp.eq.s32.totalorder %s9, 0
    %p85 = por %p83, %p84
    %p86 = scmp.ne.s32.totalorder %s78, %s80
    %p87 = scmp.eq.s32.totalorder %s14, 3
    %p88 = por %p86, %p87
    %p89 = scmp.ne.s32.totalorder %s80, %s81
    %p90 = scmp.eq.s32.totalorder %s14, 0
    %p91 = por %p89, %p90
    %p92 = scmp.ne.s32.totalorder %s80, %s81
    %p93 = scmp.eq.s32.totalorder %s15, 3
    %p94 = por %p92, %p93
    %p96 = scmp.ne.s32.totalorder %s81, %s95
    %p97 = scmp.eq.s32.totalorder %s15, 0
    %p98 = por %p96, %p97
    %s99 = ssub.s32 %s16, %s28
    %s100 = ssub.s32 %s17, %s24
    %s101 = sor.u32 %s99, %s100
    %p102 = scmp.eq.s32.totalorder %s101, 0
    %s104 = sadd.s32 %s103, 1
    %s105 = scalar_select %p102, %s103, %s104
    %p108 = pneg %p102
    %p109 = scmp.eq.s32.totalorder %s9, 3
    %p110 = por %p108, %p109
    %p111 = scmp.ne.s32.totalorder %s103, %s106
    %p112 = scmp.eq.s32.totalorder %s9, 0
    %p113 = por %p111, %p112
    %p114 = scmp.ne.s32.totalorder %s103, %s106
    %p115 = scmp.eq.s32.totalorder %s14, 3
    %p116 = por %p114, %p115
    %p117 = scmp.ne.s32.totalorder %s106, %s107
    %p118 = scmp.eq.s32.totalorder %s14, 0
    %p119 = por %p117, %p118
    %p120 = scmp.ne.s32.totalorder %s106, %s107
    %p121 = scmp.eq.s32.totalorder %s15, 3
    %p122 = por %p120, %p121
    %p124 = scmp.ne.s32.totalorder %s107, %s123
    %p125 = scmp.eq.s32.totalorder %s15, 0
    %p126 = por %p124, %p125
    %p127 = scmp.le.s32.totalorder 1, %s9
    %p128 = scmp.lt.s32.totalorder %s9, 5
    %p129 = pnand %p127, %p128
    %p130 = pneg %p129
    // Predicated region
    $region9: #{upsample_forward.7} parent=5 // pred_check
      _
    $region10: #{upsample_forward.7} parent=5 // pred_check_branch
      %132 = sbr.rel (%p129) target = $region12
    $region11: #{upsample_forward.7} parent=5 // pred_region
      %s133 = ssub.s32 %s9, 1
      // Predicated region
      $region13: #{upsample_forward.7} parent=11 // pred_check
        %p134 = pneg %p70
      $region14: #{upsample_forward.7} parent=11 // pred_check_branch
        %136 = sbr.rel (%p134) target = $region16
      $region15: #{upsample_forward.7} parent=11 // pred_region
        _
      $region16: #{upsample_forward.7} parent=11 // pred_fallthru
        _
      // Predicated region
      $region17: #{upsample_forward.7} parent=11 // pred_check
        %p137 = pneg %p91
      $region18: #{upsample_forward.7} parent=11 // pred_check_branch
        %139 = sbr.rel (%p137) target = $region20
      $region19: #{upsample_forward.7} parent=11 // pred_region
        _
      $region20: #{upsample_forward.7} parent=11 // pred_fallthru
        _
    $region12: #{upsample_forward.7} parent=5 // pred_fallthru
      _
    %p140 = scmp.lt.s32.totalorder %s9, 4
    // Predicated region
    $region21: #{upsample_forward.7} parent=5 // pred_check
      %p141 = pneg %p140
    $region22: #{upsample_forward.7} parent=5 // pred_check_branch
      %143 = sbr.rel (%p141) target = $region24
    $region23: #{upsample_forward.7} parent=5 // pred_region
      // Predicated region
      $region25: #{upsample_forward.7} parent=23 // pred_check
        %p144 = pneg %p43
      $region26: #{upsample_forward.7} parent=23 // pred_check_branch
        %146 = sbr.rel (%p144) target = $region28
      $region27: #{upsample_forward.7} parent=23 // pred_region
        %s147 = smul.u32 8, %s17
        %p148 = scmp.lt.s32.totalorder %s16, 1
        %s149 = scalar_select %p148, %s16, 1
        %p150 = scmp.lt.s32.totalorder %s147, 15
        %s151 = scalar_select %p150, %s147, 15
        %s152 = smul.addr %s151, 2
        %s153 = smul.addr %s149, 32
        %s154 = sadd.s32 %s152, %s153
        %s155 = smul.addr %s154, 8
        %s156 = scalar_lea.vmem %s0, %s155
        %s157 = smul.u32 8, %s17
      $region28: #{upsample_forward.7} parent=23 // pred_fallthru
        _
    $region24: #{upsample_forward.7} parent=5 // pred_fallthru
      _
    %p158 = scmp.le.s32.totalorder 1, %s9
    %p159 = scmp.lt.s32.totalorder %s9, 5
    %p160 = pnand %p158, %p159
    %p161 = pneg %p160
    // Predicated region
    $region29: #{upsample_forward.7} parent=5 // pred_check
      _
    $region30: #{upsample_forward.7} parent=5 // pred_check_branch
      %163 = sbr.rel (%p160) target = $region32
    $region31: #{upsample_forward.7} parent=5 // pred_region
      %s164 = ssub.s32 %s9, 1
      %s165 = smul.u32 8, %s19
      %p166 = scmp.lt.s32.totalorder %s18, 1
      %s167 = scalar_select %p166, %s18, 1
      %p168 = scmp.lt.s32.totalorder %s165, 15
      %s169 = scalar_select %p168, %s165, 15
      %s170 = smul.addr %s169, 2
      %s171 = smul.addr %s167, 32
      %s172 = sadd.s32 %s170, %s171
      %s173 = smul.addr %s172, 8
      %s174 = scalar_lea.vmem %s0, %s173
      %p175 = pneg %p49
      %p176 = pneg %p46
      %p177 = pneg %p70
      %p178 = pneg %p67
      %p179 = pneg %p91
      %p180 = pneg %p88
      %p181 = pneg %p119
      %p182 = pneg %p116
      %s183 = smul.u32 8, %s19
      %p184 = scmp.lt.s32.totalorder %s18, 1
      %s185 = scalar_select %p184, %s18, 1
      %p186 = scmp.lt.s32.totalorder %s183, 15
      %s187 = scalar_select %p186, %s183, 15
      %s188 = smul.addr %s187, 2
      %s189 = smul.addr %s185, 32
      %s190 = sadd.s32 %s188, %s189
      %s191 = smul.addr %s190, 8
      %s192 = scalar_lea.vmem %s3, %s191
      %s193 = smul.u32 8, %s19
      %p194 = scmp.lt.s32.totalorder %s18, 1
      %s195 = scalar_select %p194, %s18, 1
      %p196 = scmp.lt.s32.totalorder %s193, 15
      %s197 = scalar_select %p196, %s193, 15
      %s198 = smul.addr %s197, 2
      %s199 = smul.addr %s195, 32
      %s200 = sadd.s32 %s198, %s199
      %s201 = smul.addr %s200, 8
      %s202 = scalar_lea.vmem %s0, %s201
      %s203 = smul.u32 8, %s19
      %s204 = smul.u32 8, %s19
      %p205 = scmp.lt.s32.totalorder %s18, 1
      %s206 = scalar_select %p205, %s18, 1
      %p207 = scmp.lt.s32.totalorder %s204, 15
      %s208 = scalar_select %p207, %s204, 15
      %s209 = smul.addr %s208, 2
      %s210 = smul.addr %s206, 32
      %s211 = sadd.s32 %s209, %s210
      %s212 = smul.addr %s211, 8
      %s213 = scalar_lea.vmem %s3, %s212
      %s214 = smul.u32 8, %s19
      %v215 = vld [vmem:[%s202] sm:$0xff]
      %v216 = vld [vmem:[%s202 + $0x8] sm:$0xff]
      %v217 = vld [vmem:[%s202 + $0x10] sm:$0xff]
      %v218 = vld [vmem:[%s202 + $0x18] sm:$0xff]
      %v219 = vld [vmem:[%s202 + $0x20] sm:$0xff]
      %v220 = vld [vmem:[%s202 + $0x28] sm:$0xff]
      %v221 = vld [vmem:[%s202 + $0x30] sm:$0xff]
      %v222 = vld [vmem:[%s202 + $0x38] sm:$0xff]
      %v223 = vld [vmem:[%s202 + $0x40] sm:$0xff]
      %v224 = vld [vmem:[%s202 + $0x48] sm:$0xff]
      %v225 = vld [vmem:[%s202 + $0x50] sm:$0xff]
      %v226 = vld [vmem:[%s202 + $0x58] sm:$0xff]
      %v227 = vld [vmem:[%s202 + $0x60] sm:$0xff]
      %v228 = vld [vmem:[%s202 + $0x68] sm:$0xff]
      %v229 = vld [vmem:[%s202 + $0x70] sm:$0xff]
      %v230 = vld [vmem:[%s202 + $0x78] sm:$0xff]
      %v231 = vld [vmem:[%s1] sm:$0x1]
      %v233 = vperm.slane %v231, 0
      %v235 = vmul.f32 %v215, %v233
      %v236 = vmul.f32 %v216, %v233
      %v237 = vmul.f32 %v217, %v233
      %v238 = vmul.f32 %v218, %v233
      %v239 = vmul.f32 %v219, %v233
      %v240 = vmul.f32 %v220, %v233
      %v241 = vmul.f32 %v221, %v233
      %v242 = vmul.f32 %v222, %v233
      %v243 = vmul.f32 %v223, %v233
      %v244 = vmul.f32 %v224, %v233
      %v245 = vmul.f32 %v225, %v233
      %v246 = vmul.f32 %v226, %v233
      %v247 = vmul.f32 %v227, %v233
      %v248 = vmul.f32 %v228, %v233
      %v249 = vmul.f32 %v229, %v233
      %v250 = vmul.f32 %v230, %v233
      %v251 = vld [vmem:[%s2] sm:$0x1]
      %v253 = vperm.slane %v251, 0
      %v255 = vadd.f32 %v235, %v253
      %v256 = vadd.f32 %v236, %v253
      %v257 = vadd.f32 %v237, %v253
      %v258 = vadd.f32 %v238, %v253
      %v259 = vadd.f32 %v239, %v253
      %v260 = vadd.f32 %v240, %v253
      %v261 = vadd.f32 %v241, %v253
      %v262 = vadd.f32 %v242, %v253
      %v263 = vadd.f32 %v243, %v253
      %v264 = vadd.f32 %v244, %v253
      %v265 = vadd.f32 %v245, %v253
      %v266 = vadd.f32 %v246, %v253
      %v267 = vadd.f32 %v247, %v253
      %v268 = vadd.f32 %v248, %v253
      %v269 = vadd.f32 %v249, %v253
      %v270 = vadd.f32 %v250, %v253
      %v271 = vmax.f32 %v255, 0.0
      %v272 = vmax.f32 %v256, 0.0
      %v273 = vmax.f32 %v257, 0.0
      %v274 = vmax.f32 %v258, 0.0
      %v275 = vmax.f32 %v259, 0.0
      %v276 = vmax.f32 %v260, 0.0
      %v277 = vmax.f32 %v261, 0.0
      %v278 = vmax.f32 %v262, 0.0
      %v279 = vmax.f32 %v263, 0.0
      %v280 = vmax.f32 %v264, 0.0
      %v281 = vmax.f32 %v265, 0.0
      %v282 = vmax.f32 %v266, 0.0
      %v283 = vmax.f32 %v267, 0.0
      %v284 = vmax.f32 %v268, 0.0
      %v285 = vmax.f32 %v269, 0.0
      %v286 = vmax.f32 %v270, 0.0
      %vm287 = vcmask 64512
      %288 = vst.msk [vmem:[%s213] sm:$0xff] %vm287, %v271
      %289 = vst.msk [vmem:[%s213 + $0x8] sm:$0xff] %vm287, %v272
      %290 = vst.msk [vmem:[%s213 + $0x10] sm:$0xff] %vm287, %v273
      %291 = vst.msk [vmem:[%s213 + $0x18] sm:$0xff] %vm287, %v274
      %292 = vst.msk [vmem:[%s213 + $0x20] sm:$0xff] %vm287, %v275
      %293 = vst.msk [vmem:[%s213 + $0x28] sm:$0xff] %vm287, %v276
      %294 = vst.msk [vmem:[%s213 + $0x30] sm:$0xff] %vm287, %v277
      %295 = vst.msk [vmem:[%s213 + $0x38] sm:$0xff] %vm287, %v278
      %296 = vst.msk [vmem:[%s213 + $0x40] sm:$0xff] %vm287, %v279
      %297 = vst.msk [vmem:[%s213 + $0x48] sm:$0xff] %vm287, %v280
      %298 = vst.msk [vmem:[%s213 + $0x50] sm:$0xff] %vm287, %v281
      %299 = vst.msk [vmem:[%s213 + $0x58] sm:$0xff] %vm287, %v282
      %300 = vst.msk [vmem:[%s213 + $0x60] sm:$0xff] %vm287, %v283
      %301 = vst.msk [vmem:[%s213 + $0x68] sm:$0xff] %vm287, %v284
      %302 = vst.msk [vmem:[%s213 + $0x70] sm:$0xff] %vm287, %v285
      %303 = vst.msk [vmem:[%s213 + $0x78] sm:$0xff] %vm287, %v286
      %s304 = smul.u32 8, %s19
      %p305 = scmp.lt.s32.totalorder %s18, 1
      %s306 = scalar_select %p305, %s18, 1
      %p307 = scmp.lt.s32.totalorder %s304, 15
      %s308 = scalar_select %p307, %s304, 15
      %s309 = smul.addr %s308, 2
      %s310 = smul.addr %s306, 32
      %s311 = sadd.s32 %s309, %s310
      %s312 = smul.addr %s311, 8
      %s313 = scalar_lea.vmem %s3, %s312
      // Predicated region
      $region33: #{upsample_forward.7} parent=31 // pred_check
        %p314 = pneg %p116
      $region34: #{upsample_forward.7} parent=31 // pred_check_branch
        %316 = sbr.rel (%p314) target = $region36
      $region35: #{upsample_forward.7} parent=31 // pred_region
        %s317 = smul.u32 8, %s19
      $region36: #{upsample_forward.7} parent=31 // pred_fallthru
        _
    $region32: #{upsample_forward.7} parent=5 // pred_fallthru
      _
    %p318 = scmp.le.s32.totalorder 2, %s9
    // Predicated region
    $region37: #{upsample_forward.7} parent=5 // pred_check
      %p319 = pneg %p318
    $region38: #{upsample_forward.7} parent=5 // pred_check_branch
      %321 = sbr.rel (%p319) target = $region40
    $region39: #{upsample_forward.7} parent=5 // pred_region
      %s322 = ssub.s32 %s9, 2
      // Predicated region
      $region41: #{upsample_forward.7} parent=39 // pred_check
        %p323 = pneg %p122
      $region42: #{upsample_forward.7} parent=39 // pred_check_branch
        %325 = sbr.rel (%p323) target = $region44
      $region43: #{upsample_forward.7} parent=39 // pred_region
        %s326 = smul.u32 8, %s21
        %p327 = scmp.lt.s32.totalorder %s20, 1
        %s328 = scalar_select %p327, %s20, 1
        %p329 = scmp.lt.s32.totalorder %s326, 15
        %s330 = scalar_select %p329, %s326, 15
        %s331 = smul.addr %s330, 2
        %s332 = smul.addr %s328, 32
        %s333 = sadd.s32 %s331, %s332
        %s334 = smul.addr %s333, 8
        %s335 = scalar_lea.vmem %s3, %s334
      $region44: #{upsample_forward.7} parent=39 // pred_fallthru
        _
    $region40: #{upsample_forward.7} parent=5 // pred_fallthru
      _
  $region6: #{upsample_forward.7} parent=0 // loop_footer
    %s13 = sadd.s32 1, %s9
  $region7: #{upsample_forward.7} parent=0 // loop_footer_branch
    %8 = sbr.rel target = $region3
  $region8: #{upsample_forward.7} parent=0 // loop_exit
    _

// kernel: upsample_forward.6
$region0: #{upsample_forward.6}
  #allocation0 [shape = 'u32[]', space=smem, size = 0x4, offset = 0x4, fixed_abs, tag = 'smem constant byte address 0x4 - core index']
  #allocation1 [shape = 'u32[72,128]{1,0:T(1,128)}', space=vmem, size = 0x9000, scoped, tag = 'internal scratch']
  %s0 = inlined_call_operand.vmem [shape: f32[2,18,18,8], index: 0, kind: input, shape index: {}]
  %s1 = inlined_call_operand.vmem [shape: bf16[9,8,8], index: 1, kind: input, shape index: {}]
  %s2 = inlined_call_operand.vmem [shape: f32[1,8], index: 2, kind: input, shape index: {}]
  %s3 = inlined_call_operand.vmem [shape: f32[1,8], index: 3, kind: input, shape index: {}]
  %s4 = inlined_call_operand.vmem [shape: f32[1,8], index: 4, kind: input, shape index: {}]
  %s5 = inlined_call_operand.vmem [shape: f32[2,16,16,8], index: 5, kind: output, shape index: {0}]
  %s6 = inlined_call_operand.vmem [shape: f32[2,2,1,8], index: 6, kind: output, shape index: {1}]
  %s7 = inlined_call_operand.vmem [shape: f32[2,2,1,8], index: 7, kind: output, shape index: {2}]
  %8 = xla_tuple %s5, %s6, %s7
  %s9 = sld [smem:[#allocation0]]
  $region69: #{upsample_forward.6} parent=0
    _
  %s11 = ssub.s32 1, %s9
  %s12 = scalar_select 0, %s11, %s9
  loop: start=0, step=1, limit=6
  $region2: #{upsample_forward.6} parent=0 // loop_pre_header
    _
  $region3: #{upsample_forward.6} parent=0 // loop_header
    %s14 = sphi 0, %s18
    %p15 = scmp.ge.s32.totalorder %s14, 6
    %s21 = sphi 0, %s33
    %s22 = sphi 0, %s29
    %s23 = sphi 0, %s21
    %s24 = sphi 0, %s22
    %s25 = sphi 0, %s23
    %s26 = sphi 0, %s24
    %s36 = sphi 0, %s38
    %s39 = sphi 0, %s36
    %s40 = sphi 0, %s39
    %s56 = sphi 0, %s40
    %s60 = sphi 0, %s60
    %s62 = sphi 0, %s60
    %s63 = sphi 0, %s62
    %s77 = sphi 0, %s63
    %s81 = sphi 0, %s81
    %s83 = sphi 0, %s81
    %s84 = sphi 0, %s83
    %s98 = sphi 0, %s84
    %s102 = sphi 0, %s102
    %s104 = sphi 0, %s102
    %s105 = sphi 0, %s104
    %s119 = sphi 0, %s105
    %s123 = sphi 0, %s123
    %s125 = sphi 0, %s123
    %s126 = sphi 0, %s125
    %s140 = sphi 0, %s126
    %s148 = sphi 0, %s150
    %s151 = sphi 0, %s148
    %s152 = sphi 0, %s151
    %s168 = sphi 0, %s152
    %s176 = sphi 0, %s178
    %s179 = sphi 0, %s176
    %s180 = sphi 0, %s179
    %s196 = sphi 0, %s180
    %s204 = sphi 0, %s206
    %s207 = sphi 0, %s204
    %s208 = sphi 0, %s207
    %s224 = sphi 0, %s208
  $region4: #{upsample_forward.6} parent=0 // loop_header_branch
    %17 = sbr.rel (%p15) target = $region8
  $region5: #{upsample_forward.6} parent=0 // loop_body
    %s19 = ssub.s32 %s14, 1
    %s20 = ssub.s32 %s14, 2
    %s27 = sadd.s32 1, %s22
    %p28 = scmp.ge.s32.totalorder %s27, 2
    %s29 = scalar_select %p28, 0, %s27
    %s30 = sadd.s32 1, %s21
    %s31 = scalar_select %p28, %s30, %s21
    %p32 = scmp.ge.s32.totalorder %s31, 2
    %s33 = scalar_select %p32, 0, %s31
    %s34 = ssub.s32 %s21, %s33
    %p35 = scmp.eq.s32.totalorder %s34, 0
    %s37 = sadd.s32 %s36, 1
    %s38 = scalar_select %p35, %s36, %s37
    %p41 = pneg %p35
    %p42 = scmp.eq.s32.totalorder %s14, 3
    %p43 = por %p41, %p42
    %p44 = scmp.ne.s32.totalorder %s36, %s39
    %p45 = scmp.eq.s32.totalorder %s14, 0
    %p46 = por %p44, %p45
    %p47 = scmp.ne.s32.totalorder %s36, %s39
    %p48 = scmp.eq.s32.totalorder %s19, 3
    %p49 = por %p47, %p48
    %p50 = scmp.ne.s32.totalorder %s39, %s40
    %p51 = scmp.eq.s32.totalorder %s19, 0
    %p52 = por %p50, %p51
    %p53 = scmp.ne.s32.totalorder %s39, %s40
    %p54 = scmp.eq.s32.totalorder %s20, 3
    %p55 = por %p53, %p54
    %p57 = scmp.ne.s32.totalorder %s40, %s56
    %p58 = scmp.eq.s32.totalorder %s20, 0
    %p59 = por %p57, %p58
    %s61 = sadd.s32 %s60, 1
    %p64 = scmp.eq.s32.totalorder %s14, 3
    %p65 = scmp.ne.s32.totalorder %s60, %s62
    %p66 = scmp.eq.s32.totalorder %s14, 0
    %p67 = por %p65, %p66
    %p68 = scmp.ne.s32.totalorder %s60, %s62
    %p69 = scmp.eq.s32.totalorder %s19, 3
    %p70 = por %p68, %p69
    %p71 = scmp.ne.s32.totalorder %s62, %s63
    %p72 = scmp.eq.s32.totalorder %s19, 0
    %p73 = por %p71, %p72
    %p74 = scmp.ne.s32.totalorder %s62, %s63
    %p75 = scmp.eq.s32.totalorder %s20, 3
    %p76 = por %p74, %p75
    %p78 = scmp.ne.s32.totalorder %s63, %s77
    %p79 = scmp.eq.s32.totalorder %s20, 0
    %p80 = por %p78, %p79
    %s82 = sadd.s32 %s81, 1
    %p85 = scmp.eq.s32.totalorder %s14, 3
    %p86 = scmp.ne.s32.totalorder %s81, %s83
    %p87 = scmp.eq.s32.totalorder %s14, 0
    %p88 = por %p86, %p87
    %p89 = scmp.ne.s32.totalorder %s81, %s83
    %p90 = scmp.eq.s32.totalorder %s19, 3
    %p91 = por %p89, %p90
    %p92 = scmp.ne.s32.totalorder %s83, %s84
    %p93 = scmp.eq.s32.totalorder %s19, 0
    %p94 = por %p92, %p93
    %p95 = scmp.ne.s32.totalorder %s83, %s84
    %p96 = scmp.eq.s32.totalorder %s20, 3
    %p97 = por %p95, %p96
    %p99 = scmp.ne.s32.totalorder %s84, %s98
    %p100 = scmp.eq.s32.totalorder %s20, 0
    %p101 = por %p99, %p100
    %s103 = sadd.s32 %s102, 1
    %p106 = scmp.eq.s32.totalorder %s14, 3
    %p107 = scmp.ne.s32.totalorder %s102, %s104
    %p108 = scmp.eq.s32.totalorder %s14, 0
    %p109 = por %p107, %p108
    %p110 = scmp.ne.s32.totalorder %s102, %s104
    %p111 = scmp.eq.s32.totalorder %s19, 3
    %p112 = por %p110, %p111
    %p113 = scmp.ne.s32.totalorder %s104, %s105
    %p114 = scmp.eq.s32.totalorder %s19, 0
    %p115 = por %p113, %p114
    %p116 = scmp.ne.s32.totalorder %s104, %s105
    %p117 = scmp.eq.s32.totalorder %s20, 3
    %p118 = por %p116, %p117
    %p120 = scmp.ne.s32.totalorder %s105, %s119
    %p121 = scmp.eq.s32.totalorder %s20, 0
    %p122 = por %p120, %p121
    %s124 = sadd.s32 %s123, 1
    %p127 = scmp.eq.s32.totalorder %s14, 3
    %p128 = scmp.ne.s32.totalorder %s123, %s125
    %p129 = scmp.eq.s32.totalorder %s14, 0
    %p130 = por %p128, %p129
    %p131 = scmp.ne.s32.totalorder %s123, %s125
    %p132 = scmp.eq.s32.totalorder %s19, 3
    %p133 = por %p131, %p132
    %p134 = scmp.ne.s32.totalorder %s125, %s126
    %p135 = scmp.eq.s32.totalorder %s19, 0
    %p136 = por %p134, %p135
    %p137 = scmp.ne.s32.totalorder %s125, %s126
    %p138 = scmp.eq.s32.totalorder %s20, 3
    %p139 = por %p137, %p138
    %p141 = scmp.ne.s32.totalorder %s126, %s140
    %p142 = scmp.eq.s32.totalorder %s20, 0
    %p143 = por %p141, %p142
    %s144 = ssub.s32 %s21, %s33
    %s145 = ssub.s32 %s22, %s29
    %s146 = sor.u32 %s144, %s145
    %p147 = scmp.eq.s32.totalorder %s146, 0
    %s149 = sadd.s32 %s148, 1
    %s150 = scalar_select %p147, %s148, %s149
    %p153 = pneg %p147
    %p154 = scmp.eq.s32.totalorder %s14, 3
    %p155 = por %p153, %p154
    %p156 = scmp.ne.s32.totalorder %s148, %s151
    %p157 = scmp.eq.s32.totalorder %s14, 0
    %p158 = por %p156, %p157
    %p159 = scmp.ne.s32.totalorder %s148, %s151
    %p160 = scmp.eq.s32.totalorder %s19, 3
    %p161 = por %p159, %p160
    %p162 = scmp.ne.s32.totalorder %s151, %s152
    %p163 = scmp.eq.s32.totalorder %s19, 0
    %p164 = por %p162, %p163
    %p165 = scmp.ne.s32.totalorder %s151, %s152
    %p166 = scmp.eq.s32.totalorder %s20, 3
    %p167 = por %p165, %p166
    %p169 = scmp.ne.s32.totalorder %s152, %s168
    %p170 = scmp.eq.s32.totalorder %s20, 0
    %p171 = por %p169, %p170
    %s172 = ssub.s32 %s21, %s33
    %s173 = ssub.s32 %s22, %s29
    %s174 = sor.u32 %s172, %s173
    %p175 = scmp.eq.s32.totalorder %s174, 0
    %s177 = sadd.s32 %s176, 1
    %s178 = scalar_select %p175, %s176, %s177
    %p181 = pneg %p175
    %p182 = scmp.eq.s32.totalorder %s14, 3
    %p183 = por %p181, %p182
    %p184 = scmp.ne.s32.totalorder %s176, %s179
    %p185 = scmp.eq.s32.totalorder %s14, 0
    %p186 = por %p184, %p185
    %p187 = scmp.ne.s32.totalorder %s176, %s179
    %p188 = scmp.eq.s32.totalorder %s19, 3
    %p189 = por %p187, %p188
    %p190 = scmp.ne.s32.totalorder %s179, %s180
    %p191 = scmp.eq.s32.totalorder %s19, 0
    %p192 = por %p190, %p191
    %p193 = scmp.ne.s32.totalorder %s179, %s180
    %p194 = scmp.eq.s32.totalorder %s20, 3
    %p195 = por %p193, %p194
    %p197 = scmp.ne.s32.totalorder %s180, %s196
    %p198 = scmp.eq.s32.totalorder %s20, 0
    %p199 = por %p197, %p198
    %s200 = ssub.s32 %s21, %s33
    %s201 = ssub.s32 %s22, %s29
    %s202 = sor.u32 %s200, %s201
    %p203 = scmp.eq.s32.totalorder %s202, 0
    %s205 = sadd.s32 %s204, 1
    %s206 = scalar_select %p203, %s204, %s205
    %p209 = pneg %p203
    %p210 = scmp.eq.s32.totalorder %s14, 3
    %p211 = por %p209, %p210
    %p212 = scmp.ne.s32.totalorder %s204, %s207
    %p213 = scmp.eq.s32.totalorder %s14, 0
    %p214 = por %p212, %p213
    %p215 = scmp.ne.s32.totalorder %s204, %s207
    %p216 = scmp.eq.s32.totalorder %s19, 3
    %p217 = por %p215, %p216
    %p218 = scmp.ne.s32.totalorder %s207, %s208
    %p219 = scmp.eq.s32.totalorder %s19, 0
    %p220 = por %p218, %p219
    %p221 = scmp.ne.s32.totalorder %s207, %s208
    %p222 = scmp.eq.s32.totalorder %s20, 3
    %p223 = por %p221, %p222
    %p225 = scmp.ne.s32.totalorder %s208, %s224
    %p226 = scmp.eq.s32.totalorder %s20, 0
    %p227 = por %p225, %p226
    %p228 = scmp.le.s32.totalorder 1, %s14
    %p229 = scmp.lt.s32.totalorder %s14, 5
    %p230 = pnand %p228, %p229
    %p231 = pneg %p230
    // Predicated region
    $region9: #{upsample_forward.6} parent=5 // pred_check
      _
    $region10: #{upsample_forward.6} parent=5 // pred_check_branch
      %233 = sbr.rel (%p230) target = $region12
    $region11: #{upsample_forward.6} parent=5 // pred_region
      %s234 = ssub.s32 %s14, 1
      // Predicated region
      $region13: #{upsample_forward.6} parent=11 // pred_check
        %p235 = pneg %p73
      $region14: #{upsample_forward.6} parent=11 // pred_check_branch
        %237 = sbr.rel (%p235) target = $region16
      $region15: #{upsample_forward.6} parent=11 // pred_region
        _
      $region16: #{upsample_forward.6} parent=11 // pred_fallthru
        _
      // Predicated region
      $region17: #{upsample_forward.6} parent=11 // pred_check
        %p238 = pneg %p94
      $region18: #{upsample_forward.6} parent=11 // pred_check_branch
        %240 = sbr.rel (%p238) target = $region20
      $region19: #{upsample_forward.6} parent=11 // pred_region
        _
      $region20: #{upsample_forward.6} parent=11 // pred_fallthru
        _
      // Predicated region
      $region21: #{upsample_forward.6} parent=11 // pred_check
        %p241 = pneg %p115
      $region22: #{upsample_forward.6} parent=11 // pred_check_branch
        %243 = sbr.rel (%p241) target = $region24
      $region23: #{upsample_forward.6} parent=11 // pred_region
        _
      $region24: #{upsample_forward.6} parent=11 // pred_fallthru
        _
      // Predicated region
      $region25: #{upsample_forward.6} parent=11 // pred_check
        %p244 = pneg %p136
      $region26: #{upsample_forward.6} parent=11 // pred_check_branch
        %246 = sbr.rel (%p244) target = $region28
      $region27: #{upsample_forward.6} parent=11 // pred_region
        _
      $region28: #{upsample_forward.6} parent=11 // pred_fallthru
        _
    $region12: #{upsample_forward.6} parent=5 // pred_fallthru
      _
    %p247 = scmp.lt.s32.totalorder %s14, 4
    // Predicated region
    $region29: #{upsample_forward.6} parent=5 // pred_check
      %p248 = pneg %p247
    $region30: #{upsample_forward.6} parent=5 // pred_check_branch
      %250 = sbr.rel (%p248) target = $region32
    $region31: #{upsample_forward.6} parent=5 // pred_region
      // Predicated region
      $region33: #{upsample_forward.6} parent=31 // pred_check
        %p251 = pneg %p46
      $region34: #{upsample_forward.6} parent=31 // pred_check_branch
        %253 = sbr.rel (%p251) target = $region36
      $region35: #{upsample_forward.6} parent=31 // pred_region
        %p254 = scmp.lt.s32.totalorder %s21, 1
        %s255 = scalar_select %p254, %s21, 1
        %s256 = smul.addr %s255, 54
        %s257 = smul.addr %s256, 8
        %s258 = scalar_lea.vmem %s0, %s257
      $region36: #{upsample_forward.6} parent=31 // pred_fallthru
        _
    $region32: #{upsample_forward.6} parent=5 // pred_fallthru
      _
    %p259 = scmp.le.s32.totalorder 1, %s14
    %p260 = scmp.lt.s32.totalorder %s14, 5
    %p261 = pnand %p259, %p260
    %p262 = pneg %p261
    // Predicated region
    $region37: #{upsample_forward.6} parent=5 // pred_check
      _
    $region38: #{upsample_forward.6} parent=5 // pred_check_branch
      %264 = sbr.rel (%p261) target = $region40
    $region39: #{upsample_forward.6} parent=5 // pred_region
      %s265 = ssub.s32 %s14, 1
      %p266 = scmp.lt.s32.totalorder %s23, 1
      %s267 = scalar_select %p266, %s23, 1
      %s268 = smul.addr %s267, 54
      %s269 = smul.addr %s268, 8
      %s270 = scalar_lea.vmem %s0, %s269
      %p271 = pneg %p52
      %p272 = pneg %p49
      %p273 = pneg %p73
      %p274 = pneg %p70
      %p275 = pneg %p94
      %p276 = pneg %p91
      %p277 = pneg %p115
      %p278 = pneg %p112
      %p279 = pneg %p136
      %p280 = pneg %p133
      %p281 = pneg %p164
      %p282 = pneg %p161
      %s283 = smul.u32 8, %s24
      %p284 = scmp.lt.s32.totalorder %s23, 1
      %s285 = scalar_select %p284, %s23, 1
      %p286 = scmp.lt.s32.totalorder %s283, 15
      %s287 = scalar_select %p286, %s283, 15
      %s288 = smul.addr %s287, 2
      %s289 = smul.addr %s285, 32
      %s290 = sadd.s32 %s288, %s289
      %s291 = smul.addr %s290, 8
      %s292 = scalar_lea.vmem %s5, %s291
      %p293 = pneg %p192
      %p294 = pneg %p189
      %p295 = scmp.lt.s32.totalorder %s23, 1
      %s296 = scalar_select %p295, %s23, 1
      %p297 = scmp.lt.s32.totalorder %s24, 1
      %s298 = scalar_select %p297, %s24, 1
      %s299 = smul.addr %s296, 2
      %s300 = sadd.s32 %s298, %s299
      %s301 = scalar_lea.vmem %s6, %s300
      %p302 = pneg %p220
      %p303 = pneg %p217
      %p304 = scmp.lt.s32.totalorder %s23, 1
      %s305 = scalar_select %p304, %s23, 1
      %p306 = scmp.lt.s32.totalorder %s24, 1
      %s307 = scalar_select %p306, %s24, 1
      %s308 = smul.addr %s305, 2
      %s309 = sadd.s32 %s307, %s308
      %s310 = scalar_lea.vmem %s7, %s309
      %p311 = scmp.lt.s32.totalorder %s23, 1
      %s312 = scalar_select %p311, %s23, 1
      %s313 = smul.addr %s312, 54
      %s314 = smul.addr %s313, 8
      %s315 = scalar_lea.vmem %s0, %s314
      %s316 = smul.u32 8, %s24
      %p317 = scmp.lt.s32.totalorder %s23, 1
      %s318 = scalar_select %p317, %s23, 1
      %p319 = scmp.lt.s32.totalorder %s316, 15
      %s320 = scalar_select %p319, %s316, 15
      %s321 = smul.addr %s320, 2
      %s322 = smul.addr %s318, 32
      %s323 = sadd.s32 %s321, %s322
      %s324 = smul.addr %s323, 8
      %s325 = scalar_lea.vmem %s5, %s324
      %s326 = smul.u32 8, %s24
      %p327 = scmp.lt.s32.totalorder %s23, 1
      %s328 = scalar_select %p327, %s23, 1
      %p329 = scmp.lt.s32.totalorder %s24, 1
      %s330 = scalar_select %p329, %s24, 1
      %s331 = smul.addr %s328, 2
      %s332 = sadd.s32 %s330, %s331
      %s333 = scalar_lea.vmem %s6, %s332
      %p334 = scmp.lt.s32.totalorder %s23, 1
      %s335 = scalar_select %p334, %s23, 1
      %p336 = scmp.lt.s32.totalorder %s24, 1
      %s337 = scalar_select %p336, %s24, 1
      %s338 = smul.addr %s335, 2
      %s339 = sadd.s32 %s337, %s338
      %s340 = scalar_lea.vmem %s7, %s339
      %s342 = smul.u32 %s24, 8
      %s343 = smul.u32 %s342, 24
      %s344 = scalar_lea.vmem %s315, %s343
      %v345 = vld [vmem:[%s344] sm:$0xff]
      %v346 = vld [vmem:[%s344 + $0x8] sm:$0xff]
      %v347 = vld [vmem:[%s344 + $0x10] sm:$0x3]
      %v348 = vld [vmem:[%s344 + $0x18] sm:$0xff]
      %v349 = vld [vmem:[%s344 + $0x20] sm:$0xff]
      %v350 = vld [vmem:[%s344 + $0x28] sm:$0x3]
      %v351 = vld [vmem:[%s344 + $0x30] sm:$0xff]
      %v352 = vld [vmem:[%s344 + $0x38] sm:$0xff]
      %v353 = vld [vmem:[%s344 + $0x40] sm:$0x3]
      %v354 = vld [vmem:[%s344 + $0x48] sm:$0xff]
      %v355 = vld [vmem:[%s344 + $0x50] sm:$0xff]
      %v356 = vld [vmem:[%s344 + $0x58] sm:$0x3]
      %v357 = vld [vmem:[%s344 + $0x60] sm:$0xff]
      %v358 = vld [vmem:[%s344 + $0x68] sm:$0xff]
      %v359 = vld [vmem:[%s344 + $0x70] sm:$0x3]
      %v360 = vld [vmem:[%s344 + $0x78] sm:$0xff]
      %v361 = vld [vmem:[%s344 + $0x80] sm:$0xff]
      %v362 = vld [vmem:[%s344 + $0x88] sm:$0x3]
      %v363 = vld [vmem:[%s344 + $0x90] sm:$0xff]
      %v364 = vld [vmem:[%s344 + $0x98] sm:$0xff]
      %v365 = vld [vmem:[%s344 + $0xa0] sm:$0x3]
      %v366 = vld [vmem:[%s344 + $0xa8] sm:$0xff]
      %v367 = vld [vmem:[%s344 + $0xb0] sm:$0xff]
      %v368 = vld [vmem:[%s344 + $0xb8] sm:$0x3]
      %v369 = vld [vmem:[%s344 + $0xc0] sm:$0xff]
      %v370 = vld [vmem:[%s344 + $0xc8] sm:$0xff]
      %v371 = vld [vmem:[%s344 + $0xd0] sm:$0x3]
      %v372 = vld [vmem:[%s344 + $0xd8] sm:$0xff]
      %v373 = vld [vmem:[%s344 + $0xe0] sm:$0xff]
      %v374 = vld [vmem:[%s344 + $0xe8] sm:$0x3]
      %v375 = vld [vmem:[%s3] sm:$0x1]
      %v377 = vperm.slane %v375, 0
      %v379 = vmul.f32 %v345, %v377
      %v380 = vmul.f32 %v346, %v377
      %v381 = vmul.f32 %v347, %v377
      %v382 = vmul.f32 %v348, %v377
      %v383 = vmul.f32 %v349, %v377
      %v384 = vmul.f32 %v350, %v377
      %v385 = vmul.f32 %v351, %v377
      %v386 = vmul.f32 %v352, %v377
      %v387 = vmul.f32 %v353, %v377
      %v388 = vmul.f32 %v354, %v377
      %v389 = vmul.f32 %v355, %v377
      %v390 = vmul.f32 %v356, %v377
      %v391 = vmul.f32 %v357, %v377
      %v392 = vmul.f32 %v358, %v377
      %v393 = vmul.f32 %v359, %v377
      %v394 = vmul.f32 %v360, %v377
      %v395 = vmul.f32 %v361, %v377
      %v396 = vmul.f32 %v362, %v377
      %v397 = vmul.f32 %v363, %v377
      %v398 = vmul.f32 %v364, %v377
      %v399 = vmul.f32 %v365, %v377
      %v400 = vmul.f32 %v366, %v377
      %v401 = vmul.f32 %v367, %v377
      %v402 = vmul.f32 %v368, %v377
      %v403 = vmul.f32 %v369, %v377
      %v404 = vmul.f32 %v370, %v377
      %v405 = vmul.f32 %v371, %v377
      %v406 = vmul.f32 %v372, %v377
      %v407 = vmul.f32 %v373, %v377
      %v408 = vmul.f32 %v374, %v377
      %v409 = vld [vmem:[%s4] sm:$0x1]
      %v411 = vperm.slane %v409, 0
      %v413 = vadd.f32 %v379, %v411
      %v414 = vadd.f32 %v380, %v411
      %v415 = vadd.f32 %v381, %v411
      %v416 = vadd.f32 %v382, %v411
      %v417 = vadd.f32 %v383, %v411
      %v418 = vadd.f32 %v384, %v411
      %v419 = vadd.f32 %v385, %v411
      %v420 = vadd.f32 %v386, %v411
      %v421 = vadd.f32 %v387, %v411
      %v422 = vadd.f32 %v388, %v411
      %v423 = vadd.f32 %v389, %v411
      %v424 = vadd.f32 %v390, %v411
      %v425 = vadd.f32 %v391, %v411
      %v426 = vadd.f32 %v392, %v411
      %v427 = vadd.f32 %v393, %v411
      %v428 = vadd.f32 %v394, %v411
      %v429 = vadd.f32 %v395, %v411
      %v430 = vadd.f32 %v396, %v411
      %v431 = vadd.f32 %v397, %v411
      %v432 = vadd.f32 %v398, %v411
      %v433 = vadd.f32 %v399, %v411
      %v434 = vadd.f32 %v400, %v411
      %v435 = vadd.f32 %v401, %v411
      %v436 = vadd.f32 %v402, %v411
      %v437 = vadd.f32 %v403, %v411
      %v438 = vadd.f32 %v404, %v411
      %v439 = vadd.f32 %v405, %v411
      %v440 = vadd.f32 %v406, %v411
      %v441 = vadd.f32 %v407, %v411
      %v442 = vadd.f32 %v408, %v411
      %v443 = vmax.f32 %v413, 0.0
      %v444 = vmax.f32 %v414, 0.0
      %v445 = vmax.f32 %v415, 0.0
      %v446 = vmax.f32 %v416, 0.0
      %v447 = vmax.f32 %v417, 0.0
      %v448 = vmax.f32 %v418, 0.0
      %v449 = vmax.f32 %v419, 0.0
      %v450 = vmax.f32 %v420, 0.0
      %v451 = vmax.f32 %v421, 0.0
      %v452 = vmax.f32 %v422, 0.0
      %v453 = vmax.f32 %v423, 0.0
      %v454 = vmax.f32 %v424, 0.0
      %v455 = vmax.f32 %v425, 0.0
      %v456 = vmax.f32 %v426, 0.0
      %v457 = vmax.f32 %v427, 0.0
      %v458 = vmax.f32 %v428, 0.0
      %v459 = vmax.f32 %v429, 0.0
      %v460 = vmax.f32 %v430, 0.0
      %v461 = vmax.f32 %v431, 0.0
      %v462 = vmax.f32 %v432, 0.0
      %v463 = vmax.f32 %v433, 0.0
      %v464 = vmax.f32 %v434, 0.0
      %v465 = vmax.f32 %v435, 0.0
      %v466 = vmax.f32 %v436, 0.0
      %v467 = vmax.f32 %v437, 0.0
      %v468 = vmax.f32 %v438, 0.0
      %v469 = vmax.f32 %v439, 0.0
      %v470 = vmax.f32 %v440, 0.0
      %v471 = vmax.f32 %v441, 0.0
      %v472 = vmax.f32 %v442, 0.0
      %v473 = vstv %s342
      %v474 = vadd.s32 %v473, 1
      %v475 = vadd.s32 %v473, 2
      %v476 = vadd.s32 %v473, 3
      %v477 = vadd.s32 %v473, 4
      %v478 = vadd.s32 %v473, 5
      %v479 = vadd.s32 %v473, 6
      %v480 = vadd.s32 %v473, 7
      %v481 = vadd.s32 %v473, 8
      %v482 = vadd.s32 %v473, 9
      %v483 = vlaneseq
      %v484 = vshrl.u32 %v483, 7
      %v485 = vadd.s32 %v484, 8
      %v486 = vadd.s32 %v484, 16
      %vm487 = vcmp.gt.s32.totalorder %v473, 0
      %vm488 = vcmp.gt.s32.totalorder %v474, 0
      %vm489 = vcmp.gt.s32.totalorder %v475, 0
      %vm490 = vcmp.gt.s32.totalorder %v476, 0
      %vm491 = vcmp.gt.s32.totalorder %v477, 0
      %vm492 = vcmp.gt.s32.totalorder %v478, 0
      %vm493 = vcmp.gt.s32.totalorder %v479, 0
      %vm494 = vcmp.gt.s32.totalorder %v480, 0
      %vm495 = vcmp.gt.s32.totalorder %v481, 0
      %vm496 = vcmp.gt.s32.totalorder %v482, 0
      %vm497 = vcmp.lt.s32.totalorder %v473, 17
      %vm498 = vcmp.lt.s32.totalorder %v474, 17
      %vm499 = vcmp.lt.s32.totalorder %v475, 17
      %vm500 = vcmp.lt.s32.totalorder %v476, 17
      %vm501 = vcmp.lt.s32.totalorder %v477, 17
      %vm502 = vcmp.lt.s32.totalorder %v478, 17
      %vm503 = vcmp.lt.s32.totalorder %v479, 17
      %vm504 = vcmp.lt.s32.totalorder %v480, 17
      %vm505 = vcmp.lt.s32.totalorder %v481, 17
      %vm506 = vcmp.lt.s32.totalorder %v482, 17
      %vm507 = vmand %vm487, %vm497
      %vm508 = vmand %vm488, %vm498
      %vm509 = vmand %vm489, %vm499
      %vm510 = vmand %vm490, %vm500
      %vm511 = vmand %vm491, %vm501
      %vm512 = vmand %vm492, %vm502
      %vm513 = vmand %vm493, %vm503
      %vm514 = vmand %vm494, %vm504
      %vm515 = vmand %vm495, %vm505
      %vm516 = vmand %vm496, %vm506
      %vm517 = vcmp.gt.s32.totalorder %v484, 0
      %vm518 = vcmp.gt.s32.totalorder %v485, 0
      %vm519 = vcmp.gt.s32.totalorder %v486, 0
      %vm520 = vmand %vm507, %vm517
      %vm521 = vmand %vm507, %vm518
      %vm522 = vmand %vm507, %vm519
      %vm523 = vmand %vm508, %vm517
      %vm524 = vmand %vm508, %vm518
      %vm525 = vmand %vm508, %vm519
      %vm526 = vmand %vm509, %vm517
      %vm527 = vmand %vm509, %vm518
      %vm528 = vmand %vm509, %vm519
      %vm529 = vmand %vm510, %vm517
      %vm530 = vmand %vm510, %vm518
      %vm531 = vmand %vm510, %vm519
      %vm532 = vmand %vm511, %vm517
      %vm533 = vmand %vm511, %vm518
      %vm534 = vmand %vm511, %vm519
      %vm535 = vmand %vm512, %vm517
      %vm536 = vmand %vm512, %vm518
      %vm537 = vmand %vm512, %vm519
      %vm538 = vmand %vm513, %vm517
      %vm539 = vmand %vm513, %vm518
      %vm540 = vmand %vm513, %vm519
      %vm541 = vmand %vm514, %vm517
      %vm542 = vmand %vm514, %vm518
      %vm543 = vmand %vm514, %vm519
      %vm544 = vmand %vm515, %vm517
      %vm545 = vmand %vm515, %vm518
      %vm546 = vmand %vm515, %vm519
      %vm547 = vmand %vm516, %vm517
      %vm548 = vmand %vm516, %vm518
      %vm549 = vmand %vm516, %vm519
      %vm550 = vcmp.lt.s32.totalorder %v484, 17
      %vm551 = vcmp.lt.s32.totalorder %v485, 17
      %vm552 = vcmp.lt.s32.totalorder %v486, 17
      %vm553 = vmand %vm520, %vm550
      %vm554 = vmand %vm521, %vm551
      %vm555 = vmand %vm522, %vm552
      %vm556 = vmand %vm523, %vm550
      %vm557 = vmand %vm524, %vm551
      %vm558 = vmand %vm525, %vm552
      %vm559 = vmand %vm526, %vm550
      %vm560 = vmand %vm527, %vm551
      %vm561 = vmand %vm528, %vm552
      %vm562 = vmand %vm529, %vm550
      %vm563 = vmand %vm530, %vm551
      %vm564 = vmand %vm531, %vm552
      %vm565 = vmand %vm532, %vm550
      %vm566 = vmand %vm533, %vm551
      %vm567 = vmand %vm534, %vm552
      %vm568 = vmand %vm535, %vm550
      %vm569 = vmand %vm536, %vm551
      %vm570 = vmand %vm537, %vm552
      %vm571 = vmand %vm538, %vm550
      %vm572 = vmand %vm539, %vm551
      %vm573 = vmand %vm540, %vm552
      %vm574 = vmand %vm541, %vm550
      %vm575 = vmand %vm542, %vm551
      %vm576 = vmand %vm543, %vm552
      %vm577 = vmand %vm544, %vm550
      %vm578 = vmand %vm545, %vm551
      %vm579 = vmand %vm546, %vm552
      %vm580 = vmand %vm547, %vm550
      %vm581 = vmand %vm548, %vm551
      %vm582 = vmand %vm549, %vm552
      %v583 = vsel %vm553, 1, 0
      %v584 = vsel %vm554, 1, 0
      %v585 = vsel %vm555, 1, 0
      %v586 = vsel %vm556, 1, 0
      %v587 = vsel %vm557, 1, 0
      %v588 = vsel %vm558, 1, 0
      %v589 = vsel %vm559, 1, 0
      %v590 = vsel %vm560, 1, 0
      %v591 = vsel %vm561, 1, 0
      %v592 = vsel %vm562, 1, 0
      %v593 = vsel %vm563, 1, 0
      %v594 = vsel %vm564, 1, 0
      %v595 = vsel %vm565, 1, 0
      %v596 = vsel %vm566, 1, 0
      %v597 = vsel %vm567, 1, 0
      %v598 = vsel %vm568, 1, 0
      %v599 = vsel %vm569, 1, 0
      %v600 = vsel %vm570, 1, 0
      %v601 = vsel %vm571, 1, 0
      %v602 = vsel %vm572, 1, 0
      %v603 = vsel %vm573, 1, 0
      %v604 = vsel %vm574, 1, 0
      %v605 = vsel %vm575, 1, 0
      %v606 = vsel %vm576, 1, 0
      %v607 = vsel %vm577, 1, 0
      %v608 = vsel %vm578, 1, 0
      %v609 = vsel %vm579, 1, 0
      %v610 = vsel %vm580, 1, 0
      %v611 = vsel %vm581, 1, 0
      %v612 = vsel %vm582, 1, 0
      %vm613 = vcmp.eq.s32.totalorder %v583, 1
      %vm614 = vcmp.eq.s32.totalorder %v584, 1
      %vm615 = vcmp.eq.s32.totalorder %v585, 1
      %vm616 = vcmp.eq.s32.totalorder %v586, 1
      %vm617 = vcmp.eq.s32.totalorder %v587, 1
      %vm618 = vcmp.eq.s32.totalorder %v588, 1
      %vm619 = vcmp.eq.s32.totalorder %v589, 1
      %vm620 = vcmp.eq.s32.totalorder %v590, 1
      %vm621 = vcmp.eq.s32.totalorder %v591, 1
      %vm622 = vcmp.eq.s32.totalorder %v592, 1
      %vm623 = vcmp.eq.s32.totalorder %v593, 1
      %vm624 = vcmp.eq.s32.totalorder %v594, 1
      %vm625 = vcmp.eq.s32.totalorder %v595, 1
      %vm626 = vcmp.eq.s32.totalorder %v596, 1
      %vm627 = vcmp.eq.s32.totalorder %v597, 1
      %vm628 = vcmp.eq.s32.totalorder %v598, 1
      %vm629 = vcmp.eq.s32.totalorder %v599, 1
      %vm630 = vcmp.eq.s32.totalorder %v600, 1
      %vm631 = vcmp.eq.s32.totalorder %v601, 1
      %vm632 = vcmp.eq.s32.totalorder %v602, 1
      %vm633 = vcmp.eq.s32.totalorder %v603, 1
      %vm634 = vcmp.eq.s32.totalorder %v604, 1
      %vm635 = vcmp.eq.s32.totalorder %v605, 1
      %vm636 = vcmp.eq.s32.totalorder %v606, 1
      %vm637 = vcmp.eq.s32.totalorder %v607, 1
      %vm638 = vcmp.eq.s32.totalorder %v608, 1
      %vm639 = vcmp.eq.s32.totalorder %v609, 1
      %vm640 = vcmp.eq.s32.totalorder %v610, 1
      %vm641 = vcmp.eq.s32.totalorder %v611, 1
      %vm642 = vcmp.eq.s32.totalorder %v612, 1
      %v643 = vsel %vm613, %v443, 0.0
      %v644 = vsel %vm614, %v444, 0.0
      %v645 = vsel %vm615, %v445, 0.0
      %v646 = vsel %vm616, %v446, 0.0
      %v647 = vsel %vm617, %v447, 0.0
      %v648 = vsel %vm618, %v448, 0.0
      %v649 = vsel %vm619, %v449, 0.0
      %v650 = vsel %vm620, %v450, 0.0
      %v651 = vsel %vm621, %v451, 0.0
      %v652 = vsel %vm622, %v452, 0.0
      %v653 = vsel %vm623, %v453, 0.0
      %v654 = vsel %vm624, %v454, 0.0
      %v655 = vsel %vm625, %v455, 0.0
      %v656 = vsel %vm626, %v456, 0.0
      %v657 = vsel %vm627, %v457, 0.0
      %v658 = vsel %vm628, %v458, 0.0
      %v659 = vsel %vm629, %v459, 0.0
      %v660 = vsel %vm630, %v460, 0.0
      %v661 = vsel %vm631, %v461, 0.0
      %v662 = vsel %vm632, %v462, 0.0
      %v663 = vsel %vm633, %v463, 0.0
      %v664 = vsel %vm634, %v464, 0.0
      %v665 = vsel %vm635, %v465, 0.0
      %v666 = vsel %vm636, %v466, 0.0
      %v667 = vsel %vm637, %v467, 0.0
      %v668 = vsel %vm638, %v468, 0.0
      %v669 = vsel %vm639, %v469, 0.0
      %v670 = vsel %vm640, %v470, 0.0
      %v671 = vsel %vm641, %v471, 0.0
      %v672 = vsel %vm642, %v472, 0.0
      %v673 = vpack.c.bf16 %v643, %v643
      %v674 = vpack.c.bf16 %v644, %v644
      %v675 = vpack.c.bf16 %v645, %v645
      %v676 = vpack.c.bf16 %v646, %v646
      %v677 = vpack.c.bf16 %v647, %v647
      %v678 = vpack.c.bf16 %v648, %v648
      %v679 = vpack.c.bf16 %v649, %v649
      %v680 = vpack.c.bf16 %v650, %v650
      %v681 = vpack.c.bf16 %v651, %v651
      %v682 = vpack.c.bf16 %v652, %v652
      %v683 = vpack.c.bf16 %v653, %v653
      %v684 = vpack.c.bf16 %v654, %v654
      %v685 = vpack.c.bf16 %v655, %v655
      %v686 = vpack.c.bf16 %v656, %v656
      %v687 = vpack.c.bf16 %v657, %v657
      %v688 = vpack.c.bf16 %v658, %v658
      %v689 = vpack.c.bf16 %v659, %v659
      %v690 = vpack.c.bf16 %v660, %v660
      %v691 = vpack.c.bf16 %v661, %v661
      %v692 = vpack.c.bf16 %v662, %v662
      %v693 = vpack.c.bf16 %v663, %v663
      %v694 = vpack.c.bf16 %v664, %v664
      %v695 = vpack.c.bf16 %v665, %v665
      %v696 = vpack.c.bf16 %v666, %v666
      %v697 = vpack.c.bf16 %v667, %v667
      %v698 = vpack.c.bf16 %v668, %v668
      %v699 = vpack.c.bf16 %v669, %v669
      %v700 = vpack.c.bf16 %v670, %v670
      %v701 = vpack.c.bf16 %v671, %v671
      %v702 = vpack.c.bf16 %v672, %v672
      %v703 = vld [vmem:[%s1] sm:$0xf]
      %vm704 = vsmask.f32 3328
      %vm705 = vsmask.f32 7440
      %vm706 = vmor %vm704, %vm705
      %v708 = vshrl.u32 %v673, 16
      %v710 = vrot.slane %v708, 4
      %v711 = vshll.u32 %v673, 16
      %v713 = vrot.slane %v711, 5
      %v714 = vor.u32 %v710, %v713
      %v715 = vrot.slane %v714, 4
      %v717 = vshll.u32 %v674, 16
      %v719 = vrot.slane %v717, 5
      %v720 = vsel %vm706, %v715, %v719
      %v721 = vshrl.u32 %v674, 16
      %v723 = vrot.slane %v721, 4
      %v724 = vor.u32 %v723, %v719
      %v725 = vrot.slane %v724, 4
      %v727 = vshll.u32 %v675, 16
      %v729 = vrot.slane %v727, 5
      %v730 = vsel %vm706, %v725, %v729
      %v732 = vshrl.u32 %v676, 16
      %v734 = vrot.slane %v732, 4
      %v735 = vshll.u32 %v676, 16
      %v737 = vrot.slane %v735, 5
      %v738 = vor.u32 %v734, %v737
      %v739 = vrot.slane %v738, 4
      %v741 = vshll.u32 %v677, 16
      %v743 = vrot.slane %v741, 5
      %v744 = vsel %vm706, %v739, %v743
      %v745 = vshrl.u32 %v677, 16
      %v747 = vrot.slane %v745, 4
      %v748 = vor.u32 %v747, %v743
      %v749 = vrot.slane %v748, 4
      %v751 = vshll.u32 %v678, 16
      %v753 = vrot.slane %v751, 5
      %v754 = vsel %vm706, %v749, %v753
      %v756 = vshrl.u32 %v679, 16
      %v758 = vrot.slane %v756, 4
      %v759 = vshll.u32 %v679, 16
      %v761 = vrot.slane %v759, 5
      %v762 = vor.u32 %v758, %v761
      %v763 = vrot.slane %v762, 4
      %v765 = vshll.u32 %v680, 16
      %v767 = vrot.slane %v765, 5
      %v768 = vsel %vm706, %v763, %v767
      %v769 = vshrl.u32 %v680, 16
      %v771 = vrot.slane %v769, 4
      %v772 = vor.u32 %v771, %v767
      %v773 = vrot.slane %v772, 4
      %v775 = vshll.u32 %v681, 16
      %v777 = vrot.slane %v775, 5
      %v778 = vsel %vm706, %v773, %v777
      %v780 = vshrl.u32 %v682, 16
      %v782 = vrot.slane %v780, 4
      %v783 = vshll.u32 %v682, 16
      %v785 = vrot.slane %v783, 5
      %v786 = vor.u32 %v782, %v785
      %v787 = vrot.slane %v786, 4
      %v789 = vshll.u32 %v683, 16
      %v791 = vrot.slane %v789, 5
      %v792 = vsel %vm706, %v787, %v791
      %v793 = vshrl.u32 %v683, 16
      %v795 = vrot.slane %v793, 4
      %v796 = vor.u32 %v795, %v791
      %v797 = vrot.slane %v796, 4
      %v799 = vshll.u32 %v684, 16
      %v801 = vrot.slane %v799, 5
      %v802 = vsel %vm706, %v797, %v801
      %v804 = vshrl.u32 %v685, 16
      %v806 = vrot.slane %v804, 4
      %v807 = vshll.u32 %v685, 16
      %v809 = vrot.slane %v807, 5
      %v810 = vor.u32 %v806, %v809
      %v811 = vrot.slane %v810, 4
      %v813 = vshll.u32 %v686, 16
      %v815 = vrot.slane %v813, 5
      %v816 = vsel %vm706, %v811, %v815
      %v817 = vshrl.u32 %v686, 16
      %v819 = vrot.slane %v817, 4
      %v820 = vor.u32 %v819, %v815
      %v821 = vrot.slane %v820, 4
      %v823 = vshll.u32 %v687, 16
      %v825 = vrot.slane %v823, 5
      %v826 = vsel %vm706, %v821, %v825
      %v828 = vshrl.u32 %v688, 16
      %v830 = vrot.slane %v828, 4
      %v831 = vshll.u32 %v688, 16
      %v833 = vrot.slane %v831, 5
      %v834 = vor.u32 %v830, %v833
      %v835 = vrot.slane %v834, 4
      %v837 = vshll.u32 %v689, 16
      %v839 = vrot.slane %v837, 5
      %v840 = vsel %vm706, %v835, %v839
      %v841 = vshrl.u32 %v689, 16
      %v843 = vrot.slane %v841, 4
      %v844 = vor.u32 %v843, %v839
      %v845 = vrot.slane %v844, 4
      %v847 = vshll.u32 %v690, 16
      %v849 = vrot.slane %v847, 5
      %v850 = vsel %vm706, %v845, %v849
      %v852 = vshrl.u32 %v691, 16
      %v854 = vrot.slane %v852, 4
      %v855 = vshll.u32 %v691, 16
      %v857 = vrot.slane %v855, 5
      %v858 = vor.u32 %v854, %v857
      %v859 = vrot.slane %v858, 4
      %v861 = vshll.u32 %v692, 16
      %v863 = vrot.slane %v861, 5
      %v864 = vsel %vm706, %v859, %v863
      %v865 = vshrl.u32 %v692, 16
      %v867 = vrot.slane %v865, 4
      %v868 = vor.u32 %v867, %v863
      %v869 = vrot.slane %v868, 4
      %v871 = vshll.u32 %v693, 16
      %v873 = vrot.slane %v871, 5
      %v874 = vsel %vm706, %v869, %v873
      %v876 = vshrl.u32 %v694, 16
      %v878 = vrot.slane %v876, 4
      %v879 = vshll.u32 %v694, 16
      %v881 = vrot.slane %v879, 5
      %v882 = vor.u32 %v878, %v881
      %v883 = vrot.slane %v882, 4
      %v885 = vshll.u32 %v695, 16
      %v887 = vrot.slane %v885, 5
      %v888 = vsel %vm706, %v883, %v887
      %v889 = vshrl.u32 %v695, 16
      %v891 = vrot.slane %v889, 4
      %v892 = vor.u32 %v891, %v887
      %v893 = vrot.slane %v892, 4
      %v895 = vshll.u32 %v696, 16
      %v897 = vrot.slane %v895, 5
      %v898 = vsel %vm706, %v893, %v897
      %s899 = scalar_lea.vmem %s1, 4
      %v900 = vld [vmem:[%s899] sm:$0xf]
      %v901 = vunpack.c.l.b16 %v720
      %v902 = vunpack.c.l.b16 %v730
      %v903 = vunpack.c.l.b16 %v744
      %v904 = vunpack.c.l.b16 %v754
      %v905 = vunpack.c.l.b16 %v768
      %v906 = vunpack.c.l.b16 %v778
      %v907 = vunpack.c.l.b16 %v792
      %v908 = vunpack.c.l.b16 %v802
      %v909 = vunpack.c.l.b16 %v816
      %v910 = vunpack.c.l.b16 %v826
      %v911 = vunpack.c.l.b16 %v840
      %v912 = vunpack.c.l.b16 %v850
      %v913 = vunpack.c.l.b16 %v864
      %v914 = vunpack.c.l.b16 %v874
      %v915 = vunpack.c.l.b16 %v888
      %v916 = vunpack.c.l.b16 %v898
      %v917 = vpack.c.b16 %v902, %v901
      %v918 = vpack.c.b16 %v904, %v903
      %v919 = vpack.c.b16 %v906, %v905
      %v920 = vpack.c.b16 %v908, %v907
      %v921 = vpack.c.b16 %v910, %v909
      %v922 = vpack.c.b16 %v912, %v911
      %v923 = vpack.c.b16 %v914, %v913
      %v924 = vpack.c.b16 %v916, %v915
      %vm925 = vcmask 64512
      %v927 = vsel %vm925, %v917, 0
      %v930 = vsel %vm925, %v918, 0
      %v933 = vsel %vm925, %v919, 0
      %v936 = vsel %vm925, %v920, 0
      %v939 = vsel %vm925, %v921, 0
      %v942 = vsel %vm925, %v922, 0
      %v945 = vsel %vm925, %v923, 0
      %v948 = vsel %vm925, %v924, 0
      %vm950 = vcmask 1043456
      %v952 = vsel %vm950, %v900, 0
      %954 = vmatpush.bf16.msra.mxu0 0
      %955 = vmatpush.bf16.msra.mxu0 0
      %956 = vmatpush.bf16.msra.mxu0 0
      %957 = vmatpush.bf16.msra.mxu0 0
      %958 = vmatpush.bf16.msra.mxu0 0
      %959 = vmatpush.bf16.msra.mxu0 0
      %960 = vmatpush.bf16.msra.mxu0 0
      %961 = vmatpush.bf16.msra.mxu0 %v952
      %962 = vmatmul.bf16.gmra.mxu0 %v927
      %v963 = vpop.f32.mrf.mxu0
      %v964 = vadd.f32 0.0, %v963
      %v965 = vpop.f32.mrf.mxu0
      %v966 = vadd.f32 0.0, %v965
      %967 = vmatmul.bf16.gmra.mxu0 %v930
      %v968 = vpop.f32.mrf.mxu0
      %v969 = vadd.f32 0.0, %v968
      %v970 = vpop.f32.mrf.mxu0
      %v971 = vadd.f32 0.0, %v970
      %972 = vmatmul.bf16.gmra.mxu0 %v933
      %v973 = vpop.f32.mrf.mxu0
      %v974 = vadd.f32 0.0, %v973
      %v975 = vpop.f32.mrf.mxu0
      %v976 = vadd.f32 0.0, %v975
      %977 = vmatmul.bf16.gmra.mxu0 %v936
      %v978 = vpop.f32.mrf.mxu0
      %v979 = vadd.f32 0.0, %v978
      %v980 = vpop.f32.mrf.mxu0
      %v981 = vadd.f32 0.0, %v980
      %982 = vmatmul.bf16.gmra.mxu0 %v939
      %v983 = vpop.f32.mrf.mxu0
      %v984 = vadd.f32 0.0, %v983
      %v985 = vpop.f32.mrf.mxu0
      %v986 = vadd.f32 0.0, %v985
      %987 = vmatmul.bf16.gmra.mxu0 %v942
      %v988 = vpop.f32.mrf.mxu0
      %v989 = vadd.f32 0.0, %v988
      %v990 = vpop.f32.mrf.mxu0
      %v991 = vadd.f32 0.0, %v990
      %992 = vmatmul.bf16.gmra.mxu0 %v945
      %v993 = vpop.f32.mrf.mxu0
      %v994 = vadd.f32 0.0, %v993
      %v995 = vpop.f32.mrf.mxu0
      %v996 = vadd.f32 0.0, %v995
      %997 = vmatmul.bf16.gmra.mxu0 %v948
      %v998 = vpop.f32.mrf.mxu0
      %v999 = vadd.f32 0.0, %v998
      %v1000 = vpop.f32.mrf.mxu0
      %v1001 = vadd.f32 0.0, %v1000
      %1002 = vdwg.mxu0
      %v1019 = vunpack.c.l.b16 %v673
      %v1020 = vunpack.c.l.b16 %v674
      %v1021 = vunpack.c.l.b16 %v676
      %v1022 = vunpack.c.l.b16 %v677
      %v1023 = vunpack.c.l.b16 %v679
      %v1024 = vunpack.c.l.b16 %v680
      %v1025 = vunpack.c.l.b16 %v682
      %v1026 = vunpack.c.l.b16 %v683
      %v1027 = vunpack.c.l.b16 %v685
      %v1028 = vunpack.c.l.b16 %v686
      %v1029 = vunpack.c.l.b16 %v688
      %v1030 = vunpack.c.l.b16 %v689
      %v1031 = vunpack.c.l.b16 %v691
      %v1032 = vunpack.c.l.b16 %v692
      %v1033 = vunpack.c.l.b16 %v694
      %v1034 = vunpack.c.l.b16 %v695
      %v1035 = vpack.c.b16 %v1020, %v1019
      %v1036 = vpack.c.b16 %v1022, %v1021
      %v1037 = vpack.c.b16 %v1024, %v1023
      %v1038 = vpack.c.b16 %v1026, %v1025
      %v1039 = vpack.c.b16 %v1028, %v1027
      %v1040 = vpack.c.b16 %v1030, %v1029
      %v1041 = vpack.c.b16 %v1032, %v1031
      %v1042 = vpack.c.b16 %v1034, %v1033
      %v1044 = vsel %vm925, %v1035, 0
      %v1047 = vsel %vm925, %v1036, 0
      %v1050 = vsel %vm925, %v1037, 0
      %v1053 = vsel %vm925, %v1038, 0
      %v1056 = vsel %vm925, %v1039, 0
      %v1059 = vsel %vm925, %v1040, 0
      %v1062 = vsel %vm925, %v1041, 0
      %v1065 = vsel %vm925, %v1042, 0
      %v1068 = vsel %vm950, %v703, 0
      %1070 = vmatpush.bf16.msra.mxu0 0
      %1071 = vmatpush.bf16.msra.mxu0 0
      %1072 = vmatpush.bf16.msra.mxu0 0
      %1073 = vmatpush.bf16.msra.mxu0 0
      %1074 = vmatpush.bf16.msra.mxu0 0
      %1075 = vmatpush.bf16.msra.mxu0 0
      %1076 = vmatpush.bf16.msra.mxu0 0
      %1077 = vmatpush.bf16.msra.mxu0 %v1068
      %1078 = vmatmul.bf16.gmra.mxu0 %v1044
      %v1079 = vpop.f32.mrf.mxu0
      %v1080 = vadd.f32 %v964, %v1079
      %v1081 = vpop.f32.mrf.mxu0
      %v1082 = vadd.f32 %v966, %v1081
      %1083 = vmatmul.bf16.gmra.mxu0 %v1047
      %v1084 = vpop.f32.mrf.mxu0
      %v1085 = vadd.f32 %v969, %v1084
      %v1086 = vpop.f32.mrf.mxu0
      %v1087 = vadd.f32 %v971, %v1086
      %1088 = vmatmul.bf16.gmra.mxu0 %v1050
      %v1089 = vpop.f32.mrf.mxu0
      %v1090 = vadd.f32 %v974, %v1089
      %v1091 = vpop.f32.mrf.mxu0
      %v1092 = vadd.f32 %v976, %v1091
      %1093 = vmatmul.bf16.gmra.mxu0 %v1053
      %v1094 = vpop.f32.mrf.mxu0
      %v1095 = vadd.f32 %v979, %v1094
      %v1096 = vpop.f32.mrf.mxu0
      %v1097 = vadd.f32 %v981, %v1096
      %1098 = vmatmul.bf16.gmra.mxu0 %v1056
      %v1099 = vpop.f32.mrf.mxu0
      %v1100 = vadd.f32 %v984, %v1099
      %v1101 = vpop.f32.mrf.mxu0
      %v1102 = vadd.f32 %v986, %v1101
      %1103 = vmatmul.bf16.gmra.mxu0 %v1059
      %v1104 = vpop.f32.mrf.mxu0
      %v1105 = vadd.f32 %v989, %v1104
      %v1106 = vpop.f32.mrf.mxu0
      %v1107 = vadd.f32 %v991, %v1106
      %1108 = vmatmul.bf16.gmra.mxu0 %v1062
      %v1109 = vpop.f32.mrf.mxu0
      %v1110 = vadd.f32 %v994, %v1109
      %v1111 = vpop.f32.mrf.mxu0
      %v1112 = vadd.f32 %v996, %v1111
      %1113 = vmatmul.bf16.gmra.mxu0 %v1065
      %v1114 = vpop.f32.mrf.mxu0
      %v1115 = vadd.f32 %v999, %v1114
      %v1116 = vpop.f32.mrf.mxu0
      %v1117 = vadd.f32 %v1001, %v1116
      %1118 = vdwg.mxu0
      %vm1127 = vcmask 1042432
      %vm1128 = vcmask 1046532
      %vm1129 = vmor %vm1127, %vm1128
      %v1130 = vrot.slane %v673, 5
      %v1131 = vrot.slane %v1130, 4
      %v1132 = vrot.slane %v674, 5
      %v1133 = vsel %vm1129, %v1131, %v1132
      %v1134 = vrot.slane %v1132, 4
      %v1135 = vrot.slane %v675, 5
      %v1136 = vsel %vm1129, %v1134, %v1135
      %v1137 = vrot.slane %v676, 5
      %v1138 = vrot.slane %v1137, 4
      %v1139 = vrot.slane %v677, 5
      %v1140 = vsel %vm1129, %v1138, %v1139
      %v1141 = vrot.slane %v1139, 4
      %v1142 = vrot.slane %v678, 5
      %v1143 = vsel %vm1129, %v1141, %v1142
      %v1144 = vrot.slane %v679, 5
      %v1145 = vrot.slane %v1144, 4
      %v1146 = vrot.slane %v680, 5
      %v1147 = vsel %vm1129, %v1145, %v1146
      %v1148 = vrot.slane %v1146, 4
      %v1149 = vrot.slane %v681, 5
      %v1150 = vsel %vm1129, %v1148, %v1149
      %v1151 = vrot.slane %v682, 5
      %v1152 = vrot.slane %v1151, 4
      %v1153 = vrot.slane %v683, 5
      %v1154 = vsel %vm1129, %v1152, %v1153
      %v1155 = vrot.slane %v1153, 4
      %v1156 = vrot.slane %v684, 5
      %v1157 = vsel %vm1129, %v1155, %v1156
      %v1158 = vrot.slane %v685, 5
      %v1159 = vrot.slane %v1158, 4
      %v1160 = vrot.slane %v686, 5
      %v1161 = vsel %vm1129, %v1159, %v1160
      %v1162 = vrot.slane %v1160, 4
      %v1163 = vrot.slane %v687, 5
      %v1164 = vsel %vm1129, %v1162, %v1163
      %v1165 = vrot.slane %v688, 5
      %v1166 = vrot.slane %v1165, 4
      %v1167 = vrot.slane %v689, 5
      %v1168 = vsel %vm1129, %v1166, %v1167
      %v1169 = vrot.slane %v1167, 4
      %v1170 = vrot.slane %v690, 5
      %v1171 = vsel %vm1129, %v1169, %v1170
      %v1172 = vrot.slane %v691, 5
      %v1173 = vrot.slane %v1172, 4
      %v1174 = vrot.slane %v692, 5
      %v1175 = vsel %vm1129, %v1173, %v1174
      %v1176 = vrot.slane %v1174, 4
      %v1177 = vrot.slane %v693, 5
      %v1178 = vsel %vm1129, %v1176, %v1177
      %v1179 = vrot.slane %v694, 5
      %v1180 = vrot.slane %v1179, 4
      %v1181 = vrot.slane %v695, 5
      %v1182 = vsel %vm1129, %v1180, %v1181
      %v1183 = vrot.slane %v1181, 4
      %v1184 = vrot.slane %v696, 5
      %v1185 = vsel %vm1129, %v1183, %v1184
      %s1186 = scalar_lea.vmem %s1, 8
      %v1187 = vld [vmem:[%s1186] sm:$0xf]
      %v1188 = vunpack.c.l.b16 %v1133
      %v1189 = vunpack.c.l.b16 %v1136
      %v1190 = vunpack.c.l.b16 %v1140
      %v1191 = vunpack.c.l.b16 %v1143
      %v1192 = vunpack.c.l.b16 %v1147
      %v1193 = vunpack.c.l.b16 %v1150
      %v1194 = vunpack.c.l.b16 %v1154
      %v1195 = vunpack.c.l.b16 %v1157
      %v1196 = vunpack.c.l.b16 %v1161
      %v1197 = vunpack.c.l.b16 %v1164
      %v1198 = vunpack.c.l.b16 %v1168
      %v1199 = vunpack.c.l.b16 %v1171
      %v1200 = vunpack.c.l.b16 %v1175
      %v1201 = vunpack.c.l.b16 %v1178
      %v1202 = vunpack.c.l.b16 %v1182
      %v1203 = vunpack.c.l.b16 %v1185
      %v1204 = vpack.c.b16 %v1189, %v1188
      %v1205 = vpack.c.b16 %v1191, %v1190
      %v1206 = vpack.c.b16 %v1193, %v1192
      %v1207 = vpack.c.b16 %v1195, %v1194
      %v1208 = vpack.c.b16 %v1197, %v1196
      %v1209 = vpack.c.b16 %v1199, %v1198
      %v1210 = vpack.c.b16 %v1201, %v1200
      %v1211 = vpack.c.b16 %v1203, %v1202
      %v1213 = vsel %vm925, %v1204, 0
      %v1216 = vsel %vm925, %v1205, 0
      %v1219 = vsel %vm925, %v1206, 0
      %v1222 = vsel %vm925, %v1207, 0
      %v1225 = vsel %vm925, %v1208, 0
      %v1228 = vsel %vm925, %v1209, 0
      %v1231 = vsel %vm925, %v1210, 0
      %v1234 = vsel %vm925, %v1211, 0
      %v1237 = vsel %vm950, %v1187, 0
      %1239 = vmatpush.bf16.msra.mxu0 0
      %1240 = vmatpush.bf16.msra.mxu0 0
      %1241 = vmatpush.bf16.msra.mxu0 0
      %1242 = vmatpush.bf16.msra.mxu0 0
      %1243 = vmatpush.bf16.msra.mxu0 0
      %1244 = vmatpush.bf16.msra.mxu0 0
      %1245 = vmatpush.bf16.msra.mxu0 0
      %1246 = vmatpush.bf16.msra.mxu0 %v1237
      %1247 = vmatmul.bf16.gmra.mxu0 %v1213
      %v1248 = vpop.f32.mrf.mxu0
      %v1249 = vadd.f32 0.0, %v1248
      %v1250 = vpop.f32.mrf.mxu0
      %v1251 = vadd.f32 0.0, %v1250
      %1252 = vmatmul.bf16.gmra.mxu0 %v1216
      %v1253 = vpop.f32.mrf.mxu0
      %v1254 = vadd.f32 0.0, %v1253
      %v1255 = vpop.f32.mrf.mxu0
      %v1256 = vadd.f32 0.0, %v1255
      %1257 = vmatmul.bf16.gmra.mxu0 %v1219
      %v1258 = vpop.f32.mrf.mxu0
      %v1259 = vadd.f32 0.0, %v1258
      %v1260 = vpop.f32.mrf.mxu0
      %v1261 = vadd.f32 0.0, %v1260
      %1262 = vmatmul.bf16.gmra.mxu0 %v1222
      %v1263 = vpop.f32.mrf.mxu0
      %v1264 = vadd.f32 0.0, %v1263
      %v1265 = vpop.f32.mrf.mxu0
      %v1266 = vadd.f32 0.0, %v1265
      %1267 = vmatmul.bf16.gmra.mxu0 %v1225
      %v1268 = vpop.f32.mrf.mxu0
      %v1269 = vadd.f32 0.0, %v1268
      %v1270 = vpop.f32.mrf.mxu0
      %v1271 = vadd.f32 0.0, %v1270
      %1272 = vmatmul.bf16.gmra.mxu0 %v1228
      %v1273 = vpop.f32.mrf.mxu0
      %v1274 = vadd.f32 0.0, %v1273
      %v1275 = vpop.f32.mrf.mxu0
      %v1276 = vadd.f32 0.0, %v1275
      %1277 = vmatmul.bf16.gmra.mxu0 %v1231
      %v1278 = vpop.f32.mrf.mxu0
      %v1279 = vadd.f32 0.0, %v1278
      %v1280 = vpop.f32.mrf.mxu0
      %v1281 = vadd.f32 0.0, %v1280
      %1282 = vmatmul.bf16.gmra.mxu0 %v1234
      %v1283 = vpop.f32.mrf.mxu0
      %v1284 = vadd.f32 0.0, %v1283
      %v1285 = vpop.f32.mrf.mxu0
      %v1286 = vadd.f32 0.0, %v1285
      %1287 = vdwg.mxu0
      %v1288 = vadd.f32 %v1080, %v1249
      %v1289 = vadd.f32 %v1082, %v1251
      %v1290 = vadd.f32 %v1085, %v1254
      %v1291 = vadd.f32 %v1087, %v1256
      %v1292 = vadd.f32 %v1090, %v1259
      %v1293 = vadd.f32 %v1092, %v1261
      %v1294 = vadd.f32 %v1095, %v1264
      %v1295 = vadd.f32 %v1097, %v1266
      %v1296 = vadd.f32 %v1100, %v1269
      %v1297 = vadd.f32 %v1102, %v1271
      %v1298 = vadd.f32 %v1105, %v1274
      %v1299 = vadd.f32 %v1107, %v1276
      %v1300 = vadd.f32 %v1110, %v1279
      %v1301 = vadd.f32 %v1112, %v1281
      %v1302 = vadd.f32 %v1115, %v1284
      %v1303 = vadd.f32 %v1117, %v1286
      %s1304 = scalar_lea.vmem %s1, 12
      %v1305 = vld [vmem:[%s1304] sm:$0xf]
      %v1308 = vunpack.c.l.b16 %v697
      %v1309 = vunpack.c.l.b16 %v698
      %v1310 = vpack.c.b16 %v1309, %v1308
      %v1312 = vsel %vm925, %v1310, 0
      %v1315 = vsel %vm950, %v1305, 0
      %1317 = vmatpush.bf16.msra.mxu0 0
      %1318 = vmatpush.bf16.msra.mxu0 0
      %1319 = vmatpush.bf16.msra.mxu0 0
      %1320 = vmatpush.bf16.msra.mxu0 0
      %1321 = vmatpush.bf16.msra.mxu0 0
      %1322 = vmatpush.bf16.msra.mxu0 0
      %1323 = vmatpush.bf16.msra.mxu0 0
      %1324 = vmatpush.bf16.msra.mxu0 %v1315
      %1325 = vmatmul.bf16.gmra.mxu0 %v1047
      %v1326 = vpop.f32.mrf.mxu0
      %v1327 = vadd.f32 0.0, %v1326
      %v1328 = vpop.f32.mrf.mxu0
      %v1329 = vadd.f32 0.0, %v1328
      %1330 = vmatmul.bf16.gmra.mxu0 %v1050
      %v1331 = vpop.f32.mrf.mxu0
      %v1332 = vadd.f32 0.0, %v1331
      %v1333 = vpop.f32.mrf.mxu0
      %v1334 = vadd.f32 0.0, %v1333
      %1335 = vmatmul.bf16.gmra.mxu0 %v1053
      %v1336 = vpop.f32.mrf.mxu0
      %v1337 = vadd.f32 0.0, %v1336
      %v1338 = vpop.f32.mrf.mxu0
      %v1339 = vadd.f32 0.0, %v1338
      %1340 = vmatmul.bf16.gmra.mxu0 %v1056
      %v1341 = vpop.f32.mrf.mxu0
      %v1342 = vadd.f32 0.0, %v1341
      %v1343 = vpop.f32.mrf.mxu0
      %v1344 = vadd.f32 0.0, %v1343
      %1345 = vmatmul.bf16.gmra.mxu0 %v1059
      %v1346 = vpop.f32.mrf.mxu0
      %v1347 = vadd.f32 0.0, %v1346
      %v1348 = vpop.f32.mrf.mxu0
      %v1349 = vadd.f32 0.0, %v1348
      %1350 = vmatmul.bf16.gmra.mxu0 %v1062
      %v1351 = vpop.f32.mrf.mxu0
      %v1352 = vadd.f32 0.0, %v1351
      %v1353 = vpop.f32.mrf.mxu0
      %v1354 = vadd.f32 0.0, %v1353
      %1355 = vmatmul.bf16.gmra.mxu0 %v1065
      %v1356 = vpop.f32.mrf.mxu0
      %v1357 = vadd.f32 0.0, %v1356
      %v1358 = vpop.f32.mrf.mxu0
      %v1359 = vadd.f32 0.0, %v1358
      %1360 = vmatmul.bf16.gmra.mxu0 %v1312
      %v1361 = vpop.f32.mrf.mxu0
      %v1362 = vadd.f32 0.0, %v1361
      %v1363 = vpop.f32.mrf.mxu0
      %v1364 = vadd.f32 0.0, %v1363
      %1365 = vdwg.mxu0
      %v1366 = vadd.f32 %v1288, %v1327
      %v1367 = vadd.f32 %v1289, %v1329
      %v1368 = vadd.f32 %v1290, %v1332
      %v1369 = vadd.f32 %v1291, %v1334
      %v1370 = vadd.f32 %v1292, %v1337
      %v1371 = vadd.f32 %v1293, %v1339
      %v1372 = vadd.f32 %v1294, %v1342
      %v1373 = vadd.f32 %v1295, %v1344
      %v1374 = vadd.f32 %v1296, %v1347
      %v1375 = vadd.f32 %v1297, %v1349
      %v1376 = vadd.f32 %v1298, %v1352
      %v1377 = vadd.f32 %v1299, %v1354
      %v1378 = vadd.f32 %v1300, %v1357
      %v1379 = vadd.f32 %v1301, %v1359
      %v1380 = vadd.f32 %v1302, %v1362
      %v1381 = vadd.f32 %v1303, %v1364
      %v1383 = vshrl.u32 %v697, 16
      %v1385 = vrot.slane %v1383, 4
      %v1386 = vshll.u32 %v697, 16
      %v1388 = vrot.slane %v1386, 5
      %v1389 = vor.u32 %v1385, %v1388
      %v1390 = vrot.slane %v1389, 4
      %v1392 = vshll.u32 %v698, 16
      %v1394 = vrot.slane %v1392, 5
      %v1395 = vsel %vm706, %v1390, %v1394
      %v1396 = vshrl.u32 %v698, 16
      %v1398 = vrot.slane %v1396, 4
      %v1399 = vor.u32 %v1398, %v1394
      %v1400 = vrot.slane %v1399, 4
      %v1402 = vshll.u32 %v699, 16
      %v1404 = vrot.slane %v1402, 5
      %v1405 = vsel %vm706, %v1400, %v1404
      %s1406 = scalar_lea.vmem %s1, 16
      %v1407 = vld [vmem:[%s1406] sm:$0xf]
      %v1408 = vunpack.c.l.b16 %v1395
      %v1409 = vunpack.c.l.b16 %v1405
      %v1410 = vpack.c.b16 %v1409, %v1408
      %v1412 = vsel %vm925, %v1410, 0
      %v1415 = vsel %vm950, %v1407, 0
      %1417 = vmatpush.bf16.msra.mxu0 0
      %1418 = vmatpush.bf16.msra.mxu0 0
      %1419 = vmatpush.bf16.msra.mxu0 0
      %1420 = vmatpush.bf16.msra.mxu0 0
      %1421 = vmatpush.bf16.msra.mxu0 0
      %1422 = vmatpush.bf16.msra.mxu0 0
      %1423 = vmatpush.bf16.msra.mxu0 0
      %1424 = vmatpush.bf16.msra.mxu0 %v1415
      %1425 = vmatmul.bf16.gmra.mxu0 %v930
      %v1426 = vpop.f32.mrf.mxu0
      %v1427 = vadd.f32 0.0, %v1426
      %v1428 = vpop.f32.mrf.mxu0
      %v1429 = vadd.f32 0.0, %v1428
      %1430 = vmatmul.bf16.gmra.mxu0 %v933
      %v1431 = vpop.f32.mrf.mxu0
      %v1432 = vadd.f32 0.0, %v1431
      %v1433 = vpop.f32.mrf.mxu0
      %v1434 = vadd.f32 0.0, %v1433
      %1435 = vmatmul.bf16.gmra.mxu0 %v936
      %v1436 = vpop.f32.mrf.mxu0
      %v1437 = vadd.f32 0.0, %v1436
      %v1438 = vpop.f32.mrf.mxu0
      %v1439 = vadd.f32 0.0, %v1438
      %1440 = vmatmul.bf16.gmra.mxu0 %v939
      %v1441 = vpop.f32.mrf.mxu0
      %v1442 = vadd.f32 0.0, %v1441
      %v1443 = vpop.f32.mrf.mxu0
      %v1444 = vadd.f32 0.0, %v1443
      %1445 = vmatmul.bf16.gmra.mxu0 %v942
      %v1446 = vpop.f32.mrf.mxu0
      %v1447 = vadd.f32 0.0, %v1446
      %v1448 = vpop.f32.mrf.mxu0
      %v1449 = vadd.f32 0.0, %v1448
      %1450 = vmatmul.bf16.gmra.mxu0 %v945
      %v1451 = vpop.f32.mrf.mxu0
      %v1452 = vadd.f32 0.0, %v1451
      %v1453 = vpop.f32.mrf.mxu0
      %v1454 = vadd.f32 0.0, %v1453
      %1455 = vmatmul.bf16.gmra.mxu0 %v948
      %v1456 = vpop.f32.mrf.mxu0
      %v1457 = vadd.f32 0.0, %v1456
      %v1458 = vpop.f32.mrf.mxu0
      %v1459 = vadd.f32 0.0, %v1458
      %1460 = vmatmul.bf16.gmra.mxu0 %v1412
      %v1461 = vpop.f32.mrf.mxu0
      %v1462 = vadd.f32 0.0, %v1461
      %v1463 = vpop.f32.mrf.mxu0
      %v1464 = vadd.f32 0.0, %v1463
      %1465 = vdwg.mxu0
      %v1466 = vadd.f32 %v1366, %v1427
      %v1467 = vadd.f32 %v1367, %v1429
      %v1468 = vadd.f32 %v1368, %v1432
      %v1469 = vadd.f32 %v1369, %v1434
      %v1470 = vadd.f32 %v1370, %v1437
      %v1471 = vadd.f32 %v1371, %v1439
      %v1472 = vadd.f32 %v1372, %v1442
      %v1473 = vadd.f32 %v1373, %v1444
      %v1474 = vadd.f32 %v1374, %v1447
      %v1475 = vadd.f32 %v1375, %v1449
      %v1476 = vadd.f32 %v1376, %v1452
      %v1477 = vadd.f32 %v1377, %v1454
      %v1478 = vadd.f32 %v1378, %v1457
      %v1479 = vadd.f32 %v1379, %v1459
      %v1480 = vadd.f32 %v1380, %v1462
      %v1481 = vadd.f32 %v1381, %v1464
      %v1483 = vrot.slane %v697, 5
      %v1484 = vrot.slane %v1483, 4
      %v1485 = vrot.slane %v698, 5
      %v1486 = vsel %vm1129, %v1484, %v1485
      %v1487 = vrot.slane %v1485, 4
      %v1488 = vrot.slane %v699, 5
      %v1489 = vsel %vm1129, %v1487, %v1488
      %s1490 = scalar_lea.vmem %s1, 20
      %v1491 = vld [vmem:[%s1490] sm:$0xf]
      %v1492 = vunpack.c.l.b16 %v1486
      %v1493 = vunpack.c.l.b16 %v1489
      %v1494 = vpack.c.b16 %v1493, %v1492
      %v1496 = vsel %vm925, %v1494, 0
      %v1499 = vsel %vm950, %v1491, 0
      %1501 = vmatpush.bf16.msra.mxu0 0
      %1502 = vmatpush.bf16.msra.mxu0 0
      %1503 = vmatpush.bf16.msra.mxu0 0
      %1504 = vmatpush.bf16.msra.mxu0 0
      %1505 = vmatpush.bf16.msra.mxu0 0
      %1506 = vmatpush.bf16.msra.mxu0 0
      %1507 = vmatpush.bf16.msra.mxu0 0
      %1508 = vmatpush.bf16.msra.mxu0 %v1499
      %1509 = vmatmul.bf16.gmra.mxu0 %v1216
      %v1510 = vpop.f32.mrf.mxu0
      %v1511 = vadd.f32 0.0, %v1510
      %v1512 = vpop.f32.mrf.mxu0
      %v1513 = vadd.f32 0.0, %v1512
      %1514 = vmatmul.bf16.gmra.mxu0 %v1219
      %v1515 = vpop.f32.mrf.mxu0
      %v1516 = vadd.f32 0.0, %v1515
      %v1517 = vpop.f32.mrf.mxu0
      %v1518 = vadd.f32 0.0, %v1517
      %1519 = vmatmul.bf16.gmra.mxu0 %v1222
      %v1520 = vpop.f32.mrf.mxu0
      %v1521 = vadd.f32 0.0, %v1520
      %v1522 = vpop.f32.mrf.mxu0
      %v1523 = vadd.f32 0.0, %v1522
      %1524 = vmatmul.bf16.gmra.mxu0 %v1225
      %v1525 = vpop.f32.mrf.mxu0
      %v1526 = vadd.f32 0.0, %v1525
      %v1527 = vpop.f32.mrf.mxu0
      %v1528 = vadd.f32 0.0, %v1527
      %1529 = vmatmul.bf16.gmra.mxu0 %v1228
      %v1530 = vpop.f32.mrf.mxu0
      %v1531 = vadd.f32 0.0, %v1530
      %v1532 = vpop.f32.mrf.mxu0
      %v1533 = vadd.f32 0.0, %v1532
      %1534 = vmatmul.bf16.gmra.mxu0 %v1231
      %v1535 = vpop.f32.mrf.mxu0
      %v1536 = vadd.f32 0.0, %v1535
      %v1537 = vpop.f32.mrf.mxu0
      %v1538 = vadd.f32 0.0, %v1537
      %1539 = vmatmul.bf16.gmra.mxu0 %v1234
      %v1540 = vpop.f32.mrf.mxu0
      %v1541 = vadd.f32 0.0, %v1540
      %v1542 = vpop.f32.mrf.mxu0
      %v1543 = vadd.f32 0.0, %v1542
      %1544 = vmatmul.bf16.gmra.mxu0 %v1496
      %v1545 = vpop.f32.mrf.mxu0
      %v1546 = vadd.f32 0.0, %v1545
      %v1547 = vpop.f32.mrf.mxu0
      %v1548 = vadd.f32 0.0, %v1547
      %1549 = vdwg.mxu0
      %v1550 = vadd.f32 %v1466, %v1511
      %v1551 = vadd.f32 %v1467, %v1513
      %v1552 = vadd.f32 %v1468, %v1516
      %v1553 = vadd.f32 %v1469, %v1518
      %v1554 = vadd.f32 %v1470, %v1521
      %v1555 = vadd.f32 %v1471, %v1523
      %v1556 = vadd.f32 %v1472, %v1526
      %v1557 = vadd.f32 %v1473, %v1528
      %v1558 = vadd.f32 %v1474, %v1531
      %v1559 = vadd.f32 %v1475, %v1533
      %v1560 = vadd.f32 %v1476, %v1536
      %v1561 = vadd.f32 %v1477, %v1538
      %v1562 = vadd.f32 %v1478, %v1541
      %v1563 = vadd.f32 %v1479, %v1543
      %v1564 = vadd.f32 %v1480, %v1546
      %v1565 = vadd.f32 %v1481, %v1548
      %s1566 = scalar_lea.vmem %s1, 24
      %v1567 = vld [vmem:[%s1566] sm:$0xf]
      %v1570 = vunpack.c.l.b16 %v700
      %v1571 = vunpack.c.l.b16 %v701
      %v1572 = vpack.c.b16 %v1571, %v1570
      %v1574 = vsel %vm925, %v1572, 0
      %v1577 = vsel %vm950, %v1567, 0
      %1579 = vmatpush.bf16.msra.mxu0 0
      %1580 = vmatpush.bf16.msra.mxu0 0
      %1581 = vmatpush.bf16.msra.mxu0 0
      %1582 = vmatpush.bf16.msra.mxu0 0
      %1583 = vmatpush.bf16.msra.mxu0 0
      %1584 = vmatpush.bf16.msra.mxu0 0
      %1585 = vmatpush.bf16.msra.mxu0 0
      %1586 = vmatpush.bf16.msra.mxu0 %v1577
      %1587 = vmatmul.bf16.gmra.mxu0 %v1050
      %v1588 = vpop.f32.mrf.mxu0
      %v1589 = vadd.f32 0.0, %v1588
      %v1590 = vpop.f32.mrf.mxu0
      %v1591 = vadd.f32 0.0, %v1590
      %1592 = vmatmul.bf16.gmra.mxu0 %v1053
      %v1593 = vpop.f32.mrf.mxu0
      %v1594 = vadd.f32 0.0, %v1593
      %v1595 = vpop.f32.mrf.mxu0
      %v1596 = vadd.f32 0.0, %v1595
      %1597 = vmatmul.bf16.gmra.mxu0 %v1056
      %v1598 = vpop.f32.mrf.mxu0
      %v1599 = vadd.f32 0.0, %v1598
      %v1600 = vpop.f32.mrf.mxu0
      %v1601 = vadd.f32 0.0, %v1600
      %1602 = vmatmul.bf16.gmra.mxu0 %v1059
      %v1603 = vpop.f32.mrf.mxu0
      %v1604 = vadd.f32 0.0, %v1603
      %v1605 = vpop.f32.mrf.mxu0
      %v1606 = vadd.f32 0.0, %v1605
      %1607 = vmatmul.bf16.gmra.mxu0 %v1062
      %v1608 = vpop.f32.mrf.mxu0
      %v1609 = vadd.f32 0.0, %v1608
      %v1610 = vpop.f32.mrf.mxu0
      %v1611 = vadd.f32 0.0, %v1610
      %1612 = vmatmul.bf16.gmra.mxu0 %v1065
      %v1613 = vpop.f32.mrf.mxu0
      %v1614 = vadd.f32 0.0, %v1613
      %v1615 = vpop.f32.mrf.mxu0
      %v1616 = vadd.f32 0.0, %v1615
      %1617 = vmatmul.bf16.gmra.mxu0 %v1312
      %v1618 = vpop.f32.mrf.mxu0
      %v1619 = vadd.f32 0.0, %v1618
      %v1620 = vpop.f32.mrf.mxu0
      %v1621 = vadd.f32 0.0, %v1620
      %1622 = vmatmul.bf16.gmra.mxu0 %v1574
      %v1623 = vpop.f32.mrf.mxu0
      %v1624 = vadd.f32 0.0, %v1623
      %v1625 = vpop.f32.mrf.mxu0
      %v1626 = vadd.f32 0.0, %v1625
      %1627 = vdwg.mxu0
      %v1628 = vadd.f32 %v1550, %v1589
      %v1629 = vadd.f32 %v1551, %v1591
      %v1630 = vadd.f32 %v1552, %v1594
      %v1631 = vadd.f32 %v1553, %v1596
      %v1632 = vadd.f32 %v1554, %v1599
      %v1633 = vadd.f32 %v1555, %v1601
      %v1634 = vadd.f32 %v1556, %v1604
      %v1635 = vadd.f32 %v1557, %v1606
      %v1636 = vadd.f32 %v1558, %v1609
      %v1637 = vadd.f32 %v1559, %v1611
      %v1638 = vadd.f32 %v1560, %v1614
      %v1639 = vadd.f32 %v1561, %v1616
      %v1640 = vadd.f32 %v1562, %v1619
      %v1641 = vadd.f32 %v1563, %v1621
      %v1642 = vadd.f32 %v1564, %v1624
      %v1643 = vadd.f32 %v1565, %v1626
      %v1645 = vshrl.u32 %v700, 16
      %v1647 = vrot.slane %v1645, 4
      %v1648 = vshll.u32 %v700, 16
      %v1650 = vrot.slane %v1648, 5
      %v1651 = vor.u32 %v1647, %v1650
      %v1652 = vrot.slane %v1651, 4
      %v1654 = vshll.u32 %v701, 16
      %v1656 = vrot.slane %v1654, 5
      %v1657 = vsel %vm706, %v1652, %v1656
      %v1658 = vshrl.u32 %v701, 16
      %v1660 = vrot.slane %v1658, 4
      %v1661 = vor.u32 %v1660, %v1656
      %v1662 = vrot.slane %v1661, 4
      %v1664 = vshll.u32 %v702, 16
      %v1666 = vrot.slane %v1664, 5
      %v1667 = vsel %vm706, %v1662, %v1666
      %s1668 = scalar_lea.vmem %s1, 28
      %v1669 = vld [vmem:[%s1668] sm:$0xf]
      %v1670 = vunpack.c.l.b16 %v1657
      %v1671 = vunpack.c.l.b16 %v1667
      %v1672 = vpack.c.b16 %v1671, %v1670
      %v1674 = vsel %vm925, %v1672, 0
      %v1677 = vsel %vm950, %v1669, 0
      %1679 = vmatpush.bf16.msra.mxu0 0
      %1680 = vmatpush.bf16.msra.mxu0 0
      %1681 = vmatpush.bf16.msra.mxu0 0
      %1682 = vmatpush.bf16.msra.mxu0 0
      %1683 = vmatpush.bf16.msra.mxu0 0
      %1684 = vmatpush.bf16.msra.mxu0 0
      %1685 = vmatpush.bf16.msra.mxu0 0
      %1686 = vmatpush.bf16.msra.mxu0 %v1677
      %1687 = vmatmul.bf16.gmra.mxu0 %v933
      %v1688 = vpop.f32.mrf.mxu0
      %v1689 = vadd.f32 0.0, %v1688
      %v1690 = vpop.f32.mrf.mxu0
      %v1691 = vadd.f32 0.0, %v1690
      %1692 = vmatmul.bf16.gmra.mxu0 %v936
      %v1693 = vpop.f32.mrf.mxu0
      %v1694 = vadd.f32 0.0, %v1693
      %v1695 = vpop.f32.mrf.mxu0
      %v1696 = vadd.f32 0.0, %v1695
      %1697 = vmatmul.bf16.gmra.mxu0 %v939
      %v1698 = vpop.f32.mrf.mxu0
      %v1699 = vadd.f32 0.0, %v1698
      %v1700 = vpop.f32.mrf.mxu0
      %v1701 = vadd.f32 0.0, %v1700
      %1702 = vmatmul.bf16.gmra.mxu0 %v942
      %v1703 = vpop.f32.mrf.mxu0
      %v1704 = vadd.f32 0.0, %v1703
      %v1705 = vpop.f32.mrf.mxu0
      %v1706 = vadd.f32 0.0, %v1705
      %1707 = vmatmul.bf16.gmra.mxu0 %v945
      %v1708 = vpop.f32.mrf.mxu0
      %v1709 = vadd.f32 0.0, %v1708
      %v1710 = vpop.f32.mrf.mxu0
      %v1711 = vadd.f32 0.0, %v1710
      %1712 = vmatmul.bf16.gmra.mxu0 %v948
      %v1713 = vpop.f32.mrf.mxu0
      %v1714 = vadd.f32 0.0, %v1713
      %v1715 = vpop.f32.mrf.mxu0
      %v1716 = vadd.f32 0.0, %v1715
      %1717 = vmatmul.bf16.gmra.mxu0 %v1412
      %v1718 = vpop.f32.mrf.mxu0
      %v1719 = vadd.f32 0.0, %v1718
      %v1720 = vpop.f32.mrf.mxu0
      %v1721 = vadd.f32 0.0, %v1720
      %1722 = vmatmul.bf16.gmra.mxu0 %v1674
      %v1723 = vpop.f32.mrf.mxu0
      %v1724 = vadd.f32 0.0, %v1723
      %v1725 = vpop.f32.mrf.mxu0
      %v1726 = vadd.f32 0.0, %v1725
      %1727 = vdwg.mxu0
      %v1728 = vadd.f32 %v1628, %v1689
      %v1729 = vadd.f32 %v1629, %v1691
      %v1730 = vadd.f32 %v1630, %v1694
      %v1731 = vadd.f32 %v1631, %v1696
      %v1732 = vadd.f32 %v1632, %v1699
      %v1733 = vadd.f32 %v1633, %v1701
      %v1734 = vadd.f32 %v1634, %v1704
      %v1735 = vadd.f32 %v1635, %v1706
      %v1736 = vadd.f32 %v1636, %v1709
      %v1737 = vadd.f32 %v1637, %v1711
      %v1738 = vadd.f32 %v1638, %v1714
      %v1739 = vadd.f32 %v1639, %v1716
      %v1740 = vadd.f32 %v1640, %v1719
      %v1741 = vadd.f32 %v1641, %v1721
      %v1742 = vadd.f32 %v1642, %v1724
      %v1743 = vadd.f32 %v1643, %v1726
      %v1745 = vrot.slane %v700, 5
      %v1746 = vrot.slane %v1745, 4
      %v1747 = vrot.slane %v701, 5
      %v1748 = vsel %vm1129, %v1746, %v1747
      %v1749 = vrot.slane %v1747, 4
      %v1750 = vrot.slane %v702, 5
      %v1751 = vsel %vm1129, %v1749, %v1750
      %s1752 = scalar_lea.vmem %s1, 32
      %v1753 = vld [vmem:[%s1752] sm:$0xf]
      %v1754 = vunpack.c.l.b16 %v1748
      %v1755 = vunpack.c.l.b16 %v1751
      %v1756 = vpack.c.b16 %v1755, %v1754
      %v1758 = vsel %vm925, %v1756, 0
      %v1761 = vsel %vm950, %v1753, 0
      %1763 = vmatpush.bf16.msra.mxu0 0
      %1764 = vmatpush.bf16.msra.mxu0 0
      %1765 = vmatpush.bf16.msra.mxu0 0
      %1766 = vmatpush.bf16.msra.mxu0 0
      %1767 = vmatpush.bf16.msra.mxu0 0
      %1768 = vmatpush.bf16.msra.mxu0 0
      %1769 = vmatpush.bf16.msra.mxu0 0
      %1770 = vmatpush.bf16.msra.mxu0 %v1761
      %1771 = vmatmul.bf16.gmra.mxu0 %v1219
      %v1772 = vpop.f32.mrf.mxu0
      %v1773 = vadd.f32 0.0, %v1772
      %v1774 = vpop.f32.mrf.mxu0
      %v1775 = vadd.f32 0.0, %v1774
      %1776 = vmatmul.bf16.gmra.mxu0 %v1222
      %v1777 = vpop.f32.mrf.mxu0
      %v1778 = vadd.f32 0.0, %v1777
      %v1779 = vpop.f32.mrf.mxu0
      %v1780 = vadd.f32 0.0, %v1779
      %1781 = vmatmul.bf16.gmra.mxu0 %v1225
      %v1782 = vpop.f32.mrf.mxu0
      %v1783 = vadd.f32 0.0, %v1782
      %v1784 = vpop.f32.mrf.mxu0
      %v1785 = vadd.f32 0.0, %v1784
      %1786 = vmatmul.bf16.gmra.mxu0 %v1228
      %v1787 = vpop.f32.mrf.mxu0
      %v1788 = vadd.f32 0.0, %v1787
      %v1789 = vpop.f32.mrf.mxu0
      %v1790 = vadd.f32 0.0, %v1789
      %1791 = vmatmul.bf16.gmra.mxu0 %v1231
      %v1792 = vpop.f32.mrf.mxu0
      %v1793 = vadd.f32 0.0, %v1792
      %v1794 = vpop.f32.mrf.mxu0
      %v1795 = vadd.f32 0.0, %v1794
      %1796 = vmatmul.bf16.gmra.mxu0 %v1234
      %v1797 = vpop.f32.mrf.mxu0
      %v1798 = vadd.f32 0.0, %v1797
      %v1799 = vpop.f32.mrf.mxu0
      %v1800 = vadd.f32 0.0, %v1799
      %1801 = vmatmul.bf16.gmra.mxu0 %v1496
      %v1802 = vpop.f32.mrf.mxu0
      %v1803 = vadd.f32 0.0, %v1802
      %v1804 = vpop.f32.mrf.mxu0
      %v1805 = vadd.f32 0.0, %v1804
      %1806 = vmatmul.bf16.gmra.mxu0 %v1758
      %v1807 = vpop.f32.mrf.mxu0
      %v1808 = vadd.f32 0.0, %v1807
      %v1809 = vpop.f32.mrf.mxu0
      %v1810 = vadd.f32 0.0, %v1809
      %1811 = vdwg.mxu0
      %v1812 = vadd.f32 %v1728, %v1773
      %v1813 = vadd.f32 %v1729, %v1775
      %v1814 = vadd.f32 %v1730, %v1778
      %v1815 = vadd.f32 %v1731, %v1780
      %v1816 = vadd.f32 %v1732, %v1783
      %v1817 = vadd.f32 %v1733, %v1785
      %v1818 = vadd.f32 %v1734, %v1788
      %v1819 = vadd.f32 %v1735, %v1790
      %v1820 = vadd.f32 %v1736, %v1793
      %v1821 = vadd.f32 %v1737, %v1795
      %v1822 = vadd.f32 %v1738, %v1798
      %v1823 = vadd.f32 %v1739, %v1800
      %v1824 = vadd.f32 %v1740, %v1803
      %v1825 = vadd.f32 %v1741, %v1805
      %v1826 = vadd.f32 %v1742, %v1808
      %v1827 = vadd.f32 %v1743, %v1810
      %v1828 = vld [vmem:[%s2] sm:$0x1]
      %v1830 = vperm.slane %v1828, 0
      %v1832 = vadd.f32 %v1812, %v1830
      %v1833 = vadd.f32 %v1813, %v1830
      %v1834 = vadd.f32 %v1814, %v1830
      %v1835 = vadd.f32 %v1815, %v1830
      %v1836 = vadd.f32 %v1816, %v1830
      %v1837 = vadd.f32 %v1817, %v1830
      %v1838 = vadd.f32 %v1818, %v1830
      %v1839 = vadd.f32 %v1819, %v1830
      %v1840 = vadd.f32 %v1820, %v1830
      %v1841 = vadd.f32 %v1821, %v1830
      %v1842 = vadd.f32 %v1822, %v1830
      %v1843 = vadd.f32 %v1823, %v1830
      %v1844 = vadd.f32 %v1824, %v1830
      %v1845 = vadd.f32 %v1825, %v1830
      %v1846 = vadd.f32 %v1826, %v1830
      %v1847 = vadd.f32 %v1827, %v1830
      %1848 = vst.msk [vmem:[%s325] sm:$0xff] %vm925, %v1832
      %1849 = vst.msk [vmem:[%s325 + $0x8] sm:$0xff] %vm925, %v1833
      %1850 = vst.msk [vmem:[%s325 + $0x10] sm:$0xff] %vm925, %v1834
      %1851 = vst.msk [vmem:[%s325 + $0x18] sm:$0xff] %vm925, %v1835
      %1852 = vst.msk [vmem:[%s325 + $0x20] sm:$0xff] %vm925, %v1836
      %1853 = vst.msk [vmem:[%s325 + $0x28] sm:$0xff] %vm925, %v1837
      %1854 = vst.msk [vmem:[%s325 + $0x30] sm:$0xff] %vm925, %v1838
      %1855 = vst.msk [vmem:[%s325 + $0x38] sm:$0xff] %vm925, %v1839
      %1856 = vst.msk [vmem:[%s325 + $0x40] sm:$0xff] %vm925, %v1840
      %1857 = vst.msk [vmem:[%s325 + $0x48] sm:$0xff] %vm925, %v1841
      %1858 = vst.msk [vmem:[%s325 + $0x50] sm:$0xff] %vm925, %v1842
      %1859 = vst.msk [vmem:[%s325 + $0x58] sm:$0xff] %vm925, %v1843
      %1860 = vst.msk [vmem:[%s325 + $0x60] sm:$0xff] %vm925, %v1844
      %1861 = vst.msk [vmem:[%s325 + $0x68] sm:$0xff] %vm925, %v1845
      %1862 = vst.msk [vmem:[%s325 + $0x70] sm:$0xff] %vm925, %v1846
      %1863 = vst.msk [vmem:[%s325 + $0x78] sm:$0xff] %vm925, %v1847
      %v1864 = vsel %vm925, %v1832, 0.0
      %v1865 = vsel %vm925, %v1833, 0.0
      %v1866 = vadd.f32 %v1864, %v1865
      %v1867 = vsel %vm925, %v1834, 0.0
      %v1868 = vadd.f32 %v1866, %v1867
      %v1869 = vsel %vm925, %v1835, 0.0
      %v1870 = vadd.f32 %v1868, %v1869
      %v1871 = vsel %vm925, %v1836, 0.0
      %v1872 = vadd.f32 %v1870, %v1871
      %v1873 = vsel %vm925, %v1837, 0.0
      %v1874 = vadd.f32 %v1872, %v1873
      %v1875 = vsel %vm925, %v1838, 0.0
      %v1876 = vadd.f32 %v1874, %v1875
      %v1877 = vsel %vm925, %v1839, 0.0
      %v1878 = vadd.f32 %v1876, %v1877
      %v1879 = vsel %vm925, %v1840, 0.0
      %v1880 = vadd.f32 %v1878, %v1879
      %v1881 = vsel %vm925, %v1841, 0.0
      %v1882 = vadd.f32 %v1880, %v1881
      %v1883 = vsel %vm925, %v1842, 0.0
      %v1884 = vadd.f32 %v1882, %v1883
      %v1885 = vsel %vm925, %v1843, 0.0
      %v1886 = vadd.f32 %v1884, %v1885
      %v1887 = vsel %vm925, %v1844, 0.0
      %v1888 = vadd.f32 %v1886, %v1887
      %v1889 = vsel %vm925, %v1845, 0.0
      %v1890 = vadd.f32 %v1888, %v1889
      %v1891 = vsel %vm925, %v1846, 0.0
      %v1892 = vadd.f32 %v1890, %v1891
      %v1893 = vsel %vm925, %v1847, 0.0
      %v1894 = vadd.f32 %v1892, %v1893
      %v1895 = vrot.slane %v1894, 4
      %v1896 = vadd.f32 %v1894, %v1895
      %v1897 = vrot.slane %v1896, 2
      %v1898 = vadd.f32 %v1896, %v1897
      %v1899 = vrot.slane %v1898, 1
      %v1900 = vadd.f32 %v1898, %v1899
      %vm1901 = vcmask 57344
      %1902 = vst.msk [vmem:[%s333] sm:$0x1] %vm1901, %v1900
      %v1903 = vmul.f32 %v1832, %v1832
      %v1904 = vmul.f32 %v1833, %v1833
      %v1905 = vmul.f32 %v1834, %v1834
      %v1906 = vmul.f32 %v1835, %v1835
      %v1907 = vmul.f32 %v1836, %v1836
      %v1908 = vmul.f32 %v1837, %v1837
      %v1909 = vmul.f32 %v1838, %v1838
      %v1910 = vmul.f32 %v1839, %v1839
      %v1911 = vmul.f32 %v1840, %v1840
      %v1912 = vmul.f32 %v1841, %v1841
      %v1913 = vmul.f32 %v1842, %v1842
      %v1914 = vmul.f32 %v1843, %v1843
      %v1915 = vmul.f32 %v1844, %v1844
      %v1916 = vmul.f32 %v1845, %v1845
      %v1917 = vmul.f32 %v1846, %v1846
      %v1918 = vmul.f32 %v1847, %v1847
      %v1919 = vsel %vm925, %v1903, 0.0
      %v1920 = vsel %vm925, %v1904, 0.0
      %v1921 = vadd.f32 %v1919, %v1920
      %v1922 = vsel %vm925, %v1905, 0.0
      %v1923 = vadd.f32 %v1921, %v1922
      %v1924 = vsel %vm925, %v1906, 0.0
      %v1925 = vadd.f32 %v1923, %v1924
      %v1926 = vsel %vm925, %v1907, 0.0
      %v1927 = vadd.f32 %v1925, %v1926
      %v1928 = vsel %vm925, %v1908, 0.0
      %v1929 = vadd.f32 %v1927, %v1928
      %v1930 = vsel %vm925, %v1909, 0.0
      %v1931 = vadd.f32 %v1929, %v1930
      %v1932 = vsel %vm925, %v1910, 0.0
      %v1933 = vadd.f32 %v1931, %v1932
      %v1934 = vsel %vm925, %v1911, 0.0
      %v1935 = vadd.f32 %v1933, %v1934
      %v1936 = vsel %vm925, %v1912, 0.0
      %v1937 = vadd.f32 %v1935, %v1936
      %v1938 = vsel %vm925, %v1913, 0.0
      %v1939 = vadd.f32 %v1937, %v1938
      %v1940 = vsel %vm925, %v1914, 0.0
      %v1941 = vadd.f32 %v1939, %v1940
      %v1942 = vsel %vm925, %v1915, 0.0
      %v1943 = vadd.f32 %v1941, %v1942
      %v1944 = vsel %vm925, %v1916, 0.0
      %v1945 = vadd.f32 %v1943, %v1944
      %v1946 = vsel %vm925, %v1917, 0.0
      %v1947 = vadd.f32 %v1945, %v1946
      %v1948 = vsel %vm925, %v1918, 0.0
      %v1949 = vadd.f32 %v1947, %v1948
      %v1950 = vrot.slane %v1949, 4
      %v1951 = vadd.f32 %v1949, %v1950
      %v1952 = vrot.slane %v1951, 2
      %v1953 = vadd.f32 %v1951, %v1952
      %v1954 = vrot.slane %v1953, 1
      %v1955 = vadd.f32 %v1953, %v1954
      %1956 = vst.msk [vmem:[%s340] sm:$0x1] %vm1901, %v1955
      %s1957 = smul.u32 8, %s24
      %p1958 = scmp.lt.s32.totalorder %s23, 1
      %s1959 = scalar_select %p1958, %s23, 1
      %p1960 = scmp.lt.s32.totalorder %s1957, 15
      %s1961 = scalar_select %p1960, %s1957, 15
      %s1962 = smul.addr %s1961, 2
      %s1963 = smul.addr %s1959, 32
      %s1964 = sadd.s32 %s1962, %s1963
      %s1965 = smul.addr %s1964, 8
      %s1966 = scalar_lea.vmem %s5, %s1965
      %p1967 = scmp.lt.s32.totalorder %s23, 1
      %s1968 = scalar_select %p1967, %s23, 1
      %p1969 = scmp.lt.s32.totalorder %s24, 1
      %s1970 = scalar_select %p1969, %s24, 1
      %s1971 = smul.addr %s1968, 2
      %s1972 = sadd.s32 %s1970, %s1971
      %s1973 = scalar_lea.vmem %s6, %s1972
      %p1974 = scmp.lt.s32.totalorder %s23, 1
      %s1975 = scalar_select %p1974, %s23, 1
      %p1976 = scmp.lt.s32.totalorder %s24, 1
      %s1977 = scalar_select %p1976, %s24, 1
      %s1978 = smul.addr %s1975, 2
      %s1979 = sadd.s32 %s1977, %s1978
      %s1980 = scalar_lea.vmem %s7, %s1979
      // Predicated region
      $region41: #{upsample_forward.6} parent=39 // pred_check
        %p1981 = pneg %p161
      $region42: #{upsample_forward.6} parent=39 // pred_check_branch
        %1983 = sbr.rel (%p1981) target = $region44
      $region43: #{upsample_forward.6} parent=39 // pred_region
        %s1984 = smul.u32 8, %s24
      $region44: #{upsample_forward.6} parent=39 // pred_fallthru
        _
      // Predicated region
      $region45: #{upsample_forward.6} parent=39 // pred_check
        %p1985 = pneg %p189
      $region46: #{upsample_forward.6} parent=39 // pred_check_branch
        %1987 = sbr.rel (%p1985) target = $region48
      $region47: #{upsample_forward.6} parent=39 // pred_region
        _
      $region48: #{upsample_forward.6} parent=39 // pred_fallthru
        _
      // Predicated region
      $region49: #{upsample_forward.6} parent=39 // pred_check
        %p1988 = pneg %p217
      $region50: #{upsample_forward.6} parent=39 // pred_check_branch
        %1990 = sbr.rel (%p1988) target = $region52
      $region51: #{upsample_forward.6} parent=39 // pred_region
        _
      $region52: #{upsample_forward.6} parent=39 // pred_fallthru
        _
    $region40: #{upsample_forward.6} parent=5 // pred_fallthru
      _
    %p1991 = scmp.le.s32.totalorder 2, %s14
    // Predicated region
    $region53: #{upsample_forward.6} parent=5 // pred_check
      %p1992 = pneg %p1991
    $region54: #{upsample_forward.6} parent=5 // pred_check_branch
      %1994 = sbr.rel (%p1992) target = $region56
    $region55: #{upsample_forward.6} parent=5 // pred_region
      %s1995 = ssub.s32 %s14, 2
      // Predicated region
      $region57: #{upsample_forward.6} parent=55 // pred_check
        %p1996 = pneg %p167
      $region58: #{upsample_forward.6} parent=55 // pred_check_branch
        %1998 = sbr.rel (%p1996) target = $region60
      $region59: #{upsample_forward.6} parent=55 // pred_region
        %s1999 = smul.u32 8, %s26
        %p2000 = scmp.lt.s32.totalorder %s25, 1
        %s2001 = scalar_select %p2000, %s25, 1
        %p2002 = scmp.lt.s32.totalorder %s1999, 15
        %s2003 = scalar_select %p2002, %s1999, 15
        %s2004 = smul.addr %s2003, 2
        %s2005 = smul.addr %s2001, 32
        %s2006 = sadd.s32 %s2004, %s2005
        %s2007 = smul.addr %s2006, 8
        %s2008 = scalar_lea.vmem %s5, %s2007
      $region60: #{upsample_forward.6} parent=55 // pred_fallthru
        _
      // Predicated region
      $region61: #{upsample_forward.6} parent=55 // pred_check
        %p2009 = pneg %p195
      $region62: #{upsample_forward.6} parent=55 // pred_check_branch
        %2011 = sbr.rel (%p2009) target = $region64
      $region63: #{upsample_forward.6} parent=55 // pred_region
        %p2012 = scmp.lt.s32.totalorder %s25, 1
        %s2013 = scalar_select %p2012, %s25, 1
        %p2014 = scmp.lt.s32.totalorder %s26, 1
        %s2015 = scalar_select %p2014, %s26, 1
        %s2016 = smul.addr %s2013, 2
        %s2017 = sadd.s32 %s2015, %s2016
        %s2018 = scalar_lea.vmem %s6, %s2017
      $region64: #{upsample_forward.6} parent=55 // pred_fallthru
        _
      // Predicated region
      $region65: #{upsample_forward.6} parent=55 // pred_check
        %p2019 = pneg %p223
      $region66: #{upsample_forward.6} parent=55 // pred_check_branch
        %2021 = sbr.rel (%p2019) target = $region68
      $region67: #{upsample_forward.6} parent=55 // pred_region
        %p2022 = scmp.lt.s32.totalorder %s25, 1
        %s2023 = scalar_select %p2022, %s25, 1
        %p2024 = scmp.lt.s32.totalorder %s26, 1
        %s2025 = scalar_select %p2024, %s26, 1
        %s2026 = smul.addr %s2023, 2
        %s2027 = sadd.s32 %s2025, %s2026
        %s2028 = scalar_lea.vmem %s7, %s2027
      $region68: #{upsample_forward.6} parent=55 // pred_fallthru
        _
    $region56: #{upsample_forward.6} parent=5 // pred_fallthru
      _
  $region6: #{upsample_forward.6} parent=0 // loop_footer
    %s18 = sadd.s32 1, %s14
  $region7: #{upsample_forward.6} parent=0 // loop_footer_branch
    %13 = sbr.rel target = $region3
  $region8: #{upsample_forward.6} parent=0 // loop_exit
    _

// kernel: upsample_forward.5
$region0: #{upsample_forward.5}
  #allocation0 [shape = 'u32[]', space=smem, size = 0x4, offset = 0x4, fixed_abs, tag = 'smem constant byte address 0x4 - core index']
  #allocation1 [shape = 'u32[72,128]{1,0:T(1,128)}', space=vmem, size = 0x9000, scoped, tag = 'internal scratch']
  %s0 = inlined_call_operand.vmem [shape: bf16[2,18,18,8], index: 0, kind: input, shape index: {}]
  %s1 = inlined_call_operand.vmem [shape: bf16[2,18,18,8], index: 1, kind: input, shape index: {}]
  %s2 = inlined_call_operand.vmem [shape: bf16[9,8,8], index: 2, kind: input, shape index: {}]
  %s3 = inlined_call_operand.vmem [shape: bf16[9,8,8], index: 3, kind: input, shape index: {}]
  %s4 = inlined_call_operand.vmem [shape: f32[1,8], index: 4, kind: input, shape index: {}]
  %s5 = inlined_call_operand.vmem [shape: f32[2,16,16,8], index: 5, kind: output, shape index: {0}]
  %s6 = inlined_call_operand.vmem [shape: f32[2,2,1,8], index: 6, kind: output, shape index: {1}]
  %s7 = inlined_call_operand.vmem [shape: f32[2,2,1,8], index: 7, kind: output, shape index: {2}]
  %8 = xla_tuple %s5, %s6, %s7
  %s9 = sld [smem:[#allocation0]]
  $region69: #{upsample_forward.5} parent=0
    _
  %s11 = ssub.s32 1, %s9
  %s12 = scalar_select 0, %s11, %s9
  loop: start=0, step=1, limit=6
  $region2: #{upsample_forward.5} parent=0 // loop_pre_header
    _
  $region3: #{upsample_forward.5} parent=0 // loop_header
    %s14 = sphi 0, %s18
    %p15 = scmp.ge.s32.totalorder %s14, 6
    %s21 = sphi 0, %s33
    %s22 = sphi 0, %s29
    %s23 = sphi 0, %s21
    %s24 = sphi 0, %s22
    %s25 = sphi 0, %s23
    %s26 = sphi 0, %s24
    %s36 = sphi 0, %s38
    %s39 = sphi 0, %s36
    %s40 = sphi 0, %s39
    %s56 = sphi 0, %s40
    %s62 = sphi 0, %s64
    %s65 = sphi 0, %s62
    %s66 = sphi 0, %s65
    %s82 = sphi 0, %s66
    %s86 = sphi 0, %s86
    %s88 = sphi 0, %s86
    %s89 = sphi 0, %s88
    %s103 = sphi 0, %s89
    %s107 = sphi 0, %s107
    %s109 = sphi 0, %s107
    %s110 = sphi 0, %s109
    %s124 = sphi 0, %s110
    %s128 = sphi 0, %s128
    %s130 = sphi 0, %s128
    %s131 = sphi 0, %s130
    %s145 = sphi 0, %s131
    %s153 = sphi 0, %s155
    %s156 = sphi 0, %s153
    %s157 = sphi 0, %s156
    %s173 = sphi 0, %s157
    %s181 = sphi 0, %s183
    %s184 = sphi 0, %s181
    %s185 = sphi 0, %s184
    %s201 = sphi 0, %s185
    %s209 = sphi 0, %s211
    %s212 = sphi 0, %s209
    %s213 = sphi 0, %s212
    %s229 = sphi 0, %s213
  $region4: #{upsample_forward.5} parent=0 // loop_header_branch
    %17 = sbr.rel (%p15) target = $region8
  $region5: #{upsample_forward.5} parent=0 // loop_body
    %s19 = ssub.s32 %s14, 1
    %s20 = ssub.s32 %s14, 2
    %s27 = sadd.s32 1, %s22
    %p28 = scmp.ge.s32.totalorder %s27, 2
    %s29 = scalar_select %p28, 0, %s27
    %s30 = sadd.s32 1, %s21
    %s31 = scalar_select %p28, %s30, %s21
    %p32 = scmp.ge.s32.totalorder %s31, 2
    %s33 = scalar_select %p32, 0, %s31
    %s34 = ssub.s32 %s21, %s33
    %p35 = scmp.eq.s32.totalorder %s34, 0
    %s37 = sadd.s32 %s36, 1
    %s38 = scalar_select %p35, %s36, %s37
    %p41 = pneg %p35
    %p42 = scmp.eq.s32.totalorder %s14, 3
    %p43 = por %p41, %p42
    %p44 = scmp.ne.s32.totalorder %s36, %s39
    %p45 = scmp.eq.s32.totalorder %s14, 0
    %p46 = por %p44, %p45
    %p47 = scmp.ne.s32.totalorder %s36, %s39
    %p48 = scmp.eq.s32.totalorder %s19, 3
    %p49 = por %p47, %p48
    %p50 = scmp.ne.s32.totalorder %s39, %s40
    %p51 = scmp.eq.s32.totalorder %s19, 0
    %p52 = por %p50, %p51
    %p53 = scmp.ne.s32.totalorder %s39, %s40
    %p54 = scmp.eq.s32.totalorder %s20, 3
    %p55 = por %p53, %p54
    %p57 = scmp.ne.s32.totalorder %s40, %s56
    %p58 = scmp.eq.s32.totalorder %s20, 0
    %p59 = por %p57, %p58
    %s60 = ssub.s32 %s21, %s33
    %p61 = scmp.eq.s32.totalorder %s60, 0
    %s63 = sadd.s32 %s62, 1
    %s64 = scalar_select %p61, %s62, %s63
    %p67 = pneg %p61
    %p68 = scmp.eq.s32.totalorder %s14, 3
    %p69 = por %p67, %p68
    %p70 = scmp.ne.s32.totalorder %s62, %s65
    %p71 = scmp.eq.s32.totalorder %s14, 0
    %p72 = por %p70, %p71
    %p73 = scmp.ne.s32.totalorder %s62, %s65
    %p74 = scmp.eq.s32.totalorder %s19, 3
    %p75 = por %p73, %p74
    %p76 = scmp.ne.s32.totalorder %s65, %s66
    %p77 = scmp.eq.s32.totalorder %s19, 0
    %p78 = por %p76, %p77
    %p79 = scmp.ne.s32.totalorder %s65, %s66
    %p80 = scmp.eq.s32.totalorder %s20, 3
    %p81 = por %p79, %p80
    %p83 = scmp.ne.s32.totalorder %s66, %s82
    %p84 = scmp.eq.s32.totalorder %s20, 0
    %p85 = por %p83, %p84
    %s87 = sadd.s32 %s86, 1
    %p90 = scmp.eq.s32.totalorder %s14, 3
    %p91 = scmp.ne.s32.totalorder %s86, %s88
    %p92 = scmp.eq.s32.totalorder %s14, 0
    %p93 = por %p91, %p92
    %p94 = scmp.ne.s32.totalorder %s86, %s88
    %p95 = scmp.eq.s32.totalorder %s19, 3
    %p96 = por %p94, %p95
    %p97 = scmp.ne.s32.totalorder %s88, %s89
    %p98 = scmp.eq.s32.totalorder %s19, 0
    %p99 = por %p97, %p98
    %p100 = scmp.ne.s32.totalorder %s88, %s89
    %p101 = scmp.eq.s32.totalorder %s20, 3
    %p102 = por %p100, %p101
    %p104 = scmp.ne.s32.totalorder %s89, %s103
    %p105 = scmp.eq.s32.totalorder %s20, 0
    %p106 = por %p104, %p105
    %s108 = sadd.s32 %s107, 1
    %p111 = scmp.eq.s32.totalorder %s14, 3
    %p112 = scmp.ne.s32.totalorder %s107, %s109
    %p113 = scmp.eq.s32.totalorder %s14, 0
    %p114 = por %p112, %p113
    %p115 = scmp.ne.s32.totalorder %s107, %s109
    %p116 = scmp.eq.s32.totalorder %s19, 3
    %p117 = por %p115, %p116
    %p118 = scmp.ne.s32.totalorder %s109, %s110
    %p119 = scmp.eq.s32.totalorder %s19, 0
    %p120 = por %p118, %p119
    %p121 = scmp.ne.s32.totalorder %s109, %s110
    %p122 = scmp.eq.s32.totalorder %s20, 3
    %p123 = por %p121, %p122
    %p125 = scmp.ne.s32.totalorder %s110, %s124
    %p126 = scmp.eq.s32.totalorder %s20, 0
    %p127 = por %p125, %p126
    %s129 = sadd.s32 %s128, 1
    %p132 = scmp.eq.s32.totalorder %s14, 3
    %p133 = scmp.ne.s32.totalorder %s128, %s130
    %p134 = scmp.eq.s32.totalorder %s14, 0
    %p135 = por %p133, %p134
    %p136 = scmp.ne.s32.totalorder %s128, %s130
    %p137 = scmp.eq.s32.totalorder %s19, 3
    %p138 = por %p136, %p137
    %p139 = scmp.ne.s32.totalorder %s130, %s131
    %p140 = scmp.eq.s32.totalorder %s19, 0
    %p141 = por %p139, %p140
    %p142 = scmp.ne.s32.totalorder %s130, %s131
    %p143 = scmp.eq.s32.totalorder %s20, 3
    %p144 = por %p142, %p143
    %p146 = scmp.ne.s32.totalorder %s131, %s145
    %p147 = scmp.eq.s32.totalorder %s20, 0
    %p148 = por %p146, %p147
    %s149 = ssub.s32 %s21, %s33
    %s150 = ssub.s32 %s22, %s29
    %s151 = sor.u32 %s149, %s150
    %p152 = scmp.eq.s32.totalorder %s151, 0
    %s154 = sadd.s32 %s153, 1
    %s155 = scalar_select %p152, %s153, %s154
    %p158 = pneg %p152
    %p159 = scmp.eq.s32.totalorder %s14, 3
    %p160 = por %p158, %p159
    %p161 = scmp.ne.s32.totalorder %s153, %s156
    %p162 = scmp.eq.s32.totalorder %s14, 0
    %p163 = por %p161, %p162
    %p164 = scmp.ne.s32.totalorder %s153, %s156
    %p165 = scmp.eq.s32.totalorder %s19, 3
    %p166 = por %p164, %p165
    %p167 = scmp.ne.s32.totalorder %s156, %s157
    %p168 = scmp.eq.s32.totalorder %s19, 0
    %p169 = por %p167, %p168
    %p170 = scmp.ne.s32.totalorder %s156, %s157
    %p171 = scmp.eq.s32.totalorder %s20, 3
    %p172 = por %p170, %p171
    %p174 = scmp.ne.s32.totalorder %s157, %s173
    %p175 = scmp.eq.s32.totalorder %s20, 0
    %p176 = por %p174, %p175
    %s177 = ssub.s32 %s21, %s33
    %s178 = ssub.s32 %s22, %s29
    %s179 = sor.u32 %s177, %s178
    %p180 = scmp.eq.s32.totalorder %s179, 0
    %s182 = sadd.s32 %s181, 1
    %s183 = scalar_select %p180, %s181, %s182
    %p186 = pneg %p180
    %p187 = scmp.eq.s32.totalorder %s14, 3
    %p188 = por %p186, %p187
    %p189 = scmp.ne.s32.totalorder %s181, %s184
    %p190 = scmp.eq.s32.totalorder %s14, 0
    %p191 = por %p189, %p190
    %p192 = scmp.ne.s32.totalorder %s181, %s184
    %p193 = scmp.eq.s32.totalorder %s19, 3
    %p194 = por %p192, %p193
    %p195 = scmp.ne.s32.totalorder %s184, %s185
    %p196 = scmp.eq.s32.totalorder %s19, 0
    %p197 = por %p195, %p196
    %p198 = scmp.ne.s32.totalorder %s184, %s185
    %p199 = scmp.eq.s32.totalorder %s20, 3
    %p200 = por %p198, %p199
    %p202 = scmp.ne.s32.totalorder %s185, %s201
    %p203 = scmp.eq.s32.totalorder %s20, 0
    %p204 = por %p202, %p203
    %s205 = ssub.s32 %s21, %s33
    %s206 = ssub.s32 %s22, %s29
    %s207 = sor.u32 %s205, %s206
    %p208 = scmp.eq.s32.totalorder %s207, 0
    %s210 = sadd.s32 %s209, 1
    %s211 = scalar_select %p208, %s209, %s210
    %p214 = pneg %p208
    %p215 = scmp.eq.s32.totalorder %s14, 3
    %p216 = por %p214, %p215
    %p217 = scmp.ne.s32.totalorder %s209, %s212
    %p218 = scmp.eq.s32.totalorder %s14, 0
    %p219 = por %p217, %p218
    %p220 = scmp.ne.s32.totalorder %s209, %s212
    %p221 = scmp.eq.s32.totalorder %s19, 3
    %p222 = por %p220, %p221
    %p223 = scmp.ne.s32.totalorder %s212, %s213
    %p224 = scmp.eq.s32.totalorder %s19, 0
    %p225 = por %p223, %p224
    %p226 = scmp.ne.s32.totalorder %s212, %s213
    %p227 = scmp.eq.s32.totalorder %s20, 3
    %p228 = por %p226, %p227
    %p230 = scmp.ne.s32.totalorder %s213, %s229
    %p231 = scmp.eq.s32.totalorder %s20, 0
    %p232 = por %p230, %p231
    %p233 = scmp.le.s32.totalorder 1, %s14
    %p234 = scmp.lt.s32.totalorder %s14, 5
    %p235 = pnand %p233, %p234
    %p236 = pneg %p235
    // Predicated region
    $region9: #{upsample_forward.5} parent=5 // pred_check
      _
    $region10: #{upsample_forward.5} parent=5 // pred_check_branch
      %238 = sbr.rel (%p235) target = $region12
    $region11: #{upsample_forward.5} parent=5 // pred_region
      %s239 = ssub.s32 %s14, 1
      // Predicated region
      $region13: #{upsample_forward.5} parent=11 // pred_check
        %p240 = pneg %p99
      $region14: #{upsample_forward.5} parent=11 // pred_check_branch
        %242 = sbr.rel (%p240) target = $region16
      $region15: #{upsample_forward.5} parent=11 // pred_region
        _
      $region16: #{upsample_forward.5} parent=11 // pred_fallthru
        _
      // Predicated region
      $region17: #{upsample_forward.5} parent=11 // pred_check
        %p243 = pneg %p120
      $region18: #{upsample_forward.5} parent=11 // pred_check_branch
        %245 = sbr.rel (%p243) target = $region20
      $region19: #{upsample_forward.5} parent=11 // pred_region
        _
      $region20: #{upsample_forward.5} parent=11 // pred_fallthru
        _
      // Predicated region
      $region21: #{upsample_forward.5} parent=11 // pred_check
        %p246 = pneg %p141
      $region22: #{upsample_forward.5} parent=11 // pred_check_branch
        %248 = sbr.rel (%p246) target = $region24
      $region23: #{upsample_forward.5} parent=11 // pred_region
        _
      $region24: #{upsample_forward.5} parent=11 // pred_fallthru
        _
    $region12: #{upsample_forward.5} parent=5 // pred_fallthru
      _
    %p249 = scmp.lt.s32.totalorder %s14, 4
    // Predicated region
    $region25: #{upsample_forward.5} parent=5 // pred_check
      %p250 = pneg %p249
    $region26: #{upsample_forward.5} parent=5 // pred_check_branch
      %252 = sbr.rel (%p250) target = $region28
    $region27: #{upsample_forward.5} parent=5 // pred_region
      // Predicated region
      $region29: #{upsample_forward.5} parent=27 // pred_check
        %p253 = pneg %p46
      $region30: #{upsample_forward.5} parent=27 // pred_check_branch
        %255 = sbr.rel (%p253) target = $region32
      $region31: #{upsample_forward.5} parent=27 // pred_region
        %p256 = scmp.lt.s32.totalorder %s21, 1
        %s257 = scalar_select %p256, %s21, 1
        %s258 = smul.addr %s257, 54
        %s259 = smul.addr %s258, 4
        %s260 = scalar_lea.vmem %s0, %s259
      $region32: #{upsample_forward.5} parent=27 // pred_fallthru
        _
      // Predicated region
      $region33: #{upsample_forward.5} parent=27 // pred_check
        %p261 = pneg %p72
      $region34: #{upsample_forward.5} parent=27 // pred_check_branch
        %263 = sbr.rel (%p261) target = $region36
      $region35: #{upsample_forward.5} parent=27 // pred_region
        %p264 = scmp.lt.s32.totalorder %s21, 1
        %s265 = scalar_select %p264, %s21, 1
        %s266 = smul.addr %s265, 54
        %s267 = smul.addr %s266, 4
        %s268 = scalar_lea.vmem %s1, %s267
      $region36: #{upsample_forward.5} parent=27 // pred_fallthru
        _
    $region28: #{upsample_forward.5} parent=5 // pred_fallthru
      _
    %p269 = scmp.le.s32.totalorder 1, %s14
    %p270 = scmp.lt.s32.totalorder %s14, 5
    %p271 = pnand %p269, %p270
    %p272 = pneg %p271
    // Predicated region
    $region37: #{upsample_forward.5} parent=5 // pred_check
      _
    $region38: #{upsample_forward.5} parent=5 // pred_check_branch
      %274 = sbr.rel (%p271) target = $region40
    $region39: #{upsample_forward.5} parent=5 // pred_region
      %s275 = ssub.s32 %s14, 1
      %p276 = scmp.lt.s32.totalorder %s23, 1
      %s277 = scalar_select %p276, %s23, 1
      %s278 = smul.addr %s277, 54
      %s279 = smul.addr %s278, 4
      %s280 = scalar_lea.vmem %s0, %s279
      %p281 = pneg %p52
      %p282 = pneg %p49
      %p283 = scmp.lt.s32.totalorder %s23, 1
      %s284 = scalar_select %p283, %s23, 1
      %s285 = smul.addr %s284, 54
      %s286 = smul.addr %s285, 4
      %s287 = scalar_lea.vmem %s1, %s286
      %p288 = pneg %p78
      %p289 = pneg %p75
      %p290 = pneg %p99
      %p291 = pneg %p96
      %p292 = pneg %p120
      %p293 = pneg %p117
      %p294 = pneg %p141
      %p295 = pneg %p138
      %p296 = pneg %p169
      %p297 = pneg %p166
      %s298 = smul.u32 8, %s24
      %p299 = scmp.lt.s32.totalorder %s23, 1
      %s300 = scalar_select %p299, %s23, 1
      %p301 = scmp.lt.s32.totalorder %s298, 15
      %s302 = scalar_select %p301, %s298, 15
      %s303 = smul.addr %s302, 2
      %s304 = smul.addr %s300, 32
      %s305 = sadd.s32 %s303, %s304
      %s306 = smul.addr %s305, 8
      %s307 = scalar_lea.vmem %s5, %s306
      %p308 = pneg %p197
      %p309 = pneg %p194
      %p310 = scmp.lt.s32.totalorder %s23, 1
      %s311 = scalar_select %p310, %s23, 1
      %p312 = scmp.lt.s32.totalorder %s24, 1
      %s313 = scalar_select %p312, %s24, 1
      %s314 = smul.addr %s311, 2
      %s315 = sadd.s32 %s313, %s314
      %s316 = scalar_lea.vmem %s6, %s315
      %p317 = pneg %p225
      %p318 = pneg %p222
      %p319 = scmp.lt.s32.totalorder %s23, 1
      %s320 = scalar_select %p319, %s23, 1
      %p321 = scmp.lt.s32.totalorder %s24, 1
      %s322 = scalar_select %p321, %s24, 1
      %s323 = smul.addr %s320, 2
      %s324 = sadd.s32 %s322, %s323
      %s325 = scalar_lea.vmem %s7, %s324
      %p326 = scmp.lt.s32.totalorder %s23, 1
      %s327 = scalar_select %p326, %s23, 1
      %s328 = smul.addr %s327, 54
      %s329 = smul.addr %s328, 4
      %s330 = scalar_lea.vmem %s0, %s329
      %p331 = scmp.lt.s32.totalorder %s23, 1
      %s332 = scalar_select %p331, %s23, 1
      %s333 = smul.addr %s332, 54
      %s334 = smul.addr %s333, 4
      %s335 = scalar_lea.vmem %s1, %s334
      %s336 = smul.u32 8, %s24
      %p337 = scmp.lt.s32.totalorder %s23, 1
      %s338 = scalar_select %p337, %s23, 1
      %p339 = scmp.lt.s32.totalorder %s336, 15
      %s340 = scalar_select %p339, %s336, 15
      %s341 = smul.addr %s340, 2
      %s342 = smul.addr %s338, 32
      %s343 = sadd.s32 %s341, %s342
      %s344 = smul.addr %s343, 8
      %s345 = scalar_lea.vmem %s5, %s344
      %s346 = smul.u32 8, %s24
      %p347 = scmp.lt.s32.totalorder %s23, 1
      %s348 = scalar_select %p347, %s23, 1
      %p349 = scmp.lt.s32.totalorder %s24, 1
      %s350 = scalar_select %p349, %s24, 1
      %s351 = smul.addr %s348, 2
      %s352 = sadd.s32 %s350, %s351
      %s353 = scalar_lea.vmem %s6, %s352
      %p354 = scmp.lt.s32.totalorder %s23, 1
      %s355 = scalar_select %p354, %s23, 1
      %p356 = scmp.lt.s32.totalorder %s24, 1
      %s357 = scalar_select %p356, %s24, 1
      %s358 = smul.addr %s355, 2
      %s359 = sadd.s32 %s357, %s358
      %s360 = scalar_lea.vmem %s7, %s359
      %s362 = smul.u32 %s24, 8
      %s363 = smul.u32 %s362, 3
      %s364 = smul.addr %s363, 4
      %s365 = scalar_lea.vmem %s330, %s364
      %v366 = vld [vmem:[%s365] sm:$0xf]
      %v367 = vld [vmem:[%s365 + $0x4] sm:$0xf]
      %v368 = vld [vmem:[%s365 + $0xc] sm:$0xf]
      %v369 = vld [vmem:[%s365 + $0x10] sm:$0xf]
      %v370 = vld [vmem:[%s365 + $0x18] sm:$0xf]
      %v371 = vld [vmem:[%s365 + $0x1c] sm:$0xf]
      %v372 = vld [vmem:[%s365 + $0x24] sm:$0xf]
      %v373 = vld [vmem:[%s365 + $0x28] sm:$0xf]
      %v374 = vld [vmem:[%s365 + $0x30] sm:$0xf]
      %v375 = vld [vmem:[%s365 + $0x34] sm:$0xf]
      %v376 = vld [vmem:[%s365 + $0x3c] sm:$0xf]
      %v377 = vld [vmem:[%s365 + $0x40] sm:$0xf]
      %v378 = vld [vmem:[%s365 + $0x48] sm:$0xf]
      %v379 = vld [vmem:[%s365 + $0x4c] sm:$0xf]
      %v380 = vld [vmem:[%s365 + $0x54] sm:$0xf]
      %v381 = vld [vmem:[%s365 + $0x58] sm:$0xf]
      %s382 = smul.addr %s363, 4
      %s383 = scalar_lea.vmem %s335, %s382
      %v384 = vld [vmem:[%s383] sm:$0xf]
      %v385 = vld [vmem:[%s383 + $0x4] sm:$0xf]
      %v386 = vld [vmem:[%s383 + $0xc] sm:$0xf]
      %v387 = vld [vmem:[%s383 + $0x10] sm:$0xf]
      %v388 = vld [vmem:[%s383 + $0x18] sm:$0xf]
      %v389 = vld [vmem:[%s383 + $0x1c] sm:$0xf]
      %v390 = vld [vmem:[%s383 + $0x24] sm:$0xf]
      %v391 = vld [vmem:[%s383 + $0x28] sm:$0xf]
      %v392 = vld [vmem:[%s383 + $0x30] sm:$0xf]
      %v393 = vld [vmem:[%s383 + $0x34] sm:$0xf]
      %v394 = vld [vmem:[%s383 + $0x3c] sm:$0xf]
      %v395 = vld [vmem:[%s383 + $0x40] sm:$0xf]
      %v396 = vld [vmem:[%s383 + $0x48] sm:$0xf]
      %v397 = vld [vmem:[%s383 + $0x4c] sm:$0xf]
      %v398 = vld [vmem:[%s383 + $0x54] sm:$0xf]
      %v399 = vld [vmem:[%s383 + $0x58] sm:$0xf]
      %v400 = vld [vmem:[%s2] sm:$0xf]
      %v401 = vld [vmem:[%s3] sm:$0xf]
      %v418 = vunpack.c.l.b16 %v384
      %v419 = vunpack.c.l.b16 %v385
      %v420 = vunpack.c.l.b16 %v386
      %v421 = vunpack.c.l.b16 %v387
      %v422 = vunpack.c.l.b16 %v388
      %v423 = vunpack.c.l.b16 %v389
      %v424 = vunpack.c.l.b16 %v390
      %v425 = vunpack.c.l.b16 %v391
      %v426 = vunpack.c.l.b16 %v392
      %v427 = vunpack.c.l.b16 %v393
      %v428 = vunpack.c.l.b16 %v394
      %v429 = vunpack.c.l.b16 %v395
      %v430 = vunpack.c.l.b16 %v396
      %v431 = vunpack.c.l.b16 %v397
      %v432 = vunpack.c.l.b16 %v398
      %v433 = vunpack.c.l.b16 %v399
      %v434 = vpack.c.b16 %v419, %v418
      %v435 = vpack.c.b16 %v421, %v420
      %v436 = vpack.c.b16 %v423, %v422
      %v437 = vpack.c.b16 %v425, %v424
      %v438 = vpack.c.b16 %v427, %v426
      %v439 = vpack.c.b16 %v429, %v428
      %v440 = vpack.c.b16 %v431, %v430
      %v441 = vpack.c.b16 %v433, %v432
      %vm442 = vcmask 64512
      %v444 = vsel %vm442, %v434, 0
      %v447 = vsel %vm442, %v435, 0
      %v450 = vsel %vm442, %v436, 0
      %v453 = vsel %vm442, %v437, 0
      %v456 = vsel %vm442, %v438, 0
      %v459 = vsel %vm442, %v439, 0
      %v462 = vsel %vm442, %v440, 0
      %v465 = vsel %vm442, %v441, 0
      %vm467 = vcmask 1043456
      %v469 = vsel %vm467, %v401, 0
      %471 = vmatpush.bf16.msra.mxu0 0
      %472 = vmatpush.bf16.msra.mxu0 0
      %473 = vmatpush.bf16.msra.mxu0 0
      %474 = vmatpush.bf16.msra.mxu0 0
      %475 = vmatpush.bf16.msra.mxu0 0
      %476 = vmatpush.bf16.msra.mxu0 0
      %477 = vmatpush.bf16.msra.mxu0 0
      %478 = vmatpush.bf16.msra.mxu0 %v469
      %479 = vmatmul.bf16.gmra.mxu0 %v444
      %v480 = vpop.f32.mrf.mxu0
      %v481 = vadd.f32 0.0, %v480
      %v482 = vpop.f32.mrf.mxu0
      %v483 = vadd.f32 0.0, %v482
      %484 = vmatmul.bf16.gmra.mxu0 %v447
      %v485 = vpop.f32.mrf.mxu0
      %v486 = vadd.f32 0.0, %v485
      %v487 = vpop.f32.mrf.mxu0
      %v488 = vadd.f32 0.0, %v487
      %489 = vmatmul.bf16.gmra.mxu0 %v450
      %v490 = vpop.f32.mrf.mxu0
      %v491 = vadd.f32 0.0, %v490
      %v492 = vpop.f32.mrf.mxu0
      %v493 = vadd.f32 0.0, %v492
      %494 = vmatmul.bf16.gmra.mxu0 %v453
      %v495 = vpop.f32.mrf.mxu0
      %v496 = vadd.f32 0.0, %v495
      %v497 = vpop.f32.mrf.mxu0
      %v498 = vadd.f32 0.0, %v497
      %499 = vmatmul.bf16.gmra.mxu0 %v456
      %v500 = vpop.f32.mrf.mxu0
      %v501 = vadd.f32 0.0, %v500
      %v502 = vpop.f32.mrf.mxu0
      %v503 = vadd.f32 0.0, %v502
      %504 = vmatmul.bf16.gmra.mxu0 %v459
      %v505 = vpop.f32.mrf.mxu0
      %v506 = vadd.f32 0.0, %v505
      %v507 = vpop.f32.mrf.mxu0
      %v508 = vadd.f32 0.0, %v507
      %509 = vmatmul.bf16.gmra.mxu0 %v462
      %v510 = vpop.f32.mrf.mxu0
      %v511 = vadd.f32 0.0, %v510
      %v512 = vpop.f32.mrf.mxu0
      %v513 = vadd.f32 0.0, %v512
      %514 = vmatmul.bf16.gmra.mxu0 %v465
      %v515 = vpop.f32.mrf.mxu0
      %v516 = vadd.f32 0.0, %v515
      %v517 = vpop.f32.mrf.mxu0
      %v518 = vadd.f32 0.0, %v517
      %519 = vdwg.mxu0
      %v536 = vunpack.c.l.b16 %v366
      %v537 = vunpack.c.l.b16 %v367
      %v538 = vunpack.c.l.b16 %v368
      %v539 = vunpack.c.l.b16 %v369
      %v540 = vunpack.c.l.b16 %v370
      %v541 = vunpack.c.l.b16 %v371
      %v542 = vunpack.c.l.b16 %v372
      %v543 = vunpack.c.l.b16 %v373
      %v544 = vunpack.c.l.b16 %v374
      %v545 = vunpack.c.l.b16 %v375
      %v546 = vunpack.c.l.b16 %v376
      %v547 = vunpack.c.l.b16 %v377
      %v548 = vunpack.c.l.b16 %v378
      %v549 = vunpack.c.l.b16 %v379
      %v550 = vunpack.c.l.b16 %v380
      %v551 = vunpack.c.l.b16 %v381
      %v552 = vpack.c.b16 %v537, %v536
      %v553 = vpack.c.b16 %v539, %v538
      %v554 = vpack.c.b16 %v541, %v540
      %v555 = vpack.c.b16 %v543, %v542
      %v556 = vpack.c.b16 %v545, %v544
      %v557 = vpack.c.b16 %v547, %v546
      %v558 = vpack.c.b16 %v549, %v548
      %v559 = vpack.c.b16 %v551, %v550
      %v561 = vsel %vm442, %v552, 0
      %v564 = vsel %vm442, %v553, 0
      %v567 = vsel %vm442, %v554, 0
      %v570 = vsel %vm442, %v555, 0
      %v573 = vsel %vm442, %v556, 0
      %v576 = vsel %vm442, %v557, 0
      %v579 = vsel %vm442, %v558, 0
      %v582 = vsel %vm442, %v559, 0
      %v585 = vsel %vm467, %v400, 0
      %587 = vmatpush.bf16.msra.mxu0 0
      %588 = vmatpush.bf16.msra.mxu0 0
      %589 = vmatpush.bf16.msra.mxu0 0
      %590 = vmatpush.bf16.msra.mxu0 0
      %591 = vmatpush.bf16.msra.mxu0 0
      %592 = vmatpush.bf16.msra.mxu0 0
      %593 = vmatpush.bf16.msra.mxu0 0
      %594 = vmatpush.bf16.msra.mxu0 %v585
      %595 = vmatmul.bf16.gmra.mxu0 %v561
      %v596 = vpop.f32.mrf.mxu0
      %v597 = vadd.f32 %v481, %v596
      %v598 = vpop.f32.mrf.mxu0
      %v599 = vadd.f32 %v483, %v598
      %600 = vmatmul.bf16.gmra.mxu0 %v564
      %v601 = vpop.f32.mrf.mxu0
      %v602 = vadd.f32 %v486, %v601
      %v603 = vpop.f32.mrf.mxu0
      %v604 = vadd.f32 %v488, %v603
      %605 = vmatmul.bf16.gmra.mxu0 %v567
      %v606 = vpop.f32.mrf.mxu0
      %v607 = vadd.f32 %v491, %v606
      %v608 = vpop.f32.mrf.mxu0
      %v609 = vadd.f32 %v493, %v608
      %610 = vmatmul.bf16.gmra.mxu0 %v570
      %v611 = vpop.f32.mrf.mxu0
      %v612 = vadd.f32 %v496, %v611
      %v613 = vpop.f32.mrf.mxu0
      %v614 = vadd.f32 %v498, %v613
      %615 = vmatmul.bf16.gmra.mxu0 %v573
      %v616 = vpop.f32.mrf.mxu0
      %v617 = vadd.f32 %v501, %v616
      %v618 = vpop.f32.mrf.mxu0
      %v619 = vadd.f32 %v503, %v618
      %620 = vmatmul.bf16.gmra.mxu0 %v576
      %v621 = vpop.f32.mrf.mxu0
      %v622 = vadd.f32 %v506, %v621
      %v623 = vpop.f32.mrf.mxu0
      %v624 = vadd.f32 %v508, %v623
      %625 = vmatmul.bf16.gmra.mxu0 %v579
      %v626 = vpop.f32.mrf.mxu0
      %v627 = vadd.f32 %v511, %v626
      %v628 = vpop.f32.mrf.mxu0
      %v629 = vadd.f32 %v513, %v628
      %630 = vmatmul.bf16.gmra.mxu0 %v582
      %v631 = vpop.f32.mrf.mxu0
      %v632 = vadd.f32 %v516, %v631
      %v633 = vpop.f32.mrf.mxu0
      %v634 = vadd.f32 %v518, %v633
      %635 = vdwg.mxu0
      %v636 = vld [vmem:[%s365] sm:$0xf]
      %v637 = vld [vmem:[%s365 + $0x4] sm:$0xf]
      %v638 = vld [vmem:[%s365 + $0x8] sm:$0x1]
      %v639 = vld [vmem:[%s365 + $0xc] sm:$0xf]
      %v640 = vld [vmem:[%s365 + $0x10] sm:$0xf]
      %v641 = vld [vmem:[%s365 + $0x14] sm:$0x1]
      %v642 = vld [vmem:[%s365 + $0x18] sm:$0xf]
      %v643 = vld [vmem:[%s365 + $0x1c] sm:$0xf]
      %v644 = vld [vmem:[%s365 + $0x20] sm:$0x1]
      %v645 = vld [vmem:[%s365 + $0x24] sm:$0xf]
      %v646 = vld [vmem:[%s365 + $0x28] sm:$0xf]
      %v647 = vld [vmem:[%s365 + $0x2c] sm:$0x1]
      %v648 = vld [vmem:[%s365 + $0x30] sm:$0xf]
      %v649 = vld [vmem:[%s365 + $0x34] sm:$0xf]
      %v650 = vld [vmem:[%s365 + $0x38] sm:$0x1]
      %v651 = vld [vmem:[%s365 + $0x3c] sm:$0xf]
      %v652 = vld [vmem:[%s365 + $0x40] sm:$0xf]
      %v653 = vld [vmem:[%s365 + $0x44] sm:$0x1]
      %v654 = vld [vmem:[%s365 + $0x48] sm:$0xf]
      %v655 = vld [vmem:[%s365 + $0x4c] sm:$0xf]
      %v656 = vld [vmem:[%s365 + $0x50] sm:$0x1]
      %v657 = vld [vmem:[%s365 + $0x54] sm:$0xf]
      %v658 = vld [vmem:[%s365 + $0x58] sm:$0xf]
      %v659 = vld [vmem:[%s365 + $0x5c] sm:$0x1]
      %vm660 = vsmask.f32 3328
      %vm661 = vsmask.f32 7440
      %vm662 = vmor %vm660, %vm661
      %v664 = vshrl.u32 %v636, 16
      %v666 = vrot.slane %v664, 4
      %v667 = vshll.u32 %v636, 16
      %v669 = vrot.slane %v667, 5
      %v670 = vor.u32 %v666, %v669
      %v671 = vrot.slane %v670, 4
      %v673 = vshll.u32 %v637, 16
      %v675 = vrot.slane %v673, 5
      %v676 = vsel %vm662, %v671, %v675
      %v677 = vshrl.u32 %v637, 16
      %v679 = vrot.slane %v677, 4
      %v680 = vor.u32 %v679, %v675
      %v681 = vrot.slane %v680, 4
      %v683 = vshll.u32 %v638, 16
      %v685 = vrot.slane %v683, 5
      %v686 = vsel %vm662, %v681, %v685
      %v688 = vshrl.u32 %v639, 16
      %v690 = vrot.slane %v688, 4
      %v691 = vshll.u32 %v639, 16
      %v693 = vrot.slane %v691, 5
      %v694 = vor.u32 %v690, %v693
      %v695 = vrot.slane %v694, 4
      %v697 = vshll.u32 %v640, 16
      %v699 = vrot.slane %v697, 5
      %v700 = vsel %vm662, %v695, %v699
      %v701 = vshrl.u32 %v640, 16
      %v703 = vrot.slane %v701, 4
      %v704 = vor.u32 %v703, %v699
      %v705 = vrot.slane %v704, 4
      %v707 = vshll.u32 %v641, 16
      %v709 = vrot.slane %v707, 5
      %v710 = vsel %vm662, %v705, %v709
      %v712 = vshrl.u32 %v642, 16
      %v714 = vrot.slane %v712, 4
      %v715 = vshll.u32 %v642, 16
      %v717 = vrot.slane %v715, 5
      %v718 = vor.u32 %v714, %v717
      %v719 = vrot.slane %v718, 4
      %v721 = vshll.u32 %v643, 16
      %v723 = vrot.slane %v721, 5
      %v724 = vsel %vm662, %v719, %v723
      %v725 = vshrl.u32 %v643, 16
      %v727 = vrot.slane %v725, 4
      %v728 = vor.u32 %v727, %v723
      %v729 = vrot.slane %v728, 4
      %v731 = vshll.u32 %v644, 16
      %v733 = vrot.slane %v731, 5
      %v734 = vsel %vm662, %v729, %v733
      %v736 = vshrl.u32 %v645, 16
      %v738 = vrot.slane %v736, 4
      %v739 = vshll.u32 %v645, 16
      %v741 = vrot.slane %v739, 5
      %v742 = vor.u32 %v738, %v741
      %v743 = vrot.slane %v742, 4
      %v745 = vshll.u32 %v646, 16
      %v747 = vrot.slane %v745, 5
      %v748 = vsel %vm662, %v743, %v747
      %v749 = vshrl.u32 %v646, 16
      %v751 = vrot.slane %v749, 4
      %v752 = vor.u32 %v751, %v747
      %v753 = vrot.slane %v752, 4
      %v755 = vshll.u32 %v647, 16
      %v757 = vrot.slane %v755, 5
      %v758 = vsel %vm662, %v753, %v757
      %v760 = vshrl.u32 %v648, 16
      %v762 = vrot.slane %v760, 4
      %v763 = vshll.u32 %v648, 16
      %v765 = vrot.slane %v763, 5
      %v766 = vor.u32 %v762, %v765
      %v767 = vrot.slane %v766, 4
      %v769 = vshll.u32 %v649, 16
      %v771 = vrot.slane %v769, 5
      %v772 = vsel %vm662, %v767, %v771
      %v773 = vshrl.u32 %v649, 16
      %v775 = vrot.slane %v773, 4
      %v776 = vor.u32 %v775, %v771
      %v777 = vrot.slane %v776, 4
      %v779 = vshll.u32 %v650, 16
      %v781 = vrot.slane %v779, 5
      %v782 = vsel %vm662, %v777, %v781
      %v784 = vshrl.u32 %v651, 16
      %v786 = vrot.slane %v784, 4
      %v787 = vshll.u32 %v651, 16
      %v789 = vrot.slane %v787, 5
      %v790 = vor.u32 %v786, %v789
      %v791 = vrot.slane %v790, 4
      %v793 = vshll.u32 %v652, 16
      %v795 = vrot.slane %v793, 5
      %v796 = vsel %vm662, %v791, %v795
      %v797 = vshrl.u32 %v652, 16
      %v799 = vrot.slane %v797, 4
      %v800 = vor.u32 %v799, %v795
      %v801 = vrot.slane %v800, 4
      %v803 = vshll.u32 %v653, 16
      %v805 = vrot.slane %v803, 5
      %v806 = vsel %vm662, %v801, %v805
      %v808 = vshrl.u32 %v654, 16
      %v810 = vrot.slane %v808, 4
      %v811 = vshll.u32 %v654, 16
      %v813 = vrot.slane %v811, 5
      %v814 = vor.u32 %v810, %v813
      %v815 = vrot.slane %v814, 4
      %v817 = vshll.u32 %v655, 16
      %v819 = vrot.slane %v817, 5
      %v820 = vsel %vm662, %v815, %v819
      %v821 = vshrl.u32 %v655, 16
      %v823 = vrot.slane %v821, 4
      %v824 = vor.u32 %v823, %v819
      %v825 = vrot.slane %v824, 4
      %v827 = vshll.u32 %v656, 16
      %v829 = vrot.slane %v827, 5
      %v830 = vsel %vm662, %v825, %v829
      %v832 = vshrl.u32 %v657, 16
      %v834 = vrot.slane %v832, 4
      %v835 = vshll.u32 %v657, 16
      %v837 = vrot.slane %v835, 5
      %v838 = vor.u32 %v834, %v837
      %v839 = vrot.slane %v838, 4
      %v841 = vshll.u32 %v658, 16
      %v843 = vrot.slane %v841, 5
      %v844 = vsel %vm662, %v839, %v843
      %v845 = vshrl.u32 %v658, 16
      %v847 = vrot.slane %v845, 4
      %v848 = vor.u32 %v847, %v843
      %v849 = vrot.slane %v848, 4
      %v851 = vshll.u32 %v659, 16
      %v853 = vrot.slane %v851, 5
      %v854 = vsel %vm662, %v849, %v853
      %v855 = vld [vmem:[%s383] sm:$0xf]
      %v856 = vld [vmem:[%s383 + $0x4] sm:$0xf]
      %v857 = vld [vmem:[%s383 + $0x8] sm:$0x1]
      %v858 = vld [vmem:[%s383 + $0xc] sm:$0xf]
      %v859 = vld [vmem:[%s383 + $0x10] sm:$0xf]
      %v860 = vld [vmem:[%s383 + $0x14] sm:$0x1]
      %v861 = vld [vmem:[%s383 + $0x18] sm:$0xf]
      %v862 = vld [vmem:[%s383 + $0x1c] sm:$0xf]
      %v863 = vld [vmem:[%s383 + $0x20] sm:$0x1]
      %v864 = vld [vmem:[%s383 + $0x24] sm:$0xf]
      %v865 = vld [vmem:[%s383 + $0x28] sm:$0xf]
      %v866 = vld [vmem:[%s383 + $0x2c] sm:$0x1]
      %v867 = vld [vmem:[%s383 + $0x30] sm:$0xf]
      %v868 = vld [vmem:[%s383 + $0x34] sm:$0xf]
      %v869 = vld [vmem:[%s383 + $0x38] sm:$0x1]
      %v870 = vld [vmem:[%s383 + $0x3c] sm:$0xf]
      %v871 = vld [vmem:[%s383 + $0x40] sm:$0xf]
      %v872 = vld [vmem:[%s383 + $0x44] sm:$0x1]
      %v873 = vld [vmem:[%s383 + $0x48] sm:$0xf]
      %v874 = vld [vmem:[%s383 + $0x4c] sm:$0xf]
      %v875 = vld [vmem:[%s383 + $0x50] sm:$0x1]
      %v876 = vld [vmem:[%s383 + $0x54] sm:$0xf]
      %v877 = vld [vmem:[%s383 + $0x58] sm:$0xf]
      %v878 = vld [vmem:[%s383 + $0x5c] sm:$0x1]
      %v880 = vshrl.u32 %v855, 16
      %v882 = vrot.slane %v880, 4
      %v883 = vshll.u32 %v855, 16
      %v885 = vrot.slane %v883, 5
      %v886 = vor.u32 %v882, %v885
      %v887 = vrot.slane %v886, 4
      %v889 = vshll.u32 %v856, 16
      %v891 = vrot.slane %v889, 5
      %v892 = vsel %vm662, %v887, %v891
      %v893 = vshrl.u32 %v856, 16
      %v895 = vrot.slane %v893, 4
      %v896 = vor.u32 %v895, %v891
      %v897 = vrot.slane %v896, 4
      %v899 = vshll.u32 %v857, 16
      %v901 = vrot.slane %v899, 5
      %v902 = vsel %vm662, %v897, %v901
      %v904 = vshrl.u32 %v858, 16
      %v906 = vrot.slane %v904, 4
      %v907 = vshll.u32 %v858, 16
      %v909 = vrot.slane %v907, 5
      %v910 = vor.u32 %v906, %v909
      %v911 = vrot.slane %v910, 4
      %v913 = vshll.u32 %v859, 16
      %v915 = vrot.slane %v913, 5
      %v916 = vsel %vm662, %v911, %v915
      %v917 = vshrl.u32 %v859, 16
      %v919 = vrot.slane %v917, 4
      %v920 = vor.u32 %v919, %v915
      %v921 = vrot.slane %v920, 4
      %v923 = vshll.u32 %v860, 16
      %v925 = vrot.slane %v923, 5
      %v926 = vsel %vm662, %v921, %v925
      %v928 = vshrl.u32 %v861, 16
      %v930 = vrot.slane %v928, 4
      %v931 = vshll.u32 %v861, 16
      %v933 = vrot.slane %v931, 5
      %v934 = vor.u32 %v930, %v933
      %v935 = vrot.slane %v934, 4
      %v937 = vshll.u32 %v862, 16
      %v939 = vrot.slane %v937, 5
      %v940 = vsel %vm662, %v935, %v939
      %v941 = vshrl.u32 %v862, 16
      %v943 = vrot.slane %v941, 4
      %v944 = vor.u32 %v943, %v939
      %v945 = vrot.slane %v944, 4
      %v947 = vshll.u32 %v863, 16
      %v949 = vrot.slane %v947, 5
      %v950 = vsel %vm662, %v945, %v949
      %v952 = vshrl.u32 %v864, 16
      %v954 = vrot.slane %v952, 4
      %v955 = vshll.u32 %v864, 16
      %v957 = vrot.slane %v955, 5
      %v958 = vor.u32 %v954, %v957
      %v959 = vrot.slane %v958, 4
      %v961 = vshll.u32 %v865, 16
      %v963 = vrot.slane %v961, 5
      %v964 = vsel %vm662, %v959, %v963
      %v965 = vshrl.u32 %v865, 16
      %v967 = vrot.slane %v965, 4
      %v968 = vor.u32 %v967, %v963
      %v969 = vrot.slane %v968, 4
      %v971 = vshll.u32 %v866, 16
      %v973 = vrot.slane %v971, 5
      %v974 = vsel %vm662, %v969, %v973
      %v976 = vshrl.u32 %v867, 16
      %v978 = vrot.slane %v976, 4
      %v979 = vshll.u32 %v867, 16
      %v981 = vrot.slane %v979, 5
      %v982 = vor.u32 %v978, %v981
      %v983 = vrot.slane %v982, 4
      %v985 = vshll.u32 %v868, 16
      %v987 = vrot.slane %v985, 5
      %v988 = vsel %vm662, %v983, %v987
      %v989 = vshrl.u32 %v868, 16
      %v991 = vrot.slane %v989, 4
      %v992 = vor.u32 %v991, %v987
      %v993 = vrot.slane %v992, 4
      %v995 = vshll.u32 %v869, 16
      %v997 = vrot.slane %v995, 5
      %v998 = vsel %vm662, %v993, %v997
      %v1000 = vshrl.u32 %v870, 16
      %v1002 = vrot.slane %v1000, 4
      %v1003 = vshll.u32 %v870, 16
      %v1005 = vrot.slane %v1003, 5
      %v1006 = vor.u32 %v1002, %v1005
      %v1007 = vrot.slane %v1006, 4
      %v1009 = vshll.u32 %v871, 16
      %v1011 = vrot.slane %v1009, 5
      %v1012 = vsel %vm662, %v1007, %v1011
      %v1013 = vshrl.u32 %v871, 16
      %v1015 = vrot.slane %v1013, 4
      %v1016 = vor.u32 %v1015, %v1011
      %v1017 = vrot.slane %v1016, 4
      %v1019 = vshll.u32 %v872, 16
      %v1021 = vrot.slane %v1019, 5
      %v1022 = vsel %vm662, %v1017, %v1021
      %v1024 = vshrl.u32 %v873, 16
      %v1026 = vrot.slane %v1024, 4
      %v1027 = vshll.u32 %v873, 16
      %v1029 = vrot.slane %v1027, 5
      %v1030 = vor.u32 %v1026, %v1029
      %v1031 = vrot.slane %v1030, 4
      %v1033 = vshll.u32 %v874, 16
      %v1035 = vrot.slane %v1033, 5
      %v1036 = vsel %vm662, %v1031, %v1035
      %v1037 = vshrl.u32 %v874, 16
      %v1039 = vrot.slane %v1037, 4
      %v1040 = vor.u32 %v1039, %v1035
      %v1041 = vrot.slane %v1040, 4
      %v1043 = vshll.u32 %v875, 16
      %v1045 = vrot.slane %v1043, 5
      %v1046 = vsel %vm662, %v1041, %v1045
      %v1048 = vshrl.u32 %v876, 16
      %v1050 = vrot.slane %v1048, 4
      %v1051 = vshll.u32 %v876, 16
      %v1053 = vrot.slane %v1051, 5
      %v1054 = vor.u32 %v1050, %v1053
      %v1055 = vrot.slane %v1054, 4
      %v1057 = vshll.u32 %v877, 16
      %v1059 = vrot.slane %v1057, 5
      %v1060 = vsel %vm662, %v1055, %v1059
      %v1061 = vshrl.u32 %v877, 16
      %v1063 = vrot.slane %v1061, 4
      %v1064 = vor.u32 %v1063, %v1059
      %v1065 = vrot.slane %v1064, 4
      %v1067 = vshll.u32 %v878, 16
      %v1069 = vrot.slane %v1067, 5
      %v1070 = vsel %vm662, %v1065, %v1069
      %s1071 = scalar_lea.vmem %s2, 4
      %v1072 = vld [vmem:[%s1071] sm:$0xf]
      %v1073 = vunpack.c.l.b16 %v676
      %v1074 = vunpack.c.l.b16 %v686
      %v1075 = vunpack.c.l.b16 %v700
      %v1076 = vunpack.c.l.b16 %v710
      %v1077 = vunpack.c.l.b16 %v724
      %v1078 = vunpack.c.l.b16 %v734
      %v1079 = vunpack.c.l.b16 %v748
      %v1080 = vunpack.c.l.b16 %v758
      %v1081 = vunpack.c.l.b16 %v772
      %v1082 = vunpack.c.l.b16 %v782
      %v1083 = vunpack.c.l.b16 %v796
      %v1084 = vunpack.c.l.b16 %v806
      %v1085 = vunpack.c.l.b16 %v820
      %v1086 = vunpack.c.l.b16 %v830
      %v1087 = vunpack.c.l.b16 %v844
      %v1088 = vunpack.c.l.b16 %v854
      %v1089 = vpack.c.b16 %v1074, %v1073
      %v1090 = vpack.c.b16 %v1076, %v1075
      %v1091 = vpack.c.b16 %v1078, %v1077
      %v1092 = vpack.c.b16 %v1080, %v1079
      %v1093 = vpack.c.b16 %v1082, %v1081
      %v1094 = vpack.c.b16 %v1084, %v1083
      %v1095 = vpack.c.b16 %v1086, %v1085
      %v1096 = vpack.c.b16 %v1088, %v1087
      %v1098 = vsel %vm442, %v1089, 0
      %v1101 = vsel %vm442, %v1090, 0
      %v1104 = vsel %vm442, %v1091, 0
      %v1107 = vsel %vm442, %v1092, 0
      %v1110 = vsel %vm442, %v1093, 0
      %v1113 = vsel %vm442, %v1094, 0
      %v1116 = vsel %vm442, %v1095, 0
      %v1119 = vsel %vm442, %v1096, 0
      %v1122 = vsel %vm467, %v1072, 0
      %1124 = vmatpush.bf16.msra.mxu0 0
      %1125 = vmatpush.bf16.msra.mxu0 0
      %1126 = vmatpush.bf16.msra.mxu0 0
      %1127 = vmatpush.bf16.msra.mxu0 0
      %1128 = vmatpush.bf16.msra.mxu0 0
      %1129 = vmatpush.bf16.msra.mxu0 0
      %1130 = vmatpush.bf16.msra.mxu0 0
      %1131 = vmatpush.bf16.msra.mxu0 %v1122
      %1132 = vmatmul.bf16.gmra.mxu0 %v1098
      %v1133 = vpop.f32.mrf.mxu0
      %v1134 = vadd.f32 0.0, %v1133
      %v1135 = vpop.f32.mrf.mxu0
      %v1136 = vadd.f32 0.0, %v1135
      %1137 = vmatmul.bf16.gmra.mxu0 %v1101
      %v1138 = vpop.f32.mrf.mxu0
      %v1139 = vadd.f32 0.0, %v1138
      %v1140 = vpop.f32.mrf.mxu0
      %v1141 = vadd.f32 0.0, %v1140
      %1142 = vmatmul.bf16.gmra.mxu0 %v1104
      %v1143 = vpop.f32.mrf.mxu0
      %v1144 = vadd.f32 0.0, %v1143
      %v1145 = vpop.f32.mrf.mxu0
      %v1146 = vadd.f32 0.0, %v1145
      %1147 = vmatmul.bf16.gmra.mxu0 %v1107
      %v1148 = vpop.f32.mrf.mxu0
      %v1149 = vadd.f32 0.0, %v1148
      %v1150 = vpop.f32.mrf.mxu0
      %v1151 = vadd.f32 0.0, %v1150
      %1152 = vmatmul.bf16.gmra.mxu0 %v1110
      %v1153 = vpop.f32.mrf.mxu0
      %v1154 = vadd.f32 0.0, %v1153
      %v1155 = vpop.f32.mrf.mxu0
      %v1156 = vadd.f32 0.0, %v1155
      %1157 = vmatmul.bf16.gmra.mxu0 %v1113
      %v1158 = vpop.f32.mrf.mxu0
      %v1159 = vadd.f32 0.0, %v1158
      %v1160 = vpop.f32.mrf.mxu0
      %v1161 = vadd.f32 0.0, %v1160
      %1162 = vmatmul.bf16.gmra.mxu0 %v1116
      %v1163 = vpop.f32.mrf.mxu0
      %v1164 = vadd.f32 0.0, %v1163
      %v1165 = vpop.f32.mrf.mxu0
      %v1166 = vadd.f32 0.0, %v1165
      %1167 = vmatmul.bf16.gmra.mxu0 %v1119
      %v1168 = vpop.f32.mrf.mxu0
      %v1169 = vadd.f32 0.0, %v1168
      %v1170 = vpop.f32.mrf.mxu0
      %v1171 = vadd.f32 0.0, %v1170
      %1172 = vdwg.mxu0
      %v1173 = vadd.f32 %v597, %v1134
      %v1174 = vadd.f32 %v599, %v1136
      %v1175 = vadd.f32 %v602, %v1139
      %v1176 = vadd.f32 %v604, %v1141
      %v1177 = vadd.f32 %v607, %v1144
      %v1178 = vadd.f32 %v609, %v1146
      %v1179 = vadd.f32 %v612, %v1149
      %v1180 = vadd.f32 %v614, %v1151
      %v1181 = vadd.f32 %v617, %v1154
      %v1182 = vadd.f32 %v619, %v1156
      %v1183 = vadd.f32 %v622, %v1159
      %v1184 = vadd.f32 %v624, %v1161
      %v1185 = vadd.f32 %v627, %v1164
      %v1186 = vadd.f32 %v629, %v1166
      %v1187 = vadd.f32 %v632, %v1169
      %v1188 = vadd.f32 %v634, %v1171
      %s1189 = scalar_lea.vmem %s3, 4
      %v1190 = vld [vmem:[%s1189] sm:$0xf]
      %v1191 = vunpack.c.l.b16 %v892
      %v1192 = vunpack.c.l.b16 %v902
      %v1193 = vunpack.c.l.b16 %v916
      %v1194 = vunpack.c.l.b16 %v926
      %v1195 = vunpack.c.l.b16 %v940
      %v1196 = vunpack.c.l.b16 %v950
      %v1197 = vunpack.c.l.b16 %v964
      %v1198 = vunpack.c.l.b16 %v974
      %v1199 = vunpack.c.l.b16 %v988
      %v1200 = vunpack.c.l.b16 %v998
      %v1201 = vunpack.c.l.b16 %v1012
      %v1202 = vunpack.c.l.b16 %v1022
      %v1203 = vunpack.c.l.b16 %v1036
      %v1204 = vunpack.c.l.b16 %v1046
      %v1205 = vunpack.c.l.b16 %v1060
      %v1206 = vunpack.c.l.b16 %v1070
      %v1207 = vpack.c.b16 %v1192, %v1191
      %v1208 = vpack.c.b16 %v1194, %v1193
      %v1209 = vpack.c.b16 %v1196, %v1195
      %v1210 = vpack.c.b16 %v1198, %v1197
      %v1211 = vpack.c.b16 %v1200, %v1199
      %v1212 = vpack.c.b16 %v1202, %v1201
      %v1213 = vpack.c.b16 %v1204, %v1203
      %v1214 = vpack.c.b16 %v1206, %v1205
      %v1216 = vsel %vm442, %v1207, 0
      %v1219 = vsel %vm442, %v1208, 0
      %v1222 = vsel %vm442, %v1209, 0
      %v1225 = vsel %vm442, %v1210, 0
      %v1228 = vsel %vm442, %v1211, 0
      %v1231 = vsel %vm442, %v1212, 0
      %v1234 = vsel %vm442, %v1213, 0
      %v1237 = vsel %vm442, %v1214, 0
      %v1240 = vsel %vm467, %v1190, 0
      %1242 = vmatpush.bf16.msra.mxu0 0
      %1243 = vmatpush.bf16.msra.mxu0 0
      %1244 = vmatpush.bf16.msra.mxu0 0
      %1245 = vmatpush.bf16.msra.mxu0 0
      %1246 = vmatpush.bf16.msra.mxu0 0
      %1247 = vmatpush.bf16.msra.mxu0 0
      %1248 = vmatpush.bf16.msra.mxu0 0
      %1249 = vmatpush.bf16.msra.mxu0 %v1240
      %1250 = vmatmul.bf16.gmra.mxu0 %v1216
      %v1251 = vpop.f32.mrf.mxu0
      %v1252 = vadd.f32 0.0, %v1251
      %v1253 = vpop.f32.mrf.mxu0
      %v1254 = vadd.f32 0.0, %v1253
      %1255 = vmatmul.bf16.gmra.mxu0 %v1219
      %v1256 = vpop.f32.mrf.mxu0
      %v1257 = vadd.f32 0.0, %v1256
      %v1258 = vpop.f32.mrf.mxu0
      %v1259 = vadd.f32 0.0, %v1258
      %1260 = vmatmul.bf16.gmra.mxu0 %v1222
      %v1261 = vpop.f32.mrf.mxu0
      %v1262 = vadd.f32 0.0, %v1261
      %v1263 = vpop.f32.mrf.mxu0
      %v1264 = vadd.f32 0.0, %v1263
      %1265 = vmatmul.bf16.gmra.mxu0 %v1225
      %v1266 = vpop.f32.mrf.mxu0
      %v1267 = vadd.f32 0.0, %v1266
      %v1268 = vpop.f32.mrf.mxu0
      %v1269 = vadd.f32 0.0, %v1268
      %1270 = vmatmul.bf16.gmra.mxu0 %v1228
      %v1271 = vpop.f32.mrf.mxu0
      %v1272 = vadd.f32 0.0, %v1271
      %v1273 = vpop.f32.mrf.mxu0
      %v1274 = vadd.f32 0.0, %v1273
      %1275 = vmatmul.bf16.gmra.mxu0 %v1231
      %v1276 = vpop.f32.mrf.mxu0
      %v1277 = vadd.f32 0.0, %v1276
      %v1278 = vpop.f32.mrf.mxu0
      %v1279 = vadd.f32 0.0, %v1278
      %1280 = vmatmul.bf16.gmra.mxu0 %v1234
      %v1281 = vpop.f32.mrf.mxu0
      %v1282 = vadd.f32 0.0, %v1281
      %v1283 = vpop.f32.mrf.mxu0
      %v1284 = vadd.f32 0.0, %v1283
      %1285 = vmatmul.bf16.gmra.mxu0 %v1237
      %v1286 = vpop.f32.mrf.mxu0
      %v1287 = vadd.f32 0.0, %v1286
      %v1288 = vpop.f32.mrf.mxu0
      %v1289 = vadd.f32 0.0, %v1288
      %1290 = vdwg.mxu0
      %v1291 = vadd.f32 %v1173, %v1252
      %v1292 = vadd.f32 %v1174, %v1254
      %v1293 = vadd.f32 %v1175, %v1257
      %v1294 = vadd.f32 %v1176, %v1259
      %v1295 = vadd.f32 %v1177, %v1262
      %v1296 = vadd.f32 %v1178, %v1264
      %v1297 = vadd.f32 %v1179, %v1267
      %v1298 = vadd.f32 %v1180, %v1269
      %v1299 = vadd.f32 %v1181, %v1272
      %v1300 = vadd.f32 %v1182, %v1274
      %v1301 = vadd.f32 %v1183, %v1277
      %v1302 = vadd.f32 %v1184, %v1279
      %v1303 = vadd.f32 %v1185, %v1282
      %v1304 = vadd.f32 %v1186, %v1284
      %v1305 = vadd.f32 %v1187, %v1287
      %v1306 = vadd.f32 %v1188, %v1289
      %v1307 = vld [vmem:[%s365] sm:$0xe]
      %v1308 = vld [vmem:[%s365 + $0xc] sm:$0xe]
      %v1309 = vld [vmem:[%s365 + $0x18] sm:$0xe]
      %v1310 = vld [vmem:[%s365 + $0x24] sm:$0xe]
      %v1311 = vld [vmem:[%s365 + $0x30] sm:$0xe]
      %v1312 = vld [vmem:[%s365 + $0x3c] sm:$0xe]
      %v1313 = vld [vmem:[%s365 + $0x48] sm:$0xe]
      %v1314 = vld [vmem:[%s365 + $0x54] sm:$0xe]
      %vm1339 = vcmask 1042432
      %vm1340 = vcmask 1046532
      %vm1341 = vmor %vm1339, %vm1340
      %v1342 = vrot.slane %v1307, 5
      %v1343 = vrot.slane %v1342, 4
      %v1344 = vrot.slane %v637, 5
      %v1345 = vsel %vm1341, %v1343, %v1344
      %v1346 = vrot.slane %v1344, 4
      %v1347 = vrot.slane %v638, 5
      %v1348 = vsel %vm1341, %v1346, %v1347
      %v1349 = vrot.slane %v1308, 5
      %v1350 = vrot.slane %v1349, 4
      %v1351 = vrot.slane %v640, 5
      %v1352 = vsel %vm1341, %v1350, %v1351
      %v1353 = vrot.slane %v1351, 4
      %v1354 = vrot.slane %v641, 5
      %v1355 = vsel %vm1341, %v1353, %v1354
      %v1356 = vrot.slane %v1309, 5
      %v1357 = vrot.slane %v1356, 4
      %v1358 = vrot.slane %v643, 5
      %v1359 = vsel %vm1341, %v1357, %v1358
      %v1360 = vrot.slane %v1358, 4
      %v1361 = vrot.slane %v644, 5
      %v1362 = vsel %vm1341, %v1360, %v1361
      %v1363 = vrot.slane %v1310, 5
      %v1364 = vrot.slane %v1363, 4
      %v1365 = vrot.slane %v646, 5
      %v1366 = vsel %vm1341, %v1364, %v1365
      %v1367 = vrot.slane %v1365, 4
      %v1368 = vrot.slane %v647, 5
      %v1369 = vsel %vm1341, %v1367, %v1368
      %v1370 = vrot.slane %v1311, 5
      %v1371 = vrot.slane %v1370, 4
      %v1372 = vrot.slane %v649, 5
      %v1373 = vsel %vm1341, %v1371, %v1372
      %v1374 = vrot.slane %v1372, 4
      %v1375 = vrot.slane %v650, 5
      %v1376 = vsel %vm1341, %v1374, %v1375
      %v1377 = vrot.slane %v1312, 5
      %v1378 = vrot.slane %v1377, 4
      %v1379 = vrot.slane %v652, 5
      %v1380 = vsel %vm1341, %v1378, %v1379
      %v1381 = vrot.slane %v1379, 4
      %v1382 = vrot.slane %v653, 5
      %v1383 = vsel %vm1341, %v1381, %v1382
      %v1384 = vrot.slane %v1313, 5
      %v1385 = vrot.slane %v1384, 4
      %v1386 = vrot.slane %v655, 5
      %v1387 = vsel %vm1341, %v1385, %v1386
      %v1388 = vrot.slane %v1386, 4
      %v1389 = vrot.slane %v656, 5
      %v1390 = vsel %vm1341, %v1388, %v1389
      %v1391 = vrot.slane %v1314, 5
      %v1392 = vrot.slane %v1391, 4
      %v1393 = vrot.slane %v658, 5
      %v1394 = vsel %vm1341, %v1392, %v1393
      %v1395 = vrot.slane %v1393, 4
      %v1396 = vrot.slane %v659, 5
      %v1397 = vsel %vm1341, %v1395, %v1396
      %v1398 = vld [vmem:[%s383] sm:$0xe]
      %v1399 = vld [vmem:[%s383 + $0xc] sm:$0xe]
      %v1400 = vld [vmem:[%s383 + $0x18] sm:$0xe]
      %v1401 = vld [vmem:[%s383 + $0x24] sm:$0xe]
      %v1402 = vld [vmem:[%s383 + $0x30] sm:$0xe]
      %v1403 = vld [vmem:[%s383 + $0x3c] sm:$0xe]
      %v1404 = vld [vmem:[%s383 + $0x48] sm:$0xe]
      %v1405 = vld [vmem:[%s383 + $0x54] sm:$0xe]
      %v1430 = vrot.slane %v1398, 5
      %v1431 = vrot.slane %v1430, 4
      %v1432 = vrot.slane %v856, 5
      %v1433 = vsel %vm1341, %v1431, %v1432
      %v1434 = vrot.slane %v1432, 4
      %v1435 = vrot.slane %v857, 5
      %v1436 = vsel %vm1341, %v1434, %v1435
      %v1437 = vrot.slane %v1399, 5
      %v1438 = vrot.slane %v1437, 4
      %v1439 = vrot.slane %v859, 5
      %v1440 = vsel %vm1341, %v1438, %v1439
      %v1441 = vrot.slane %v1439, 4
      %v1442 = vrot.slane %v860, 5
      %v1443 = vsel %vm1341, %v1441, %v1442
      %v1444 = vrot.slane %v1400, 5
      %v1445 = vrot.slane %v1444, 4
      %v1446 = vrot.slane %v862, 5
      %v1447 = vsel %vm1341, %v1445, %v1446
      %v1448 = vrot.slane %v1446, 4
      %v1449 = vrot.slane %v863, 5
      %v1450 = vsel %vm1341, %v1448, %v1449
      %v1451 = vrot.slane %v1401, 5
      %v1452 = vrot.slane %v1451, 4
      %v1453 = vrot.slane %v865, 5
      %v1454 = vsel %vm1341, %v1452, %v1453
      %v1455 = vrot.slane %v1453, 4
      %v1456 = vrot.slane %v866, 5
      %v1457 = vsel %vm1341, %v1455, %v1456
      %v1458 = vrot.slane %v1402, 5
      %v1459 = vrot.slane %v1458, 4
      %v1460 = vrot.slane %v868, 5
      %v1461 = vsel %vm1341, %v1459, %v1460
      %v1462 = vrot.slane %v1460, 4
      %v1463 = vrot.slane %v869, 5
      %v1464 = vsel %vm1341, %v1462, %v1463
      %v1465 = vrot.slane %v1403, 5
      %v1466 = vrot.slane %v1465, 4
      %v1467 = vrot.slane %v871, 5
      %v1468 = vsel %vm1341, %v1466, %v1467
      %v1469 = vrot.slane %v1467, 4
      %v1470 = vrot.slane %v872, 5
      %v1471 = vsel %vm1341, %v1469, %v1470
      %v1472 = vrot.slane %v1404, 5
      %v1473 = vrot.slane %v1472, 4
      %v1474 = vrot.slane %v874, 5
      %v1475 = vsel %vm1341, %v1473, %v1474
      %v1476 = vrot.slane %v1474, 4
      %v1477 = vrot.slane %v875, 5
      %v1478 = vsel %vm1341, %v1476, %v1477
      %v1479 = vrot.slane %v1405, 5
      %v1480 = vrot.slane %v1479, 4
      %v1481 = vrot.slane %v877, 5
      %v1482 = vsel %vm1341, %v1480, %v1481
      %v1483 = vrot.slane %v1481, 4
      %v1484 = vrot.slane %v878, 5
      %v1485 = vsel %vm1341, %v1483, %v1484
      %s1486 = scalar_lea.vmem %s2, 8
      %v1487 = vld [vmem:[%s1486] sm:$0xf]
      %v1488 = vunpack.c.l.b16 %v1345
      %v1489 = vunpack.c.l.b16 %v1348
      %v1490 = vunpack.c.l.b16 %v1352
      %v1491 = vunpack.c.l.b16 %v1355
      %v1492 = vunpack.c.l.b16 %v1359
      %v1493 = vunpack.c.l.b16 %v1362
      %v1494 = vunpack.c.l.b16 %v1366
      %v1495 = vunpack.c.l.b16 %v1369
      %v1496 = vunpack.c.l.b16 %v1373
      %v1497 = vunpack.c.l.b16 %v1376
      %v1498 = vunpack.c.l.b16 %v1380
      %v1499 = vunpack.c.l.b16 %v1383
      %v1500 = vunpack.c.l.b16 %v1387
      %v1501 = vunpack.c.l.b16 %v1390
      %v1502 = vunpack.c.l.b16 %v1394
      %v1503 = vunpack.c.l.b16 %v1397
      %v1504 = vpack.c.b16 %v1489, %v1488
      %v1505 = vpack.c.b16 %v1491, %v1490
      %v1506 = vpack.c.b16 %v1493, %v1492
      %v1507 = vpack.c.b16 %v1495, %v1494
      %v1508 = vpack.c.b16 %v1497, %v1496
      %v1509 = vpack.c.b16 %v1499, %v1498
      %v1510 = vpack.c.b16 %v1501, %v1500
      %v1511 = vpack.c.b16 %v1503, %v1502
      %v1513 = vsel %vm442, %v1504, 0
      %v1516 = vsel %vm442, %v1505, 0
      %v1519 = vsel %vm442, %v1506, 0
      %v1522 = vsel %vm442, %v1507, 0
      %v1525 = vsel %vm442, %v1508, 0
      %v1528 = vsel %vm442, %v1509, 0
      %v1531 = vsel %vm442, %v1510, 0
      %v1534 = vsel %vm442, %v1511, 0
      %v1537 = vsel %vm467, %v1487, 0
      %1539 = vmatpush.bf16.msra.mxu0 0
      %1540 = vmatpush.bf16.msra.mxu0 0
      %1541 = vmatpush.bf16.msra.mxu0 0
      %1542 = vmatpush.bf16.msra.mxu0 0
      %1543 = vmatpush.bf16.msra.mxu0 0
      %1544 = vmatpush.bf16.msra.mxu0 0
      %1545 = vmatpush.bf16.msra.mxu0 0
      %1546 = vmatpush.bf16.msra.mxu0 %v1537
      %1547 = vmatmul.bf16.gmra.mxu0 %v1513
      %v1548 = vpop.f32.mrf.mxu0
      %v1549 = vadd.f32 0.0, %v1548
      %v1550 = vpop.f32.mrf.mxu0
      %v1551 = vadd.f32 0.0, %v1550
      %1552 = vmatmul.bf16.gmra.mxu0 %v1516
      %v1553 = vpop.f32.mrf.mxu0
      %v1554 = vadd.f32 0.0, %v1553
      %v1555 = vpop.f32.mrf.mxu0
      %v1556 = vadd.f32 0.0, %v1555
      %1557 = vmatmul.bf16.gmra.mxu0 %v1519
      %v1558 = vpop.f32.mrf.mxu0
      %v1559 = vadd.f32 0.0, %v1558
      %v1560 = vpop.f32.mrf.mxu0
      %v1561 = vadd.f32 0.0, %v1560
      %1562 = vmatmul.bf16.gmra.mxu0 %v1522
      %v1563 = vpop.f32.mrf.mxu0
      %v1564 = vadd.f32 0.0, %v1563
      %v1565 = vpop.f32.mrf.mxu0
      %v1566 = vadd.f32 0.0, %v1565
      %1567 = vmatmul.bf16.gmra.mxu0 %v1525
      %v1568 = vpop.f32.mrf.mxu0
      %v1569 = vadd.f32 0.0, %v1568
      %v1570 = vpop.f32.mrf.mxu0
      %v1571 = vadd.f32 0.0, %v1570
      %1572 = vmatmul.bf16.gmra.mxu0 %v1528
      %v1573 = vpop.f32.mrf.mxu0
      %v1574 = vadd.f32 0.0, %v1573
      %v1575 = vpop.f32.mrf.mxu0
      %v1576 = vadd.f32 0.0, %v1575
      %1577 = vmatmul.bf16.gmra.mxu0 %v1531
      %v1578 = vpop.f32.mrf.mxu0
      %v1579 = vadd.f32 0.0, %v1578
      %v1580 = vpop.f32.mrf.mxu0
      %v1581 = vadd.f32 0.0, %v1580
      %1582 = vmatmul.bf16.gmra.mxu0 %v1534
      %v1583 = vpop.f32.mrf.mxu0
      %v1584 = vadd.f32 0.0, %v1583
      %v1585 = vpop.f32.mrf.mxu0
      %v1586 = vadd.f32 0.0, %v1585
      %1587 = vdwg.mxu0
      %v1588 = vadd.f32 %v1291, %v1549
      %v1589 = vadd.f32 %v1292, %v1551
      %v1590 = vadd.f32 %v1293, %v1554
      %v1591 = vadd.f32 %v1294, %v1556
      %v1592 = vadd.f32 %v1295, %v1559
      %v1593 = vadd.f32 %v1296, %v1561
      %v1594 = vadd.f32 %v1297, %v1564
      %v1595 = vadd.f32 %v1298, %v1566
      %v1596 = vadd.f32 %v1299, %v1569
      %v1597 = vadd.f32 %v1300, %v1571
      %v1598 = vadd.f32 %v1301, %v1574
      %v1599 = vadd.f32 %v1302, %v1576
      %v1600 = vadd.f32 %v1303, %v1579
      %v1601 = vadd.f32 %v1304, %v1581
      %v1602 = vadd.f32 %v1305, %v1584
      %v1603 = vadd.f32 %v1306, %v1586
      %s1604 = scalar_lea.vmem %s3, 8
      %v1605 = vld [vmem:[%s1604] sm:$0xf]
      %v1606 = vunpack.c.l.b16 %v1433
      %v1607 = vunpack.c.l.b16 %v1436
      %v1608 = vunpack.c.l.b16 %v1440
      %v1609 = vunpack.c.l.b16 %v1443
      %v1610 = vunpack.c.l.b16 %v1447
      %v1611 = vunpack.c.l.b16 %v1450
      %v1612 = vunpack.c.l.b16 %v1454
      %v1613 = vunpack.c.l.b16 %v1457
      %v1614 = vunpack.c.l.b16 %v1461
      %v1615 = vunpack.c.l.b16 %v1464
      %v1616 = vunpack.c.l.b16 %v1468
      %v1617 = vunpack.c.l.b16 %v1471
      %v1618 = vunpack.c.l.b16 %v1475
      %v1619 = vunpack.c.l.b16 %v1478
      %v1620 = vunpack.c.l.b16 %v1482
      %v1621 = vunpack.c.l.b16 %v1485
      %v1622 = vpack.c.b16 %v1607, %v1606
      %v1623 = vpack.c.b16 %v1609, %v1608
      %v1624 = vpack.c.b16 %v1611, %v1610
      %v1625 = vpack.c.b16 %v1613, %v1612
      %v1626 = vpack.c.b16 %v1615, %v1614
      %v1627 = vpack.c.b16 %v1617, %v1616
      %v1628 = vpack.c.b16 %v1619, %v1618
      %v1629 = vpack.c.b16 %v1621, %v1620
      %v1631 = vsel %vm442, %v1622, 0
      %v1634 = vsel %vm442, %v1623, 0
      %v1637 = vsel %vm442, %v1624, 0
      %v1640 = vsel %vm442, %v1625, 0
      %v1643 = vsel %vm442, %v1626, 0
      %v1646 = vsel %vm442, %v1627, 0
      %v1649 = vsel %vm442, %v1628, 0
      %v1652 = vsel %vm442, %v1629, 0
      %v1655 = vsel %vm467, %v1605, 0
      %1657 = vmatpush.bf16.msra.mxu0 0
      %1658 = vmatpush.bf16.msra.mxu0 0
      %1659 = vmatpush.bf16.msra.mxu0 0
      %1660 = vmatpush.bf16.msra.mxu0 0
      %1661 = vmatpush.bf16.msra.mxu0 0
      %1662 = vmatpush.bf16.msra.mxu0 0
      %1663 = vmatpush.bf16.msra.mxu0 0
      %1664 = vmatpush.bf16.msra.mxu0 %v1655
      %1665 = vmatmul.bf16.gmra.mxu0 %v1631
      %v1666 = vpop.f32.mrf.mxu0
      %v1667 = vadd.f32 0.0, %v1666
      %v1668 = vpop.f32.mrf.mxu0
      %v1669 = vadd.f32 0.0, %v1668
      %1670 = vmatmul.bf16.gmra.mxu0 %v1634
      %v1671 = vpop.f32.mrf.mxu0
      %v1672 = vadd.f32 0.0, %v1671
      %v1673 = vpop.f32.mrf.mxu0
      %v1674 = vadd.f32 0.0, %v1673
      %1675 = vmatmul.bf16.gmra.mxu0 %v1637
      %v1676 = vpop.f32.mrf.mxu0
      %v1677 = vadd.f32 0.0, %v1676
      %v1678 = vpop.f32.mrf.mxu0
      %v1679 = vadd.f32 0.0, %v1678
      %1680 = vmatmul.bf16.gmra.mxu0 %v1640
      %v1681 = vpop.f32.mrf.mxu0
      %v1682 = vadd.f32 0.0, %v1681
      %v1683 = vpop.f32.mrf.mxu0
      %v1684 = vadd.f32 0.0, %v1683
      %1685 = vmatmul.bf16.gmra.mxu0 %v1643
      %v1686 = vpop.f32.mrf.mxu0
      %v1687 = vadd.f32 0.0, %v1686
      %v1688 = vpop.f32.mrf.mxu0
      %v1689 = vadd.f32 0.0, %v1688
      %1690 = vmatmul.bf16.gmra.mxu0 %v1646
      %v1691 = vpop.f32.mrf.mxu0
      %v1692 = vadd.f32 0.0, %v1691
      %v1693 = vpop.f32.mrf.mxu0
      %v1694 = vadd.f32 0.0, %v1693
      %1695 = vmatmul.bf16.gmra.mxu0 %v1649
      %v1696 = vpop.f32.mrf.mxu0
      %v1697 = vadd.f32 0.0, %v1696
      %v1698 = vpop.f32.mrf.mxu0
      %v1699 = vadd.f32 0.0, %v1698
      %1700 = vmatmul.bf16.gmra.mxu0 %v1652
      %v1701 = vpop.f32.mrf.mxu0
      %v1702 = vadd.f32 0.0, %v1701
      %v1703 = vpop.f32.mrf.mxu0
      %v1704 = vadd.f32 0.0, %v1703
      %1705 = vdwg.mxu0
      %v1706 = vadd.f32 %v1588, %v1667
      %v1707 = vadd.f32 %v1589, %v1669
      %v1708 = vadd.f32 %v1590, %v1672
      %v1709 = vadd.f32 %v1591, %v1674
      %v1710 = vadd.f32 %v1592, %v1677
      %v1711 = vadd.f32 %v1593, %v1679
      %v1712 = vadd.f32 %v1594, %v1682
      %v1713 = vadd.f32 %v1595, %v1684
      %v1714 = vadd.f32 %v1596, %v1687
      %v1715 = vadd.f32 %v1597, %v1689
      %v1716 = vadd.f32 %v1598, %v1692
      %v1717 = vadd.f32 %v1599, %v1694
      %v1718 = vadd.f32 %v1600, %v1697
      %v1719 = vadd.f32 %v1601, %v1699
      %v1720 = vadd.f32 %v1602, %v1702
      %v1721 = vadd.f32 %v1603, %v1704
      %s1722 = sadd.s32 %s362, 1
      %s1723 = smul.u32 %s1722, 3
      %s1724 = smul.addr %s1723, 4
      %s1725 = scalar_lea.vmem %s330, %s1724
      %v1726 = vld [vmem:[%s1725] sm:$0xf]
      %v1727 = vld [vmem:[%s1725 + $0x4] sm:$0xf]
      %v1728 = vld [vmem:[%s1725 + $0xc] sm:$0xf]
      %v1729 = vld [vmem:[%s1725 + $0x10] sm:$0xf]
      %v1730 = vld [vmem:[%s1725 + $0x18] sm:$0xf]
      %v1731 = vld [vmem:[%s1725 + $0x1c] sm:$0xf]
      %v1732 = vld [vmem:[%s1725 + $0x24] sm:$0xf]
      %v1733 = vld [vmem:[%s1725 + $0x28] sm:$0xf]
      %v1734 = vld [vmem:[%s1725 + $0x30] sm:$0xf]
      %v1735 = vld [vmem:[%s1725 + $0x34] sm:$0xf]
      %v1736 = vld [vmem:[%s1725 + $0x3c] sm:$0xf]
      %v1737 = vld [vmem:[%s1725 + $0x40] sm:$0xf]
      %v1738 = vld [vmem:[%s1725 + $0x48] sm:$0xf]
      %v1739 = vld [vmem:[%s1725 + $0x4c] sm:$0xf]
      %v1740 = vld [vmem:[%s1725 + $0x54] sm:$0xf]
      %v1741 = vld [vmem:[%s1725 + $0x58] sm:$0xf]
      %s1742 = smul.addr %s1723, 4
      %s1743 = scalar_lea.vmem %s335, %s1742
      %v1744 = vld [vmem:[%s1743] sm:$0xf]
      %v1745 = vld [vmem:[%s1743 + $0x4] sm:$0xf]
      %v1746 = vld [vmem:[%s1743 + $0xc] sm:$0xf]
      %v1747 = vld [vmem:[%s1743 + $0x10] sm:$0xf]
      %v1748 = vld [vmem:[%s1743 + $0x18] sm:$0xf]
      %v1749 = vld [vmem:[%s1743 + $0x1c] sm:$0xf]
      %v1750 = vld [vmem:[%s1743 + $0x24] sm:$0xf]
      %v1751 = vld [vmem:[%s1743 + $0x28] sm:$0xf]
      %v1752 = vld [vmem:[%s1743 + $0x30] sm:$0xf]
      %v1753 = vld [vmem:[%s1743 + $0x34] sm:$0xf]
      %v1754 = vld [vmem:[%s1743 + $0x3c] sm:$0xf]
      %v1755 = vld [vmem:[%s1743 + $0x40] sm:$0xf]
      %v1756 = vld [vmem:[%s1743 + $0x48] sm:$0xf]
      %v1757 = vld [vmem:[%s1743 + $0x4c] sm:$0xf]
      %v1758 = vld [vmem:[%s1743 + $0x54] sm:$0xf]
      %v1759 = vld [vmem:[%s1743 + $0x58] sm:$0xf]
      %s1760 = scalar_lea.vmem %s2, 12
      %v1761 = vld [vmem:[%s1760] sm:$0xf]
      %v1778 = vunpack.c.l.b16 %v1726
      %v1779 = vunpack.c.l.b16 %v1727
      %v1780 = vunpack.c.l.b16 %v1728
      %v1781 = vunpack.c.l.b16 %v1729
      %v1782 = vunpack.c.l.b16 %v1730
      %v1783 = vunpack.c.l.b16 %v1731
      %v1784 = vunpack.c.l.b16 %v1732
      %v1785 = vunpack.c.l.b16 %v1733
      %v1786 = vunpack.c.l.b16 %v1734
      %v1787 = vunpack.c.l.b16 %v1735
      %v1788 = vunpack.c.l.b16 %v1736
      %v1789 = vunpack.c.l.b16 %v1737
      %v1790 = vunpack.c.l.b16 %v1738
      %v1791 = vunpack.c.l.b16 %v1739
      %v1792 = vunpack.c.l.b16 %v1740
      %v1793 = vunpack.c.l.b16 %v1741
      %v1794 = vpack.c.b16 %v1779, %v1778
      %v1795 = vpack.c.b16 %v1781, %v1780
      %v1796 = vpack.c.b16 %v1783, %v1782
      %v1797 = vpack.c.b16 %v1785, %v1784
      %v1798 = vpack.c.b16 %v1787, %v1786
      %v1799 = vpack.c.b16 %v1789, %v1788
      %v1800 = vpack.c.b16 %v1791, %v1790
      %v1801 = vpack.c.b16 %v1793, %v1792
      %v1803 = vsel %vm442, %v1794, 0
      %v1806 = vsel %vm442, %v1795, 0
      %v1809 = vsel %vm442, %v1796, 0
      %v1812 = vsel %vm442, %v1797, 0
      %v1815 = vsel %vm442, %v1798, 0
      %v1818 = vsel %vm442, %v1799, 0
      %v1821 = vsel %vm442, %v1800, 0
      %v1824 = vsel %vm442, %v1801, 0
      %v1827 = vsel %vm467, %v1761, 0
      %1829 = vmatpush.bf16.msra.mxu0 0
      %1830 = vmatpush.bf16.msra.mxu0 0
      %1831 = vmatpush.bf16.msra.mxu0 0
      %1832 = vmatpush.bf16.msra.mxu0 0
      %1833 = vmatpush.bf16.msra.mxu0 0
      %1834 = vmatpush.bf16.msra.mxu0 0
      %1835 = vmatpush.bf16.msra.mxu0 0
      %1836 = vmatpush.bf16.msra.mxu0 %v1827
      %1837 = vmatmul.bf16.gmra.mxu0 %v1803
      %v1838 = vpop.f32.mrf.mxu0
      %v1839 = vadd.f32 0.0, %v1838
      %v1840 = vpop.f32.mrf.mxu0
      %v1841 = vadd.f32 0.0, %v1840
      %1842 = vmatmul.bf16.gmra.mxu0 %v1806
      %v1843 = vpop.f32.mrf.mxu0
      %v1844 = vadd.f32 0.0, %v1843
      %v1845 = vpop.f32.mrf.mxu0
      %v1846 = vadd.f32 0.0, %v1845
      %1847 = vmatmul.bf16.gmra.mxu0 %v1809
      %v1848 = vpop.f32.mrf.mxu0
      %v1849 = vadd.f32 0.0, %v1848
      %v1850 = vpop.f32.mrf.mxu0
      %v1851 = vadd.f32 0.0, %v1850
      %1852 = vmatmul.bf16.gmra.mxu0 %v1812
      %v1853 = vpop.f32.mrf.mxu0
      %v1854 = vadd.f32 0.0, %v1853
      %v1855 = vpop.f32.mrf.mxu0
      %v1856 = vadd.f32 0.0, %v1855
      %1857 = vmatmul.bf16.gmra.mxu0 %v1815
      %v1858 = vpop.f32.mrf.mxu0
      %v1859 = vadd.f32 0.0, %v1858
      %v1860 = vpop.f32.mrf.mxu0
      %v1861 = vadd.f32 0.0, %v1860
      %1862 = vmatmul.bf16.gmra.mxu0 %v1818
      %v1863 = vpop.f32.mrf.mxu0
      %v1864 = vadd.f32 0.0, %v1863
      %v1865 = vpop.f32.mrf.mxu0
      %v1866 = vadd.f32 0.0, %v1865
      %1867 = vmatmul.bf16.gmra.mxu0 %v1821
      %v1868 = vpop.f32.mrf.mxu0
      %v1869 = vadd.f32 0.0, %v1868
      %v1870 = vpop.f32.mrf.mxu0
      %v1871 = vadd.f32 0.0, %v1870
      %1872 = vmatmul.bf16.gmra.mxu0 %v1824
      %v1873 = vpop.f32.mrf.mxu0
      %v1874 = vadd.f32 0.0, %v1873
      %v1875 = vpop.f32.mrf.mxu0
      %v1876 = vadd.f32 0.0, %v1875
      %1877 = vdwg.mxu0
      %v1878 = vadd.f32 %v1706, %v1839
      %v1879 = vadd.f32 %v1707, %v1841
      %v1880 = vadd.f32 %v1708, %v1844
      %v1881 = vadd.f32 %v1709, %v1846
      %v1882 = vadd.f32 %v1710, %v1849
      %v1883 = vadd.f32 %v1711, %v1851
      %v1884 = vadd.f32 %v1712, %v1854
      %v1885 = vadd.f32 %v1713, %v1856
      %v1886 = vadd.f32 %v1714, %v1859
      %v1887 = vadd.f32 %v1715, %v1861
      %v1888 = vadd.f32 %v1716, %v1864
      %v1889 = vadd.f32 %v1717, %v1866
      %v1890 = vadd.f32 %v1718, %v1869
      %v1891 = vadd.f32 %v1719, %v1871
      %v1892 = vadd.f32 %v1720, %v1874
      %v1893 = vadd.f32 %v1721, %v1876
      %s1894 = scalar_lea.vmem %s3, 12
      %v1895 = vld [vmem:[%s1894] sm:$0xf]
      %v1912 = vunpack.c.l.b16 %v1744
      %v1913 = vunpack.c.l.b16 %v1745
      %v1914 = vunpack.c.l.b16 %v1746
      %v1915 = vunpack.c.l.b16 %v1747
      %v1916 = vunpack.c.l.b16 %v1748
      %v1917 = vunpack.c.l.b16 %v1749
      %v1918 = vunpack.c.l.b16 %v1750
      %v1919 = vunpack.c.l.b16 %v1751
      %v1920 = vunpack.c.l.b16 %v1752
      %v1921 = vunpack.c.l.b16 %v1753
      %v1922 = vunpack.c.l.b16 %v1754
      %v1923 = vunpack.c.l.b16 %v1755
      %v1924 = vunpack.c.l.b16 %v1756
      %v1925 = vunpack.c.l.b16 %v1757
      %v1926 = vunpack.c.l.b16 %v1758
      %v1927 = vunpack.c.l.b16 %v1759
      %v1928 = vpack.c.b16 %v1913, %v1912
      %v1929 = vpack.c.b16 %v1915, %v1914
      %v1930 = vpack.c.b16 %v1917, %v1916
      %v1931 = vpack.c.b16 %v1919, %v1918
      %v1932 = vpack.c.b16 %v1921, %v1920
      %v1933 = vpack.c.b16 %v1923, %v1922
      %v1934 = vpack.c.b16 %v1925, %v1924
      %v1935 = vpack.c.b16 %v1927, %v1926
      %v1937 = vsel %vm442, %v1928, 0
      %v1940 = vsel %vm442, %v1929, 0
      %v1943 = vsel %vm442, %v1930, 0
      %v1946 = vsel %vm442, %v1931, 0
      %v1949 = vsel %vm442, %v1932, 0
      %v1952 = vsel %vm442, %v1933, 0
      %v1955 = vsel %vm442, %v1934, 0
      %v1958 = vsel %vm442, %v1935, 0
      %v1961 = vsel %vm467, %v1895, 0
      %1963 = vmatpush.bf16.msra.mxu0 0
      %1964 = vmatpush.bf16.msra.mxu0 0
      %1965 = vmatpush.bf16.msra.mxu0 0
      %1966 = vmatpush.bf16.msra.mxu0 0
      %1967 = vmatpush.bf16.msra.mxu0 0
      %1968 = vmatpush.bf16.msra.mxu0 0
      %1969 = vmatpush.bf16.msra.mxu0 0
      %1970 = vmatpush.bf16.msra.mxu0 %v1961
      %1971 = vmatmul.bf16.gmra.mxu0 %v1937
      %v1972 = vpop.f32.mrf.mxu0
      %v1973 = vadd.f32 0.0, %v1972
      %v1974 = vpop.f32.mrf.mxu0
      %v1975 = vadd.f32 0.0, %v1974
      %1976 = vmatmul.bf16.gmra.mxu0 %v1940
      %v1977 = vpop.f32.mrf.mxu0
      %v1978 = vadd.f32 0.0, %v1977
      %v1979 = vpop.f32.mrf.mxu0
      %v1980 = vadd.f32 0.0, %v1979
      %1981 = vmatmul.bf16.gmra.mxu0 %v1943
      %v1982 = vpop.f32.mrf.mxu0
      %v1983 = vadd.f32 0.0, %v1982
      %v1984 = vpop.f32.mrf.mxu0
      %v1985 = vadd.f32 0.0, %v1984
      %1986 = vmatmul.bf16.gmra.mxu0 %v1946
      %v1987 = vpop.f32.mrf.mxu0
      %v1988 = vadd.f32 0.0, %v1987
      %v1989 = vpop.f32.mrf.mxu0
      %v1990 = vadd.f32 0.0, %v1989
      %1991 = vmatmul.bf16.gmra.mxu0 %v1949
      %v1992 = vpop.f32.mrf.mxu0
      %v1993 = vadd.f32 0.0, %v1992
      %v1994 = vpop.f32.mrf.mxu0
      %v1995 = vadd.f32 0.0, %v1994
      %1996 = vmatmul.bf16.gmra.mxu0 %v1952
      %v1997 = vpop.f32.mrf.mxu0
      %v1998 = vadd.f32 0.0, %v1997
      %v1999 = vpop.f32.mrf.mxu0
      %v2000 = vadd.f32 0.0, %v1999
      %2001 = vmatmul.bf16.gmra.mxu0 %v1955
      %v2002 = vpop.f32.mrf.mxu0
      %v2003 = vadd.f32 0.0, %v2002
      %v2004 = vpop.f32.mrf.mxu0
      %v2005 = vadd.f32 0.0, %v2004
      %2006 = vmatmul.bf16.gmra.mxu0 %v1958
      %v2007 = vpop.f32.mrf.mxu0
      %v2008 = vadd.f32 0.0, %v2007
      %v2009 = vpop.f32.mrf.mxu0
      %v2010 = vadd.f32 0.0, %v2009
      %2011 = vdwg.mxu0
      %v2012 = vadd.f32 %v1878, %v1973
      %v2013 = vadd.f32 %v1879, %v1975
      %v2014 = vadd.f32 %v1880, %v1978
      %v2015 = vadd.f32 %v1881, %v1980
      %v2016 = vadd.f32 %v1882, %v1983
      %v2017 = vadd.f32 %v1883, %v1985
      %v2018 = vadd.f32 %v1884, %v1988
      %v2019 = vadd.f32 %v1885, %v1990
      %v2020 = vadd.f32 %v1886, %v1993
      %v2021 = vadd.f32 %v1887, %v1995
      %v2022 = vadd.f32 %v1888, %v1998
      %v2023 = vadd.f32 %v1889, %v2000
      %v2024 = vadd.f32 %v1890, %v2003
      %v2025 = vadd.f32 %v1891, %v2005
      %v2026 = vadd.f32 %v1892, %v2008
      %v2027 = vadd.f32 %v1893, %v2010
      %v2028 = vld [vmem:[%s1725] sm:$0xf]
      %v2029 = vld [vmem:[%s1725 + $0x4] sm:$0xf]
      %v2030 = vld [vmem:[%s1725 + $0x8] sm:$0x1]
      %v2031 = vld [vmem:[%s1725 + $0xc] sm:$0xf]
      %v2032 = vld [vmem:[%s1725 + $0x10] sm:$0xf]
      %v2033 = vld [vmem:[%s1725 + $0x14] sm:$0x1]
      %v2034 = vld [vmem:[%s1725 + $0x18] sm:$0xf]
      %v2035 = vld [vmem:[%s1725 + $0x1c] sm:$0xf]
      %v2036 = vld [vmem:[%s1725 + $0x20] sm:$0x1]
      %v2037 = vld [vmem:[%s1725 + $0x24] sm:$0xf]
      %v2038 = vld [vmem:[%s1725 + $0x28] sm:$0xf]
      %v2039 = vld [vmem:[%s1725 + $0x2c] sm:$0x1]
      %v2040 = vld [vmem:[%s1725 + $0x30] sm:$0xf]
      %v2041 = vld [vmem:[%s1725 + $0x34] sm:$0xf]
      %v2042 = vld [vmem:[%s1725 + $0x38] sm:$0x1]
      %v2043 = vld [vmem:[%s1725 + $0x3c] sm:$0xf]
      %v2044 = vld [vmem:[%s1725 + $0x40] sm:$0xf]
      %v2045 = vld [vmem:[%s1725 + $0x44] sm:$0x1]
      %v2046 = vld [vmem:[%s1725 + $0x48] sm:$0xf]
      %v2047 = vld [vmem:[%s1725 + $0x4c] sm:$0xf]
      %v2048 = vld [vmem:[%s1725 + $0x50] sm:$0x1]
      %v2049 = vld [vmem:[%s1725 + $0x54] sm:$0xf]
      %v2050 = vld [vmem:[%s1725 + $0x58] sm:$0xf]
      %v2051 = vld [vmem:[%s1725 + $0x5c] sm:$0x1]
      %v2053 = vshrl.u32 %v2028, 16
      %v2055 = vrot.slane %v2053, 4
      %v2056 = vshll.u32 %v2028, 16
      %v2058 = vrot.slane %v2056, 5
      %v2059 = vor.u32 %v2055, %v2058
      %v2060 = vrot.slane %v2059, 4
      %v2062 = vshll.u32 %v2029, 16
      %v2064 = vrot.slane %v2062, 5
      %v2065 = vsel %vm662, %v2060, %v2064
      %v2066 = vshrl.u32 %v2029, 16
      %v2068 = vrot.slane %v2066, 4
      %v2069 = vor.u32 %v2068, %v2064
      %v2070 = vrot.slane %v2069, 4
      %v2072 = vshll.u32 %v2030, 16
      %v2074 = vrot.slane %v2072, 5
      %v2075 = vsel %vm662, %v2070, %v2074
      %v2077 = vshrl.u32 %v2031, 16
      %v2079 = vrot.slane %v2077, 4
      %v2080 = vshll.u32 %v2031, 16
      %v2082 = vrot.slane %v2080, 5
      %v2083 = vor.u32 %v2079, %v2082
      %v2084 = vrot.slane %v2083, 4
      %v2086 = vshll.u32 %v2032, 16
      %v2088 = vrot.slane %v2086, 5
      %v2089 = vsel %vm662, %v2084, %v2088
      %v2090 = vshrl.u32 %v2032, 16
      %v2092 = vrot.slane %v2090, 4
      %v2093 = vor.u32 %v2092, %v2088
      %v2094 = vrot.slane %v2093, 4
      %v2096 = vshll.u32 %v2033, 16
      %v2098 = vrot.slane %v2096, 5
      %v2099 = vsel %vm662, %v2094, %v2098
      %v2101 = vshrl.u32 %v2034, 16
      %v2103 = vrot.slane %v2101, 4
      %v2104 = vshll.u32 %v2034, 16
      %v2106 = vrot.slane %v2104, 5
      %v2107 = vor.u32 %v2103, %v2106
      %v2108 = vrot.slane %v2107, 4
      %v2110 = vshll.u32 %v2035, 16
      %v2112 = vrot.slane %v2110, 5
      %v2113 = vsel %vm662, %v2108, %v2112
      %v2114 = vshrl.u32 %v2035, 16
      %v2116 = vrot.slane %v2114, 4
      %v2117 = vor.u32 %v2116, %v2112
      %v2118 = vrot.slane %v2117, 4
      %v2120 = vshll.u32 %v2036, 16
      %v2122 = vrot.slane %v2120, 5
      %v2123 = vsel %vm662, %v2118, %v2122
      %v2125 = vshrl.u32 %v2037, 16
      %v2127 = vrot.slane %v2125, 4
      %v2128 = vshll.u32 %v2037, 16
      %v2130 = vrot.slane %v2128, 5
      %v2131 = vor.u32 %v2127, %v2130
      %v2132 = vrot.slane %v2131, 4
      %v2134 = vshll.u32 %v2038, 16
      %v2136 = vrot.slane %v2134, 5
      %v2137 = vsel %vm662, %v2132, %v2136
      %v2138 = vshrl.u32 %v2038, 16
      %v2140 = vrot.slane %v2138, 4
      %v2141 = vor.u32 %v2140, %v2136
      %v2142 = vrot.slane %v2141, 4
      %v2144 = vshll.u32 %v2039, 16
      %v2146 = vrot.slane %v2144, 5
      %v2147 = vsel %vm662, %v2142, %v2146
      %v2149 = vshrl.u32 %v2040, 16
      %v2151 = vrot.slane %v2149, 4
      %v2152 = vshll.u32 %v2040, 16
      %v2154 = vrot.slane %v2152, 5
      %v2155 = vor.u32 %v2151, %v2154
      %v2156 = vrot.slane %v2155, 4
      %v2158 = vshll.u32 %v2041, 16
      %v2160 = vrot.slane %v2158, 5
      %v2161 = vsel %vm662, %v2156, %v2160
      %v2162 = vshrl.u32 %v2041, 16
      %v2164 = vrot.slane %v2162, 4
      %v2165 = vor.u32 %v2164, %v2160
      %v2166 = vrot.slane %v2165, 4
      %v2168 = vshll.u32 %v2042, 16
      %v2170 = vrot.slane %v2168, 5
      %v2171 = vsel %vm662, %v2166, %v2170
      %v2173 = vshrl.u32 %v2043, 16
      %v2175 = vrot.slane %v2173, 4
      %v2176 = vshll.u32 %v2043, 16
      %v2178 = vrot.slane %v2176, 5
      %v2179 = vor.u32 %v2175, %v2178
      %v2180 = vrot.slane %v2179, 4
      %v2182 = vshll.u32 %v2044, 16
      %v2184 = vrot.slane %v2182, 5
      %v2185 = vsel %vm662, %v2180, %v2184
      %v2186 = vshrl.u32 %v2044, 16
      %v2188 = vrot.slane %v2186, 4
      %v2189 = vor.u32 %v2188, %v2184
      %v2190 = vrot.slane %v2189, 4
      %v2192 = vshll.u32 %v2045, 16
      %v2194 = vrot.slane %v2192, 5
      %v2195 = vsel %vm662, %v2190, %v2194
      %v2197 = vshrl.u32 %v2046, 16
      %v2199 = vrot.slane %v2197, 4
      %v2200 = vshll.u32 %v2046, 16
      %v2202 = vrot.slane %v2200, 5
      %v2203 = vor.u32 %v2199, %v2202
      %v2204 = vrot.slane %v2203, 4
      %v2206 = vshll.u32 %v2047, 16
      %v2208 = vrot.slane %v2206, 5
      %v2209 = vsel %vm662, %v2204, %v2208
      %v2210 = vshrl.u32 %v2047, 16
      %v2212 = vrot.slane %v2210, 4
      %v2213 = vor.u32 %v2212, %v2208
      %v2214 = vrot.slane %v2213, 4
      %v2216 = vshll.u32 %v2048, 16
      %v2218 = vrot.slane %v2216, 5
      %v2219 = vsel %vm662, %v2214, %v2218
      %v2221 = vshrl.u32 %v2049, 16
      %v2223 = vrot.slane %v2221, 4
      %v2224 = vshll.u32 %v2049, 16
      %v2226 = vrot.slane %v2224, 5
      %v2227 = vor.u32 %v2223, %v2226
      %v2228 = vrot.slane %v2227, 4
      %v2230 = vshll.u32 %v2050, 16
      %v2232 = vrot.slane %v2230, 5
      %v2233 = vsel %vm662, %v2228, %v2232
      %v2234 = vshrl.u32 %v2050, 16
      %v2236 = vrot.slane %v2234, 4
      %v2237 = vor.u32 %v2236, %v2232
      %v2238 = vrot.slane %v2237, 4
      %v2240 = vshll.u32 %v2051, 16
      %v2242 = vrot.slane %v2240, 5
      %v2243 = vsel %vm662, %v2238, %v2242
      %v2244 = vld [vmem:[%s1743] sm:$0xf]
      %v2245 = vld [vmem:[%s1743 + $0x4] sm:$0xf]
      %v2246 = vld [vmem:[%s1743 + $0x8] sm:$0x1]
      %v2247 = vld [vmem:[%s1743 + $0xc] sm:$0xf]
      %v2248 = vld [vmem:[%s1743 + $0x10] sm:$0xf]
      %v2249 = vld [vmem:[%s1743 + $0x14] sm:$0x1]
      %v2250 = vld [vmem:[%s1743 + $0x18] sm:$0xf]
      %v2251 = vld [vmem:[%s1743 + $0x1c] sm:$0xf]
      %v2252 = vld [vmem:[%s1743 + $0x20] sm:$0x1]
      %v2253 = vld [vmem:[%s1743 + $0x24] sm:$0xf]
      %v2254 = vld [vmem:[%s1743 + $0x28] sm:$0xf]
      %v2255 = vld [vmem:[%s1743 + $0x2c] sm:$0x1]
      %v2256 = vld [vmem:[%s1743 + $0x30] sm:$0xf]
      %v2257 = vld [vmem:[%s1743 + $0x34] sm:$0xf]
      %v2258 = vld [vmem:[%s1743 + $0x38] sm:$0x1]
      %v2259 = vld [vmem:[%s1743 + $0x3c] sm:$0xf]
      %v2260 = vld [vmem:[%s1743 + $0x40] sm:$0xf]
      %v2261 = vld [vmem:[%s1743 + $0x44] sm:$0x1]
      %v2262 = vld [vmem:[%s1743 + $0x48] sm:$0xf]
      %v2263 = vld [vmem:[%s1743 + $0x4c] sm:$0xf]
      %v2264 = vld [vmem:[%s1743 + $0x50] sm:$0x1]
      %v2265 = vld [vmem:[%s1743 + $0x54] sm:$0xf]
      %v2266 = vld [vmem:[%s1743 + $0x58] sm:$0xf]
      %v2267 = vld [vmem:[%s1743 + $0x5c] sm:$0x1]
      %v2269 = vshrl.u32 %v2244, 16
      %v2271 = vrot.slane %v2269, 4
      %v2272 = vshll.u32 %v2244, 16
      %v2274 = vrot.slane %v2272, 5
      %v2275 = vor.u32 %v2271, %v2274
      %v2276 = vrot.slane %v2275, 4
      %v2278 = vshll.u32 %v2245, 16
      %v2280 = vrot.slane %v2278, 5
      %v2281 = vsel %vm662, %v2276, %v2280
      %v2282 = vshrl.u32 %v2245, 16
      %v2284 = vrot.slane %v2282, 4
      %v2285 = vor.u32 %v2284, %v2280
      %v2286 = vrot.slane %v2285, 4
      %v2288 = vshll.u32 %v2246, 16
      %v2290 = vrot.slane %v2288, 5
      %v2291 = vsel %vm662, %v2286, %v2290
      %v2293 = vshrl.u32 %v2247, 16
      %v2295 = vrot.slane %v2293, 4
      %v2296 = vshll.u32 %v2247, 16
      %v2298 = vrot.slane %v2296, 5
      %v2299 = vor.u32 %v2295, %v2298
      %v2300 = vrot.slane %v2299, 4
      %v2302 = vshll.u32 %v2248, 16
      %v2304 = vrot.slane %v2302, 5
      %v2305 = vsel %vm662, %v2300, %v2304
      %v2306 = vshrl.u32 %v2248, 16
      %v2308 = vrot.slane %v2306, 4
      %v2309 = vor.u32 %v2308, %v2304
      %v2310 = vrot.slane %v2309, 4
      %v2312 = vshll.u32 %v2249, 16
      %v2314 = vrot.slane %v2312, 5
      %v2315 = vsel %vm662, %v2310, %v2314
      %v2317 = vshrl.u32 %v2250, 16
      %v2319 = vrot.slane %v2317, 4
      %v2320 = vshll.u32 %v2250, 16
      %v2322 = vrot.slane %v2320, 5
      %v2323 = vor.u32 %v2319, %v2322
      %v2324 = vrot.slane %v2323, 4
      %v2326 = vshll.u32 %v2251, 16
      %v2328 = vrot.slane %v2326, 5
      %v2329 = vsel %vm662, %v2324, %v2328
      %v2330 = vshrl.u32 %v2251, 16
      %v2332 = vrot.slane %v2330, 4
      %v2333 = vor.u32 %v2332, %v2328
      %v2334 = vrot.slane %v2333, 4
      %v2336 = vshll.u32 %v2252, 16
      %v2338 = vrot.slane %v2336, 5
      %v2339 = vsel %vm662, %v2334, %v2338
      %v2341 = vshrl.u32 %v2253, 16
      %v2343 = vrot.slane %v2341, 4
      %v2344 = vshll.u32 %v2253, 16
      %v2346 = vrot.slane %v2344, 5
      %v2347 = vor.u32 %v2343, %v2346
      %v2348 = vrot.slane %v2347, 4
      %v2350 = vshll.u32 %v2254, 16
      %v2352 = vrot.slane %v2350, 5
      %v2353 = vsel %vm662, %v2348, %v2352
      %v2354 = vshrl.u32 %v2254, 16
      %v2356 = vrot.slane %v2354, 4
      %v2357 = vor.u32 %v2356, %v2352
      %v2358 = vrot.slane %v2357, 4
      %v2360 = vshll.u32 %v2255, 16
      %v2362 = vrot.slane %v2360, 5
      %v2363 = vsel %vm662, %v2358, %v2362
      %v2365 = vshrl.u32 %v2256, 16
      %v2367 = vrot.slane %v2365, 4
      %v2368 = vshll.u32 %v2256, 16
      %v2370 = vrot.slane %v2368, 5
      %v2371 = vor.u32 %v2367, %v2370
      %v2372 = vrot.slane %v2371, 4
      %v2374 = vshll.u32 %v2257, 16
      %v2376 = vrot.slane %v2374, 5
      %v2377 = vsel %vm662, %v2372, %v2376
      %v2378 = vshrl.u32 %v2257, 16
      %v2380 = vrot.slane %v2378, 4
      %v2381 = vor.u32 %v2380, %v2376
      %v2382 = vrot.slane %v2381, 4
      %v2384 = vshll.u32 %v2258, 16
      %v2386 = vrot.slane %v2384, 5
      %v2387 = vsel %vm662, %v2382, %v2386
      %v2389 = vshrl.u32 %v2259, 16
      %v2391 = vrot.slane %v2389, 4
      %v2392 = vshll.u32 %v2259, 16
      %v2394 = vrot.slane %v2392, 5
      %v2395 = vor.u32 %v2391, %v2394
      %v2396 = vrot.slane %v2395, 4
      %v2398 = vshll.u32 %v2260, 16
      %v2400 = vrot.slane %v2398, 5
      %v2401 = vsel %vm662, %v2396, %v2400
      %v2402 = vshrl.u32 %v2260, 16
      %v2404 = vrot.slane %v2402, 4
      %v2405 = vor.u32 %v2404, %v2400
      %v2406 = vrot.slane %v2405, 4
      %v2408 = vshll.u32 %v2261, 16
      %v2410 = vrot.slane %v2408, 5
      %v2411 = vsel %vm662, %v2406, %v2410
      %v2413 = vshrl.u32 %v2262, 16
      %v2415 = vrot.slane %v2413, 4
      %v2416 = vshll.u32 %v2262, 16
      %v2418 = vrot.slane %v2416, 5
      %v2419 = vor.u32 %v2415, %v2418
      %v2420 = vrot.slane %v2419, 4
      %v2422 = vshll.u32 %v2263, 16
      %v2424 = vrot.slane %v2422, 5
      %v2425 = vsel %vm662, %v2420, %v2424
      %v2426 = vshrl.u32 %v2263, 16
      %v2428 = vrot.slane %v2426, 4
      %v2429 = vor.u32 %v2428, %v2424
      %v2430 = vrot.slane %v2429, 4
      %v2432 = vshll.u32 %v2264, 16
      %v2434 = vrot.slane %v2432, 5
      %v2435 = vsel %vm662, %v2430, %v2434
      %v2437 = vshrl.u32 %v2265, 16
      %v2439 = vrot.slane %v2437, 4
      %v2440 = vshll.u32 %v2265, 16
      %v2442 = vrot.slane %v2440, 5
      %v2443 = vor.u32 %v2439, %v2442
      %v2444 = vrot.slane %v2443, 4
      %v2446 = vshll.u32 %v2266, 16
      %v2448 = vrot.slane %v2446, 5
      %v2449 = vsel %vm662, %v2444, %v2448
      %v2450 = vshrl.u32 %v2266, 16
      %v2452 = vrot.slane %v2450, 4
      %v2453 = vor.u32 %v2452, %v2448
      %v2454 = vrot.slane %v2453, 4
      %v2456 = vshll.u32 %v2267, 16
      %v2458 = vrot.slane %v2456, 5
      %v2459 = vsel %vm662, %v2454, %v2458
      %s2460 = scalar_lea.vmem %s2, 16
      %v2461 = vld [vmem:[%s2460] sm:$0xf]
      %v2462 = vunpack.c.l.b16 %v2065
      %v2463 = vunpack.c.l.b16 %v2075
      %v2464 = vunpack.c.l.b16 %v2089
      %v2465 = vunpack.c.l.b16 %v2099
      %v2466 = vunpack.c.l.b16 %v2113
      %v2467 = vunpack.c.l.b16 %v2123
      %v2468 = vunpack.c.l.b16 %v2137
      %v2469 = vunpack.c.l.b16 %v2147
      %v2470 = vunpack.c.l.b16 %v2161
      %v2471 = vunpack.c.l.b16 %v2171
      %v2472 = vunpack.c.l.b16 %v2185
      %v2473 = vunpack.c.l.b16 %v2195
      %v2474 = vunpack.c.l.b16 %v2209
      %v2475 = vunpack.c.l.b16 %v2219
      %v2476 = vunpack.c.l.b16 %v2233
      %v2477 = vunpack.c.l.b16 %v2243
      %v2478 = vpack.c.b16 %v2463, %v2462
      %v2479 = vpack.c.b16 %v2465, %v2464
      %v2480 = vpack.c.b16 %v2467, %v2466
      %v2481 = vpack.c.b16 %v2469, %v2468
      %v2482 = vpack.c.b16 %v2471, %v2470
      %v2483 = vpack.c.b16 %v2473, %v2472
      %v2484 = vpack.c.b16 %v2475, %v2474
      %v2485 = vpack.c.b16 %v2477, %v2476
      %v2487 = vsel %vm442, %v2478, 0
      %v2490 = vsel %vm442, %v2479, 0
      %v2493 = vsel %vm442, %v2480, 0
      %v2496 = vsel %vm442, %v2481, 0
      %v2499 = vsel %vm442, %v2482, 0
      %v2502 = vsel %vm442, %v2483, 0
      %v2505 = vsel %vm442, %v2484, 0
      %v2508 = vsel %vm442, %v2485, 0
      %v2511 = vsel %vm467, %v2461, 0
      %2513 = vmatpush.bf16.msra.mxu0 0
      %2514 = vmatpush.bf16.msra.mxu0 0
      %2515 = vmatpush.bf16.msra.mxu0 0
      %2516 = vmatpush.bf16.msra.mxu0 0
      %2517 = vmatpush.bf16.msra.mxu0 0
      %2518 = vmatpush.bf16.msra.mxu0 0
      %2519 = vmatpush.bf16.msra.mxu0 0
      %2520 = vmatpush.bf16.msra.mxu0 %v2511
      %2521 = vmatmul.bf16.gmra.mxu0 %v2487
      %v2522 = vpop.f32.mrf.mxu0
      %v2523 = vadd.f32 0.0, %v2522
      %v2524 = vpop.f32.mrf.mxu0
      %v2525 = vadd.f32 0.0, %v2524
      %2526 = vmatmul.bf16.gmra.mxu0 %v2490
      %v2527 = vpop.f32.mrf.mxu0
      %v2528 = vadd.f32 0.0, %v2527
      %v2529 = vpop.f32.mrf.mxu0
      %v2530 = vadd.f32 0.0, %v2529
      %2531 = vmatmul.bf16.gmra.mxu0 %v2493
      %v2532 = vpop.f32.mrf.mxu0
      %v2533 = vadd.f32 0.0, %v2532
      %v2534 = vpop.f32.mrf.mxu0
      %v2535 = vadd.f32 0.0, %v2534
      %2536 = vmatmul.bf16.gmra.mxu0 %v2496
      %v2537 = vpop.f32.mrf.mxu0
      %v2538 = vadd.f32 0.0, %v2537
      %v2539 = vpop.f32.mrf.mxu0
      %v2540 = vadd.f32 0.0, %v2539
      %2541 = vmatmul.bf16.gmra.mxu0 %v2499
      %v2542 = vpop.f32.mrf.mxu0
      %v2543 = vadd.f32 0.0, %v2542
      %v2544 = vpop.f32.mrf.mxu0
      %v2545 = vadd.f32 0.0, %v2544
      %2546 = vmatmul.bf16.gmra.mxu0 %v2502
      %v2547 = vpop.f32.mrf.mxu0
      %v2548 = vadd.f32 0.0, %v2547
      %v2549 = vpop.f32.mrf.mxu0
      %v2550 = vadd.f32 0.0, %v2549
      %2551 = vmatmul.bf16.gmra.mxu0 %v2505
      %v2552 = vpop.f32.mrf.mxu0
      %v2553 = vadd.f32 0.0, %v2552
      %v2554 = vpop.f32.mrf.mxu0
      %v2555 = vadd.f32 0.0, %v2554
      %2556 = vmatmul.bf16.gmra.mxu0 %v2508
      %v2557 = vpop.f32.mrf.mxu0
      %v2558 = vadd.f32 0.0, %v2557
      %v2559 = vpop.f32.mrf.mxu0
      %v2560 = vadd.f32 0.0, %v2559
      %2561 = vdwg.mxu0
      %v2562 = vadd.f32 %v2012, %v2523
      %v2563 = vadd.f32 %v2013, %v2525
      %v2564 = vadd.f32 %v2014, %v2528
      %v2565 = vadd.f32 %v2015, %v2530
      %v2566 = vadd.f32 %v2016, %v2533
      %v2567 = vadd.f32 %v2017, %v2535
      %v2568 = vadd.f32 %v2018, %v2538
      %v2569 = vadd.f32 %v2019, %v2540
      %v2570 = vadd.f32 %v2020, %v2543
      %v2571 = vadd.f32 %v2021, %v2545
      %v2572 = vadd.f32 %v2022, %v2548
      %v2573 = vadd.f32 %v2023, %v2550
      %v2574 = vadd.f32 %v2024, %v2553
      %v2575 = vadd.f32 %v2025, %v2555
      %v2576 = vadd.f32 %v2026, %v2558
      %v2577 = vadd.f32 %v2027, %v2560
      %s2578 = scalar_lea.vmem %s3, 16
      %v2579 = vld [vmem:[%s2578] sm:$0xf]
      %v2580 = vunpack.c.l.b16 %v2281
      %v2581 = vunpack.c.l.b16 %v2291
      %v2582 = vunpack.c.l.b16 %v2305
      %v2583 = vunpack.c.l.b16 %v2315
      %v2584 = vunpack.c.l.b16 %v2329
      %v2585 = vunpack.c.l.b16 %v2339
      %v2586 = vunpack.c.l.b16 %v2353
      %v2587 = vunpack.c.l.b16 %v2363
      %v2588 = vunpack.c.l.b16 %v2377
      %v2589 = vunpack.c.l.b16 %v2387
      %v2590 = vunpack.c.l.b16 %v2401
      %v2591 = vunpack.c.l.b16 %v2411
      %v2592 = vunpack.c.l.b16 %v2425
      %v2593 = vunpack.c.l.b16 %v2435
      %v2594 = vunpack.c.l.b16 %v2449
      %v2595 = vunpack.c.l.b16 %v2459
      %v2596 = vpack.c.b16 %v2581, %v2580
      %v2597 = vpack.c.b16 %v2583, %v2582
      %v2598 = vpack.c.b16 %v2585, %v2584
      %v2599 = vpack.c.b16 %v2587, %v2586
      %v2600 = vpack.c.b16 %v2589, %v2588
      %v2601 = vpack.c.b16 %v2591, %v2590
      %v2602 = vpack.c.b16 %v2593, %v2592
      %v2603 = vpack.c.b16 %v2595, %v2594
      %v2605 = vsel %vm442, %v2596, 0
      %v2608 = vsel %vm442, %v2597, 0
      %v2611 = vsel %vm442, %v2598, 0
      %v2614 = vsel %vm442, %v2599, 0
      %v2617 = vsel %vm442, %v2600, 0
      %v2620 = vsel %vm442, %v2601, 0
      %v2623 = vsel %vm442, %v2602, 0
      %v2626 = vsel %vm442, %v2603, 0
      %v2629 = vsel %vm467, %v2579, 0
      %2631 = vmatpush.bf16.msra.mxu0 0
      %2632 = vmatpush.bf16.msra.mxu0 0
      %2633 = vmatpush.bf16.msra.mxu0 0
      %2634 = vmatpush.bf16.msra.mxu0 0
      %2635 = vmatpush.bf16.msra.mxu0 0
      %2636 = vmatpush.bf16.msra.mxu0 0
      %2637 = vmatpush.bf16.msra.mxu0 0
      %2638 = vmatpush.bf16.msra.mxu0 %v2629
      %2639 = vmatmul.bf16.gmra.mxu0 %v2605
      %v2640 = vpop.f32.mrf.mxu0
      %v2641 = vadd.f32 0.0, %v2640
      %v2642 = vpop.f32.mrf.mxu0
      %v2643 = vadd.f32 0.0, %v2642
      %2644 = vmatmul.bf16.gmra.mxu0 %v2608
      %v2645 = vpop.f32.mrf.mxu0
      %v2646 = vadd.f32 0.0, %v2645
      %v2647 = vpop.f32.mrf.mxu0
      %v2648 = vadd.f32 0.0, %v2647
      %2649 = vmatmul.bf16.gmra.mxu0 %v2611
      %v2650 = vpop.f32.mrf.mxu0
      %v2651 = vadd.f32 0.0, %v2650
      %v2652 = vpop.f32.mrf.mxu0
      %v2653 = vadd.f32 0.0, %v2652
      %2654 = vmatmul.bf16.gmra.mxu0 %v2614
      %v2655 = vpop.f32.mrf.mxu0
      %v2656 = vadd.f32 0.0, %v2655
      %v2657 = vpop.f32.mrf.mxu0
      %v2658 = vadd.f32 0.0, %v2657
      %2659 = vmatmul.bf16.gmra.mxu0 %v2617
      %v2660 = vpop.f32.mrf.mxu0
      %v2661 = vadd.f32 0.0, %v2660
      %v2662 = vpop.f32.mrf.mxu0
      %v2663 = vadd.f32 0.0, %v2662
      %2664 = vmatmul.bf16.gmra.mxu0 %v2620
      %v2665 = vpop.f32.mrf.mxu0
      %v2666 = vadd.f32 0.0, %v2665
      %v2667 = vpop.f32.mrf.mxu0
      %v2668 = vadd.f32 0.0, %v2667
      %2669 = vmatmul.bf16.gmra.mxu0 %v2623
      %v2670 = vpop.f32.mrf.mxu0
      %v2671 = vadd.f32 0.0, %v2670
      %v2672 = vpop.f32.mrf.mxu0
      %v2673 = vadd.f32 0.0, %v2672
      %2674 = vmatmul.bf16.gmra.mxu0 %v2626
      %v2675 = vpop.f32.mrf.mxu0
      %v2676 = vadd.f32 0.0, %v2675
      %v2677 = vpop.f32.mrf.mxu0
      %v2678 = vadd.f32 0.0, %v2677
      %2679 = vdwg.mxu0
      %v2680 = vadd.f32 %v2562, %v2641
      %v2681 = vadd.f32 %v2563, %v2643
      %v2682 = vadd.f32 %v2564, %v2646
      %v2683 = vadd.f32 %v2565, %v2648
      %v2684 = vadd.f32 %v2566, %v2651
      %v2685 = vadd.f32 %v2567, %v2653
      %v2686 = vadd.f32 %v2568, %v2656
      %v2687 = vadd.f32 %v2569, %v2658
      %v2688 = vadd.f32 %v2570, %v2661
      %v2689 = vadd.f32 %v2571, %v2663
      %v2690 = vadd.f32 %v2572, %v2666
      %v2691 = vadd.f32 %v2573, %v2668
      %v2692 = vadd.f32 %v2574, %v2671
      %v2693 = vadd.f32 %v2575, %v2673
      %v2694 = vadd.f32 %v2576, %v2676
      %v2695 = vadd.f32 %v2577, %v2678
      %v2696 = vld [vmem:[%s1725] sm:$0xe]
      %v2697 = vld [vmem:[%s1725 + $0xc] sm:$0xe]
      %v2698 = vld [vmem:[%s1725 + $0x18] sm:$0xe]
      %v2699 = vld [vmem:[%s1725 + $0x24] sm:$0xe]
      %v2700 = vld [vmem:[%s1725 + $0x30] sm:$0xe]
      %v2701 = vld [vmem:[%s1725 + $0x3c] sm:$0xe]
      %v2702 = vld [vmem:[%s1725 + $0x48] sm:$0xe]
      %v2703 = vld [vmem:[%s1725 + $0x54] sm:$0xe]
      %v2728 = vrot.slane %v2696, 5
      %v2729 = vrot.slane %v2728, 4
      %v2730 = vrot.slane %v2029, 5
      %v2731 = vsel %vm1341, %v2729, %v2730
      %v2732 = vrot.slane %v2730, 4
      %v2733 = vrot.slane %v2030, 5
      %v2734 = vsel %vm1341, %v2732, %v2733
      %v2735 = vrot.slane %v2697, 5
      %v2736 = vrot.slane %v2735, 4
      %v2737 = vrot.slane %v2032, 5
      %v2738 = vsel %vm1341, %v2736, %v2737
      %v2739 = vrot.slane %v2737, 4
      %v2740 = vrot.slane %v2033, 5
      %v2741 = vsel %vm1341, %v2739, %v2740
      %v2742 = vrot.slane %v2698, 5
      %v2743 = vrot.slane %v2742, 4
      %v2744 = vrot.slane %v2035, 5
      %v2745 = vsel %vm1341, %v2743, %v2744
      %v2746 = vrot.slane %v2744, 4
      %v2747 = vrot.slane %v2036, 5
      %v2748 = vsel %vm1341, %v2746, %v2747
      %v2749 = vrot.slane %v2699, 5
      %v2750 = vrot.slane %v2749, 4
      %v2751 = vrot.slane %v2038, 5
      %v2752 = vsel %vm1341, %v2750, %v2751
      %v2753 = vrot.slane %v2751, 4
      %v2754 = vrot.slane %v2039, 5
      %v2755 = vsel %vm1341, %v2753, %v2754
      %v2756 = vrot.slane %v2700, 5
      %v2757 = vrot.slane %v2756, 4
      %v2758 = vrot.slane %v2041, 5
      %v2759 = vsel %vm1341, %v2757, %v2758
      %v2760 = vrot.slane %v2758, 4
      %v2761 = vrot.slane %v2042, 5
      %v2762 = vsel %vm1341, %v2760, %v2761
      %v2763 = vrot.slane %v2701, 5
      %v2764 = vrot.slane %v2763, 4
      %v2765 = vrot.slane %v2044, 5
      %v2766 = vsel %vm1341, %v2764, %v2765
      %v2767 = vrot.slane %v2765, 4
      %v2768 = vrot.slane %v2045, 5
      %v2769 = vsel %vm1341, %v2767, %v2768
      %v2770 = vrot.slane %v2702, 5
      %v2771 = vrot.slane %v2770, 4
      %v2772 = vrot.slane %v2047, 5
      %v2773 = vsel %vm1341, %v2771, %v2772
      %v2774 = vrot.slane %v2772, 4
      %v2775 = vrot.slane %v2048, 5
      %v2776 = vsel %vm1341, %v2774, %v2775
      %v2777 = vrot.slane %v2703, 5
      %v2778 = vrot.slane %v2777, 4
      %v2779 = vrot.slane %v2050, 5
      %v2780 = vsel %vm1341, %v2778, %v2779
      %v2781 = vrot.slane %v2779, 4
      %v2782 = vrot.slane %v2051, 5
      %v2783 = vsel %vm1341, %v2781, %v2782
      %v2784 = vld [vmem:[%s1743] sm:$0xe]
      %v2785 = vld [vmem:[%s1743 + $0xc] sm:$0xe]
      %v2786 = vld [vmem:[%s1743 + $0x18] sm:$0xe]
      %v2787 = vld [vmem:[%s1743 + $0x24] sm:$0xe]
      %v2788 = vld [vmem:[%s1743 + $0x30] sm:$0xe]
      %v2789 = vld [vmem:[%s1743 + $0x3c] sm:$0xe]
      %v2790 = vld [vmem:[%s1743 + $0x48] sm:$0xe]
      %v2791 = vld [vmem:[%s1743 + $0x54] sm:$0xe]
      %v2816 = vrot.slane %v2784, 5
      %v2817 = vrot.slane %v2816, 4
      %v2818 = vrot.slane %v2245, 5
      %v2819 = vsel %vm1341, %v2817, %v2818
      %v2820 = vrot.slane %v2818, 4
      %v2821 = vrot.slane %v2246, 5
      %v2822 = vsel %vm1341, %v2820, %v2821
      %v2823 = vrot.slane %v2785, 5
      %v2824 = vrot.slane %v2823, 4
      %v2825 = vrot.slane %v2248, 5
      %v2826 = vsel %vm1341, %v2824, %v2825
      %v2827 = vrot.slane %v2825, 4
      %v2828 = vrot.slane %v2249, 5
      %v2829 = vsel %vm1341, %v2827, %v2828
      %v2830 = vrot.slane %v2786, 5
      %v2831 = vrot.slane %v2830, 4
      %v2832 = vrot.slane %v2251, 5
      %v2833 = vsel %vm1341, %v2831, %v2832
      %v2834 = vrot.slane %v2832, 4
      %v2835 = vrot.slane %v2252, 5
      %v2836 = vsel %vm1341, %v2834, %v2835
      %v2837 = vrot.slane %v2787, 5
      %v2838 = vrot.slane %v2837, 4
      %v2839 = vrot.slane %v2254, 5
      %v2840 = vsel %vm1341, %v2838, %v2839
      %v2841 = vrot.slane %v2839, 4
      %v2842 = vrot.slane %v2255, 5
      %v2843 = vsel %vm1341, %v2841, %v2842
      %v2844 = vrot.slane %v2788, 5
      %v2845 = vrot.slane %v2844, 4
      %v2846 = vrot.slane %v2257, 5
      %v2847 = vsel %vm1341, %v2845, %v2846
      %v2848 = vrot.slane %v2846, 4
      %v2849 = vrot.slane %v2258, 5
      %v2850 = vsel %vm1341, %v2848, %v2849
      %v2851 = vrot.slane %v2789, 5
      %v2852 = vrot.slane %v2851, 4
      %v2853 = vrot.slane %v2260, 5
      %v2854 = vsel %vm1341, %v2852, %v2853
      %v2855 = vrot.slane %v2853, 4
      %v2856 = vrot.slane %v2261, 5
      %v2857 = vsel %vm1341, %v2855, %v2856
      %v2858 = vrot.slane %v2790, 5
      %v2859 = vrot.slane %v2858, 4
      %v2860 = vrot.slane %v2263, 5
      %v2861 = vsel %vm1341, %v2859, %v2860
      %v2862 = vrot.slane %v2860, 4
      %v2863 = vrot.slane %v2264, 5
      %v2864 = vsel %vm1341, %v2862, %v2863
      %v2865 = vrot.slane %v2791, 5
      %v2866 = vrot.slane %v2865, 4
      %v2867 = vrot.slane %v2266, 5
      %v2868 = vsel %vm1341, %v2866, %v2867
      %v2869 = vrot.slane %v2867, 4
      %v2870 = vrot.slane %v2267, 5
      %v2871 = vsel %vm1341, %v2869, %v2870
      %s2872 = scalar_lea.vmem %s2, 20
      %v2873 = vld [vmem:[%s2872] sm:$0xf]
      %v2874 = vunpack.c.l.b16 %v2731
      %v2875 = vunpack.c.l.b16 %v2734
      %v2876 = vunpack.c.l.b16 %v2738
      %v2877 = vunpack.c.l.b16 %v2741
      %v2878 = vunpack.c.l.b16 %v2745
      %v2879 = vunpack.c.l.b16 %v2748
      %v2880 = vunpack.c.l.b16 %v2752
      %v2881 = vunpack.c.l.b16 %v2755
      %v2882 = vunpack.c.l.b16 %v2759
      %v2883 = vunpack.c.l.b16 %v2762
      %v2884 = vunpack.c.l.b16 %v2766
      %v2885 = vunpack.c.l.b16 %v2769
      %v2886 = vunpack.c.l.b16 %v2773
      %v2887 = vunpack.c.l.b16 %v2776
      %v2888 = vunpack.c.l.b16 %v2780
      %v2889 = vunpack.c.l.b16 %v2783
      %v2890 = vpack.c.b16 %v2875, %v2874
      %v2891 = vpack.c.b16 %v2877, %v2876
      %v2892 = vpack.c.b16 %v2879, %v2878
      %v2893 = vpack.c.b16 %v2881, %v2880
      %v2894 = vpack.c.b16 %v2883, %v2882
      %v2895 = vpack.c.b16 %v2885, %v2884
      %v2896 = vpack.c.b16 %v2887, %v2886
      %v2897 = vpack.c.b16 %v2889, %v2888
      %v2899 = vsel %vm442, %v2890, 0
      %v2902 = vsel %vm442, %v2891, 0
      %v2905 = vsel %vm442, %v2892, 0
      %v2908 = vsel %vm442, %v2893, 0
      %v2911 = vsel %vm442, %v2894, 0
      %v2914 = vsel %vm442, %v2895, 0
      %v2917 = vsel %vm442, %v2896, 0
      %v2920 = vsel %vm442, %v2897, 0
      %v2923 = vsel %vm467, %v2873, 0
      %2925 = vmatpush.bf16.msra.mxu0 0
      %2926 = vmatpush.bf16.msra.mxu0 0
      %2927 = vmatpush.bf16.msra.mxu0 0
      %2928 = vmatpush.bf16.msra.mxu0 0
      %2929 = vmatpush.bf16.msra.mxu0 0
      %2930 = vmatpush.bf16.msra.mxu0 0
      %2931 = vmatpush.bf16.msra.mxu0 0
      %2932 = vmatpush.bf16.msra.mxu0 %v2923
      %2933 = vmatmul.bf16.gmra.mxu0 %v2899
      %v2934 = vpop.f32.mrf.mxu0
      %v2935 = vadd.f32 0.0, %v2934
      %v2936 = vpop.f32.mrf.mxu0
      %v2937 = vadd.f32 0.0, %v2936
      %2938 = vmatmul.bf16.gmra.mxu0 %v2902
      %v2939 = vpop.f32.mrf.mxu0
      %v2940 = vadd.f32 0.0, %v2939
      %v2941 = vpop.f32.mrf.mxu0
      %v2942 = vadd.f32 0.0, %v2941
      %2943 = vmatmul.bf16.gmra.mxu0 %v2905
      %v2944 = vpop.f32.mrf.mxu0
      %v2945 = vadd.f32 0.0, %v2944
      %v2946 = vpop.f32.mrf.mxu0
      %v2947 = vadd.f32 0.0, %v2946
      %2948 = vmatmul.bf16.gmra.mxu0 %v2908
      %v2949 = vpop.f32.mrf.mxu0
      %v2950 = vadd.f32 0.0, %v2949
      %v2951 = vpop.f32.mrf.mxu0
      %v2952 = vadd.f32 0.0, %v2951
      %2953 = vmatmul.bf16.gmra.mxu0 %v2911
      %v2954 = vpop.f32.mrf.mxu0
      %v2955 = vadd.f32 0.0, %v2954
      %v2956 = vpop.f32.mrf.mxu0
      %v2957 = vadd.f32 0.0, %v2956
      %2958 = vmatmul.bf16.gmra.mxu0 %v2914
      %v2959 = vpop.f32.mrf.mxu0
      %v2960 = vadd.f32 0.0, %v2959
      %v2961 = vpop.f32.mrf.mxu0
      %v2962 = vadd.f32 0.0, %v2961
      %2963 = vmatmul.bf16.gmra.mxu0 %v2917
      %v2964 = vpop.f32.mrf.mxu0
      %v2965 = vadd.f32 0.0, %v2964
      %v2966 = vpop.f32.mrf.mxu0
      %v2967 = vadd.f32 0.0, %v2966
      %2968 = vmatmul.bf16.gmra.mxu0 %v2920
      %v2969 = vpop.f32.mrf.mxu0
      %v2970 = vadd.f32 0.0, %v2969
      %v2971 = vpop.f32.mrf.mxu0
      %v2972 = vadd.f32 0.0, %v2971
      %2973 = vdwg.mxu0
      %v2974 = vadd.f32 %v2680, %v2935
      %v2975 = vadd.f32 %v2681, %v2937
      %v2976 = vadd.f32 %v2682, %v2940
      %v2977 = vadd.f32 %v2683, %v2942
      %v2978 = vadd.f32 %v2684, %v2945
      %v2979 = vadd.f32 %v2685, %v2947
      %v2980 = vadd.f32 %v2686, %v2950
      %v2981 = vadd.f32 %v2687, %v2952
      %v2982 = vadd.f32 %v2688, %v2955
      %v2983 = vadd.f32 %v2689, %v2957
      %v2984 = vadd.f32 %v2690, %v2960
      %v2985 = vadd.f32 %v2691, %v2962
      %v2986 = vadd.f32 %v2692, %v2965
      %v2987 = vadd.f32 %v2693, %v2967
      %v2988 = vadd.f32 %v2694, %v2970
      %v2989 = vadd.f32 %v2695, %v2972
      %s2990 = scalar_lea.vmem %s3, 20
      %v2991 = vld [vmem:[%s2990] sm:$0xf]
      %v2992 = vunpack.c.l.b16 %v2819
      %v2993 = vunpack.c.l.b16 %v2822
      %v2994 = vunpack.c.l.b16 %v2826
      %v2995 = vunpack.c.l.b16 %v2829
      %v2996 = vunpack.c.l.b16 %v2833
      %v2997 = vunpack.c.l.b16 %v2836
      %v2998 = vunpack.c.l.b16 %v2840
      %v2999 = vunpack.c.l.b16 %v2843
      %v3000 = vunpack.c.l.b16 %v2847
      %v3001 = vunpack.c.l.b16 %v2850
      %v3002 = vunpack.c.l.b16 %v2854
      %v3003 = vunpack.c.l.b16 %v2857
      %v3004 = vunpack.c.l.b16 %v2861
      %v3005 = vunpack.c.l.b16 %v2864
      %v3006 = vunpack.c.l.b16 %v2868
      %v3007 = vunpack.c.l.b16 %v2871
      %v3008 = vpack.c.b16 %v2993, %v2992
      %v3009 = vpack.c.b16 %v2995, %v2994
      %v3010 = vpack.c.b16 %v2997, %v2996
      %v3011 = vpack.c.b16 %v2999, %v2998
      %v3012 = vpack.c.b16 %v3001, %v3000
      %v3013 = vpack.c.b16 %v3003, %v3002
      %v3014 = vpack.c.b16 %v3005, %v3004
      %v3015 = vpack.c.b16 %v3007, %v3006
      %v3017 = vsel %vm442, %v3008, 0
      %v3020 = vsel %vm442, %v3009, 0
      %v3023 = vsel %vm442, %v3010, 0
      %v3026 = vsel %vm442, %v3011, 0
      %v3029 = vsel %vm442, %v3012, 0
      %v3032 = vsel %vm442, %v3013, 0
      %v3035 = vsel %vm442, %v3014, 0
      %v3038 = vsel %vm442, %v3015, 0
      %v3041 = vsel %vm467, %v2991, 0
      %3043 = vmatpush.bf16.msra.mxu0 0
      %3044 = vmatpush.bf16.msra.mxu0 0
      %3045 = vmatpush.bf16.msra.mxu0 0
      %3046 = vmatpush.bf16.msra.mxu0 0
      %3047 = vmatpush.bf16.msra.mxu0 0
      %3048 = vmatpush.bf16.msra.mxu0 0
      %3049 = vmatpush.bf16.msra.mxu0 0
      %3050 = vmatpush.bf16.msra.mxu0 %v3041
      %3051 = vmatmul.bf16.gmra.mxu0 %v3017
      %v3052 = vpop.f32.mrf.mxu0
      %v3053 = vadd.f32 0.0, %v3052
      %v3054 = vpop.f32.mrf.mxu0
      %v3055 = vadd.f32 0.0, %v3054
      %3056 = vmatmul.bf16.gmra.mxu0 %v3020
      %v3057 = vpop.f32.mrf.mxu0
      %v3058 = vadd.f32 0.0, %v3057
      %v3059 = vpop.f32.mrf.mxu0
      %v3060 = vadd.f32 0.0, %v3059
      %3061 = vmatmul.bf16.gmra.mxu0 %v3023
      %v3062 = vpop.f32.mrf.mxu0
      %v3063 = vadd.f32 0.0, %v3062
      %v3064 = vpop.f32.mrf.mxu0
      %v3065 = vadd.f32 0.0, %v3064
      %3066 = vmatmul.bf16.gmra.mxu0 %v3026
      %v3067 = vpop.f32.mrf.mxu0
      %v3068 = vadd.f32 0.0, %v3067
      %v3069 = vpop.f32.mrf.mxu0
      %v3070 = vadd.f32 0.0, %v3069
      %3071 = vmatmul.bf16.gmra.mxu0 %v3029
      %v3072 = vpop.f32.mrf.mxu0
      %v3073 = vadd.f32 0.0, %v3072
      %v3074 = vpop.f32.mrf.mxu0
      %v3075 = vadd.f32 0.0, %v3074
      %3076 = vmatmul.bf16.gmra.mxu0 %v3032
      %v3077 = vpop.f32.mrf.mxu0
      %v3078 = vadd.f32 0.0, %v3077
      %v3079 = vpop.f32.mrf.mxu0
      %v3080 = vadd.f32 0.0, %v3079
      %3081 = vmatmul.bf16.gmra.mxu0 %v3035
      %v3082 = vpop.f32.mrf.mxu0
      %v3083 = vadd.f32 0.0, %v3082
      %v3084 = vpop.f32.mrf.mxu0
      %v3085 = vadd.f32 0.0, %v3084
      %3086 = vmatmul.bf16.gmra.mxu0 %v3038
      %v3087 = vpop.f32.mrf.mxu0
      %v3088 = vadd.f32 0.0, %v3087
      %v3089 = vpop.f32.mrf.mxu0
      %v3090 = vadd.f32 0.0, %v3089
      %3091 = vdwg.mxu0
      %v3092 = vadd.f32 %v2974, %v3053
      %v3093 = vadd.f32 %v2975, %v3055
      %v3094 = vadd.f32 %v2976, %v3058
      %v3095 = vadd.f32 %v2977, %v3060
      %v3096 = vadd.f32 %v2978, %v3063
      %v3097 = vadd.f32 %v2979, %v3065
      %v3098 = vadd.f32 %v2980, %v3068
      %v3099 = vadd.f32 %v2981, %v3070
      %v3100 = vadd.f32 %v2982, %v3073
      %v3101 = vadd.f32 %v2983, %v3075
      %v3102 = vadd.f32 %v2984, %v3078
      %v3103 = vadd.f32 %v2985, %v3080
      %v3104 = vadd.f32 %v2986, %v3083
      %v3105 = vadd.f32 %v2987, %v3085
      %v3106 = vadd.f32 %v2988, %v3088
      %v3107 = vadd.f32 %v2989, %v3090
      %s3108 = sadd.s32 %s362, 2
      %s3109 = smul.u32 %s3108, 3
      %s3110 = smul.addr %s3109, 4
      %s3111 = scalar_lea.vmem %s330, %s3110
      %v3112 = vld [vmem:[%s3111] sm:$0xf]
      %v3113 = vld [vmem:[%s3111 + $0x4] sm:$0xf]
      %v3114 = vld [vmem:[%s3111 + $0xc] sm:$0xf]
      %v3115 = vld [vmem:[%s3111 + $0x10] sm:$0xf]
      %v3116 = vld [vmem:[%s3111 + $0x18] sm:$0xf]
      %v3117 = vld [vmem:[%s3111 + $0x1c] sm:$0xf]
      %v3118 = vld [vmem:[%s3111 + $0x24] sm:$0xf]
      %v3119 = vld [vmem:[%s3111 + $0x28] sm:$0xf]
      %v3120 = vld [vmem:[%s3111 + $0x30] sm:$0xf]
      %v3121 = vld [vmem:[%s3111 + $0x34] sm:$0xf]
      %v3122 = vld [vmem:[%s3111 + $0x3c] sm:$0xf]
      %v3123 = vld [vmem:[%s3111 + $0x40] sm:$0xf]
      %v3124 = vld [vmem:[%s3111 + $0x48] sm:$0xf]
      %v3125 = vld [vmem:[%s3111 + $0x4c] sm:$0xf]
      %v3126 = vld [vmem:[%s3111 + $0x54] sm:$0xf]
      %v3127 = vld [vmem:[%s3111 + $0x58] sm:$0xf]
      %s3128 = smul.addr %s3109, 4
      %s3129 = scalar_lea.vmem %s335, %s3128
      %v3130 = vld [vmem:[%s3129] sm:$0xf]
      %v3131 = vld [vmem:[%s3129 + $0x4] sm:$0xf]
      %v3132 = vld [vmem:[%s3129 + $0xc] sm:$0xf]
      %v3133 = vld [vmem:[%s3129 + $0x10] sm:$0xf]
      %v3134 = vld [vmem:[%s3129 + $0x18] sm:$0xf]
      %v3135 = vld [vmem:[%s3129 + $0x1c] sm:$0xf]
      %v3136 = vld [vmem:[%s3129 + $0x24] sm:$0xf]
      %v3137 = vld [vmem:[%s3129 + $0x28] sm:$0xf]
      %v3138 = vld [vmem:[%s3129 + $0x30] sm:$0xf]
      %v3139 = vld [vmem:[%s3129 + $0x34] sm:$0xf]
      %v3140 = vld [vmem:[%s3129 + $0x3c] sm:$0xf]
      %v3141 = vld [vmem:[%s3129 + $0x40] sm:$0xf]
      %v3142 = vld [vmem:[%s3129 + $0x48] sm:$0xf]
      %v3143 = vld [vmem:[%s3129 + $0x4c] sm:$0xf]
      %v3144 = vld [vmem:[%s3129 + $0x54] sm:$0xf]
      %v3145 = vld [vmem:[%s3129 + $0x58] sm:$0xf]
      %s3146 = scalar_lea.vmem %s2, 24
      %v3147 = vld [vmem:[%s3146] sm:$0xf]
      %v3164 = vunpack.c.l.b16 %v3112
      %v3165 = vunpack.c.l.b16 %v3113
      %v3166 = vunpack.c.l.b16 %v3114
      %v3167 = vunpack.c.l.b16 %v3115
      %v3168 = vunpack.c.l.b16 %v3116
      %v3169 = vunpack.c.l.b16 %v3117
      %v3170 = vunpack.c.l.b16 %v3118
      %v3171 = vunpack.c.l.b16 %v3119
      %v3172 = vunpack.c.l.b16 %v3120
      %v3173 = vunpack.c.l.b16 %v3121
      %v3174 = vunpack.c.l.b16 %v3122
      %v3175 = vunpack.c.l.b16 %v3123
      %v3176 = vunpack.c.l.b16 %v3124
      %v3177 = vunpack.c.l.b16 %v3125
      %v3178 = vunpack.c.l.b16 %v3126
      %v3179 = vunpack.c.l.b16 %v3127
      %v3180 = vpack.c.b16 %v3165, %v3164
      %v3181 = vpack.c.b16 %v3167, %v3166
      %v3182 = vpack.c.b16 %v3169, %v3168
      %v3183 = vpack.c.b16 %v3171, %v3170
      %v3184 = vpack.c.b16 %v3173, %v3172
      %v3185 = vpack.c.b16 %v3175, %v3174
      %v3186 = vpack.c.b16 %v3177, %v3176
      %v3187 = vpack.c.b16 %v3179, %v3178
      %v3189 = vsel %vm442, %v3180, 0
      %v3192 = vsel %vm442, %v3181, 0
      %v3195 = vsel %vm442, %v3182, 0
      %v3198 = vsel %vm442, %v3183, 0
      %v3201 = vsel %vm442, %v3184, 0
      %v3204 = vsel %vm442, %v3185, 0
      %v3207 = vsel %vm442, %v3186, 0
      %v3210 = vsel %vm442, %v3187, 0
      %v3213 = vsel %vm467, %v3147, 0
      %3215 = vmatpush.bf16.msra.mxu0 0
      %3216 = vmatpush.bf16.msra.mxu0 0
      %3217 = vmatpush.bf16.msra.mxu0 0
      %3218 = vmatpush.bf16.msra.mxu0 0
      %3219 = vmatpush.bf16.msra.mxu0 0
      %3220 = vmatpush.bf16.msra.mxu0 0
      %3221 = vmatpush.bf16.msra.mxu0 0
      %3222 = vmatpush.bf16.msra.mxu0 %v3213
      %3223 = vmatmul.bf16.gmra.mxu0 %v3189
      %v3224 = vpop.f32.mrf.mxu0
      %v3225 = vadd.f32 0.0, %v3224
      %v3226 = vpop.f32.mrf.mxu0
      %v3227 = vadd.f32 0.0, %v3226
      %3228 = vmatmul.bf16.gmra.mxu0 %v3192
      %v3229 = vpop.f32.mrf.mxu0
      %v3230 = vadd.f32 0.0, %v3229
      %v3231 = vpop.f32.mrf.mxu0
      %v3232 = vadd.f32 0.0, %v3231
      %3233 = vmatmul.bf16.gmra.mxu0 %v3195
      %v3234 = vpop.f32.mrf.mxu0
      %v3235 = vadd.f32 0.0, %v3234
      %v3236 = vpop.f32.mrf.mxu0
      %v3237 = vadd.f32 0.0, %v3236
      %3238 = vmatmul.bf16.gmra.mxu0 %v3198
      %v3239 = vpop.f32.mrf.mxu0
      %v3240 = vadd.f32 0.0, %v3239
      %v3241 = vpop.f32.mrf.mxu0
      %v3242 = vadd.f32 0.0, %v3241
      %3243 = vmatmul.bf16.gmra.mxu0 %v3201
      %v3244 = vpop.f32.mrf.mxu0
      %v3245 = vadd.f32 0.0, %v3244
      %v3246 = vpop.f32.mrf.mxu0
      %v3247 = vadd.f32 0.0, %v3246
      %3248 = vmatmul.bf16.gmra.mxu0 %v3204
      %v3249 = vpop.f32.mrf.mxu0
      %v3250 = vadd.f32 0.0, %v3249
      %v3251 = vpop.f32.mrf.mxu0
      %v3252 = vadd.f32 0.0, %v3251
      %3253 = vmatmul.bf16.gmra.mxu0 %v3207
      %v3254 = vpop.f32.mrf.mxu0
      %v3255 = vadd.f32 0.0, %v3254
      %v3256 = vpop.f32.mrf.mxu0
      %v3257 = vadd.f32 0.0, %v3256
      %3258 = vmatmul.bf16.gmra.mxu0 %v3210
      %v3259 = vpop.f32.mrf.mxu0
      %v3260 = vadd.f32 0.0, %v3259
      %v3261 = vpop.f32.mrf.mxu0
      %v3262 = vadd.f32 0.0, %v3261
      %3263 = vdwg.mxu0
      %v3264 = vadd.f32 %v3092, %v3225
      %v3265 = vadd.f32 %v3093, %v3227
      %v3266 = vadd.f32 %v3094, %v3230
      %v3267 = vadd.f32 %v3095, %v3232
      %v3268 = vadd.f32 %v3096, %v3235
      %v3269 = vadd.f32 %v3097, %v3237
      %v3270 = vadd.f32 %v3098, %v3240
      %v3271 = vadd.f32 %v3099, %v3242
      %v3272 = vadd.f32 %v3100, %v3245
      %v3273 = vadd.f32 %v3101, %v3247
      %v3274 = vadd.f32 %v3102, %v3250
      %v3275 = vadd.f32 %v3103, %v3252
      %v3276 = vadd.f32 %v3104, %v3255
      %v3277 = vadd.f32 %v3105, %v3257
      %v3278 = vadd.f32 %v3106, %v3260
      %v3279 = vadd.f32 %v3107, %v3262
      %s3280 = scalar_lea.vmem %s3, 24
      %v3281 = vld [vmem:[%s3280] sm:$0xf]
      %v3298 = vunpack.c.l.b16 %v3130
      %v3299 = vunpack.c.l.b16 %v3131
      %v3300 = vunpack.c.l.b16 %v3132
      %v3301 = vunpack.c.l.b16 %v3133
      %v3302 = vunpack.c.l.b16 %v3134
      %v3303 = vunpack.c.l.b16 %v3135
      %v3304 = vunpack.c.l.b16 %v3136
      %v3305 = vunpack.c.l.b16 %v3137
      %v3306 = vunpack.c.l.b16 %v3138
      %v3307 = vunpack.c.l.b16 %v3139
      %v3308 = vunpack.c.l.b16 %v3140
      %v3309 = vunpack.c.l.b16 %v3141
      %v3310 = vunpack.c.l.b16 %v3142
      %v3311 = vunpack.c.l.b16 %v3143
      %v3312 = vunpack.c.l.b16 %v3144
      %v3313 = vunpack.c.l.b16 %v3145
      %v3314 = vpack.c.b16 %v3299, %v3298
      %v3315 = vpack.c.b16 %v3301, %v3300
      %v3316 = vpack.c.b16 %v3303, %v3302
      %v3317 = vpack.c.b16 %v3305, %v3304
      %v3318 = vpack.c.b16 %v3307, %v3306
      %v3319 = vpack.c.b16 %v3309, %v3308
      %v3320 = vpack.c.b16 %v3311, %v3310
      %v3321 = vpack.c.b16 %v3313, %v3312
      %v3323 = vsel %vm442, %v3314, 0
      %v3326 = vsel %vm442, %v3315, 0
      %v3329 = vsel %vm442, %v3316, 0
      %v3332 = vsel %vm442, %v3317, 0
      %v3335 = vsel %vm442, %v3318, 0
      %v3338 = vsel %vm442, %v3319, 0
      %v3341 = vsel %vm442, %v3320, 0
      %v3344 = vsel %vm442, %v3321, 0
      %v3347 = vsel %vm467, %v3281, 0
      %3349 = vmatpush.bf16.msra.mxu0 0
      %3350 = vmatpush.bf16.msra.mxu0 0
      %3351 = vmatpush.bf16.msra.mxu0 0
      %3352 = vmatpush.bf16.msra.mxu0 0
      %3353 = vmatpush.bf16.msra.mxu0 0
      %3354 = vmatpush.bf16.msra.mxu0 0
      %3355 = vmatpush.bf16.msra.mxu0 0
      %3356 = vmatpush.bf16.msra.mxu0 %v3347
      %3357 = vmatmul.bf16.gmra.mxu0 %v3323
      %v3358 = vpop.f32.mrf.mxu0
      %v3359 = vadd.f32 0.0, %v3358
      %v3360 = vpop.f32.mrf.mxu0
      %v3361 = vadd.f32 0.0, %v3360
      %3362 = vmatmul.bf16.gmra.mxu0 %v3326
      %v3363 = vpop.f32.mrf.mxu0
      %v3364 = vadd.f32 0.0, %v3363
      %v3365 = vpop.f32.mrf.mxu0
      %v3366 = vadd.f32 0.0, %v3365
      %3367 = vmatmul.bf16.gmra.mxu0 %v3329
      %v3368 = vpop.f32.mrf.mxu0
      %v3369 = vadd.f32 0.0, %v3368
      %v3370 = vpop.f32.mrf.mxu0
      %v3371 = vadd.f32 0.0, %v3370
      %3372 = vmatmul.bf16.gmra.mxu0 %v3332
      %v3373 = vpop.f32.mrf.mxu0
      %v3374 = vadd.f32 0.0, %v3373
      %v3375 = vpop.f32.mrf.mxu0
      %v3376 = vadd.f32 0.0, %v3375
      %3377 = vmatmul.bf16.gmra.mxu0 %v3335
      %v3378 = vpop.f32.mrf.mxu0
      %v3379 = vadd.f32 0.0, %v3378
      %v3380 = vpop.f32.mrf.mxu0
      %v3381 = vadd.f32 0.0, %v3380
      %3382 = vmatmul.bf16.gmra.mxu0 %v3338
      %v3383 = vpop.f32.mrf.mxu0
      %v3384 = vadd.f32 0.0, %v3383
      %v3385 = vpop.f32.mrf.mxu0
      %v3386 = vadd.f32 0.0, %v3385
      %3387 = vmatmul.bf16.gmra.mxu0 %v3341
      %v3388 = vpop.f32.mrf.mxu0
      %v3389 = vadd.f32 0.0, %v3388
      %v3390 = vpop.f32.mrf.mxu0
      %v3391 = vadd.f32 0.0, %v3390
      %3392 = vmatmul.bf16.gmra.mxu0 %v3344
      %v3393 = vpop.f32.mrf.mxu0
      %v3394 = vadd.f32 0.0, %v3393
      %v3395 = vpop.f32.mrf.mxu0
      %v3396 = vadd.f32 0.0, %v3395
      %3397 = vdwg.mxu0
      %v3398 = vadd.f32 %v3264, %v3359
      %v3399 = vadd.f32 %v3265, %v3361
      %v3400 = vadd.f32 %v3266, %v3364
      %v3401 = vadd.f32 %v3267, %v3366
      %v3402 = vadd.f32 %v3268, %v3369
      %v3403 = vadd.f32 %v3269, %v3371
      %v3404 = vadd.f32 %v3270, %v3374
      %v3405 = vadd.f32 %v3271, %v3376
      %v3406 = vadd.f32 %v3272, %v3379
      %v3407 = vadd.f32 %v3273, %v3381
      %v3408 = vadd.f32 %v3274, %v3384
      %v3409 = vadd.f32 %v3275, %v3386
      %v3410 = vadd.f32 %v3276, %v3389
      %v3411 = vadd.f32 %v3277, %v3391
      %v3412 = vadd.f32 %v3278, %v3394
      %v3413 = vadd.f32 %v3279, %v3396
      %v3414 = vld [vmem:[%s3111] sm:$0xf]
      %v3415 = vld [vmem:[%s3111 + $0x4] sm:$0xf]
      %v3416 = vld [vmem:[%s3111 + $0x8] sm:$0x1]
      %v3417 = vld [vmem:[%s3111 + $0xc] sm:$0xf]
      %v3418 = vld [vmem:[%s3111 + $0x10] sm:$0xf]
      %v3419 = vld [vmem:[%s3111 + $0x14] sm:$0x1]
      %v3420 = vld [vmem:[%s3111 + $0x18] sm:$0xf]
      %v3421 = vld [vmem:[%s3111 + $0x1c] sm:$0xf]
      %v3422 = vld [vmem:[%s3111 + $0x20] sm:$0x1]
      %v3423 = vld [vmem:[%s3111 + $0x24] sm:$0xf]
      %v3424 = vld [vmem:[%s3111 + $0x28] sm:$0xf]
      %v3425 = vld [vmem:[%s3111 + $0x2c] sm:$0x1]
      %v3426 = vld [vmem:[%s3111 + $0x30] sm:$0xf]
      %v3427 = vld [vmem:[%s3111 + $0x34] sm:$0xf]
      %v3428 = vld [vmem:[%s3111 + $0x38] sm:$0x1]
      %v3429 = vld [vmem:[%s3111 + $0x3c] sm:$0xf]
      %v3430 = vld [vmem:[%s3111 + $0x40] sm:$0xf]
      %v3431 = vld [vmem:[%s3111 + $0x44] sm:$0x1]
      %v3432 = vld [vmem:[%s3111 + $0x48] sm:$0xf]
      %v3433 = vld [vmem:[%s3111 + $0x4c] sm:$0xf]
      %v3434 = vld [vmem:[%s3111 + $0x50] sm:$0x1]
      %v3435 = vld [vmem:[%s3111 + $0x54] sm:$0xf]
      %v3436 = vld [vmem:[%s3111 + $0x58] sm:$0xf]
      %v3437 = vld [vmem:[%s3111 + $0x5c] sm:$0x1]
      %v3439 = vshrl.u32 %v3414, 16
      %v3441 = vrot.slane %v3439, 4
      %v3442 = vshll.u32 %v3414, 16
      %v3444 = vrot.slane %v3442, 5
      %v3445 = vor.u32 %v3441, %v3444
      %v3446 = vrot.slane %v3445, 4
      %v3448 = vshll.u32 %v3415, 16
      %v3450 = vrot.slane %v3448, 5
      %v3451 = vsel %vm662, %v3446, %v3450
      %v3452 = vshrl.u32 %v3415, 16
      %v3454 = vrot.slane %v3452, 4
      %v3455 = vor.u32 %v3454, %v3450
      %v3456 = vrot.slane %v3455, 4
      %v3458 = vshll.u32 %v3416, 16
      %v3460 = vrot.slane %v3458, 5
      %v3461 = vsel %vm662, %v3456, %v3460
      %v3463 = vshrl.u32 %v3417, 16
      %v3465 = vrot.slane %v3463, 4
      %v3466 = vshll.u32 %v3417, 16
      %v3468 = vrot.slane %v3466, 5
      %v3469 = vor.u32 %v3465, %v3468
      %v3470 = vrot.slane %v3469, 4
      %v3472 = vshll.u32 %v3418, 16
      %v3474 = vrot.slane %v3472, 5
      %v3475 = vsel %vm662, %v3470, %v3474
      %v3476 = vshrl.u32 %v3418, 16
      %v3478 = vrot.slane %v3476, 4
      %v3479 = vor.u32 %v3478, %v3474
      %v3480 = vrot.slane %v3479, 4
      %v3482 = vshll.u32 %v3419, 16
      %v3484 = vrot.slane %v3482, 5
      %v3485 = vsel %vm662, %v3480, %v3484
      %v3487 = vshrl.u32 %v3420, 16
      %v3489 = vrot.slane %v3487, 4
      %v3490 = vshll.u32 %v3420, 16
      %v3492 = vrot.slane %v3490, 5
      %v3493 = vor.u32 %v3489, %v3492
      %v3494 = vrot.slane %v3493, 4
      %v3496 = vshll.u32 %v3421, 16
      %v3498 = vrot.slane %v3496, 5
      %v3499 = vsel %vm662, %v3494, %v3498
      %v3500 = vshrl.u32 %v3421, 16
      %v3502 = vrot.slane %v3500, 4
      %v3503 = vor.u32 %v3502, %v3498
      %v3504 = vrot.slane %v3503, 4
      %v3506 = vshll.u32 %v3422, 16
      %v3508 = vrot.slane %v3506, 5
      %v3509 = vsel %vm662, %v3504, %v3508
      %v3511 = vshrl.u32 %v3423, 16
      %v3513 = vrot.slane %v3511, 4
      %v3514 = vshll.u32 %v3423, 16
      %v3516 = vrot.slane %v3514, 5
      %v3517 = vor.u32 %v3513, %v3516
      %v3518 = vrot.slane %v3517, 4
      %v3520 = vshll.u32 %v3424, 16
      %v3522 = vrot.slane %v3520, 5
      %v3523 = vsel %vm662, %v3518, %v3522
      %v3524 = vshrl.u32 %v3424, 16
      %v3526 = vrot.slane %v3524, 4
      %v3527 = vor.u32 %v3526, %v3522
      %v3528 = vrot.slane %v3527, 4
      %v3530 = vshll.u32 %v3425, 16
      %v3532 = vrot.slane %v3530, 5
      %v3533 = vsel %vm662, %v3528, %v3532
      %v3535 = vshrl.u32 %v3426, 16
      %v3537 = vrot.slane %v3535, 4
      %v3538 = vshll.u32 %v3426, 16
      %v3540 = vrot.slane %v3538, 5
      %v3541 = vor.u32 %v3537, %v3540
      %v3542 = vrot.slane %v3541, 4
      %v3544 = vshll.u32 %v3427, 16
      %v3546 = vrot.slane %v3544, 5
      %v3547 = vsel %vm662, %v3542, %v3546
      %v3548 = vshrl.u32 %v3427, 16
      %v3550 = vrot.slane %v3548, 4
      %v3551 = vor.u32 %v3550, %v3546
      %v3552 = vrot.slane %v3551, 4
      %v3554 = vshll.u32 %v3428, 16
      %v3556 = vrot.slane %v3554, 5
      %v3557 = vsel %vm662, %v3552, %v3556
      %v3559 = vshrl.u32 %v3429, 16
      %v3561 = vrot.slane %v3559, 4
      %v3562 = vshll.u32 %v3429, 16
      %v3564 = vrot.slane %v3562, 5
      %v3565 = vor.u32 %v3561, %v3564
      %v3566 = vrot.slane %v3565, 4
      %v3568 = vshll.u32 %v3430, 16
      %v3570 = vrot.slane %v3568, 5
      %v3571 = vsel %vm662, %v3566, %v3570
      %v3572 = vshrl.u32 %v3430, 16
      %v3574 = vrot.slane %v3572, 4
      %v3575 = vor.u32 %v3574, %v3570
      %v3576 = vrot.slane %v3575, 4
      %v3578 = vshll.u32 %v3431, 16
      %v3580 = vrot.slane %v3578, 5
      %v3581 = vsel %vm662, %v3576, %v3580
      %v3583 = vshrl.u32 %v3432, 16
      %v3585 = vrot.slane %v3583, 4
      %v3586 = vshll.u32 %v3432, 16
      %v3588 = vrot.slane %v3586, 5
      %v3589 = vor.u32 %v3585, %v3588
      %v3590 = vrot.slane %v3589, 4
      %v3592 = vshll.u32 %v3433, 16
      %v3594 = vrot.slane %v3592, 5
      %v3595 = vsel %vm662, %v3590, %v3594
      %v3596 = vshrl.u32 %v3433, 16
      %v3598 = vrot.slane %v3596, 4
      %v3599 = vor.u32 %v3598, %v3594
      %v3600 = vrot.slane %v3599, 4
      %v3602 = vshll.u32 %v3434, 16
      %v3604 = vrot.slane %v3602, 5
      %v3605 = vsel %vm662, %v3600, %v3604
      %v3607 = vshrl.u32 %v3435, 16
      %v3609 = vrot.slane %v3607, 4
      %v3610 = vshll.u32 %v3435, 16
      %v3612 = vrot.slane %v3610, 5
      %v3613 = vor.u32 %v3609, %v3612
      %v3614 = vrot.slane %v3613, 4
      %v3616 = vshll.u32 %v3436, 16
      %v3618 = vrot.slane %v3616, 5
      %v3619 = vsel %vm662, %v3614, %v3618
      %v3620 = vshrl.u32 %v3436, 16
      %v3622 = vrot.slane %v3620, 4
      %v3623 = vor.u32 %v3622, %v3618
      %v3624 = vrot.slane %v3623, 4
      %v3626 = vshll.u32 %v3437, 16
      %v3628 = vrot.slane %v3626, 5
      %v3629 = vsel %vm662, %v3624, %v3628
      %v3630 = vld [vmem:[%s3129] sm:$0xf]
      %v3631 = vld [vmem:[%s3129 + $0x4] sm:$0xf]
      %v3632 = vld [vmem:[%s3129 + $0x8] sm:$0x1]
      %v3633 = vld [vmem:[%s3129 + $0xc] sm:$0xf]
      %v3634 = vld [vmem:[%s3129 + $0x10] sm:$0xf]
      %v3635 = vld [vmem:[%s3129 + $0x14] sm:$0x1]
      %v3636 = vld [vmem:[%s3129 + $0x18] sm:$0xf]
      %v3637 = vld [vmem:[%s3129 + $0x1c] sm:$0xf]
      %v3638 = vld [vmem:[%s3129 + $0x20] sm:$0x1]
      %v3639 = vld [vmem:[%s3129 + $0x24] sm:$0xf]
      %v3640 = vld [vmem:[%s3129 + $0x28] sm:$0xf]
      %v3641 = vld [vmem:[%s3129 + $0x2c] sm:$0x1]
      %v3642 = vld [vmem:[%s3129 + $0x30] sm:$0xf]
      %v3643 = vld [vmem:[%s3129 + $0x34] sm:$0xf]
      %v3644 = vld [vmem:[%s3129 + $0x38] sm:$0x1]
      %v3645 = vld [vmem:[%s3129 + $0x3c] sm:$0xf]
      %v3646 = vld [vmem:[%s3129 + $0x40] sm:$0xf]
      %v3647 = vld [vmem:[%s3129 + $0x44] sm:$0x1]
      %v3648 = vld [vmem:[%s3129 + $0x48] sm:$0xf]
      %v3649 = vld [vmem:[%s3129 + $0x4c] sm:$0xf]
      %v3650 = vld [vmem:[%s3129 + $0x50] sm:$0x1]
      %v3651 = vld [vmem:[%s3129 + $0x54] sm:$0xf]
      %v3652 = vld [vmem:[%s3129 + $0x58] sm:$0xf]
      %v3653 = vld [vmem:[%s3129 + $0x5c] sm:$0x1]
      %v3655 = vshrl.u32 %v3630, 16
      %v3657 = vrot.slane %v3655, 4
      %v3658 = vshll.u32 %v3630, 16
      %v3660 = vrot.slane %v3658, 5
      %v3661 = vor.u32 %v3657, %v3660
      %v3662 = vrot.slane %v3661, 4
      %v3664 = vshll.u32 %v3631, 16
      %v3666 = vrot.slane %v3664, 5
      %v3667 = vsel %vm662, %v3662, %v3666
      %v3668 = vshrl.u32 %v3631, 16
      %v3670 = vrot.slane %v3668, 4
      %v3671 = vor.u32 %v3670, %v3666
      %v3672 = vrot.slane %v3671, 4
      %v3674 = vshll.u32 %v3632, 16
      %v3676 = vrot.slane %v3674, 5
      %v3677 = vsel %vm662, %v3672, %v3676
      %v3679 = vshrl.u32 %v3633, 16
      %v3681 = vrot.slane %v3679, 4
      %v3682 = vshll.u32 %v3633, 16
      %v3684 = vrot.slane %v3682, 5
      %v3685 = vor.u32 %v3681, %v3684
      %v3686 = vrot.slane %v3685, 4
      %v3688 = vshll.u32 %v3634, 16
      %v3690 = vrot.slane %v3688, 5
      %v3691 = vsel %vm662, %v3686, %v3690
      %v3692 = vshrl.u32 %v3634, 16
      %v3694 = vrot.slane %v3692, 4
      %v3695 = vor.u32 %v3694, %v3690
      %v3696 = vrot.slane %v3695, 4
      %v3698 = vshll.u32 %v3635, 16
      %v3700 = vrot.slane %v3698, 5
      %v3701 = vsel %vm662, %v3696, %v3700
      %v3703 = vshrl.u32 %v3636, 16
      %v3705 = vrot.slane %v3703, 4
      %v3706 = vshll.u32 %v3636, 16
      %v3708 = vrot.slane %v3706, 5
      %v3709 = vor.u32 %v3705, %v3708
      %v3710 = vrot.slane %v3709, 4
      %v3712 = vshll.u32 %v3637, 16
      %v3714 = vrot.slane %v3712, 5
      %v3715 = vsel %vm662, %v3710, %v3714
      %v3716 = vshrl.u32 %v3637, 16
      %v3718 = vrot.slane %v3716, 4
      %v3719 = vor.u32 %v3718, %v3714
      %v3720 = vrot.slane %v3719, 4
      %v3722 = vshll.u32 %v3638, 16
      %v3724 = vrot.slane %v3722, 5
      %v3725 = vsel %vm662, %v3720, %v3724
      %v3727 = vshrl.u32 %v3639, 16
      %v3729 = vrot.slane %v3727, 4
      %v3730 = vshll.u32 %v3639, 16
      %v3732 = vrot.slane %v3730, 5
      %v3733 = vor.u32 %v3729, %v3732
      %v3734 = vrot.slane %v3733, 4
      %v3736 = vshll.u32 %v3640, 16
      %v3738 = vrot.slane %v3736, 5
      %v3739 = vsel %vm662, %v3734, %v3738
      %v3740 = vshrl.u32 %v3640, 16
      %v3742 = vrot.slane %v3740, 4
      %v3743 = vor.u32 %v3742, %v3738
      %v3744 = vrot.slane %v3743, 4
      %v3746 = vshll.u32 %v3641, 16
      %v3748 = vrot.slane %v3746, 5
      %v3749 = vsel %vm662, %v3744, %v3748
      %v3751 = vshrl.u32 %v3642, 16
      %v3753 = vrot.slane %v3751, 4
      %v3754 = vshll.u32 %v3642, 16
      %v3756 = vrot.slane %v3754, 5
      %v3757 = vor.u32 %v3753, %v3756
      %v3758 = vrot.slane %v3757, 4
      %v3760 = vshll.u32 %v3643, 16
      %v3762 = vrot.slane %v3760, 5
      %v3763 = vsel %vm662, %v3758, %v3762
      %v3764 = vshrl.u32 %v3643, 16
      %v3766 = vrot.slane %v3764, 4
      %v3767 = vor.u32 %v3766, %v3762
      %v3768 = vrot.slane %v3767, 4
      %v3770 = vshll.u32 %v3644, 16
      %v3772 = vrot.slane %v3770, 5
      %v3773 = vsel %vm662, %v3768, %v3772
      %v3775 = vshrl.u32 %v3645, 16
      %v3777 = vrot.slane %v3775, 4
      %v3778 = vshll.u32 %v3645, 16
      %v3780 = vrot.slane %v3778, 5
      %v3781 = vor.u32 %v3777, %v3780
      %v3782 = vrot.slane %v3781, 4
      %v3784 = vshll.u32 %v3646, 16
      %v3786 = vrot.slane %v3784, 5
      %v3787 = vsel %vm662, %v3782, %v3786
      %v3788 = vshrl.u32 %v3646, 16
      %v3790 = vrot.slane %v3788, 4
      %v3791 = vor.u32 %v3790, %v3786
      %v3792 = vrot.slane %v3791, 4
      %v3794 = vshll.u32 %v3647, 16
      %v3796 = vrot.slane %v3794, 5
      %v3797 = vsel %vm662, %v3792, %v3796
      %v3799 = vshrl.u32 %v3648, 16
      %v3801 = vrot.slane %v3799, 4
      %v3802 = vshll.u32 %v3648, 16
      %v3804 = vrot.slane %v3802, 5
      %v3805 = vor.u32 %v3801, %v3804
      %v3806 = vrot.slane %v3805, 4
      %v3808 = vshll.u32 %v3649, 16
      %v3810 = vrot.slane %v3808, 5
      %v3811 = vsel %vm662, %v3806, %v3810
      %v3812 = vshrl.u32 %v3649, 16
      %v3814 = vrot.slane %v3812, 4
      %v3815 = vor.u32 %v3814, %v3810
      %v3816 = vrot.slane %v3815, 4
      %v3818 = vshll.u32 %v3650, 16
      %v3820 = vrot.slane %v3818, 5
      %v3821 = vsel %vm662, %v3816, %v3820
      %v3823 = vshrl.u32 %v3651, 16
      %v3825 = vrot.slane %v3823, 4
      %v3826 = vshll.u32 %v3651, 16
      %v3828 = vrot.slane %v3826, 5
      %v3829 = vor.u32 %v3825, %v3828
      %v3830 = vrot.slane %v3829, 4
      %v3832 = vshll.u32 %v3652, 16
      %v3834 = vrot.slane %v3832, 5
      %v3835 = vsel %vm662, %v3830, %v3834
      %v3836 = vshrl.u32 %v3652, 16
      %v3838 = vrot.slane %v3836, 4
      %v3839 = vor.u32 %v3838, %v3834
      %v3840 = vrot.slane %v3839, 4
      %v3842 = vshll.u32 %v3653, 16
      %v3844 = vrot.slane %v3842, 5
      %v3845 = vsel %vm662, %v3840, %v3844
      %s3846 = scalar_lea.vmem %s2, 28
      %v3847 = vld [vmem:[%s3846] sm:$0xf]
      %v3848 = vunpack.c.l.b16 %v3451
      %v3849 = vunpack.c.l.b16 %v3461
      %v3850 = vunpack.c.l.b16 %v3475
      %v3851 = vunpack.c.l.b16 %v3485
      %v3852 = vunpack.c.l.b16 %v3499
      %v3853 = vunpack.c.l.b16 %v3509
      %v3854 = vunpack.c.l.b16 %v3523
      %v3855 = vunpack.c.l.b16 %v3533
      %v3856 = vunpack.c.l.b16 %v3547
      %v3857 = vunpack.c.l.b16 %v3557
      %v3858 = vunpack.c.l.b16 %v3571
      %v3859 = vunpack.c.l.b16 %v3581
      %v3860 = vunpack.c.l.b16 %v3595
      %v3861 = vunpack.c.l.b16 %v3605
      %v3862 = vunpack.c.l.b16 %v3619
      %v3863 = vunpack.c.l.b16 %v3629
      %v3864 = vpack.c.b16 %v3849, %v3848
      %v3865 = vpack.c.b16 %v3851, %v3850
      %v3866 = vpack.c.b16 %v3853, %v3852
      %v3867 = vpack.c.b16 %v3855, %v3854
      %v3868 = vpack.c.b16 %v3857, %v3856
      %v3869 = vpack.c.b16 %v3859, %v3858
      %v3870 = vpack.c.b16 %v3861, %v3860
      %v3871 = vpack.c.b16 %v3863, %v3862
      %v3873 = vsel %vm442, %v3864, 0
      %v3876 = vsel %vm442, %v3865, 0
      %v3879 = vsel %vm442, %v3866, 0
      %v3882 = vsel %vm442, %v3867, 0
      %v3885 = vsel %vm442, %v3868, 0
      %v3888 = vsel %vm442, %v3869, 0
      %v3891 = vsel %vm442, %v3870, 0
      %v3894 = vsel %vm442, %v3871, 0
      %v3897 = vsel %vm467, %v3847, 0
      %3899 = vmatpush.bf16.msra.mxu0 0
      %3900 = vmatpush.bf16.msra.mxu0 0
      %3901 = vmatpush.bf16.msra.mxu0 0
      %3902 = vmatpush.bf16.msra.mxu0 0
      %3903 = vmatpush.bf16.msra.mxu0 0
      %3904 = vmatpush.bf16.msra.mxu0 0
      %3905 = vmatpush.bf16.msra.mxu0 0
      %3906 = vmatpush.bf16.msra.mxu0 %v3897
      %3907 = vmatmul.bf16.gmra.mxu0 %v3873
      %v3908 = vpop.f32.mrf.mxu0
      %v3909 = vadd.f32 0.0, %v3908
      %v3910 = vpop.f32.mrf.mxu0
      %v3911 = vadd.f32 0.0, %v3910
      %3912 = vmatmul.bf16.gmra.mxu0 %v3876
      %v3913 = vpop.f32.mrf.mxu0
      %v3914 = vadd.f32 0.0, %v3913
      %v3915 = vpop.f32.mrf.mxu0
      %v3916 = vadd.f32 0.0, %v3915
      %3917 = vmatmul.bf16.gmra.mxu0 %v3879
      %v3918 = vpop.f32.mrf.mxu0
      %v3919 = vadd.f32 0.0, %v3918
      %v3920 = vpop.f32.mrf.mxu0
      %v3921 = vadd.f32 0.0, %v3920
      %3922 = vmatmul.bf16.gmra.mxu0 %v3882
      %v3923 = vpop.f32.mrf.mxu0
      %v3924 = vadd.f32 0.0, %v3923
      %v3925 = vpop.f32.mrf.mxu0
      %v3926 = vadd.f32 0.0, %v3925
      %3927 = vmatmul.bf16.gmra.mxu0 %v3885
      %v3928 = vpop.f32.mrf.mxu0
      %v3929 = vadd.f32 0.0, %v3928
      %v3930 = vpop.f32.mrf.mxu0
      %v3931 = vadd.f32 0.0, %v3930
      %3932 = vmatmul.bf16.gmra.mxu0 %v3888
      %v3933 = vpop.f32.mrf.mxu0
      %v3934 = vadd.f32 0.0, %v3933
      %v3935 = vpop.f32.mrf.mxu0
      %v3936 = vadd.f32 0.0, %v3935
      %3937 = vmatmul.bf16.gmra.mxu0 %v3891
      %v3938 = vpop.f32.mrf.mxu0
      %v3939 = vadd.f32 0.0, %v3938
      %v3940 = vpop.f32.mrf.mxu0
      %v3941 = vadd.f32 0.0, %v3940
      %3942 = vmatmul.bf16.gmra.mxu0 %v3894
      %v3943 = vpop.f32.mrf.mxu0
      %v3944 = vadd.f32 0.0, %v3943
      %v3945 = vpop.f32.mrf.mxu0
      %v3946 = vadd.f32 0.0, %v3945
      %3947 = vdwg.mxu0
      %v3948 = vadd.f32 %v3398, %v3909
      %v3949 = vadd.f32 %v3399, %v3911
      %v3950 = vadd.f32 %v3400, %v3914
      %v3951 = vadd.f32 %v3401, %v3916
      %v3952 = vadd.f32 %v3402, %v3919
      %v3953 = vadd.f32 %v3403, %v3921
      %v3954 = vadd.f32 %v3404, %v3924
      %v3955 = vadd.f32 %v3405, %v3926
      %v3956 = vadd.f32 %v3406, %v3929
      %v3957 = vadd.f32 %v3407, %v3931
      %v3958 = vadd.f32 %v3408, %v3934
      %v3959 = vadd.f32 %v3409, %v3936
      %v3960 = vadd.f32 %v3410, %v3939
      %v3961 = vadd.f32 %v3411, %v3941
      %v3962 = vadd.f32 %v3412, %v3944
      %v3963 = vadd.f32 %v3413, %v3946
      %s3964 = scalar_lea.vmem %s3, 28
      %v3965 = vld [vmem:[%s3964] sm:$0xf]
      %v3966 = vunpack.c.l.b16 %v3667
      %v3967 = vunpack.c.l.b16 %v3677
      %v3968 = vunpack.c.l.b16 %v3691
      %v3969 = vunpack.c.l.b16 %v3701
      %v3970 = vunpack.c.l.b16 %v3715
      %v3971 = vunpack.c.l.b16 %v3725
      %v3972 = vunpack.c.l.b16 %v3739
      %v3973 = vunpack.c.l.b16 %v3749
      %v3974 = vunpack.c.l.b16 %v3763
      %v3975 = vunpack.c.l.b16 %v3773
      %v3976 = vunpack.c.l.b16 %v3787
      %v3977 = vunpack.c.l.b16 %v3797
      %v3978 = vunpack.c.l.b16 %v3811
      %v3979 = vunpack.c.l.b16 %v3821
      %v3980 = vunpack.c.l.b16 %v3835
      %v3981 = vunpack.c.l.b16 %v3845
      %v3982 = vpack.c.b16 %v3967, %v3966
      %v3983 = vpack.c.b16 %v3969, %v3968
      %v3984 = vpack.c.b16 %v3971, %v3970
      %v3985 = vpack.c.b16 %v3973, %v3972
      %v3986 = vpack.c.b16 %v3975, %v3974
      %v3987 = vpack.c.b16 %v3977, %v3976
      %v3988 = vpack.c.b16 %v3979, %v3978
      %v3989 = vpack.c.b16 %v3981, %v3980
      %v3991 = vsel %vm442, %v3982, 0
      %v3994 = vsel %vm442, %v3983, 0
      %v3997 = vsel %vm442, %v3984, 0
      %v4000 = vsel %vm442, %v3985, 0
      %v4003 = vsel %vm442, %v3986, 0
      %v4006 = vsel %vm442, %v3987, 0
      %v4009 = vsel %vm442, %v3988, 0
      %v4012 = vsel %vm442, %v3989, 0
      %v4015 = vsel %vm467, %v3965, 0
      %4017 = vmatpush.bf16.msra.mxu0 0
      %4018 = vmatpush.bf16.msra.mxu0 0
      %4019 = vmatpush.bf16.msra.mxu0 0
      %4020 = vmatpush.bf16.msra.mxu0 0
      %4021 = vmatpush.bf16.msra.mxu0 0
      %4022 = vmatpush.bf16.msra.mxu0 0
      %4023 = vmatpush.bf16.msra.mxu0 0
      %4024 = vmatpush.bf16.msra.mxu0 %v4015
      %4025 = vmatmul.bf16.gmra.mxu0 %v3991
      %v4026 = vpop.f32.mrf.mxu0
      %v4027 = vadd.f32 0.0, %v4026
      %v4028 = vpop.f32.mrf.mxu0
      %v4029 = vadd.f32 0.0, %v4028
      %4030 = vmatmul.bf16.gmra.mxu0 %v3994
      %v4031 = vpop.f32.mrf.mxu0
      %v4032 = vadd.f32 0.0, %v4031
      %v4033 = vpop.f32.mrf.mxu0
      %v4034 = vadd.f32 0.0, %v4033
      %4035 = vmatmul.bf16.gmra.mxu0 %v3997
      %v4036 = vpop.f32.mrf.mxu0
      %v4037 = vadd.f32 0.0, %v4036
      %v4038 = vpop.f32.mrf.mxu0
      %v4039 = vadd.f32 0.0, %v4038
      %4040 = vmatmul.bf16.gmra.mxu0 %v4000
      %v4041 = vpop.f32.mrf.mxu0
      %v4042 = vadd.f32 0.0, %v4041
      %v4043 = vpop.f32.mrf.mxu0
      %v4044 = vadd.f32 0.0, %v4043
      %4045 = vmatmul.bf16.gmra.mxu0 %v4003
      %v4046 = vpop.f32.mrf.mxu0
      %v4047 = vadd.f32 0.0, %v4046
      %v4048 = vpop.f32.mrf.mxu0
      %v4049 = vadd.f32 0.0, %v4048
      %4050 = vmatmul.bf16.gmra.mxu0 %v4006
      %v4051 = vpop.f32.mrf.mxu0
      %v4052 = vadd.f32 0.0, %v4051
      %v4053 = vpop.f32.mrf.mxu0
      %v4054 = vadd.f32 0.0, %v4053
      %4055 = vmatmul.bf16.gmra.mxu0 %v4009
      %v4056 = vpop.f32.mrf.mxu0
      %v4057 = vadd.f32 0.0, %v4056
      %v4058 = vpop.f32.mrf.mxu0
      %v4059 = vadd.f32 0.0, %v4058
      %4060 = vmatmul.bf16.gmra.mxu0 %v4012
      %v4061 = vpop.f32.mrf.mxu0
      %v4062 = vadd.f32 0.0, %v4061
      %v4063 = vpop.f32.mrf.mxu0
      %v4064 = vadd.f32 0.0, %v4063
      %4065 = vdwg.mxu0
      %v4066 = vadd.f32 %v3948, %v4027
      %v4067 = vadd.f32 %v3949, %v4029
      %v4068 = vadd.f32 %v3950, %v4032
      %v4069 = vadd.f32 %v3951, %v4034
      %v4070 = vadd.f32 %v3952, %v4037
      %v4071 = vadd.f32 %v3953, %v4039
      %v4072 = vadd.f32 %v3954, %v4042
      %v4073 = vadd.f32 %v3955, %v4044
      %v4074 = vadd.f32 %v3956, %v4047
      %v4075 = vadd.f32 %v3957, %v4049
      %v4076 = vadd.f32 %v3958, %v4052
      %v4077 = vadd.f32 %v3959, %v4054
      %v4078 = vadd.f32 %v3960, %v4057
      %v4079 = vadd.f32 %v3961, %v4059
      %v4080 = vadd.f32 %v3962, %v4062
      %v4081 = vadd.f32 %v3963, %v4064
      %v4082 = vld [vmem:[%s3111] sm:$0xe]
      %v4083 = vld [vmem:[%s3111 + $0xc] sm:$0xe]
      %v4084 = vld [vmem:[%s3111 + $0x18] sm:$0xe]
      %v4085 = vld [vmem:[%s3111 + $0x24] sm:$0xe]
      %v4086 = vld [vmem:[%s3111 + $0x30] sm:$0xe]
      %v4087 = vld [vmem:[%s3111 + $0x3c] sm:$0xe]
      %v4088 = vld [vmem:[%s3111 + $0x48] sm:$0xe]
      %v4089 = vld [vmem:[%s3111 + $0x54] sm:$0xe]
      %v4114 = vrot.slane %v4082, 5
      %v4115 = vrot.slane %v4114, 4
      %v4116 = vrot.slane %v3415, 5
      %v4117 = vsel %vm1341, %v4115, %v4116
      %v4118 = vrot.slane %v4116, 4
      %v4119 = vrot.slane %v3416, 5
      %v4120 = vsel %vm1341, %v4118, %v4119
      %v4121 = vrot.slane %v4083, 5
      %v4122 = vrot.slane %v4121, 4
      %v4123 = vrot.slane %v3418, 5
      %v4124 = vsel %vm1341, %v4122, %v4123
      %v4125 = vrot.slane %v4123, 4
      %v4126 = vrot.slane %v3419, 5
      %v4127 = vsel %vm1341, %v4125, %v4126
      %v4128 = vrot.slane %v4084, 5
      %v4129 = vrot.slane %v4128, 4
      %v4130 = vrot.slane %v3421, 5
      %v4131 = vsel %vm1341, %v4129, %v4130
      %v4132 = vrot.slane %v4130, 4
      %v4133 = vrot.slane %v3422, 5
      %v4134 = vsel %vm1341, %v4132, %v4133
      %v4135 = vrot.slane %v4085, 5
      %v4136 = vrot.slane %v4135, 4
      %v4137 = vrot.slane %v3424, 5
      %v4138 = vsel %vm1341, %v4136, %v4137
      %v4139 = vrot.slane %v4137, 4
      %v4140 = vrot.slane %v3425, 5
      %v4141 = vsel %vm1341, %v4139, %v4140
      %v4142 = vrot.slane %v4086, 5
      %v4143 = vrot.slane %v4142, 4
      %v4144 = vrot.slane %v3427, 5
      %v4145 = vsel %vm1341, %v4143, %v4144
      %v4146 = vrot.slane %v4144, 4
      %v4147 = vrot.slane %v3428, 5
      %v4148 = vsel %vm1341, %v4146, %v4147
      %v4149 = vrot.slane %v4087, 5
      %v4150 = vrot.slane %v4149, 4
      %v4151 = vrot.slane %v3430, 5
      %v4152 = vsel %vm1341, %v4150, %v4151
      %v4153 = vrot.slane %v4151, 4
      %v4154 = vrot.slane %v3431, 5
      %v4155 = vsel %vm1341, %v4153, %v4154
      %v4156 = vrot.slane %v4088, 5
      %v4157 = vrot.slane %v4156, 4
      %v4158 = vrot.slane %v3433, 5
      %v4159 = vsel %vm1341, %v4157, %v4158
      %v4160 = vrot.slane %v4158, 4
      %v4161 = vrot.slane %v3434, 5
      %v4162 = vsel %vm1341, %v4160, %v4161
      %v4163 = vrot.slane %v4089, 5
      %v4164 = vrot.slane %v4163, 4
      %v4165 = vrot.slane %v3436, 5
      %v4166 = vsel %vm1341, %v4164, %v4165
      %v4167 = vrot.slane %v4165, 4
      %v4168 = vrot.slane %v3437, 5
      %v4169 = vsel %vm1341, %v4167, %v4168
      %v4170 = vld [vmem:[%s3129] sm:$0xe]
      %v4171 = vld [vmem:[%s3129 + $0xc] sm:$0xe]
      %v4172 = vld [vmem:[%s3129 + $0x18] sm:$0xe]
      %v4173 = vld [vmem:[%s3129 + $0x24] sm:$0xe]
      %v4174 = vld [vmem:[%s3129 + $0x30] sm:$0xe]
      %v4175 = vld [vmem:[%s3129 + $0x3c] sm:$0xe]
      %v4176 = vld [vmem:[%s3129 + $0x48] sm:$0xe]
      %v4177 = vld [vmem:[%s3129 + $0x54] sm:$0xe]
      %v4202 = vrot.slane %v4170, 5
      %v4203 = vrot.slane %v4202, 4
      %v4204 = vrot.slane %v3631, 5
      %v4205 = vsel %vm1341, %v4203, %v4204
      %v4206 = vrot.slane %v4204, 4
      %v4207 = vrot.slane %v3632, 5
      %v4208 = vsel %vm1341, %v4206, %v4207
      %v4209 = vrot.slane %v4171, 5
      %v4210 = vrot.slane %v4209, 4
      %v4211 = vrot.slane %v3634, 5
      %v4212 = vsel %vm1341, %v4210, %v4211
      %v4213 = vrot.slane %v4211, 4
      %v4214 = vrot.slane %v3635, 5
      %v4215 = vsel %vm1341, %v4213, %v4214
      %v4216 = vrot.slane %v4172, 5
      %v4217 = vrot.slane %v4216, 4
      %v4218 = vrot.slane %v3637, 5
      %v4219 = vsel %vm1341, %v4217, %v4218
      %v4220 = vrot.slane %v4218, 4
      %v4221 = vrot.slane %v3638, 5
      %v4222 = vsel %vm1341, %v4220, %v4221
      %v4223 = vrot.slane %v4173, 5
      %v4224 = vrot.slane %v4223, 4
      %v4225 = vrot.slane %v3640, 5
      %v4226 = vsel %vm1341, %v4224, %v4225
      %v4227 = vrot.slane %v4225, 4
      %v4228 = vrot.slane %v3641, 5
      %v4229 = vsel %vm1341, %v4227, %v4228
      %v4230 = vrot.slane %v4174, 5
      %v4231 = vrot.slane %v4230, 4
      %v4232 = vrot.slane %v3643, 5
      %v4233 = vsel %vm1341, %v4231, %v4232
      %v4234 = vrot.slane %v4232, 4
      %v4235 = vrot.slane %v3644, 5
      %v4236 = vsel %vm1341, %v4234, %v4235
      %v4237 = vrot.slane %v4175, 5
      %v4238 = vrot.slane %v4237, 4
      %v4239 = vrot.slane %v3646, 5
      %v4240 = vsel %vm1341, %v4238, %v4239
      %v4241 = vrot.slane %v4239, 4
      %v4242 = vrot.slane %v3647, 5
      %v4243 = vsel %vm1341, %v4241, %v4242
      %v4244 = vrot.slane %v4176, 5
      %v4245 = vrot.slane %v4244, 4
      %v4246 = vrot.slane %v3649, 5
      %v4247 = vsel %vm1341, %v4245, %v4246
      %v4248 = vrot.slane %v4246, 4
      %v4249 = vrot.slane %v3650, 5
      %v4250 = vsel %vm1341, %v4248, %v4249
      %v4251 = vrot.slane %v4177, 5
      %v4252 = vrot.slane %v4251, 4
      %v4253 = vrot.slane %v3652, 5
      %v4254 = vsel %vm1341, %v4252, %v4253
      %v4255 = vrot.slane %v4253, 4
      %v4256 = vrot.slane %v3653, 5
      %v4257 = vsel %vm1341, %v4255, %v4256
      %s4258 = scalar_lea.vmem %s2, 32
      %v4259 = vld [vmem:[%s4258] sm:$0xf]
      %v4260 = vunpack.c.l.b16 %v4117
      %v4261 = vunpack.c.l.b16 %v4120
      %v4262 = vunpack.c.l.b16 %v4124
      %v4263 = vunpack.c.l.b16 %v4127
      %v4264 = vunpack.c.l.b16 %v4131
      %v4265 = vunpack.c.l.b16 %v4134
      %v4266 = vunpack.c.l.b16 %v4138
      %v4267 = vunpack.c.l.b16 %v4141
      %v4268 = vunpack.c.l.b16 %v4145
      %v4269 = vunpack.c.l.b16 %v4148
      %v4270 = vunpack.c.l.b16 %v4152
      %v4271 = vunpack.c.l.b16 %v4155
      %v4272 = vunpack.c.l.b16 %v4159
      %v4273 = vunpack.c.l.b16 %v4162
      %v4274 = vunpack.c.l.b16 %v4166
      %v4275 = vunpack.c.l.b16 %v4169
      %v4276 = vpack.c.b16 %v4261, %v4260
      %v4277 = vpack.c.b16 %v4263, %v4262
      %v4278 = vpack.c.b16 %v4265, %v4264
      %v4279 = vpack.c.b16 %v4267, %v4266
      %v4280 = vpack.c.b16 %v4269, %v4268
      %v4281 = vpack.c.b16 %v4271, %v4270
      %v4282 = vpack.c.b16 %v4273, %v4272
      %v4283 = vpack.c.b16 %v4275, %v4274
      %v4285 = vsel %vm442, %v4276, 0
      %v4288 = vsel %vm442, %v4277, 0
      %v4291 = vsel %vm442, %v4278, 0
      %v4294 = vsel %vm442, %v4279, 0
      %v4297 = vsel %vm442, %v4280, 0
      %v4300 = vsel %vm442, %v4281, 0
      %v4303 = vsel %vm442, %v4282, 0
      %v4306 = vsel %vm442, %v4283, 0
      %v4309 = vsel %vm467, %v4259, 0
      %4311 = vmatpush.bf16.msra.mxu0 0
      %4312 = vmatpush.bf16.msra.mxu0 0
      %4313 = vmatpush.bf16.msra.mxu0 0
      %4314 = vmatpush.bf16.msra.mxu0 0
      %4315 = vmatpush.bf16.msra.mxu0 0
      %4316 = vmatpush.bf16.msra.mxu0 0
      %4317 = vmatpush.bf16.msra.mxu0 0
      %4318 = vmatpush.bf16.msra.mxu0 %v4309
      %4319 = vmatmul.bf16.gmra.mxu0 %v4285
      %v4320 = vpop.f32.mrf.mxu0
      %v4321 = vadd.f32 0.0, %v4320
      %v4322 = vpop.f32.mrf.mxu0
      %v4323 = vadd.f32 0.0, %v4322
      %4324 = vmatmul.bf16.gmra.mxu0 %v4288
      %v4325 = vpop.f32.mrf.mxu0
      %v4326 = vadd.f32 0.0, %v4325
      %v4327 = vpop.f32.mrf.mxu0
      %v4328 = vadd.f32 0.0, %v4327
      %4329 = vmatmul.bf16.gmra.mxu0 %v4291
      %v4330 = vpop.f32.mrf.mxu0
      %v4331 = vadd.f32 0.0, %v4330
      %v4332 = vpop.f32.mrf.mxu0
      %v4333 = vadd.f32 0.0, %v4332
      %4334 = vmatmul.bf16.gmra.mxu0 %v4294
      %v4335 = vpop.f32.mrf.mxu0
      %v4336 = vadd.f32 0.0, %v4335
      %v4337 = vpop.f32.mrf.mxu0
      %v4338 = vadd.f32 0.0, %v4337
      %4339 = vmatmul.bf16.gmra.mxu0 %v4297
      %v4340 = vpop.f32.mrf.mxu0
      %v4341 = vadd.f32 0.0, %v4340
      %v4342 = vpop.f32.mrf.mxu0
      %v4343 = vadd.f32 0.0, %v4342
      %4344 = vmatmul.bf16.gmra.mxu0 %v4300
      %v4345 = vpop.f32.mrf.mxu0
      %v4346 = vadd.f32 0.0, %v4345
      %v4347 = vpop.f32.mrf.mxu0
      %v4348 = vadd.f32 0.0, %v4347
      %4349 = vmatmul.bf16.gmra.mxu0 %v4303
      %v4350 = vpop.f32.mrf.mxu0
      %v4351 = vadd.f32 0.0, %v4350
      %v4352 = vpop.f32.mrf.mxu0
      %v4353 = vadd.f32 0.0, %v4352
      %4354 = vmatmul.bf16.gmra.mxu0 %v4306
      %v4355 = vpop.f32.mrf.mxu0
      %v4356 = vadd.f32 0.0, %v4355
      %v4357 = vpop.f32.mrf.mxu0
      %v4358 = vadd.f32 0.0, %v4357
      %4359 = vdwg.mxu0
      %v4360 = vadd.f32 %v4066, %v4321
      %v4361 = vadd.f32 %v4067, %v4323
      %v4362 = vadd.f32 %v4068, %v4326
      %v4363 = vadd.f32 %v4069, %v4328
      %v4364 = vadd.f32 %v4070, %v4331
      %v4365 = vadd.f32 %v4071, %v4333
      %v4366 = vadd.f32 %v4072, %v4336
      %v4367 = vadd.f32 %v4073, %v4338
      %v4368 = vadd.f32 %v4074, %v4341
      %v4369 = vadd.f32 %v4075, %v4343
      %v4370 = vadd.f32 %v4076, %v4346
      %v4371 = vadd.f32 %v4077, %v4348
      %v4372 = vadd.f32 %v4078, %v4351
      %v4373 = vadd.f32 %v4079, %v4353
      %v4374 = vadd.f32 %v4080, %v4356
      %v4375 = vadd.f32 %v4081, %v4358
      %s4376 = scalar_lea.vmem %s3, 32
      %v4377 = vld [vmem:[%s4376] sm:$0xf]
      %v4378 = vunpack.c.l.b16 %v4205
      %v4379 = vunpack.c.l.b16 %v4208
      %v4380 = vunpack.c.l.b16 %v4212
      %v4381 = vunpack.c.l.b16 %v4215
      %v4382 = vunpack.c.l.b16 %v4219
      %v4383 = vunpack.c.l.b16 %v4222
      %v4384 = vunpack.c.l.b16 %v4226
      %v4385 = vunpack.c.l.b16 %v4229
      %v4386 = vunpack.c.l.b16 %v4233
      %v4387 = vunpack.c.l.b16 %v4236
      %v4388 = vunpack.c.l.b16 %v4240
      %v4389 = vunpack.c.l.b16 %v4243
      %v4390 = vunpack.c.l.b16 %v4247
      %v4391 = vunpack.c.l.b16 %v4250
      %v4392 = vunpack.c.l.b16 %v4254
      %v4393 = vunpack.c.l.b16 %v4257
      %v4394 = vpack.c.b16 %v4379, %v4378
      %v4395 = vpack.c.b16 %v4381, %v4380
      %v4396 = vpack.c.b16 %v4383, %v4382
      %v4397 = vpack.c.b16 %v4385, %v4384
      %v4398 = vpack.c.b16 %v4387, %v4386
      %v4399 = vpack.c.b16 %v4389, %v4388
      %v4400 = vpack.c.b16 %v4391, %v4390
      %v4401 = vpack.c.b16 %v4393, %v4392
      %v4403 = vsel %vm442, %v4394, 0
      %v4406 = vsel %vm442, %v4395, 0
      %v4409 = vsel %vm442, %v4396, 0
      %v4412 = vsel %vm442, %v4397, 0
      %v4415 = vsel %vm442, %v4398, 0
      %v4418 = vsel %vm442, %v4399, 0
      %v4421 = vsel %vm442, %v4400, 0
      %v4424 = vsel %vm442, %v4401, 0
      %v4427 = vsel %vm467, %v4377, 0
      %4429 = vmatpush.bf16.msra.mxu0 0
      %4430 = vmatpush.bf16.msra.mxu0 0
      %4431 = vmatpush.bf16.msra.mxu0 0
      %4432 = vmatpush.bf16.msra.mxu0 0
      %4433 = vmatpush.bf16.msra.mxu0 0
      %4434 = vmatpush.bf16.msra.mxu0 0
      %4435 = vmatpush.bf16.msra.mxu0 0
      %4436 = vmatpush.bf16.msra.mxu0 %v4427
      %4437 = vmatmul.bf16.gmra.mxu0 %v4403
      %v4438 = vpop.f32.mrf.mxu0
      %v4439 = vadd.f32 0.0, %v4438
      %v4440 = vpop.f32.mrf.mxu0
      %v4441 = vadd.f32 0.0, %v4440
      %4442 = vmatmul.bf16.gmra.mxu0 %v4406
      %v4443 = vpop.f32.mrf.mxu0
      %v4444 = vadd.f32 0.0, %v4443
      %v4445 = vpop.f32.mrf.mxu0
      %v4446 = vadd.f32 0.0, %v4445
      %4447 = vmatmul.bf16.gmra.mxu0 %v4409
      %v4448 = vpop.f32.mrf.mxu0
      %v4449 = vadd.f32 0.0, %v4448
      %v4450 = vpop.f32.mrf.mxu0
      %v4451 = vadd.f32 0.0, %v4450
      %4452 = vmatmul.bf16.gmra.mxu0 %v4412
      %v4453 = vpop.f32.mrf.mxu0
      %v4454 = vadd.f32 0.0, %v4453
      %v4455 = vpop.f32.mrf.mxu0
      %v4456 = vadd.f32 0.0, %v4455
      %4457 = vmatmul.bf16.gmra.mxu0 %v4415
      %v4458 = vpop.f32.mrf.mxu0
      %v4459 = vadd.f32 0.0, %v4458
      %v4460 = vpop.f32.mrf.mxu0
      %v4461 = vadd.f32 0.0, %v4460
      %4462 = vmatmul.bf16.gmra.mxu0 %v4418
      %v4463 = vpop.f32.mrf.mxu0
      %v4464 = vadd.f32 0.0, %v4463
      %v4465 = vpop.f32.mrf.mxu0
      %v4466 = vadd.f32 0.0, %v4465
      %4467 = vmatmul.bf16.gmra.mxu0 %v4421
      %v4468 = vpop.f32.mrf.mxu0
      %v4469 = vadd.f32 0.0, %v4468
      %v4470 = vpop.f32.mrf.mxu0
      %v4471 = vadd.f32 0.0, %v4470
      %4472 = vmatmul.bf16.gmra.mxu0 %v4424
      %v4473 = vpop.f32.mrf.mxu0
      %v4474 = vadd.f32 0.0, %v4473
      %v4475 = vpop.f32.mrf.mxu0
      %v4476 = vadd.f32 0.0, %v4475
      %4477 = vdwg.mxu0
      %v4478 = vadd.f32 %v4360, %v4439
      %v4479 = vadd.f32 %v4361, %v4441
      %v4480 = vadd.f32 %v4362, %v4444
      %v4481 = vadd.f32 %v4363, %v4446
      %v4482 = vadd.f32 %v4364, %v4449
      %v4483 = vadd.f32 %v4365, %v4451
      %v4484 = vadd.f32 %v4366, %v4454
      %v4485 = vadd.f32 %v4367, %v4456
      %v4486 = vadd.f32 %v4368, %v4459
      %v4487 = vadd.f32 %v4369, %v4461
      %v4488 = vadd.f32 %v4370, %v4464
      %v4489 = vadd.f32 %v4371, %v4466
      %v4490 = vadd.f32 %v4372, %v4469
      %v4491 = vadd.f32 %v4373, %v4471
      %v4492 = vadd.f32 %v4374, %v4474
      %v4493 = vadd.f32 %v4375, %v4476
      %v4494 = vld [vmem:[%s4] sm:$0x1]
      %v4496 = vperm.slane %v4494, 0
      %v4498 = vadd.f32 %v4478, %v4496
      %v4499 = vadd.f32 %v4479, %v4496
      %v4500 = vadd.f32 %v4480, %v4496
      %v4501 = vadd.f32 %v4481, %v4496
      %v4502 = vadd.f32 %v4482, %v4496
      %v4503 = vadd.f32 %v4483, %v4496
      %v4504 = vadd.f32 %v4484, %v4496
      %v4505 = vadd.f32 %v4485, %v4496
      %v4506 = vadd.f32 %v4486, %v4496
      %v4507 = vadd.f32 %v4487, %v4496
      %v4508 = vadd.f32 %v4488, %v4496
      %v4509 = vadd.f32 %v4489, %v4496
      %v4510 = vadd.f32 %v4490, %v4496
      %v4511 = vadd.f32 %v4491, %v4496
      %v4512 = vadd.f32 %v4492, %v4496
      %v4513 = vadd.f32 %v4493, %v4496
      %4514 = vst.msk [vmem:[%s345] sm:$0xff] %vm442, %v4498
      %4515 = vst.msk [vmem:[%s345 + $0x8] sm:$0xff] %vm442, %v4499
      %4516 = vst.msk [vmem:[%s345 + $0x10] sm:$0xff] %vm442, %v4500
      %4517 = vst.msk [vmem:[%s345 + $0x18] sm:$0xff] %vm442, %v4501
      %4518 = vst.msk [vmem:[%s345 + $0x20] sm:$0xff] %vm442, %v4502
      %4519 = vst.msk [vmem:[%s345 + $0x28] sm:$0xff] %vm442, %v4503
      %4520 = vst.msk [vmem:[%s345 + $0x30] sm:$0xff] %vm442, %v4504
      %4521 = vst.msk [vmem:[%s345 + $0x38] sm:$0xff] %vm442, %v4505
      %4522 = vst.msk [vmem:[%s345 + $0x40] sm:$0xff] %vm442, %v4506
      %4523 = vst.msk [vmem:[%s345 + $0x48] sm:$0xff] %vm442, %v4507
      %4524 = vst.msk [vmem:[%s345 + $0x50] sm:$0xff] %vm442, %v4508
      %4525 = vst.msk [vmem:[%s345 + $0x58] sm:$0xff] %vm442, %v4509
      %4526 = vst.msk [vmem:[%s345 + $0x60] sm:$0xff] %vm442, %v4510
      %4527 = vst.msk [vmem:[%s345 + $0x68] sm:$0xff] %vm442, %v4511
      %4528 = vst.msk [vmem:[%s345 + $0x70] sm:$0xff] %vm442, %v4512
      %4529 = vst.msk [vmem:[%s345 + $0x78] sm:$0xff] %vm442, %v4513
      %v4530 = vsel %vm442, %v4498, 0.0
      %v4531 = vsel %vm442, %v4499, 0.0
      %v4532 = vadd.f32 %v4530, %v4531
      %v4533 = vsel %vm442, %v4500, 0.0
      %v4534 = vadd.f32 %v4532, %v4533
      %v4535 = vsel %vm442, %v4501, 0.0
      %v4536 = vadd.f32 %v4534, %v4535
      %v4537 = vsel %vm442, %v4502, 0.0
      %v4538 = vadd.f32 %v4536, %v4537
      %v4539 = vsel %vm442, %v4503, 0.0
      %v4540 = vadd.f32 %v4538, %v4539
      %v4541 = vsel %vm442, %v4504, 0.0
      %v4542 = vadd.f32 %v4540, %v4541
      %v4543 = vsel %vm442, %v4505, 0.0
      %v4544 = vadd.f32 %v4542, %v4543
      %v4545 = vsel %vm442, %v4506, 0.0
      %v4546 = vadd.f32 %v4544, %v4545
      %v4547 = vsel %vm442, %v4507, 0.0
      %v4548 = vadd.f32 %v4546, %v4547
      %v4549 = vsel %vm442, %v4508, 0.0
      %v4550 = vadd.f32 %v4548, %v4549
      %v4551 = vsel %vm442, %v4509, 0.0
      %v4552 = vadd.f32 %v4550, %v4551
      %v4553 = vsel %vm442, %v4510, 0.0
      %v4554 = vadd.f32 %v4552, %v4553
      %v4555 = vsel %vm442, %v4511, 0.0
      %v4556 = vadd.f32 %v4554, %v4555
      %v4557 = vsel %vm442, %v4512, 0.0
      %v4558 = vadd.f32 %v4556, %v4557
      %v4559 = vsel %vm442, %v4513, 0.0
      %v4560 = vadd.f32 %v4558, %v4559
      %v4561 = vrot.slane %v4560, 4
      %v4562 = vadd.f32 %v4560, %v4561
      %v4563 = vrot.slane %v4562, 2
      %v4564 = vadd.f32 %v4562, %v4563
      %v4565 = vrot.slane %v4564, 1
      %v4566 = vadd.f32 %v4564, %v4565
      %vm4567 = vcmask 57344
      %4568 = vst.msk [vmem:[%s353] sm:$0x1] %vm4567, %v4566
      %v4569 = vmul.f32 %v4498, %v4498
      %v4570 = vmul.f32 %v4499, %v4499
      %v4571 = vmul.f32 %v4500, %v4500
      %v4572 = vmul.f32 %v4501, %v4501
      %v4573 = vmul.f32 %v4502, %v4502
      %v4574 = vmul.f32 %v4503, %v4503
      %v4575 = vmul.f32 %v4504, %v4504
      %v4576 = vmul.f32 %v4505, %v4505
      %v4577 = vmul.f32 %v4506, %v4506
      %v4578 = vmul.f32 %v4507, %v4507
      %v4579 = vmul.f32 %v4508, %v4508
      %v4580 = vmul.f32 %v4509, %v4509
      %v4581 = vmul.f32 %v4510, %v4510
      %v4582 = vmul.f32 %v4511, %v4511
      %v4583 = vmul.f32 %v4512, %v4512
      %v4584 = vmul.f32 %v4513, %v4513
      %v4585 = vsel %vm442, %v4569, 0.0
      %v4586 = vsel %vm442, %v4570, 0.0
      %v4587 = vadd.f32 %v4585, %v4586
      %v4588 = vsel %vm442, %v4571, 0.0
      %v4589 = vadd.f32 %v4587, %v4588
      %v4590 = vsel %vm442, %v4572, 0.0
      %v4591 = vadd.f32 %v4589, %v4590
      %v4592 = vsel %vm442, %v4573, 0.0
      %v4593 = vadd.f32 %v4591, %v4592
      %v4594 = vsel %vm442, %v4574, 0.0
      %v4595 = vadd.f32 %v4593, %v4594
      %v4596 = vsel %vm442, %v4575, 0.0
      %v4597 = vadd.f32 %v4595, %v4596
      %v4598 = vsel %vm442, %v4576, 0.0
      %v4599 = vadd.f32 %v4597, %v4598
      %v4600 = vsel %vm442, %v4577, 0.0
      %v4601 = vadd.f32 %v4599, %v4600
      %v4602 = vsel %vm442, %v4578, 0.0
      %v4603 = vadd.f32 %v4601, %v4602
      %v4604 = vsel %vm442, %v4579, 0.0
      %v4605 = vadd.f32 %v4603, %v4604
      %v4606 = vsel %vm442, %v4580, 0.0
      %v4607 = vadd.f32 %v4605, %v4606
      %v4608 = vsel %vm442, %v4581, 0.0
      %v4609 = vadd.f32 %v4607, %v4608
      %v4610 = vsel %vm442, %v4582, 0.0
      %v4611 = vadd.f32 %v4609, %v4610
      %v4612 = vsel %vm442, %v4583, 0.0
      %v4613 = vadd.f32 %v4611, %v4612
      %v4614 = vsel %vm442, %v4584, 0.0
      %v4615 = vadd.f32 %v4613, %v4614
      %v4616 = vrot.slane %v4615, 4
      %v4617 = vadd.f32 %v4615, %v4616
      %v4618 = vrot.slane %v4617, 2
      %v4619 = vadd.f32 %v4617, %v4618
      %v4620 = vrot.slane %v4619, 1
      %v4621 = vadd.f32 %v4619, %v4620
      %4622 = vst.msk [vmem:[%s360] sm:$0x1] %vm4567, %v4621
      %s4623 = smul.u32 8, %s24
      %p4624 = scmp.lt.s32.totalorder %s23, 1
      %s4625 = scalar_select %p4624, %s23, 1
      %p4626 = scmp.lt.s32.totalorder %s4623, 15
      %s4627 = scalar_select %p4626, %s4623, 15
      %s4628 = smul.addr %s4627, 2
      %s4629 = smul.addr %s4625, 32
      %s4630 = sadd.s32 %s4628, %s4629
      %s4631 = smul.addr %s4630, 8
      %s4632 = scalar_lea.vmem %s5, %s4631
      %p4633 = scmp.lt.s32.totalorder %s23, 1
      %s4634 = scalar_select %p4633, %s23, 1
      %p4635 = scmp.lt.s32.totalorder %s24, 1
      %s4636 = scalar_select %p4635, %s24, 1
      %s4637 = smul.addr %s4634, 2
      %s4638 = sadd.s32 %s4636, %s4637
      %s4639 = scalar_lea.vmem %s6, %s4638
      %p4640 = scmp.lt.s32.totalorder %s23, 1
      %s4641 = scalar_select %p4640, %s23, 1
      %p4642 = scmp.lt.s32.totalorder %s24, 1
      %s4643 = scalar_select %p4642, %s24, 1
      %s4644 = smul.addr %s4641, 2
      %s4645 = sadd.s32 %s4643, %s4644
      %s4646 = scalar_lea.vmem %s7, %s4645
      // Predicated region
      $region41: #{upsample_forward.5} parent=39 // pred_check
        %p4647 = pneg %p166
      $region42: #{upsample_forward.5} parent=39 // pred_check_branch
        %4649 = sbr.rel (%p4647) target = $region44
      $region43: #{upsample_forward.5} parent=39 // pred_region
        %s4650 = smul.u32 8, %s24
      $region44: #{upsample_forward.5} parent=39 // pred_fallthru
        _
      // Predicated region
      $region45: #{upsample_forward.5} parent=39 // pred_check
        %p4651 = pneg %p194
      $region46: #{upsample_forward.5} parent=39 // pred_check_branch
        %4653 = sbr.rel (%p4651) target = $region48
      $region47: #{upsample_forward.5} parent=39 // pred_region
        _
      $region48: #{upsample_forward.5} parent=39 // pred_fallthru
        _
      // Predicated region
      $region49: #{upsample_forward.5} parent=39 // pred_check
        %p4654 = pneg %p222
      $region50: #{upsample_forward.5} parent=39 // pred_check_branch
        %4656 = sbr.rel (%p4654) target = $region52
      $region51: #{upsample_forward.5} parent=39 // pred_region
        _
      $region52: #{upsample_forward.5} parent=39 // pred_fallthru
        _
    $region40: #{upsample_forward.5} parent=5 // pred_fallthru
      _
    %p4657 = scmp.le.s32.totalorder 2, %s14
    // Predicated region
    $region53: #{upsample_forward.5} parent=5 // pred_check
      %p4658 = pneg %p4657
    $region54: #{upsample_forward.5} parent=5 // pred_check_branch
      %4660 = sbr.rel (%p4658) target = $region56
    $region55: #{upsample_forward.5} parent=5 // pred_region
      %s4661 = ssub.s32 %s14, 2
      // Predicated region
      $region57: #{upsample_forward.5} parent=55 // pred_check
        %p4662 = pneg %p172
      $region58: #{upsample_forward.5} parent=55 // pred_check_branch
        %4664 = sbr.rel (%p4662) target = $region60
      $region59: #{upsample_forward.5} parent=55 // pred_region
        %s4665 = smul.u32 8, %s26
        %p4666 = scmp.lt.s32.totalorder %s25, 1
        %s4667 = scalar_select %p4666, %s25, 1
        %p4668 = scmp.lt.s32.totalorder %s4665, 15
        %s4669 = scalar_select %p4668, %s4665, 15
        %s4670 = smul.addr %s4669, 2
        %s4671 = smul.addr %s4667, 32
        %s4672 = sadd.s32 %s4670, %s4671
        %s4673 = smul.addr %s4672, 8
        %s4674 = scalar_lea.vmem %s5, %s4673
      $region60: #{upsample_forward.5} parent=55 // pred_fallthru
        _
      // Predicated region
      $region61: #{upsample_forward.5} parent=55 // pred_check
        %p4675 = pneg %p200
      $region62: #{upsample_forward.5} parent=55 // pred_check_branch
        %4677 = sbr.rel (%p4675) target = $region64
      $region63: #{upsample_forward.5} parent=55 // pred_region
        %p4678 = scmp.lt.s32.totalorder %s25, 1
        %s4679 = scalar_select %p4678, %s25, 1
        %p4680 = scmp.lt.s32.totalorder %s26, 1
        %s4681 = scalar_select %p4680, %s26, 1
        %s4682 = smul.addr %s4679, 2
        %s4683 = sadd.s32 %s4681, %s4682
        %s4684 = scalar_lea.vmem %s6, %s4683
      $region64: #{upsample_forward.5} parent=55 // pred_fallthru
        _
      // Predicated region
      $region65: #{upsample_forward.5} parent=55 // pred_check
        %p4685 = pneg %p228
      $region66: #{upsample_forward.5} parent=55 // pred_check_branch
        %4687 = sbr.rel (%p4685) target = $region68
      $region67: #{upsample_forward.5} parent=55 // pred_region
        %p4688 = scmp.lt.s32.totalorder %s25, 1
        %s4689 = scalar_select %p4688, %s25, 1
        %p4690 = scmp.lt.s32.totalorder %s26, 1
        %s4691 = scalar_select %p4690, %s26, 1
        %s4692 = smul.addr %s4689, 2
        %s4693 = sadd.s32 %s4691, %s4692
        %s4694 = scalar_lea.vmem %s7, %s4693
      $region68: #{upsample_forward.5} parent=55 // pred_fallthru
        _
    $region56: #{upsample_forward.5} parent=5 // pred_fallthru
      _
  $region6: #{upsample_forward.5} parent=0 // loop_footer
    %s18 = sadd.s32 1, %s14
  $region7: #{upsample_forward.5} parent=0 // loop_footer_branch
    %13 = sbr.rel target = $region3
  $region8: #{upsample_forward.5} parent=0 // loop_exit
    _

</llo_original>
